<compile_context>
chip_gen: v7x
topology: tpu7x:2x2x1
jax: 0.10.0
libtpu: 0.0.40
codegen_flags: <defaults>
</compile_context>

<pallas_src>
import math

import numpy as np
import jax
import jax.numpy as jnp
from jax import lax
from jax.experimental import pallas as pl
from jax.experimental.pallas import tpu as pltpu

# ---- synthetic model hyper-parameters ---------------------------------------
IN_C = 4
CONV_CHANNELS = (8, 16)     # two ConvBlocks
H = W = 16                  # input spatial size
POOL_OUT = 5                # AdaptiveAvgPool2d((5, 5))
HIDDEN = 32
NUM_CLASSES = 10
KH = KW = 3
BN_EPS = 1e-5


def _im2col_taps(h, w):
    """Static (dest, src) crop ranges for the 9 taps of a 3x3, pad=1 conv."""
    taps = []
    for kh in range(KH):
        for kw in range(KW):
            dh0, dh1 = max(0, 1 - kh), min(h, h + 1 - kh)
            dw0, dw1 = max(0, 1 - kw), min(w, w + 1 - kw)
            sh0, sh1 = dh0 + kh - 1, dh1 + kh - 1
            sw0, sw1 = dw0 + kw - 1, dw1 + kw - 1
            taps.append(((dh0, dh1, dw0, dw1), (sh0, sh1, sw0, sw1)))
    return taps


# --------------------------- fused Pallas kernel ------------------------------
def fused_forward_kernel(
    x_ref,                        # (N, H, W, Cin)         NHWC input
    cw1_ref, t1_ref,              # conv1: (9*Cin, C1) [scale folded], (1, C1)
    cw2_ref, t2_ref,              # conv2: (9*C1, C2)  [scale folded], (1, C2)
    poolb_ref,                    # (N*25, N*H*W)          block-diag pool matrix
    w1bt_ref,                     # (N*25, C2*HIDDEN)      permuted Linear1 weight (tiled)
    rexp_ref,                     # (C2, C2*HIDDEN)        channel expand mask
    ssel_ref,                     # (N, N*25)              per-batch row-sum selector
    ssum_ref,                     # (C2*HIDDEN, HIDDEN)    channel collapse mask
    b1_ref,                       # (1, HIDDEN)
    w2h_ref,                      # (HIDDEN, NUM_CLASSES)
    b2_ref,                       # (1, NUM_CLASSES)
    o_ref,                        # (N, NUM_CLASSES)
    im1_ref, im2_ref, act_ref,    # VMEM scratch
):
    n, h, w, cin = x_ref.shape
    c1 = cw1_ref.shape[1]
    hw = h * w
    taps = _im2col_taps(h, w)

    def conv_bn_relu(src_ref, im_ref, w_ref, shift_ref, cin_l):
        # Assemble the im2col slab in VMEM (zero border == implicit pad=1),
        # then ONE matmul per conv layer: (N*HW, 9*Cin) @ (9*Cin, Cout).
        im_ref[...] = jnp.zeros_like(im_ref)
        for t, ((dh0, dh1, dw0, dw1), (sh0, sh1, sw0, sw1)) in enumerate(taps):
            im_ref[:, dh0:dh1, dw0:dw1, t * cin_l:(t + 1) * cin_l] = (
                src_ref[:, sh0:sh1, sw0:sw1, :])
        slab = im_ref[...].reshape(n * hw, KH * KW * cin_l)
        y = jnp.dot(slab, w_ref[...], preferred_element_type=jnp.float32)
        return jnp.maximum(y + shift_ref[...], 0.0)

    # ---- ConvBlock 1 ----
    y1 = conv_bn_relu(x_ref, im1_ref, cw1_ref, t1_ref, cin)        # (N*HW, C1)

    # ---- ConvBlock 2 ----
    act_ref[...] = y1.reshape(n, h, w, c1)
    y2 = conv_bn_relu(act_ref, im2_ref, cw2_ref, t2_ref, c1)       # (N*HW, C2)

    # ---- adaptive avg pool + flatten/Linear1 (folded) + ReLU + Linear2 -----
    # All batches at once:
    #   pooled[b*25+p, c]       = sum_hw P[p,hw] * y2[b*HW+hw, c]
    #   hcols[b, c*HID+k]       = sum_p pooled[b*25+p, c] * W1[k, c*25+p]
    #   hvec[b, k]              = relu(sum_c hcols[b, c*HID+k] + b1[k])
    pooled = jnp.dot(poolb_ref[...], y2,
                     preferred_element_type=jnp.float32)            # (N*25, C2)
    pooled_e = jnp.dot(pooled, rexp_ref[...],
                       preferred_element_type=jnp.float32)          # (N*25, C2*HID)
    hcols = jnp.dot(ssel_ref[...], pooled_e * w1bt_ref[...],
                    preferred_element_type=jnp.float32)             # (N, C2*HID)
    hvec = jnp.dot(hcols, ssum_ref[...],
                   preferred_element_type=jnp.float32) + b1_ref[...]  # (N, HID)
    hvec = jnp.maximum(hvec, 0.0)
    o_ref[...] = (jnp.dot(hvec, w2h_ref[...],
                          preferred_element_type=jnp.float32)
                  + b2_ref[...])                                    # (N, NCLS)


# ------------------------------- wrapper --------------------------------------
def forward(x_nchw, params):
    (cw1, t1, cw2, t2, pool_mat, w1b, rexp, ssum, b1, w2h, b2) = params
    x_nhwc = jnp.transpose(x_nchw, (0, 2, 3, 1)).astype(jnp.float32)  # NCHW -> NHWC
    n = x_nhwc.shape[0]
    p2 = POOL_OUT * POOL_OUT

    # batch-size-dependent constant matrices (tiny; built once per jit trace)
    eye_n = jnp.eye(n, dtype=jnp.float32)
    pool_blk = jnp.kron(eye_n, pool_mat)                              # (n*25, n*HW)
    w1b_t = jnp.tile(w1b, (n, 1))                                     # (n*25, C2*HID)
    ssel = jnp.kron(eye_n, jnp.ones((1, p2), jnp.float32))            # (n, n*25)

    kernel_args = (x_nhwc, cw1, t1, cw2, t2,
                   pool_blk, w1b_t, rexp, ssel, ssum, b1, w2h, b2)
    vmem = pltpu.MemorySpace.VMEM
    return pl.pallas_call(
        fused_forward_kernel,
        out_shape=jax.ShapeDtypeStruct((n, NUM_CLASSES), jnp.float32),
        in_specs=[pl.BlockSpec(memory_space=vmem) for _ in kernel_args],
        out_specs=pl.BlockSpec(memory_space=vmem),
        scratch_shapes=[
            pltpu.VMEM((n, H, W, KH * KW * IN_C), jnp.float32),              # im2col 1
            pltpu.VMEM((n, H, W, KH * KW * CONV_CHANNELS[0]), jnp.float32),  # im2col 2
            pltpu.VMEM((n, H, W, CONV_CHANNELS[0]), jnp.float32),            # act buffer
        ],
    )(*kernel_args)


# ---------------------- parameter init (deterministic) ------------------------
def init_params(key):
    torch_params = {}
    packed_convs = []
    cin = IN_C
    for idx, cout in enumerate(CONV_CHANNELS):
        k = jax.random.fold_in(key, idx)
        fan_out = cout * KH * KW                       # kaiming_normal_, fan_out, relu
        std = math.sqrt(2.0 / fan_out)
        w_oihw = jax.random.normal(k, (cout, cin, KH, KW), jnp.float32) * std
        bias = jnp.zeros((cout,), jnp.float32)
        gamma = jnp.ones((cout,), jnp.float32)
        beta = jnp.zeros((cout,), jnp.float32)
        rmean = jnp.zeros((cout,), jnp.float32)
        rvar = jnp.ones((cout,), jnp.float32)
        scale = gamma / jnp.sqrt(rvar + BN_EPS)
        shift = beta + (bias - rmean) * scale
        # OIHW -> (KH, KW, Cin, Cout) -> (9*Cin, Cout); K order = (kh, kw, cin)
        w_mat = jnp.transpose(w_oihw, (2, 3, 1, 0)).reshape(KH * KW * cin, cout)
        w_mat = w_mat * scale[None, :]                 # fold BN scale into weights
        packed_convs.append((w_mat, shift.reshape(1, cout)))
        torch_params[f"conv{idx}"] = (w_oihw, scale, shift)
        cin = cout

    c2 = CONV_CHANNELS[-1]
    feat = c2 * POOL_OUT * POOL_OUT
    k1 = jax.random.fold_in(key, 100)
    k2 = jax.random.fold_in(key, 101)
    w1 = jax.random.normal(k1, (HIDDEN, feat), jnp.float32) * 0.01     # N(0, 0.01)
    b1 = jnp.zeros((HIDDEN,), jnp.float32)
    w2 = jax.random.normal(k2, (NUM_CLASSES, HIDDEN), jnp.float32) * 0.01
    b2 = jnp.zeros((NUM_CLASSES,), jnp.float32)
    torch_params["head"] = (w1, b1, w2, b2)

    # precomputed pooling matrix (PyTorch AdaptiveAvgPool2d window formula)
    P = np.zeros((POOL_OUT * POOL_OUT, H * W), np.float32)
    for ph in range(POOL_OUT):
        i0, i1 = (ph * H) // POOL_OUT, math.ceil((ph + 1) * H / POOL_OUT)
        for pw in range(POOL_OUT):
            j0, j1 = (pw * W) // POOL_OUT, math.ceil((pw + 1) * W / POOL_OUT)
            val = 1.0 / ((i1 - i0) * (j1 - j0))
            for i in range(i0, i1):
                for j in range(j0, j1):
                    P[ph * POOL_OUT + pw, i * W + j] = val
    pool_mat = jnp.asarray(P)

    # fold torch's (C,5,5) flatten + Linear1 into constants acting on the
    # (25, C2) pooled slab (no in-kernel transpose / lane-merging reshape):
    #   w1b[p, c*HIDDEN+k] = W1[k, c*25+p]
    w1b = jnp.transpose(w1.reshape(HIDDEN, c2, POOL_OUT * POOL_OUT),
                        (2, 1, 0)).reshape(POOL_OUT * POOL_OUT, c2 * HIDDEN)
    rexp = jnp.repeat(jnp.eye(c2, dtype=jnp.float32), HIDDEN, axis=1)  # (C2, C2*HID)
    ssum = jnp.tile(jnp.eye(HIDDEN, dtype=jnp.float32), (c2, 1))       # (C2*HID, HID)

    packed = (packed_convs[0][0], packed_convs[0][1],
              packed_convs[1][0], packed_convs[1][1],
              pool_mat, w1b, rexp, ssum,
              b1.reshape(1, HIDDEN), w2.T, b2.reshape(1, NUM_CLASSES))
    return packed, torch_params


# --------------------- pure-JAX reference (NCHW, like torch) ------------------
def reference_forward(x_nchw, torch_params):
    x = x_nchw.astype(jnp.float32)
    for idx in range(len(CONV_CHANNELS)):
        w_oihw, scale, shift = torch_params[f"conv{idx}"]
        x = lax.conv_general_dilated(x, w_oihw, (1, 1), ((1, 1), (1, 1)),
                                     dimension_numbers=("NCHW", "OIHW", "NCHW"))
        x = x * scale.reshape(1, -1, 1, 1) + shift.reshape(1, -1, 1, 1)
        x = jnp.maximum(x, 0.0)
    rows = []
    for ph in range(POOL_OUT):
        i0, i1 = (ph * H) // POOL_OUT, math.ceil((ph + 1) * H / POOL_OUT)
        cols = []
        for pw in range(POOL_OUT):
            j0, j1 = (pw * W) // POOL_OUT, math.ceil((pw + 1) * W / POOL_OUT)
            cols.append(jnp.mean(x[:, :, i0:i1, j0:j1], axis=(2, 3)))
        rows.append(jnp.stack(cols, axis=-1))
    pooled = jnp.stack(rows, axis=-2)                  # (N, C, 5, 5)
    flat = pooled.reshape(x.shape[0], -1)
    w1, b1, w2, b2 = torch_params["head"]
    hvec = jnp.maximum(flat @ w1.T + b1, 0.0)
    return hvec @ w2.T + b2


if __name__ == "__main__":
    key = jax.random.PRNGKey(0)
    params, torch_params = init_params(jax.random.fold_in(key, 1))
    x = jax.random.normal(jax.random.fold_in(key, 2), (2, IN_C, H, W), jnp.float32)

    out = jax.block_until_ready(jax.jit(forward)(x, params))

    assert out.shape == (2, NUM_CLASSES), out.shape
    assert bool(jnp.all(jnp.isfinite(out)))

    ref = reference_forward(x, torch_params)
    max_diff = float(jnp.max(jnp.abs(out - ref)))
    assert bool(jnp.allclose(out, ref, rtol=2e-2, atol=2e-3)), max_diff

    print("KERNEL_OK")
</pallas_src>

<mosaic_0001>
module attributes {stable_mosaic.version = 11 : i64} {
  func.func @fused_forward_kernel(%arg0: memref<2x16x16x4xf32, #tpu.memory_space<vmem>>, %arg1: memref<36x8xf32, #tpu.memory_space<vmem>>, %arg2: memref<1x8xf32, #tpu.memory_space<vmem>>, %arg3: memref<72x16xf32, #tpu.memory_space<vmem>>, %arg4: memref<1x16xf32, #tpu.memory_space<vmem>>, %arg5: memref<50x512xf32, #tpu.memory_space<vmem>>, %arg6: memref<50x512xf32, #tpu.memory_space<vmem>>, %arg7: memref<16x512xf32, #tpu.memory_space<vmem>>, %arg8: memref<2x50xf32, #tpu.memory_space<vmem>>, %arg9: memref<512x32xf32, #tpu.memory_space<vmem>>, %arg10: memref<1x32xf32, #tpu.memory_space<vmem>>, %arg11: memref<32x10xf32, #tpu.memory_space<vmem>>, %arg12: memref<1x10xf32, #tpu.memory_space<vmem>>, %arg13: memref<2x10xf32, #tpu.memory_space<vmem>>, %arg14: memref<2x16x16x36xf32, #tpu.memory_space<vmem>>, %arg15: memref<2x16x16x72xf32, #tpu.memory_space<vmem>>, %arg16: memref<2x16x16x8xf32, #tpu.memory_space<vmem>>) attributes {dimension_semantics = [], scalar_prefetch = 0 : i64, scratch_operands = 3 : i64, tpu.core_type = #tpu.core_type<tc>} {
    %cst = arith.constant 0.000000e+00 : f32
    %0 = vector.broadcast %cst : f32 to vector<2x16x16x36xf32>
    %c0 = arith.constant 0 : index
    %c0_0 = arith.constant 0 : index
    %c0_1 = arith.constant 0 : index
    %c0_2 = arith.constant 0 : index
    %1 = vector.load %arg14[%c0, %c0_0, %c0_1, %c0_2] : memref<2x16x16x36xf32, #tpu.memory_space<vmem>>, vector<2x16x16x36xf32>
    tpu.vector_store %arg14[%c0, %c0_0, %c0_1, %c0_2], %0 {strides = array<i32>} : memref<2x16x16x36xf32, #tpu.memory_space<vmem>>, vector<2x16x16x36xf32>,
    %c0_3 = arith.constant 0 : index
    %c0_4 = arith.constant 0 : index
    %c0_5 = arith.constant 0 : index
    %c0_6 = arith.constant 0 : index
    %2 = vector.load %arg0[%c0_3, %c0_4, %c0_5, %c0_6] : memref<2x16x16x4xf32, #tpu.memory_space<vmem>>, vector<2x15x15x4xf32>
    %c0_7 = arith.constant 0 : index
    %c1 = arith.constant 1 : index
    %c1_8 = arith.constant 1 : index
    %c0_9 = arith.constant 0 : index
    %3 = vector.load %arg14[%c0_7, %c1, %c1_8, %c0_9] : memref<2x16x16x36xf32, #tpu.memory_space<vmem>>, vector<2x15x15x4xf32>
    tpu.vector_store %arg14[%c0_7, %c1, %c1_8, %c0_9], %2 {strides = array<i32>} : memref<2x16x16x36xf32, #tpu.memory_space<vmem>>, vector<2x15x15x4xf32>,
    %c0_10 = arith.constant 0 : index
    %c0_11 = arith.constant 0 : index
    %c0_12 = arith.constant 0 : index
    %c0_13 = arith.constant 0 : index
    %4 = vector.load %arg0[%c0_10, %c0_11, %c0_12, %c0_13] : memref<2x16x16x4xf32, #tpu.memory_space<vmem>>, vector<2x15x16x4xf32>
    %c0_14 = arith.constant 0 : index
    %c1_15 = arith.constant 1 : index
    %c0_16 = arith.constant 0 : index
    %c4 = arith.constant 4 : index
    %5 = vector.load %arg14[%c0_14, %c1_15, %c0_16, %c4] : memref<2x16x16x36xf32, #tpu.memory_space<vmem>>, vector<2x15x16x4xf32>
    tpu.vector_store %arg14[%c0_14, %c1_15, %c0_16, %c4], %4 {strides = array<i32>} : memref<2x16x16x36xf32, #tpu.memory_space<vmem>>, vector<2x15x16x4xf32>,
    %c0_17 = arith.constant 0 : index
    %c0_18 = arith.constant 0 : index
    %c1_19 = arith.constant 1 : index
    %c0_20 = arith.constant 0 : index
    %6 = vector.load %arg0[%c0_17, %c0_18, %c1_19, %c0_20] : memref<2x16x16x4xf32, #tpu.memory_space<vmem>>, vector<2x15x15x4xf32>
    %c0_21 = arith.constant 0 : index
    %c1_22 = arith.constant 1 : index
    %c0_23 = arith.constant 0 : index
    %c8 = arith.constant 8 : index
    %7 = vector.load %arg14[%c0_21, %c1_22, %c0_23, %c8] : memref<2x16x16x36xf32, #tpu.memory_space<vmem>>, vector<2x15x15x4xf32>
    tpu.vector_store %arg14[%c0_21, %c1_22, %c0_23, %c8], %6 {strides = array<i32>} : memref<2x16x16x36xf32, #tpu.memory_space<vmem>>, vector<2x15x15x4xf32>,
    %c0_24 = arith.constant 0 : index
    %c0_25 = arith.constant 0 : index
    %c0_26 = arith.constant 0 : index
    %c0_27 = arith.constant 0 : index
    %8 = vector.load %arg0[%c0_24, %c0_25, %c0_26, %c0_27] : memref<2x16x16x4xf32, #tpu.memory_space<vmem>>, vector<2x16x15x4xf32>
    %c0_28 = arith.constant 0 : index
    %c0_29 = arith.constant 0 : index
    %c1_30 = arith.constant 1 : index
    %c12 = arith.constant 12 : index
    %9 = vector.load %arg14[%c0_28, %c0_29, %c1_30, %c12] : memref<2x16x16x36xf32, #tpu.memory_space<vmem>>, vector<2x16x15x4xf32>
    tpu.vector_store %arg14[%c0_28, %c0_29, %c1_30, %c12], %8 {strides = array<i32>} : memref<2x16x16x36xf32, #tpu.memory_space<vmem>>, vector<2x16x15x4xf32>,
    %c0_31 = arith.constant 0 : index
    %c0_32 = arith.constant 0 : index
    %c0_33 = arith.constant 0 : index
    %c0_34 = arith.constant 0 : index
    %10 = vector.load %arg0[%c0_31, %c0_32, %c0_33, %c0_34] : memref<2x16x16x4xf32, #tpu.memory_space<vmem>>, vector<2x16x16x4xf32>
    %c0_35 = arith.constant 0 : index
    %c0_36 = arith.constant 0 : index
    %c0_37 = arith.constant 0 : index
    %c16 = arith.constant 16 : index
    %11 = vector.load %arg14[%c0_35, %c0_36, %c0_37, %c16] : memref<2x16x16x36xf32, #tpu.memory_space<vmem>>, vector<2x16x16x4xf32>
    tpu.vector_store %arg14[%c0_35, %c0_36, %c0_37, %c16], %10 {strides = array<i32>} : memref<2x16x16x36xf32, #tpu.memory_space<vmem>>, vector<2x16x16x4xf32>,
    %c0_38 = arith.constant 0 : index
    %c0_39 = arith.constant 0 : index
    %c1_40 = arith.constant 1 : index
    %c0_41 = arith.constant 0 : index
    %12 = vector.load %arg0[%c0_38, %c0_39, %c1_40, %c0_41] : memref<2x16x16x4xf32, #tpu.memory_space<vmem>>, vector<2x16x15x4xf32>
    %c0_42 = arith.constant 0 : index
    %c0_43 = arith.constant 0 : index
    %c0_44 = arith.constant 0 : index
    %c20 = arith.constant 20 : index
    %13 = vector.load %arg14[%c0_42, %c0_43, %c0_44, %c20] : memref<2x16x16x36xf32, #tpu.memory_space<vmem>>, vector<2x16x15x4xf32>
    tpu.vector_store %arg14[%c0_42, %c0_43, %c0_44, %c20], %12 {strides = array<i32>} : memref<2x16x16x36xf32, #tpu.memory_space<vmem>>, vector<2x16x15x4xf32>,
    %c0_45 = arith.constant 0 : index
    %c1_46 = arith.constant 1 : index
    %c0_47 = arith.constant 0 : index
    %c0_48 = arith.constant 0 : index
    %14 = vector.load %arg0[%c0_45, %c1_46, %c0_47, %c0_48] : memref<2x16x16x4xf32, #tpu.memory_space<vmem>>, vector<2x15x15x4xf32>
    %c0_49 = arith.constant 0 : index
    %c0_50 = arith.constant 0 : index
    %c1_51 = arith.constant 1 : index
    %c24 = arith.constant 24 : index
    %15 = vector.load %arg14[%c0_49, %c0_50, %c1_51, %c24] : memref<2x16x16x36xf32, #tpu.memory_space<vmem>>, vector<2x15x15x4xf32>
    tpu.vector_store %arg14[%c0_49, %c0_50, %c1_51, %c24], %14 {strides = array<i32>} : memref<2x16x16x36xf32, #tpu.memory_space<vmem>>, vector<2x15x15x4xf32>,
    %c0_52 = arith.constant 0 : index
    %c1_53 = arith.constant 1 : index
    %c0_54 = arith.constant 0 : index
    %c0_55 = arith.constant 0 : index
    %16 = vector.load %arg0[%c0_52, %c1_53, %c0_54, %c0_55] : memref<2x16x16x4xf32, #tpu.memory_space<vmem>>, vector<2x15x16x4xf32>
    %c0_56 = arith.constant 0 : index
    %c0_57 = arith.constant 0 : index
    %c0_58 = arith.constant 0 : index
    %c28 = arith.constant 28 : index
    %17 = vector.load %arg14[%c0_56, %c0_57, %c0_58, %c28] : memref<2x16x16x36xf32, #tpu.memory_space<vmem>>, vector<2x15x16x4xf32>
    tpu.vector_store %arg14[%c0_56, %c0_57, %c0_58, %c28], %16 {strides = array<i32>} : memref<2x16x16x36xf32, #tpu.memory_space<vmem>>, vector<2x15x16x4xf32>,
    %c0_59 = arith.constant 0 : index
    %c1_60 = arith.constant 1 : index
    %c1_61 = arith.constant 1 : index
    %c0_62 = arith.constant 0 : index
    %18 = vector.load %arg0[%c0_59, %c1_60, %c1_61, %c0_62] : memref<2x16x16x4xf32, #tpu.memory_space<vmem>>, vector<2x15x15x4xf32>
    %c0_63 = arith.constant 0 : index
    %c0_64 = arith.constant 0 : index
    %c0_65 = arith.constant 0 : index
    %c32 = arith.constant 32 : index
    %19 = vector.load %arg14[%c0_63, %c0_64, %c0_65, %c32] : memref<2x16x16x36xf32, #tpu.memory_space<vmem>>, vector<2x15x15x4xf32>
    tpu.vector_store %arg14[%c0_63, %c0_64, %c0_65, %c32], %18 {strides = array<i32>} : memref<2x16x16x36xf32, #tpu.memory_space<vmem>>, vector<2x15x15x4xf32>,
    %c0_66 = arith.constant 0 : index
    %c0_67 = arith.constant 0 : index
    %c0_68 = arith.constant 0 : index
    %c0_69 = arith.constant 0 : index
    %20 = vector.load %arg14[%c0_66, %c0_67, %c0_68, %c0_69] : memref<2x16x16x36xf32, #tpu.memory_space<vmem>>, vector<2x16x16x36xf32>
    %21 = vector.shape_cast %20 : vector<2x16x16x36xf32> to vector<512x36xf32>
    %c0_70 = arith.constant 0 : index
    %c0_71 = arith.constant 0 : index
    %22 = vector.load %arg1[%c0_70, %c0_71] : memref<36x8xf32, #tpu.memory_space<vmem>>, vector<36x8xf32>
    %cst_72 = arith.constant dense<0.000000e+00> : vector<512x8xf32>
    %23 = tpu.matmul %21, %22, %cst_72 {dimension_numbers = #tpu.dot_dimension_numbers<[1], [0], [0], [1], [0, 0, 1, 1], [], []>} : vector<512x36xf32>, vector<36x8xf32>, vector<512x8xf32> -> vector<512x8xf32>
    %c0_73 = arith.constant 0 : index
    %c0_74 = arith.constant 0 : index
    %24 = vector.load %arg2[%c0_73, %c0_74] : memref<1x8xf32, #tpu.memory_space<vmem>>, vector<1x8xf32>
    %25 = vector.broadcast %24 : vector<1x8xf32> to vector<512x8xf32>
    %26 = arith.addf %23, %25 : vector<512x8xf32>
    %cst_75 = arith.constant 0.000000e+00 : f32
    %27 = vector.broadcast %cst_75 : f32 to vector<512x8xf32>
    %28 = arith.maximumf %26, %27 : vector<512x8xf32>
    %29 = vector.shape_cast %28 : vector<512x8xf32> to vector<2x16x16x8xf32>
    %c0_76 = arith.constant 0 : index
    %c0_77 = arith.constant 0 : index
    %c0_78 = arith.constant 0 : index
    %c0_79 = arith.constant 0 : index
    %30 = vector.load %arg16[%c0_76, %c0_77, %c0_78, %c0_79] : memref<2x16x16x8xf32, #tpu.memory_space<vmem>>, vector<2x16x16x8xf32>
    tpu.vector_store %arg16[%c0_76, %c0_77, %c0_78, %c0_79], %29 {strides = array<i32>} : memref<2x16x16x8xf32, #tpu.memory_space<vmem>>, vector<2x16x16x8xf32>,
    %cst_80 = arith.constant 0.000000e+00 : f32
    %31 = vector.broadcast %cst_80 : f32 to vector<2x16x16x72xf32>
    %c0_81 = arith.constant 0 : index
    %c0_82 = arith.constant 0 : index
    %c0_83 = arith.constant 0 : index
    %c0_84 = arith.constant 0 : index
    %32 = vector.load %arg15[%c0_81, %c0_82, %c0_83, %c0_84] : memref<2x16x16x72xf32, #tpu.memory_space<vmem>>, vector<2x16x16x72xf32>
    tpu.vector_store %arg15[%c0_81, %c0_82, %c0_83, %c0_84], %31 {strides = array<i32>} : memref<2x16x16x72xf32, #tpu.memory_space<vmem>>, vector<2x16x16x72xf32>,
    %c0_85 = arith.constant 0 : index
    %c0_86 = arith.constant 0 : index
    %c0_87 = arith.constant 0 : index
    %c0_88 = arith.constant 0 : index
    %33 = vector.load %arg16[%c0_85, %c0_86, %c0_87, %c0_88] : memref<2x16x16x8xf32, #tpu.memory_space<vmem>>, vector<2x15x15x8xf32>
    %c0_89 = arith.constant 0 : index
    %c1_90 = arith.constant 1 : index
    %c1_91 = arith.constant 1 : index
    %c0_92 = arith.constant 0 : index
    %34 = vector.load %arg15[%c0_89, %c1_90, %c1_91, %c0_92] : memref<2x16x16x72xf32, #tpu.memory_space<vmem>>, vector<2x15x15x8xf32>
    tpu.vector_store %arg15[%c0_89, %c1_90, %c1_91, %c0_92], %33 {strides = array<i32>} : memref<2x16x16x72xf32, #tpu.memory_space<vmem>>, vector<2x15x15x8xf32>,
    %c0_93 = arith.constant 0 : index
    %c0_94 = arith.constant 0 : index
    %c0_95 = arith.constant 0 : index
    %c0_96 = arith.constant 0 : index
    %35 = vector.load %arg16[%c0_93, %c0_94, %c0_95, %c0_96] : memref<2x16x16x8xf32, #tpu.memory_space<vmem>>, vector<2x15x16x8xf32>
    %c0_97 = arith.constant 0 : index
    %c1_98 = arith.constant 1 : index
    %c0_99 = arith.constant 0 : index
    %c8_100 = arith.constant 8 : index
    %36 = vector.load %arg15[%c0_97, %c1_98, %c0_99, %c8_100] : memref<2x16x16x72xf32, #tpu.memory_space<vmem>>, vector<2x15x16x8xf32>
    tpu.vector_store %arg15[%c0_97, %c1_98, %c0_99, %c8_100], %35 {strides = array<i32>} : memref<2x16x16x72xf32, #tpu.memory_space<vmem>>, vector<2x15x16x8xf32>,
    %c0_101 = arith.constant 0 : index
    %c0_102 = arith.constant 0 : index
    %c1_103 = arith.constant 1 : index
    %c0_104 = arith.constant 0 : index
    %37 = vector.load %arg16[%c0_101, %c0_102, %c1_103, %c0_104] : memref<2x16x16x8xf32, #tpu.memory_space<vmem>>, vector<2x15x15x8xf32>
    %c0_105 = arith.constant 0 : index
    %c1_106 = arith.constant 1 : index
    %c0_107 = arith.constant 0 : index
    %c16_108 = arith.constant 16 : index
    %38 = vector.load %arg15[%c0_105, %c1_106, %c0_107, %c16_108] : memref<2x16x16x72xf32, #tpu.memory_space<vmem>>, vector<2x15x15x8xf32>
    tpu.vector_store %arg15[%c0_105, %c1_106, %c0_107, %c16_108], %37 {strides = array<i32>} : memref<2x16x16x72xf32, #tpu.memory_space<vmem>>, vector<2x15x15x8xf32>,
    %c0_109 = arith.constant 0 : index
    %c0_110 = arith.constant 0 : index
    %c0_111 = arith.constant 0 : index
    %c0_112 = arith.constant 0 : index
    %39 = vector.load %arg16[%c0_109, %c0_110, %c0_111, %c0_112] : memref<2x16x16x8xf32, #tpu.memory_space<vmem>>, vector<2x16x15x8xf32>
    %c0_113 = arith.constant 0 : index
    %c0_114 = arith.constant 0 : index
    %c1_115 = arith.constant 1 : index
    %c24_116 = arith.constant 24 : index
    %40 = vector.load %arg15[%c0_113, %c0_114, %c1_115, %c24_116] : memref<2x16x16x72xf32, #tpu.memory_space<vmem>>, vector<2x16x15x8xf32>
    tpu.vector_store %arg15[%c0_113, %c0_114, %c1_115, %c24_116], %39 {strides = array<i32>} : memref<2x16x16x72xf32, #tpu.memory_space<vmem>>, vector<2x16x15x8xf32>,
    %c0_117 = arith.constant 0 : index
    %c0_118 = arith.constant 0 : index
    %c0_119 = arith.constant 0 : index
    %c0_120 = arith.constant 0 : index
    %41 = vector.load %arg16[%c0_117, %c0_118, %c0_119, %c0_120] : memref<2x16x16x8xf32, #tpu.memory_space<vmem>>, vector<2x16x16x8xf32>
    %c0_121 = arith.constant 0 : index
    %c0_122 = arith.constant 0 : index
    %c0_123 = arith.constant 0 : index
    %c32_124 = arith.constant 32 : index
    %42 = vector.load %arg15[%c0_121, %c0_122, %c0_123, %c32_124] : memref<2x16x16x72xf32, #tpu.memory_space<vmem>>, vector<2x16x16x8xf32>
    tpu.vector_store %arg15[%c0_121, %c0_122, %c0_123, %c32_124], %41 {strides = array<i32>} : memref<2x16x16x72xf32, #tpu.memory_space<vmem>>, vector<2x16x16x8xf32>,
    %c0_125 = arith.constant 0 : index
    %c0_126 = arith.constant 0 : index
    %c1_127 = arith.constant 1 : index
    %c0_128 = arith.constant 0 : index
    %43 = vector.load %arg16[%c0_125, %c0_126, %c1_127, %c0_128] : memref<2x16x16x8xf32, #tpu.memory_space<vmem>>, vector<2x16x15x8xf32>
    %c0_129 = arith.constant 0 : index
    %c0_130 = arith.constant 0 : index
    %c0_131 = arith.constant 0 : index
    %c40 = arith.constant 40 : index
    %44 = vector.load %arg15[%c0_129, %c0_130, %c0_131, %c40] : memref<2x16x16x72xf32, #tpu.memory_space<vmem>>, vector<2x16x15x8xf32>
    tpu.vector_store %arg15[%c0_129, %c0_130, %c0_131, %c40], %43 {strides = array<i32>} : memref<2x16x16x72xf32, #tpu.memory_space<vmem>>, vector<2x16x15x8xf32>,
    %c0_132 = arith.constant 0 : index
    %c1_133 = arith.constant 1 : index
    %c0_134 = arith.constant 0 : index
    %c0_135 = arith.constant 0 : index
    %45 = vector.load %arg16[%c0_132, %c1_133, %c0_134, %c0_135] : memref<2x16x16x8xf32, #tpu.memory_space<vmem>>, vector<2x15x15x8xf32>
    %c0_136 = arith.constant 0 : index
    %c0_137 = arith.constant 0 : index
    %c1_138 = arith.constant 1 : index
    %c48 = arith.constant 48 : index
    %46 = vector.load %arg15[%c0_136, %c0_137, %c1_138, %c48] : memref<2x16x16x72xf32, #tpu.memory_space<vmem>>, vector<2x15x15x8xf32>
    tpu.vector_store %arg15[%c0_136, %c0_137, %c1_138, %c48], %45 {strides = array<i32>} : memref<2x16x16x72xf32, #tpu.memory_space<vmem>>, vector<2x15x15x8xf32>,
    %c0_139 = arith.constant 0 : index
    %c1_140 = arith.constant 1 : index
    %c0_141 = arith.constant 0 : index
    %c0_142 = arith.constant 0 : index
    %47 = vector.load %arg16[%c0_139, %c1_140, %c0_141, %c0_142] : memref<2x16x16x8xf32, #tpu.memory_space<vmem>>, vector<2x15x16x8xf32>
    %c0_143 = arith.constant 0 : index
    %c0_144 = arith.constant 0 : index
    %c0_145 = arith.constant 0 : index
    %c56 = arith.constant 56 : index
    %48 = vector.load %arg15[%c0_143, %c0_144, %c0_145, %c56] : memref<2x16x16x72xf32, #tpu.memory_space<vmem>>, vector<2x15x16x8xf32>
    tpu.vector_store %arg15[%c0_143, %c0_144, %c0_145, %c56], %47 {strides = array<i32>} : memref<2x16x16x72xf32, #tpu.memory_space<vmem>>, vector<2x15x16x8xf32>,
    %c0_146 = arith.constant 0 : index
    %c1_147 = arith.constant 1 : index
    %c1_148 = arith.constant 1 : index
    %c0_149 = arith.constant 0 : index
    %49 = vector.load %arg16[%c0_146, %c1_147, %c1_148, %c0_149] : memref<2x16x16x8xf32, #tpu.memory_space<vmem>>, vector<2x15x15x8xf32>
    %c0_150 = arith.constant 0 : index
    %c0_151 = arith.constant 0 : index
    %c0_152 = arith.constant 0 : index
    %c64 = arith.constant 64 : index
    %50 = vector.load %arg15[%c0_150, %c0_151, %c0_152, %c64] : memref<2x16x16x72xf32, #tpu.memory_space<vmem>>, vector<2x15x15x8xf32>
    tpu.vector_store %arg15[%c0_150, %c0_151, %c0_152, %c64], %49 {strides = array<i32>} : memref<2x16x16x72xf32, #tpu.memory_space<vmem>>, vector<2x15x15x8xf32>,
    %c0_153 = arith.constant 0 : index
    %c0_154 = arith.constant 0 : index
    %c0_155 = arith.constant 0 : index
    %c0_156 = arith.constant 0 : index
    %51 = vector.load %arg15[%c0_153, %c0_154, %c0_155, %c0_156] : memref<2x16x16x72xf32, #tpu.memory_space<vmem>>, vector<2x16x16x72xf32>
    %52 = vector.shape_cast %51 : vector<2x16x16x72xf32> to vector<512x72xf32>
    %c0_157 = arith.constant 0 : index
    %c0_158 = arith.constant 0 : index
    %53 = vector.load %arg3[%c0_157, %c0_158] : memref<72x16xf32, #tpu.memory_space<vmem>>, vector<72x16xf32>
    %cst_159 = arith.constant dense<0.000000e+00> : vector<512x16xf32>
    %54 = tpu.matmul %52, %53, %cst_159 {dimension_numbers = #tpu.dot_dimension_numbers<[1], [0], [0], [1], [0, 0, 1, 1], [], []>} : vector<512x72xf32>, vector<72x16xf32>, vector<512x16xf32> -> vector<512x16xf32>
    %c0_160 = arith.constant 0 : index
    %c0_161 = arith.constant 0 : index
    %55 = vector.load %arg4[%c0_160, %c0_161] : memref<1x16xf32, #tpu.memory_space<vmem>>, vector<1x16xf32>
    %56 = vector.broadcast %55 : vector<1x16xf32> to vector<512x16xf32>
    %57 = arith.addf %54, %56 : vector<512x16xf32>
    %cst_162 = arith.constant 0.000000e+00 : f32
    %58 = vector.broadcast %cst_162 : f32 to vector<512x16xf32>
    %59 = arith.maximumf %57, %58 : vector<512x16xf32>
    %c0_163 = arith.constant 0 : index
    %c0_164 = arith.constant 0 : index
    %60 = vector.load %arg5[%c0_163, %c0_164] : memref<50x512xf32, #tpu.memory_space<vmem>>, vector<50x512xf32>
    %cst_165 = arith.constant dense<0.000000e+00> : vector<50x16xf32>
    %61 = tpu.matmul %60, %59, %cst_165 {dimension_numbers = #tpu.dot_dimension_numbers<[1], [0], [0], [1], [0, 0, 1, 1], [], []>} : vector<50x512xf32>, vector<512x16xf32>, vector<50x16xf32> -> vector<50x16xf32>
    %c0_166 = arith.constant 0 : index
    %c0_167 = arith.constant 0 : index
    %62 = vector.load %arg7[%c0_166, %c0_167] : memref<16x512xf32, #tpu.memory_space<vmem>>, vector<16x512xf32>
    %cst_168 = arith.constant dense<0.000000e+00> : vector<50x512xf32>
    %63 = tpu.matmul %61, %62, %cst_168 {dimension_numbers = #tpu.dot_dimension_numbers<[1], [0], [0], [1], [0, 0, 1, 1], [], []>} : vector<50x16xf32>, vector<16x512xf32>, vector<50x512xf32> -> vector<50x512xf32>
    %c0_169 = arith.constant 0 : index
    %c0_170 = arith.constant 0 : index
    %64 = vector.load %arg8[%c0_169, %c0_170] : memref<2x50xf32, #tpu.memory_space<vmem>>, vector<2x50xf32>
    %c0_171 = arith.constant 0 : index
    %c0_172 = arith.constant 0 : index
    %65 = vector.load %arg6[%c0_171, %c0_172] : memref<50x512xf32, #tpu.memory_space<vmem>>, vector<50x512xf32>
    %66 = arith.mulf %63, %65 : vector<50x512xf32>
    %cst_173 = arith.constant dense<0.000000e+00> : vector<2x512xf32>
    %67 = tpu.matmul %64, %66, %cst_173 {dimension_numbers = #tpu.dot_dimension_numbers<[1], [0], [0], [1], [0, 0, 1, 1], [], []>} : vector<2x50xf32>, vector<50x512xf32>, vector<2x512xf32> -> vector<2x512xf32>
    %c0_174 = arith.constant 0 : index
    %c0_175 = arith.constant 0 : index
    %68 = vector.load %arg9[%c0_174, %c0_175] : memref<512x32xf32, #tpu.memory_space<vmem>>, vector<512x32xf32>
    %cst_176 = arith.constant dense<0.000000e+00> : vector<2x32xf32>
    %69 = tpu.matmul %67, %68, %cst_176 {dimension_numbers = #tpu.dot_dimension_numbers<[1], [0], [0], [1], [0, 0, 1, 1], [], []>} : vector<2x512xf32>, vector<512x32xf32>, vector<2x32xf32> -> vector<2x32xf32>
    %c0_177 = arith.constant 0 : index
    %c0_178 = arith.constant 0 : index
    %70 = vector.load %arg10[%c0_177, %c0_178] : memref<1x32xf32, #tpu.memory_space<vmem>>, vector<1x32xf32>
    %71 = vector.broadcast %70 : vector<1x32xf32> to vector<2x32xf32>
    %72 = arith.addf %69, %71 : vector<2x32xf32>
    %cst_179 = arith.constant 0.000000e+00 : f32
    %73 = vector.broadcast %cst_179 : f32 to vector<2x32xf32>
    %74 = arith.maximumf %72, %73 : vector<2x32xf32>
    %c0_180 = arith.constant 0 : index
    %c0_181 = arith.constant 0 : index
    %75 = vector.load %arg11[%c0_180, %c0_181] : memref<32x10xf32, #tpu.memory_space<vmem>>, vector<32x10xf32>
    %cst_182 = arith.constant dense<0.000000e+00> : vector<2x10xf32>
    %76 = tpu.matmul %74, %75, %cst_182 {dimension_numbers = #tpu.dot_dimension_numbers<[1], [0], [0], [1], [0, 0, 1, 1], [], []>} : vector<2x32xf32>, vector<32x10xf32>, vector<2x10xf32> -> vector<2x10xf32>
    %c0_183 = arith.constant 0 : index
    %c0_184 = arith.constant 0 : index
    %77 = vector.load %arg12[%c0_183, %c0_184] : memref<1x10xf32, #tpu.memory_space<vmem>>, vector<1x10xf32>
    %78 = vector.broadcast %77 : vector<1x10xf32> to vector<2x10xf32>
    %79 = arith.addf %76, %78 : vector<2x10xf32>
    %c0_185 = arith.constant 0 : index
    %c0_186 = arith.constant 0 : index
    %80 = vector.load %arg13[%c0_185, %c0_186] : memref<2x10xf32, #tpu.memory_space<vmem>>, vector<2x10xf32>
    tpu.vector_store %arg13[%c0_185, %c0_186], %79 {strides = array<i32>} : memref<2x10xf32, #tpu.memory_space<vmem>>, vector<2x10xf32>,
    return
  }
}

</mosaic_0001>

<llo_original>
// kernel: tile.9
$region0: #{tile.9}
  %s0 = inlined_call_operand.vmem [shape: f32[2,25,512], index: 0, kind: input, shape index: {}]
  %s1 = inlined_call_operand.vmem [shape: f32[50,512], index: 1, kind: output, shape index: {}]
  %v2 = vld [vmem:[%s0] sm:$0xff]
  %3 = vst [vmem:[%s1] sm:$0xff] %v2
  %s4 = scalar_lea.vmem %s0, 8
  %v5 = vld [vmem:[%s4] sm:$0xff]
  %s6 = scalar_lea.vmem %s1, 8
  %7 = vst [vmem:[%s6] sm:$0xff] %v5
  %s8 = scalar_lea.vmem %s0, 16
  %v9 = vld [vmem:[%s8] sm:$0xff]
  %s10 = scalar_lea.vmem %s1, 16
  %11 = vst [vmem:[%s10] sm:$0xff] %v9
  %s12 = scalar_lea.vmem %s0, 24
  %v13 = vld [vmem:[%s12] sm:$0xff]
  %s14 = scalar_lea.vmem %s1, 24
  %15 = vst [vmem:[%s14] sm:$0xff] %v13
  %s16 = scalar_lea.vmem %s0, 32
  %v17 = vld [vmem:[%s16] sm:$0xff]
  %s18 = scalar_lea.vmem %s1, 32
  %19 = vst [vmem:[%s18] sm:$0xff] %v17
  %s20 = scalar_lea.vmem %s0, 40
  %v21 = vld [vmem:[%s20] sm:$0xff]
  %s22 = scalar_lea.vmem %s1, 40
  %23 = vst [vmem:[%s22] sm:$0xff] %v21
  %s24 = scalar_lea.vmem %s0, 48
  %v25 = vld [vmem:[%s24] sm:$0xff]
  %s26 = scalar_lea.vmem %s1, 48
  %27 = vst [vmem:[%s26] sm:$0xff] %v25
  %s28 = scalar_lea.vmem %s0, 56
  %v29 = vld [vmem:[%s28] sm:$0xff]
  %s30 = scalar_lea.vmem %s1, 56
  %31 = vst [vmem:[%s30] sm:$0xff] %v29
  %s32 = scalar_lea.vmem %s0, 64
  %v33 = vld [vmem:[%s32] sm:$0xff]
  %s34 = scalar_lea.vmem %s1, 64
  %35 = vst [vmem:[%s34] sm:$0xff] %v33
  %s36 = scalar_lea.vmem %s0, 72
  %v37 = vld [vmem:[%s36] sm:$0xff]
  %s38 = scalar_lea.vmem %s1, 72
  %39 = vst [vmem:[%s38] sm:$0xff] %v37
  %s40 = scalar_lea.vmem %s0, 80
  %v41 = vld [vmem:[%s40] sm:$0xff]
  %s42 = scalar_lea.vmem %s1, 80
  %43 = vst [vmem:[%s42] sm:$0xff] %v41
  %s44 = scalar_lea.vmem %s0, 88
  %v45 = vld [vmem:[%s44] sm:$0xff]
  %s46 = scalar_lea.vmem %s1, 88
  %47 = vst [vmem:[%s46] sm:$0xff] %v45
  %s48 = scalar_lea.vmem %s0, 96
  %v49 = vld [vmem:[%s48] ss:$8 sm:$0xf]
  %s50 = scalar_lea.vmem %s0, 124
  %v51 = vld [vmem:[%s50] sm:$0x10]
  %vm52 = vcmask 1044484
  %v53 = vsel %vm52, %v51, %v49
  %s54 = scalar_lea.vmem %s1, 96
  %55 = vst [vmem:[%s54] ss:$8 sm:$0xf] %v53
  %s56 = scalar_lea.vmem %s1, 93
  %57 = vst [vmem:[%s56] sm:$0x10] %v53
  %s58 = scalar_lea.vmem %s0, 129
  %v59 = vld [vmem:[%s58] sm:$0xff]
  %s60 = scalar_lea.vmem %s1, 98
  %61 = vst [vmem:[%s60] sm:$0x3f] %v59
  %s62 = scalar_lea.vmem %s1, 266
  %63 = vst [vmem:[%s62] ss:$-23 sm:$0xc0] %v59
  %s64 = scalar_lea.vmem %s0, 137
  %v65 = vld [vmem:[%s64] sm:$0xff]
  %s66 = scalar_lea.vmem %s1, 106
  %67 = vst [vmem:[%s66] sm:$0x3f] %v65
  %s68 = scalar_lea.vmem %s1, 274
  %69 = vst [vmem:[%s68] ss:$-23 sm:$0xc0] %v65
  %s70 = scalar_lea.vmem %s0, 145
  %v71 = vld [vmem:[%s70] sm:$0xff]
  %s72 = scalar_lea.vmem %s1, 114
  %73 = vst [vmem:[%s72] sm:$0x3f] %v71
  %s74 = scalar_lea.vmem %s1, 282
  %75 = vst [vmem:[%s74] ss:$-23 sm:$0xc0] %v71
  %s76 = scalar_lea.vmem %s0, 153
  %v77 = vld [vmem:[%s76] sm:$0xff]
  %s78 = scalar_lea.vmem %s1, 122
  %79 = vst [vmem:[%s78] sm:$0x3f] %v77
  %s80 = scalar_lea.vmem %s1, 290
  %81 = vst [vmem:[%s80] ss:$-23 sm:$0xc0] %v77
  %s82 = scalar_lea.vmem %s0, 161
  %v83 = vld [vmem:[%s82] sm:$0xff]
  %s84 = scalar_lea.vmem %s1, 130
  %85 = vst [vmem:[%s84] sm:$0x3f] %v83
  %s86 = scalar_lea.vmem %s1, 298
  %87 = vst [vmem:[%s86] ss:$-23 sm:$0xc0] %v83
  %s88 = scalar_lea.vmem %s0, 169
  %v89 = vld [vmem:[%s88] sm:$0xff]
  %s90 = scalar_lea.vmem %s1, 138
  %91 = vst [vmem:[%s90] sm:$0x3f] %v89
  %s92 = scalar_lea.vmem %s1, 306
  %93 = vst [vmem:[%s92] ss:$-23 sm:$0xc0] %v89
  %s94 = scalar_lea.vmem %s0, 177
  %v95 = vld [vmem:[%s94] sm:$0xff]
  %s96 = scalar_lea.vmem %s1, 146
  %97 = vst [vmem:[%s96] sm:$0x3f] %v95
  %s98 = scalar_lea.vmem %s1, 314
  %99 = vst [vmem:[%s98] ss:$-23 sm:$0xc0] %v95
  %s100 = scalar_lea.vmem %s0, 185
  %v101 = vld [vmem:[%s100] sm:$0xff]
  %s102 = scalar_lea.vmem %s1, 154
  %103 = vst [vmem:[%s102] sm:$0x3f] %v101
  %s104 = scalar_lea.vmem %s1, 322
  %105 = vst [vmem:[%s104] ss:$-23 sm:$0xc0] %v101
  %s106 = scalar_lea.vmem %s0, 193
  %v107 = vld [vmem:[%s106] sm:$0xff]
  %s108 = scalar_lea.vmem %s1, 162
  %109 = vst [vmem:[%s108] sm:$0x3f] %v107
  %s110 = scalar_lea.vmem %s1, 330
  %111 = vst [vmem:[%s110] ss:$-23 sm:$0xc0] %v107
  %s112 = scalar_lea.vmem %s0, 201
  %v113 = vld [vmem:[%s112] sm:$0xff]
  %s114 = scalar_lea.vmem %s1, 170
  %115 = vst [vmem:[%s114] sm:$0x3f] %v113
  %s116 = scalar_lea.vmem %s1, 338
  %117 = vst [vmem:[%s116] ss:$-23 sm:$0xc0] %v113
  %s118 = scalar_lea.vmem %s0, 209
  %v119 = vld [vmem:[%s118] sm:$0xff]
  %s120 = scalar_lea.vmem %s1, 178
  %121 = vst [vmem:[%s120] sm:$0x3f] %v119
  %s122 = scalar_lea.vmem %s1, 346
  %123 = vst [vmem:[%s122] ss:$-23 sm:$0xc0] %v119
  %s124 = scalar_lea.vmem %s0, 217
  %v125 = vld [vmem:[%s124] sm:$0xff]
  %s126 = scalar_lea.vmem %s1, 186
  %127 = vst [vmem:[%s126] sm:$0x3f] %v125
  %s128 = scalar_lea.vmem %s1, 354
  %129 = vst [vmem:[%s128] ss:$-23 sm:$0xc0] %v125
  %s130 = scalar_lea.vmem %s0, 232
  %v131 = vld [vmem:[%s130] ss:$8 sm:$0x7]
  %s132 = scalar_lea.vmem %s1, 201
  %133 = vst [vmem:[%s132] ss:$8 sm:$0x7] %v131

// kernel: forward.1
$region0: #{forward.1}
  #allocation0 [shape = 'u32[]', space=smem, size = 0x4, offset = 0x4, fixed_abs, tag = 'smem constant byte address 0x4 - core index']
  #allocation1 [shape = 'u32[144,128]{1,0:T(1,128)}', space=vmem, size = 0x12000, scoped, tag = 'internal scratch']
  #allocation2 [shape = 'f32[2,16,16,36]{3,2,1,0:T(8,128)}', space=vmem, size = 0x40000, scoped, tag = 'scratch operand']
  #allocation3 [shape = 'f32[2,16,16,72]{3,2,1,0:T(8,128)}', space=vmem, size = 0x40000, scoped, tag = 'scratch operand']
  #allocation4 [shape = 'f32[2,16,16,8]{3,2,1,0:T(8,128)}', space=vmem, size = 0x40000, scoped, tag = 'scratch operand']
  %s0 = inlined_call_operand.vmem [shape: f32[2,16,16,4], index: 0, kind: input, shape index: {}]
  %s1 = inlined_call_operand.vmem [shape: f32[36,8], index: 1, kind: input, shape index: {}]
  %s2 = inlined_call_operand.vmem [shape: f32[1,8], index: 2, kind: input, shape index: {}]
  %s3 = inlined_call_operand.vmem [shape: f32[72,16], index: 3, kind: input, shape index: {}]
  %s4 = inlined_call_operand.vmem [shape: f32[1,16], index: 4, kind: input, shape index: {}]
  %s5 = inlined_call_operand.vmem [shape: f32[50,512], index: 5, kind: input, shape index: {}]
  %s6 = inlined_call_operand.vmem [shape: f32[50,512], index: 6, kind: input, shape index: {}]
  %s7 = inlined_call_operand.vmem [shape: f32[16,512], index: 7, kind: input, shape index: {}]
  %s8 = inlined_call_operand.vmem [shape: f32[2,50], index: 8, kind: input, shape index: {}]
  %s9 = inlined_call_operand.vmem [shape: f32[512,32], index: 9, kind: input, shape index: {}]
  %s10 = inlined_call_operand.vmem [shape: f32[1,32], index: 10, kind: input, shape index: {}]
  %s11 = inlined_call_operand.vmem [shape: f32[32,10], index: 11, kind: input, shape index: {}]
  %s12 = inlined_call_operand.vmem [shape: f32[1,10], index: 12, kind: input, shape index: {}]
  %s13 = inlined_call_operand.hbm [shape: f32[2,10], index: 13, kind: output, shape index: {}]
  %s14 = sld [smem:[#allocation0]]
  $region62: #{forward.1} parent=0
    _
  %s16 = ssub.s32 1, %s14
  %s17 = scalar_select 0, %s16, %s14
  $region1: #{forward.1} parent=0
    #allocation5 [shape = 'u8[1024]{0}', space=vmem, size = 0x400, scoped, tag = 'output window, operand 0, single buffered']
    #allocation6 [shape = 's32[1]{0}', space=sflag, size = 0x4, scoped, tag = 'scoped memory for forward.1']
    %18 = vsyncpa [#allocation6], 0
    // Predicated region
    $region2: #{forward.1} parent=1 // pred_check
      _
    $region3: #{forward.1} parent=1 // pred_check_branch
      %20 = sbr.rel (0) target = $region5
    $region4: #{forward.1} parent=1 // pred_region
      _
    $region5: #{forward.1} parent=1 // pred_fallthru
      _
    // Predicated region
    $region6: #{forward.1} parent=1 // pred_check
      _
    $region7: #{forward.1} parent=1 // pred_check_branch
      %22 = sbr.rel (0) target = $region9
    $region8: #{forward.1} parent=1 // pred_region
      _
    $region9: #{forward.1} parent=1 // pred_fallthru
      _
    // Predicated region
    $region10: #{forward.1} parent=1 // pred_check
      _
    $region11: #{forward.1} parent=1 // pred_check_branch
      %24 = sbr.rel (0) target = $region13
    $region12: #{forward.1} parent=1 // pred_region
      _
    $region13: #{forward.1} parent=1 // pred_fallthru
      _
    // Predicated region
    $region14: #{forward.1} parent=1 // pred_check
      _
    $region15: #{forward.1} parent=1 // pred_check_branch
      %26 = sbr.rel (0) target = $region17
    $region16: #{forward.1} parent=1 // pred_region
      _
    $region17: #{forward.1} parent=1 // pred_fallthru
      _
    // Predicated region
    $region18: #{forward.1} parent=1 // pred_check
      _
    $region19: #{forward.1} parent=1 // pred_check_branch
      %28 = sbr.rel (0) target = $region21
    $region20: #{forward.1} parent=1 // pred_region
      _
    $region21: #{forward.1} parent=1 // pred_fallthru
      _
    // Predicated region
    $region22: #{forward.1} parent=1 // pred_check
      _
    $region23: #{forward.1} parent=1 // pred_check_branch
      %30 = sbr.rel (0) target = $region25
    $region24: #{forward.1} parent=1 // pred_region
      _
    $region25: #{forward.1} parent=1 // pred_fallthru
      _
    // Predicated region
    $region26: #{forward.1} parent=1 // pred_check
      _
    $region27: #{forward.1} parent=1 // pred_check_branch
      %32 = sbr.rel (0) target = $region29
    $region28: #{forward.1} parent=1 // pred_region
      _
    $region29: #{forward.1} parent=1 // pred_fallthru
      _
    // Predicated region
    $region30: #{forward.1} parent=1 // pred_check
      _
    $region31: #{forward.1} parent=1 // pred_check_branch
      %34 = sbr.rel (0) target = $region33
    $region32: #{forward.1} parent=1 // pred_region
      _
    $region33: #{forward.1} parent=1 // pred_fallthru
      _
    // Predicated region
    $region34: #{forward.1} parent=1 // pred_check
      _
    $region35: #{forward.1} parent=1 // pred_check_branch
      %36 = sbr.rel (0) target = $region37
    $region36: #{forward.1} parent=1 // pred_region
      _
    $region37: #{forward.1} parent=1 // pred_fallthru
      _
    // Predicated region
    $region38: #{forward.1} parent=1 // pred_check
      _
    $region39: #{forward.1} parent=1 // pred_check_branch
      %38 = sbr.rel (0) target = $region41
    $region40: #{forward.1} parent=1 // pred_region
      _
    $region41: #{forward.1} parent=1 // pred_fallthru
      _
    // Predicated region
    $region42: #{forward.1} parent=1 // pred_check
      _
    $region43: #{forward.1} parent=1 // pred_check_branch
      %40 = sbr.rel (0) target = $region45
    $region44: #{forward.1} parent=1 // pred_region
      _
    $region45: #{forward.1} parent=1 // pred_fallthru
      _
    // Predicated region
    $region46: #{forward.1} parent=1 // pred_check
      _
    $region47: #{forward.1} parent=1 // pred_check_branch
      %42 = sbr.rel (0) target = $region49
    $region48: #{forward.1} parent=1 // pred_region
      _
    $region49: #{forward.1} parent=1 // pred_fallthru
      _
    // Predicated region
    $region50: #{forward.1} parent=1 // pred_check
      _
    $region51: #{forward.1} parent=1 // pred_check_branch
      %44 = sbr.rel (0) target = $region53
    $region52: #{forward.1} parent=1 // pred_region
      _
    $region53: #{forward.1} parent=1 // pred_fallthru
      _
    %vm45 = vcmask 293888
    %46 = vst.msk [vmem:[#allocation2] sm:$0xff] %vm45, 0.0
    %47 = vst.msk [vmem:[#allocation2 + $0x8] sm:$0xff] %vm45, 0.0
    %48 = vst.msk [vmem:[#allocation2 + $0x10] sm:$0xff] %vm45, 0.0
    %49 = vst.msk [vmem:[#allocation2 + $0x18] sm:$0xff] %vm45, 0.0
    %50 = vst.msk [vmem:[#allocation2 + $0x20] sm:$0xff] %vm45, 0.0
    %51 = vst.msk [vmem:[#allocation2 + $0x28] sm:$0xff] %vm45, 0.0
    %52 = vst.msk [vmem:[#allocation2 + $0x30] sm:$0xff] %vm45, 0.0
    %53 = vst.msk [vmem:[#allocation2 + $0x38] sm:$0xff] %vm45, 0.0
    %54 = vst.msk [vmem:[#allocation2 + $0x40] sm:$0xff] %vm45, 0.0
    %55 = vst.msk [vmem:[#allocation2 + $0x48] sm:$0xff] %vm45, 0.0
    %56 = vst.msk [vmem:[#allocation2 + $0x50] sm:$0xff] %vm45, 0.0
    %57 = vst.msk [vmem:[#allocation2 + $0x58] sm:$0xff] %vm45, 0.0
    %58 = vst.msk [vmem:[#allocation2 + $0x60] sm:$0xff] %vm45, 0.0
    %59 = vst.msk [vmem:[#allocation2 + $0x68] sm:$0xff] %vm45, 0.0
    %60 = vst.msk [vmem:[#allocation2 + $0x70] sm:$0xff] %vm45, 0.0
    %61 = vst.msk [vmem:[#allocation2 + $0x78] sm:$0xff] %vm45, 0.0
    %62 = vst.msk [vmem:[#allocation2 + $0x80] sm:$0xff] %vm45, 0.0
    %63 = vst.msk [vmem:[#allocation2 + $0x88] sm:$0xff] %vm45, 0.0
    %64 = vst.msk [vmem:[#allocation2 + $0x90] sm:$0xff] %vm45, 0.0
    %65 = vst.msk [vmem:[#allocation2 + $0x98] sm:$0xff] %vm45, 0.0
    %66 = vst.msk [vmem:[#allocation2 + $0xa0] sm:$0xff] %vm45, 0.0
    %67 = vst.msk [vmem:[#allocation2 + $0xa8] sm:$0xff] %vm45, 0.0
    %68 = vst.msk [vmem:[#allocation2 + $0xb0] sm:$0xff] %vm45, 0.0
    %69 = vst.msk [vmem:[#allocation2 + $0xb8] sm:$0xff] %vm45, 0.0
    %70 = vst.msk [vmem:[#allocation2 + $0xc0] sm:$0xff] %vm45, 0.0
    %71 = vst.msk [vmem:[#allocation2 + $0xc8] sm:$0xff] %vm45, 0.0
    %72 = vst.msk [vmem:[#allocation2 + $0xd0] sm:$0xff] %vm45, 0.0
    %73 = vst.msk [vmem:[#allocation2 + $0xd8] sm:$0xff] %vm45, 0.0
    %74 = vst.msk [vmem:[#allocation2 + $0xe0] sm:$0xff] %vm45, 0.0
    %75 = vst.msk [vmem:[#allocation2 + $0xe8] sm:$0xff] %vm45, 0.0
    %76 = vst.msk [vmem:[#allocation2 + $0xf0] sm:$0xff] %vm45, 0.0
    %77 = vst.msk [vmem:[#allocation2 + $0xf8] sm:$0xff] %vm45, 0.0
    %78 = vst.msk [vmem:[#allocation2 + $0x100] sm:$0xff] %vm45, 0.0
    %79 = vst.msk [vmem:[#allocation2 + $0x108] sm:$0xff] %vm45, 0.0
    %80 = vst.msk [vmem:[#allocation2 + $0x110] sm:$0xff] %vm45, 0.0
    %81 = vst.msk [vmem:[#allocation2 + $0x118] sm:$0xff] %vm45, 0.0
    %82 = vst.msk [vmem:[#allocation2 + $0x120] sm:$0xff] %vm45, 0.0
    %83 = vst.msk [vmem:[#allocation2 + $0x128] sm:$0xff] %vm45, 0.0
    %84 = vst.msk [vmem:[#allocation2 + $0x130] sm:$0xff] %vm45, 0.0
    %85 = vst.msk [vmem:[#allocation2 + $0x138] sm:$0xff] %vm45, 0.0
    %86 = vst.msk [vmem:[#allocation2 + $0x140] sm:$0xff] %vm45, 0.0
    %87 = vst.msk [vmem:[#allocation2 + $0x148] sm:$0xff] %vm45, 0.0
    %88 = vst.msk [vmem:[#allocation2 + $0x150] sm:$0xff] %vm45, 0.0
    %89 = vst.msk [vmem:[#allocation2 + $0x158] sm:$0xff] %vm45, 0.0
    %90 = vst.msk [vmem:[#allocation2 + $0x160] sm:$0xff] %vm45, 0.0
    %91 = vst.msk [vmem:[#allocation2 + $0x168] sm:$0xff] %vm45, 0.0
    %92 = vst.msk [vmem:[#allocation2 + $0x170] sm:$0xff] %vm45, 0.0
    %93 = vst.msk [vmem:[#allocation2 + $0x178] sm:$0xff] %vm45, 0.0
    %94 = vst.msk [vmem:[#allocation2 + $0x180] sm:$0xff] %vm45, 0.0
    %95 = vst.msk [vmem:[#allocation2 + $0x188] sm:$0xff] %vm45, 0.0
    %96 = vst.msk [vmem:[#allocation2 + $0x190] sm:$0xff] %vm45, 0.0
    %97 = vst.msk [vmem:[#allocation2 + $0x198] sm:$0xff] %vm45, 0.0
    %98 = vst.msk [vmem:[#allocation2 + $0x1a0] sm:$0xff] %vm45, 0.0
    %99 = vst.msk [vmem:[#allocation2 + $0x1a8] sm:$0xff] %vm45, 0.0
    %100 = vst.msk [vmem:[#allocation2 + $0x1b0] sm:$0xff] %vm45, 0.0
    %101 = vst.msk [vmem:[#allocation2 + $0x1b8] sm:$0xff] %vm45, 0.0
    %102 = vst.msk [vmem:[#allocation2 + $0x1c0] sm:$0xff] %vm45, 0.0
    %103 = vst.msk [vmem:[#allocation2 + $0x1c8] sm:$0xff] %vm45, 0.0
    %104 = vst.msk [vmem:[#allocation2 + $0x1d0] sm:$0xff] %vm45, 0.0
    %105 = vst.msk [vmem:[#allocation2 + $0x1d8] sm:$0xff] %vm45, 0.0
    %106 = vst.msk [vmem:[#allocation2 + $0x1e0] sm:$0xff] %vm45, 0.0
    %107 = vst.msk [vmem:[#allocation2 + $0x1e8] sm:$0xff] %vm45, 0.0
    %108 = vst.msk [vmem:[#allocation2 + $0x1f0] sm:$0xff] %vm45, 0.0
    %109 = vst.msk [vmem:[#allocation2 + $0x1f8] sm:$0xff] %vm45, 0.0
    %v110 = vld [vmem:[%s0] sm:$0xff]
    %v111 = vld [vmem:[%s0 + $0x8] sm:$0x7f]
    %v112 = vld [vmem:[%s0 + $0x10] sm:$0xff]
    %v113 = vld [vmem:[%s0 + $0x18] sm:$0x7f]
    %v114 = vld [vmem:[%s0 + $0x20] sm:$0xff]
    %v115 = vld [vmem:[%s0 + $0x28] sm:$0x7f]
    %v116 = vld [vmem:[%s0 + $0x30] sm:$0xff]
    %v117 = vld [vmem:[%s0 + $0x38] sm:$0x7f]
    %v118 = vld [vmem:[%s0 + $0x40] sm:$0xff]
    %v119 = vld [vmem:[%s0 + $0x48] sm:$0x7f]
    %v120 = vld [vmem:[%s0 + $0x50] sm:$0xff]
    %v121 = vld [vmem:[%s0 + $0x58] sm:$0x7f]
    %v122 = vld [vmem:[%s0 + $0x60] sm:$0xff]
    %v123 = vld [vmem:[%s0 + $0x68] sm:$0x7f]
    %v124 = vld [vmem:[%s0 + $0x70] sm:$0xff]
    %v125 = vld [vmem:[%s0 + $0x78] sm:$0x7f]
    %v126 = vld [vmem:[%s0 + $0x80] sm:$0xff]
    %v127 = vld [vmem:[%s0 + $0x88] sm:$0x7f]
    %v128 = vld [vmem:[%s0 + $0x90] sm:$0xff]
    %v129 = vld [vmem:[%s0 + $0x98] sm:$0x7f]
    %v130 = vld [vmem:[%s0 + $0xa0] sm:$0xff]
    %v131 = vld [vmem:[%s0 + $0xa8] sm:$0x7f]
    %v132 = vld [vmem:[%s0 + $0xb0] sm:$0xff]
    %v133 = vld [vmem:[%s0 + $0xb8] sm:$0x7f]
    %v134 = vld [vmem:[%s0 + $0xc0] sm:$0xff]
    %v135 = vld [vmem:[%s0 + $0xc8] sm:$0x7f]
    %v136 = vld [vmem:[%s0 + $0xd0] sm:$0xff]
    %v137 = vld [vmem:[%s0 + $0xd8] sm:$0x7f]
    %v138 = vld [vmem:[%s0 + $0xe0] sm:$0xff]
    %v139 = vld [vmem:[%s0 + $0xe8] sm:$0x7f]
    %v140 = vld [vmem:[%s0 + $0x100] sm:$0xff]
    %v141 = vld [vmem:[%s0 + $0x108] sm:$0x7f]
    %v142 = vld [vmem:[%s0 + $0x110] sm:$0xff]
    %v143 = vld [vmem:[%s0 + $0x118] sm:$0x7f]
    %v144 = vld [vmem:[%s0 + $0x120] sm:$0xff]
    %v145 = vld [vmem:[%s0 + $0x128] sm:$0x7f]
    %v146 = vld [vmem:[%s0 + $0x130] sm:$0xff]
    %v147 = vld [vmem:[%s0 + $0x138] sm:$0x7f]
    %v148 = vld [vmem:[%s0 + $0x140] sm:$0xff]
    %v149 = vld [vmem:[%s0 + $0x148] sm:$0x7f]
    %v150 = vld [vmem:[%s0 + $0x150] sm:$0xff]
    %v151 = vld [vmem:[%s0 + $0x158] sm:$0x7f]
    %v152 = vld [vmem:[%s0 + $0x160] sm:$0xff]
    %v153 = vld [vmem:[%s0 + $0x168] sm:$0x7f]
    %v154 = vld [vmem:[%s0 + $0x170] sm:$0xff]
    %v155 = vld [vmem:[%s0 + $0x178] sm:$0x7f]
    %v156 = vld [vmem:[%s0 + $0x180] sm:$0xff]
    %v157 = vld [vmem:[%s0 + $0x188] sm:$0x7f]
    %v158 = vld [vmem:[%s0 + $0x190] sm:$0xff]
    %v159 = vld [vmem:[%s0 + $0x198] sm:$0x7f]
    %v160 = vld [vmem:[%s0 + $0x1a0] sm:$0xff]
    %v161 = vld [vmem:[%s0 + $0x1a8] sm:$0x7f]
    %v162 = vld [vmem:[%s0 + $0x1b0] sm:$0xff]
    %v163 = vld [vmem:[%s0 + $0x1b8] sm:$0x7f]
    %v164 = vld [vmem:[%s0 + $0x1c0] sm:$0xff]
    %v165 = vld [vmem:[%s0 + $0x1c8] sm:$0x7f]
    %v166 = vld [vmem:[%s0 + $0x1d0] sm:$0xff]
    %v167 = vld [vmem:[%s0 + $0x1d8] sm:$0x7f]
    %v168 = vld [vmem:[%s0 + $0x1e0] sm:$0xff]
    %v169 = vld [vmem:[%s0 + $0x1e8] sm:$0x7f]
    %s170 = scalar_lea.vmem [#allocation2], 16
    %vm171 = vcmask 31744
    %172 = vst.msk [vmem:[%s170 + $0x1] sm:$0xff] %vm171, %v110
    %vm173 = vcmask 30720
    %174 = vst.msk [vmem:[%s170 + $0x9] sm:$0x7f] %vm173, %v111
    %175 = vst.msk [vmem:[%s170 + $0x11] sm:$0xff] %vm171, %v112
    %176 = vst.msk [vmem:[%s170 + $0x19] sm:$0x7f] %vm173, %v113
    %177 = vst.msk [vmem:[%s170 + $0x21] sm:$0xff] %vm171, %v114
    %178 = vst.msk [vmem:[%s170 + $0x29] sm:$0x7f] %vm173, %v115
    %179 = vst.msk [vmem:[%s170 + $0x31] sm:$0xff] %vm171, %v116
    %180 = vst.msk [vmem:[%s170 + $0x39] sm:$0x7f] %vm173, %v117
    %181 = vst.msk [vmem:[%s170 + $0x41] sm:$0xff] %vm171, %v118
    %182 = vst.msk [vmem:[%s170 + $0x49] sm:$0x7f] %vm173, %v119
    %183 = vst.msk [vmem:[%s170 + $0x51] sm:$0xff] %vm171, %v120
    %184 = vst.msk [vmem:[%s170 + $0x59] sm:$0x7f] %vm173, %v121
    %185 = vst.msk [vmem:[%s170 + $0x61] sm:$0xff] %vm171, %v122
    %186 = vst.msk [vmem:[%s170 + $0x69] sm:$0x7f] %vm173, %v123
    %187 = vst.msk [vmem:[%s170 + $0x71] sm:$0xff] %vm171, %v124
    %188 = vst.msk [vmem:[%s170 + $0x79] sm:$0x7f] %vm173, %v125
    %189 = vst.msk [vmem:[%s170 + $0x81] sm:$0xff] %vm171, %v126
    %190 = vst.msk [vmem:[%s170 + $0x89] sm:$0x7f] %vm173, %v127
    %191 = vst.msk [vmem:[%s170 + $0x91] sm:$0xff] %vm171, %v128
    %192 = vst.msk [vmem:[%s170 + $0x99] sm:$0x7f] %vm173, %v129
    %193 = vst.msk [vmem:[%s170 + $0xa1] sm:$0xff] %vm171, %v130
    %194 = vst.msk [vmem:[%s170 + $0xa9] sm:$0x7f] %vm173, %v131
    %195 = vst.msk [vmem:[%s170 + $0xb1] sm:$0xff] %vm171, %v132
    %196 = vst.msk [vmem:[%s170 + $0xb9] sm:$0x7f] %vm173, %v133
    %197 = vst.msk [vmem:[%s170 + $0xc1] sm:$0xff] %vm171, %v134
    %198 = vst.msk [vmem:[%s170 + $0xc9] sm:$0x7f] %vm173, %v135
    %199 = vst.msk [vmem:[%s170 + $0xd1] sm:$0xff] %vm171, %v136
    %200 = vst.msk [vmem:[%s170 + $0xd9] sm:$0x7f] %vm173, %v137
    %201 = vst.msk [vmem:[%s170 + $0xe1] sm:$0xff] %vm171, %v138
    %202 = vst.msk [vmem:[%s170 + $0xe9] sm:$0x7f] %vm173, %v139
    %203 = vst.msk [vmem:[%s170 + $0x101] sm:$0xff] %vm171, %v140
    %204 = vst.msk [vmem:[%s170 + $0x109] sm:$0x7f] %vm173, %v141
    %205 = vst.msk [vmem:[%s170 + $0x111] sm:$0xff] %vm171, %v142
    %206 = vst.msk [vmem:[%s170 + $0x119] sm:$0x7f] %vm173, %v143
    %207 = vst.msk [vmem:[%s170 + $0x121] sm:$0xff] %vm171, %v144
    %208 = vst.msk [vmem:[%s170 + $0x129] sm:$0x7f] %vm173, %v145
    %209 = vst.msk [vmem:[%s170 + $0x131] sm:$0xff] %vm171, %v146
    %210 = vst.msk [vmem:[%s170 + $0x139] sm:$0x7f] %vm173, %v147
    %211 = vst.msk [vmem:[%s170 + $0x141] sm:$0xff] %vm171, %v148
    %212 = vst.msk [vmem:[%s170 + $0x149] sm:$0x7f] %vm173, %v149
    %213 = vst.msk [vmem:[%s170 + $0x151] sm:$0xff] %vm171, %v150
    %214 = vst.msk [vmem:[%s170 + $0x159] sm:$0x7f] %vm173, %v151
    %215 = vst.msk [vmem:[%s170 + $0x161] sm:$0xff] %vm171, %v152
    %216 = vst.msk [vmem:[%s170 + $0x169] sm:$0x7f] %vm173, %v153
    %217 = vst.msk [vmem:[%s170 + $0x171] sm:$0xff] %vm171, %v154
    %218 = vst.msk [vmem:[%s170 + $0x179] sm:$0x7f] %vm173, %v155
    %219 = vst.msk [vmem:[%s170 + $0x181] sm:$0xff] %vm171, %v156
    %220 = vst.msk [vmem:[%s170 + $0x189] sm:$0x7f] %vm173, %v157
    %221 = vst.msk [vmem:[%s170 + $0x191] sm:$0xff] %vm171, %v158
    %222 = vst.msk [vmem:[%s170 + $0x199] sm:$0x7f] %vm173, %v159
    %223 = vst.msk [vmem:[%s170 + $0x1a1] sm:$0xff] %vm171, %v160
    %224 = vst.msk [vmem:[%s170 + $0x1a9] sm:$0x7f] %vm173, %v161
    %225 = vst.msk [vmem:[%s170 + $0x1b1] sm:$0xff] %vm171, %v162
    %226 = vst.msk [vmem:[%s170 + $0x1b9] sm:$0x7f] %vm173, %v163
    %227 = vst.msk [vmem:[%s170 + $0x1c1] sm:$0xff] %vm171, %v164
    %228 = vst.msk [vmem:[%s170 + $0x1c9] sm:$0x7f] %vm173, %v165
    %229 = vst.msk [vmem:[%s170 + $0x1d1] sm:$0xff] %vm171, %v166
    %230 = vst.msk [vmem:[%s170 + $0x1d9] sm:$0x7f] %vm173, %v167
    %231 = vst.msk [vmem:[%s170 + $0x1e1] sm:$0xff] %vm171, %v168
    %232 = vst.msk [vmem:[%s170 + $0x1e9] sm:$0x7f] %vm173, %v169
    %v233 = vld [vmem:[%s0] sm:$0xff]
    %v234 = vld [vmem:[%s0 + $0x8] sm:$0xff]
    %v235 = vld [vmem:[%s0 + $0x10] sm:$0xff]
    %v236 = vld [vmem:[%s0 + $0x18] sm:$0xff]
    %v237 = vld [vmem:[%s0 + $0x20] sm:$0xff]
    %v238 = vld [vmem:[%s0 + $0x28] sm:$0xff]
    %v239 = vld [vmem:[%s0 + $0x30] sm:$0xff]
    %v240 = vld [vmem:[%s0 + $0x38] sm:$0xff]
    %v241 = vld [vmem:[%s0 + $0x40] sm:$0xff]
    %v242 = vld [vmem:[%s0 + $0x48] sm:$0xff]
    %v243 = vld [vmem:[%s0 + $0x50] sm:$0xff]
    %v244 = vld [vmem:[%s0 + $0x58] sm:$0xff]
    %v245 = vld [vmem:[%s0 + $0x60] sm:$0xff]
    %v246 = vld [vmem:[%s0 + $0x68] sm:$0xff]
    %v247 = vld [vmem:[%s0 + $0x70] sm:$0xff]
    %v248 = vld [vmem:[%s0 + $0x78] sm:$0xff]
    %v249 = vld [vmem:[%s0 + $0x80] sm:$0xff]
    %v250 = vld [vmem:[%s0 + $0x88] sm:$0xff]
    %v251 = vld [vmem:[%s0 + $0x90] sm:$0xff]
    %v252 = vld [vmem:[%s0 + $0x98] sm:$0xff]
    %v253 = vld [vmem:[%s0 + $0xa0] sm:$0xff]
    %v254 = vld [vmem:[%s0 + $0xa8] sm:$0xff]
    %v255 = vld [vmem:[%s0 + $0xb0] sm:$0xff]
    %v256 = vld [vmem:[%s0 + $0xb8] sm:$0xff]
    %v257 = vld [vmem:[%s0 + $0xc0] sm:$0xff]
    %v258 = vld [vmem:[%s0 + $0xc8] sm:$0xff]
    %v259 = vld [vmem:[%s0 + $0xd0] sm:$0xff]
    %v260 = vld [vmem:[%s0 + $0xd8] sm:$0xff]
    %v261 = vld [vmem:[%s0 + $0xe0] sm:$0xff]
    %v262 = vld [vmem:[%s0 + $0xe8] sm:$0xff]
    %v263 = vld [vmem:[%s0 + $0x100] sm:$0xff]
    %v264 = vld [vmem:[%s0 + $0x108] sm:$0xff]
    %v265 = vld [vmem:[%s0 + $0x110] sm:$0xff]
    %v266 = vld [vmem:[%s0 + $0x118] sm:$0xff]
    %v267 = vld [vmem:[%s0 + $0x120] sm:$0xff]
    %v268 = vld [vmem:[%s0 + $0x128] sm:$0xff]
    %v269 = vld [vmem:[%s0 + $0x130] sm:$0xff]
    %v270 = vld [vmem:[%s0 + $0x138] sm:$0xff]
    %v271 = vld [vmem:[%s0 + $0x140] sm:$0xff]
    %v272 = vld [vmem:[%s0 + $0x148] sm:$0xff]
    %v273 = vld [vmem:[%s0 + $0x150] sm:$0xff]
    %v274 = vld [vmem:[%s0 + $0x158] sm:$0xff]
    %v275 = vld [vmem:[%s0 + $0x160] sm:$0xff]
    %v276 = vld [vmem:[%s0 + $0x168] sm:$0xff]
    %v277 = vld [vmem:[%s0 + $0x170] sm:$0xff]
    %v278 = vld [vmem:[%s0 + $0x178] sm:$0xff]
    %v279 = vld [vmem:[%s0 + $0x180] sm:$0xff]
    %v280 = vld [vmem:[%s0 + $0x188] sm:$0xff]
    %v281 = vld [vmem:[%s0 + $0x190] sm:$0xff]
    %v282 = vld [vmem:[%s0 + $0x198] sm:$0xff]
    %v283 = vld [vmem:[%s0 + $0x1a0] sm:$0xff]
    %v284 = vld [vmem:[%s0 + $0x1a8] sm:$0xff]
    %v285 = vld [vmem:[%s0 + $0x1b0] sm:$0xff]
    %v286 = vld [vmem:[%s0 + $0x1b8] sm:$0xff]
    %v287 = vld [vmem:[%s0 + $0x1c0] sm:$0xff]
    %v288 = vld [vmem:[%s0 + $0x1c8] sm:$0xff]
    %v289 = vld [vmem:[%s0 + $0x1d0] sm:$0xff]
    %v290 = vld [vmem:[%s0 + $0x1d8] sm:$0xff]
    %v291 = vld [vmem:[%s0 + $0x1e0] sm:$0xff]
    %v292 = vld [vmem:[%s0 + $0x1e8] sm:$0xff]
    %353 = vrot.lane.b32.xlu0 %v233, 4
    %v354 = vpop.permute.xlu0 %353
    %355 = vrot.lane.b32.xlu0 %v234, 4
    %v356 = vpop.permute.xlu0 %355
    %357 = vrot.lane.b32.xlu0 %v235, 4
    %v358 = vpop.permute.xlu0 %357
    %359 = vrot.lane.b32.xlu0 %v236, 4
    %v360 = vpop.permute.xlu0 %359
    %361 = vrot.lane.b32.xlu0 %v237, 4
    %v362 = vpop.permute.xlu0 %361
    %363 = vrot.lane.b32.xlu0 %v238, 4
    %v364 = vpop.permute.xlu0 %363
    %365 = vrot.lane.b32.xlu0 %v239, 4
    %v366 = vpop.permute.xlu0 %365
    %367 = vrot.lane.b32.xlu0 %v240, 4
    %v368 = vpop.permute.xlu0 %367
    %369 = vrot.lane.b32.xlu0 %v241, 4
    %v370 = vpop.permute.xlu0 %369
    %371 = vrot.lane.b32.xlu0 %v242, 4
    %v372 = vpop.permute.xlu0 %371
    %373 = vrot.lane.b32.xlu0 %v243, 4
    %v374 = vpop.permute.xlu0 %373
    %375 = vrot.lane.b32.xlu0 %v244, 4
    %v376 = vpop.permute.xlu0 %375
    %377 = vrot.lane.b32.xlu0 %v245, 4
    %v378 = vpop.permute.xlu0 %377
    %379 = vrot.lane.b32.xlu0 %v246, 4
    %v380 = vpop.permute.xlu0 %379
    %381 = vrot.lane.b32.xlu0 %v247, 4
    %v382 = vpop.permute.xlu0 %381
    %383 = vrot.lane.b32.xlu0 %v248, 4
    %v384 = vpop.permute.xlu0 %383
    %385 = vrot.lane.b32.xlu0 %v249, 4
    %v386 = vpop.permute.xlu0 %385
    %387 = vrot.lane.b32.xlu0 %v250, 4
    %v388 = vpop.permute.xlu0 %387
    %389 = vrot.lane.b32.xlu0 %v251, 4
    %v390 = vpop.permute.xlu0 %389
    %391 = vrot.lane.b32.xlu0 %v252, 4
    %v392 = vpop.permute.xlu0 %391
    %393 = vrot.lane.b32.xlu0 %v253, 4
    %v394 = vpop.permute.xlu0 %393
    %395 = vrot.lane.b32.xlu0 %v254, 4
    %v396 = vpop.permute.xlu0 %395
    %397 = vrot.lane.b32.xlu0 %v255, 4
    %v398 = vpop.permute.xlu0 %397
    %399 = vrot.lane.b32.xlu0 %v256, 4
    %v400 = vpop.permute.xlu0 %399
    %401 = vrot.lane.b32.xlu0 %v257, 4
    %v402 = vpop.permute.xlu0 %401
    %403 = vrot.lane.b32.xlu0 %v258, 4
    %v404 = vpop.permute.xlu0 %403
    %405 = vrot.lane.b32.xlu0 %v259, 4
    %v406 = vpop.permute.xlu0 %405
    %407 = vrot.lane.b32.xlu0 %v260, 4
    %v408 = vpop.permute.xlu0 %407
    %409 = vrot.lane.b32.xlu0 %v261, 4
    %v410 = vpop.permute.xlu0 %409
    %411 = vrot.lane.b32.xlu0 %v262, 4
    %v412 = vpop.permute.xlu0 %411
    %413 = vrot.lane.b32.xlu0 %v263, 4
    %v414 = vpop.permute.xlu0 %413
    %415 = vrot.lane.b32.xlu0 %v264, 4
    %v416 = vpop.permute.xlu0 %415
    %417 = vrot.lane.b32.xlu0 %v265, 4
    %v418 = vpop.permute.xlu0 %417
    %419 = vrot.lane.b32.xlu0 %v266, 4
    %v420 = vpop.permute.xlu0 %419
    %421 = vrot.lane.b32.xlu0 %v267, 4
    %v422 = vpop.permute.xlu0 %421
    %423 = vrot.lane.b32.xlu0 %v268, 4
    %v424 = vpop.permute.xlu0 %423
    %425 = vrot.lane.b32.xlu0 %v269, 4
    %v426 = vpop.permute.xlu0 %425
    %427 = vrot.lane.b32.xlu0 %v270, 4
    %v428 = vpop.permute.xlu0 %427
    %429 = vrot.lane.b32.xlu0 %v271, 4
    %v430 = vpop.permute.xlu0 %429
    %431 = vrot.lane.b32.xlu0 %v272, 4
    %v432 = vpop.permute.xlu0 %431
    %433 = vrot.lane.b32.xlu0 %v273, 4
    %v434 = vpop.permute.xlu0 %433
    %435 = vrot.lane.b32.xlu0 %v274, 4
    %v436 = vpop.permute.xlu0 %435
    %437 = vrot.lane.b32.xlu0 %v275, 4
    %v438 = vpop.permute.xlu0 %437
    %439 = vrot.lane.b32.xlu0 %v276, 4
    %v440 = vpop.permute.xlu0 %439
    %441 = vrot.lane.b32.xlu0 %v277, 4
    %v442 = vpop.permute.xlu0 %441
    %443 = vrot.lane.b32.xlu0 %v278, 4
    %v444 = vpop.permute.xlu0 %443
    %445 = vrot.lane.b32.xlu0 %v279, 4
    %v446 = vpop.permute.xlu0 %445
    %447 = vrot.lane.b32.xlu0 %v280, 4
    %v448 = vpop.permute.xlu0 %447
    %449 = vrot.lane.b32.xlu0 %v281, 4
    %v450 = vpop.permute.xlu0 %449
    %451 = vrot.lane.b32.xlu0 %v282, 4
    %v452 = vpop.permute.xlu0 %451
    %453 = vrot.lane.b32.xlu0 %v283, 4
    %v454 = vpop.permute.xlu0 %453
    %455 = vrot.lane.b32.xlu0 %v284, 4
    %v456 = vpop.permute.xlu0 %455
    %457 = vrot.lane.b32.xlu0 %v285, 4
    %v458 = vpop.permute.xlu0 %457
    %459 = vrot.lane.b32.xlu0 %v286, 4
    %v460 = vpop.permute.xlu0 %459
    %461 = vrot.lane.b32.xlu0 %v287, 4
    %v462 = vpop.permute.xlu0 %461
    %463 = vrot.lane.b32.xlu0 %v288, 4
    %v464 = vpop.permute.xlu0 %463
    %465 = vrot.lane.b32.xlu0 %v289, 4
    %v466 = vpop.permute.xlu0 %465
    %467 = vrot.lane.b32.xlu0 %v290, 4
    %v468 = vpop.permute.xlu0 %467
    %469 = vrot.lane.b32.xlu0 %v291, 4
    %v470 = vpop.permute.xlu0 %469
    %471 = vrot.lane.b32.xlu0 %v292, 4
    %v472 = vpop.permute.xlu0 %471
    %vm533 = vcmask 64544
    %534 = vst.msk [vmem:[%s170] sm:$0xff] %vm533, %v354
    %535 = vst.msk [vmem:[%s170 + $0x8] sm:$0xff] %vm533, %v356
    %536 = vst.msk [vmem:[%s170 + $0x10] sm:$0xff] %vm533, %v358
    %537 = vst.msk [vmem:[%s170 + $0x18] sm:$0xff] %vm533, %v360
    %538 = vst.msk [vmem:[%s170 + $0x20] sm:$0xff] %vm533, %v362
    %539 = vst.msk [vmem:[%s170 + $0x28] sm:$0xff] %vm533, %v364
    %540 = vst.msk [vmem:[%s170 + $0x30] sm:$0xff] %vm533, %v366
    %541 = vst.msk [vmem:[%s170 + $0x38] sm:$0xff] %vm533, %v368
    %542 = vst.msk [vmem:[%s170 + $0x40] sm:$0xff] %vm533, %v370
    %543 = vst.msk [vmem:[%s170 + $0x48] sm:$0xff] %vm533, %v372
    %544 = vst.msk [vmem:[%s170 + $0x50] sm:$0xff] %vm533, %v374
    %545 = vst.msk [vmem:[%s170 + $0x58] sm:$0xff] %vm533, %v376
    %546 = vst.msk [vmem:[%s170 + $0x60] sm:$0xff] %vm533, %v378
    %547 = vst.msk [vmem:[%s170 + $0x68] sm:$0xff] %vm533, %v380
    %548 = vst.msk [vmem:[%s170 + $0x70] sm:$0xff] %vm533, %v382
    %549 = vst.msk [vmem:[%s170 + $0x78] sm:$0xff] %vm533, %v384
    %550 = vst.msk [vmem:[%s170 + $0x80] sm:$0xff] %vm533, %v386
    %551 = vst.msk [vmem:[%s170 + $0x88] sm:$0xff] %vm533, %v388
    %552 = vst.msk [vmem:[%s170 + $0x90] sm:$0xff] %vm533, %v390
    %553 = vst.msk [vmem:[%s170 + $0x98] sm:$0xff] %vm533, %v392
    %554 = vst.msk [vmem:[%s170 + $0xa0] sm:$0xff] %vm533, %v394
    %555 = vst.msk [vmem:[%s170 + $0xa8] sm:$0xff] %vm533, %v396
    %556 = vst.msk [vmem:[%s170 + $0xb0] sm:$0xff] %vm533, %v398
    %557 = vst.msk [vmem:[%s170 + $0xb8] sm:$0xff] %vm533, %v400
    %558 = vst.msk [vmem:[%s170 + $0xc0] sm:$0xff] %vm533, %v402
    %559 = vst.msk [vmem:[%s170 + $0xc8] sm:$0xff] %vm533, %v404
    %560 = vst.msk [vmem:[%s170 + $0xd0] sm:$0xff] %vm533, %v406
    %561 = vst.msk [vmem:[%s170 + $0xd8] sm:$0xff] %vm533, %v408
    %562 = vst.msk [vmem:[%s170 + $0xe0] sm:$0xff] %vm533, %v410
    %563 = vst.msk [vmem:[%s170 + $0xe8] sm:$0xff] %vm533, %v412
    %564 = vst.msk [vmem:[%s170 + $0x100] sm:$0xff] %vm533, %v414
    %565 = vst.msk [vmem:[%s170 + $0x108] sm:$0xff] %vm533, %v416
    %566 = vst.msk [vmem:[%s170 + $0x110] sm:$0xff] %vm533, %v418
    %567 = vst.msk [vmem:[%s170 + $0x118] sm:$0xff] %vm533, %v420
    %568 = vst.msk [vmem:[%s170 + $0x120] sm:$0xff] %vm533, %v422
    %569 = vst.msk [vmem:[%s170 + $0x128] sm:$0xff] %vm533, %v424
    %570 = vst.msk [vmem:[%s170 + $0x130] sm:$0xff] %vm533, %v426
    %571 = vst.msk [vmem:[%s170 + $0x138] sm:$0xff] %vm533, %v428
    %572 = vst.msk [vmem:[%s170 + $0x140] sm:$0xff] %vm533, %v430
    %573 = vst.msk [vmem:[%s170 + $0x148] sm:$0xff] %vm533, %v432
    %574 = vst.msk [vmem:[%s170 + $0x150] sm:$0xff] %vm533, %v434
    %575 = vst.msk [vmem:[%s170 + $0x158] sm:$0xff] %vm533, %v436
    %576 = vst.msk [vmem:[%s170 + $0x160] sm:$0xff] %vm533, %v438
    %577 = vst.msk [vmem:[%s170 + $0x168] sm:$0xff] %vm533, %v440
    %578 = vst.msk [vmem:[%s170 + $0x170] sm:$0xff] %vm533, %v442
    %579 = vst.msk [vmem:[%s170 + $0x178] sm:$0xff] %vm533, %v444
    %580 = vst.msk [vmem:[%s170 + $0x180] sm:$0xff] %vm533, %v446
    %581 = vst.msk [vmem:[%s170 + $0x188] sm:$0xff] %vm533, %v448
    %582 = vst.msk [vmem:[%s170 + $0x190] sm:$0xff] %vm533, %v450
    %583 = vst.msk [vmem:[%s170 + $0x198] sm:$0xff] %vm533, %v452
    %584 = vst.msk [vmem:[%s170 + $0x1a0] sm:$0xff] %vm533, %v454
    %585 = vst.msk [vmem:[%s170 + $0x1a8] sm:$0xff] %vm533, %v456
    %586 = vst.msk [vmem:[%s170 + $0x1b0] sm:$0xff] %vm533, %v458
    %587 = vst.msk [vmem:[%s170 + $0x1b8] sm:$0xff] %vm533, %v460
    %588 = vst.msk [vmem:[%s170 + $0x1c0] sm:$0xff] %vm533, %v462
    %589 = vst.msk [vmem:[%s170 + $0x1c8] sm:$0xff] %vm533, %v464
    %590 = vst.msk [vmem:[%s170 + $0x1d0] sm:$0xff] %vm533, %v466
    %591 = vst.msk [vmem:[%s170 + $0x1d8] sm:$0xff] %vm533, %v468
    %592 = vst.msk [vmem:[%s170 + $0x1e0] sm:$0xff] %vm533, %v470
    %593 = vst.msk [vmem:[%s170 + $0x1e8] sm:$0xff] %vm533, %v472
    %v594 = vld [vmem:[%s0 + $0x1] sm:$0xff]
    %v595 = vld [vmem:[%s0 + $0x9] sm:$0x7f]
    %v596 = vld [vmem:[%s0 + $0x11] sm:$0xff]
    %v597 = vld [vmem:[%s0 + $0x19] sm:$0x7f]
    %v598 = vld [vmem:[%s0 + $0x21] sm:$0xff]
    %v599 = vld [vmem:[%s0 + $0x29] sm:$0x7f]
    %v600 = vld [vmem:[%s0 + $0x31] sm:$0xff]
    %v601 = vld [vmem:[%s0 + $0x39] sm:$0x7f]
    %v602 = vld [vmem:[%s0 + $0x41] sm:$0xff]
    %v603 = vld [vmem:[%s0 + $0x49] sm:$0x7f]
    %v604 = vld [vmem:[%s0 + $0x51] sm:$0xff]
    %v605 = vld [vmem:[%s0 + $0x59] sm:$0x7f]
    %v606 = vld [vmem:[%s0 + $0x61] sm:$0xff]
    %v607 = vld [vmem:[%s0 + $0x69] sm:$0x7f]
    %v608 = vld [vmem:[%s0 + $0x71] sm:$0xff]
    %v609 = vld [vmem:[%s0 + $0x79] sm:$0x7f]
    %v610 = vld [vmem:[%s0 + $0x81] sm:$0xff]
    %v611 = vld [vmem:[%s0 + $0x89] sm:$0x7f]
    %v612 = vld [vmem:[%s0 + $0x91] sm:$0xff]
    %v613 = vld [vmem:[%s0 + $0x99] sm:$0x7f]
    %v614 = vld [vmem:[%s0 + $0xa1] sm:$0xff]
    %v615 = vld [vmem:[%s0 + $0xa9] sm:$0x7f]
    %v616 = vld [vmem:[%s0 + $0xb1] sm:$0xff]
    %v617 = vld [vmem:[%s0 + $0xb9] sm:$0x7f]
    %v618 = vld [vmem:[%s0 + $0xc1] sm:$0xff]
    %v619 = vld [vmem:[%s0 + $0xc9] sm:$0x7f]
    %v620 = vld [vmem:[%s0 + $0xd1] sm:$0xff]
    %v621 = vld [vmem:[%s0 + $0xd9] sm:$0x7f]
    %v622 = vld [vmem:[%s0 + $0xe1] sm:$0xff]
    %v623 = vld [vmem:[%s0 + $0xe9] sm:$0x7f]
    %v624 = vld [vmem:[%s0 + $0x101] sm:$0xff]
    %v625 = vld [vmem:[%s0 + $0x109] sm:$0x7f]
    %v626 = vld [vmem:[%s0 + $0x111] sm:$0xff]
    %v627 = vld [vmem:[%s0 + $0x119] sm:$0x7f]
    %v628 = vld [vmem:[%s0 + $0x121] sm:$0xff]
    %v629 = vld [vmem:[%s0 + $0x129] sm:$0x7f]
    %v630 = vld [vmem:[%s0 + $0x131] sm:$0xff]
    %v631 = vld [vmem:[%s0 + $0x139] sm:$0x7f]
    %v632 = vld [vmem:[%s0 + $0x141] sm:$0xff]
    %v633 = vld [vmem:[%s0 + $0x149] sm:$0x7f]
    %v634 = vld [vmem:[%s0 + $0x151] sm:$0xff]
    %v635 = vld [vmem:[%s0 + $0x159] sm:$0x7f]
    %v636 = vld [vmem:[%s0 + $0x161] sm:$0xff]
    %v637 = vld [vmem:[%s0 + $0x169] sm:$0x7f]
    %v638 = vld [vmem:[%s0 + $0x171] sm:$0xff]
    %v639 = vld [vmem:[%s0 + $0x179] sm:$0x7f]
    %v640 = vld [vmem:[%s0 + $0x181] sm:$0xff]
    %v641 = vld [vmem:[%s0 + $0x189] sm:$0x7f]
    %v642 = vld [vmem:[%s0 + $0x191] sm:$0xff]
    %v643 = vld [vmem:[%s0 + $0x199] sm:$0x7f]
    %v644 = vld [vmem:[%s0 + $0x1a1] sm:$0xff]
    %v645 = vld [vmem:[%s0 + $0x1a9] sm:$0x7f]
    %v646 = vld [vmem:[%s0 + $0x1b1] sm:$0xff]
    %v647 = vld [vmem:[%s0 + $0x1b9] sm:$0x7f]
    %v648 = vld [vmem:[%s0 + $0x1c1] sm:$0xff]
    %v649 = vld [vmem:[%s0 + $0x1c9] sm:$0x7f]
    %v650 = vld [vmem:[%s0 + $0x1d1] sm:$0xff]
    %v651 = vld [vmem:[%s0 + $0x1d9] sm:$0x7f]
    %v652 = vld [vmem:[%s0 + $0x1e1] sm:$0xff]
    %v653 = vld [vmem:[%s0 + $0x1e9] sm:$0x7f]
    %714 = vrot.lane.b32.xlu0 %v594, 8
    %v715 = vpop.permute.xlu0 %714
    %716 = vrot.lane.b32.xlu0 %v595, 8
    %v717 = vpop.permute.xlu0 %716
    %718 = vrot.lane.b32.xlu0 %v596, 8
    %v719 = vpop.permute.xlu0 %718
    %720 = vrot.lane.b32.xlu0 %v597, 8
    %v721 = vpop.permute.xlu0 %720
    %722 = vrot.lane.b32.xlu0 %v598, 8
    %v723 = vpop.permute.xlu0 %722
    %724 = vrot.lane.b32.xlu0 %v599, 8
    %v725 = vpop.permute.xlu0 %724
    %726 = vrot.lane.b32.xlu0 %v600, 8
    %v727 = vpop.permute.xlu0 %726
    %728 = vrot.lane.b32.xlu0 %v601, 8
    %v729 = vpop.permute.xlu0 %728
    %730 = vrot.lane.b32.xlu0 %v602, 8
    %v731 = vpop.permute.xlu0 %730
    %732 = vrot.lane.b32.xlu0 %v603, 8
    %v733 = vpop.permute.xlu0 %732
    %734 = vrot.lane.b32.xlu0 %v604, 8
    %v735 = vpop.permute.xlu0 %734
    %736 = vrot.lane.b32.xlu0 %v605, 8
    %v737 = vpop.permute.xlu0 %736
    %738 = vrot.lane.b32.xlu0 %v606, 8
    %v739 = vpop.permute.xlu0 %738
    %740 = vrot.lane.b32.xlu0 %v607, 8
    %v741 = vpop.permute.xlu0 %740
    %742 = vrot.lane.b32.xlu0 %v608, 8
    %v743 = vpop.permute.xlu0 %742
    %744 = vrot.lane.b32.xlu0 %v609, 8
    %v745 = vpop.permute.xlu0 %744
    %746 = vrot.lane.b32.xlu0 %v610, 8
    %v747 = vpop.permute.xlu0 %746
    %748 = vrot.lane.b32.xlu0 %v611, 8
    %v749 = vpop.permute.xlu0 %748
    %750 = vrot.lane.b32.xlu0 %v612, 8
    %v751 = vpop.permute.xlu0 %750
    %752 = vrot.lane.b32.xlu0 %v613, 8
    %v753 = vpop.permute.xlu0 %752
    %754 = vrot.lane.b32.xlu0 %v614, 8
    %v755 = vpop.permute.xlu0 %754
    %756 = vrot.lane.b32.xlu0 %v615, 8
    %v757 = vpop.permute.xlu0 %756
    %758 = vrot.lane.b32.xlu0 %v616, 8
    %v759 = vpop.permute.xlu0 %758
    %760 = vrot.lane.b32.xlu0 %v617, 8
    %v761 = vpop.permute.xlu0 %760
    %762 = vrot.lane.b32.xlu0 %v618, 8
    %v763 = vpop.permute.xlu0 %762
    %764 = vrot.lane.b32.xlu0 %v619, 8
    %v765 = vpop.permute.xlu0 %764
    %766 = vrot.lane.b32.xlu0 %v620, 8
    %v767 = vpop.permute.xlu0 %766
    %768 = vrot.lane.b32.xlu0 %v621, 8
    %v769 = vpop.permute.xlu0 %768
    %770 = vrot.lane.b32.xlu0 %v622, 8
    %v771 = vpop.permute.xlu0 %770
    %772 = vrot.lane.b32.xlu0 %v623, 8
    %v773 = vpop.permute.xlu0 %772
    %774 = vrot.lane.b32.xlu0 %v624, 8
    %v775 = vpop.permute.xlu0 %774
    %776 = vrot.lane.b32.xlu0 %v625, 8
    %v777 = vpop.permute.xlu0 %776
    %778 = vrot.lane.b32.xlu0 %v626, 8
    %v779 = vpop.permute.xlu0 %778
    %780 = vrot.lane.b32.xlu0 %v627, 8
    %v781 = vpop.permute.xlu0 %780
    %782 = vrot.lane.b32.xlu0 %v628, 8
    %v783 = vpop.permute.xlu0 %782
    %784 = vrot.lane.b32.xlu0 %v629, 8
    %v785 = vpop.permute.xlu0 %784
    %786 = vrot.lane.b32.xlu0 %v630, 8
    %v787 = vpop.permute.xlu0 %786
    %788 = vrot.lane.b32.xlu0 %v631, 8
    %v789 = vpop.permute.xlu0 %788
    %790 = vrot.lane.b32.xlu0 %v632, 8
    %v791 = vpop.permute.xlu0 %790
    %792 = vrot.lane.b32.xlu0 %v633, 8
    %v793 = vpop.permute.xlu0 %792
    %794 = vrot.lane.b32.xlu0 %v634, 8
    %v795 = vpop.permute.xlu0 %794
    %796 = vrot.lane.b32.xlu0 %v635, 8
    %v797 = vpop.permute.xlu0 %796
    %798 = vrot.lane.b32.xlu0 %v636, 8
    %v799 = vpop.permute.xlu0 %798
    %800 = vrot.lane.b32.xlu0 %v637, 8
    %v801 = vpop.permute.xlu0 %800
    %802 = vrot.lane.b32.xlu0 %v638, 8
    %v803 = vpop.permute.xlu0 %802
    %804 = vrot.lane.b32.xlu0 %v639, 8
    %v805 = vpop.permute.xlu0 %804
    %806 = vrot.lane.b32.xlu0 %v640, 8
    %v807 = vpop.permute.xlu0 %806
    %808 = vrot.lane.b32.xlu0 %v641, 8
    %v809 = vpop.permute.xlu0 %808
    %810 = vrot.lane.b32.xlu0 %v642, 8
    %v811 = vpop.permute.xlu0 %810
    %812 = vrot.lane.b32.xlu0 %v643, 8
    %v813 = vpop.permute.xlu0 %812
    %814 = vrot.lane.b32.xlu0 %v644, 8
    %v815 = vpop.permute.xlu0 %814
    %816 = vrot.lane.b32.xlu0 %v645, 8
    %v817 = vpop.permute.xlu0 %816
    %818 = vrot.lane.b32.xlu0 %v646, 8
    %v819 = vpop.permute.xlu0 %818
    %820 = vrot.lane.b32.xlu0 %v647, 8
    %v821 = vpop.permute.xlu0 %820
    %822 = vrot.lane.b32.xlu0 %v648, 8
    %v823 = vpop.permute.xlu0 %822
    %824 = vrot.lane.b32.xlu0 %v649, 8
    %v825 = vpop.permute.xlu0 %824
    %826 = vrot.lane.b32.xlu0 %v650, 8
    %v827 = vpop.permute.xlu0 %826
    %828 = vrot.lane.b32.xlu0 %v651, 8
    %v829 = vpop.permute.xlu0 %828
    %830 = vrot.lane.b32.xlu0 %v652, 8
    %v831 = vpop.permute.xlu0 %830
    %832 = vrot.lane.b32.xlu0 %v653, 8
    %v833 = vpop.permute.xlu0 %832
    %vm894 = vcmask 97344
    %895 = vst.msk [vmem:[%s170] sm:$0xff] %vm894, %v715
    %vm896 = vcmask 96320
    %897 = vst.msk [vmem:[%s170 + $0x8] sm:$0x7f] %vm896, %v717
    %898 = vst.msk [vmem:[%s170 + $0x10] sm:$0xff] %vm894, %v719
    %899 = vst.msk [vmem:[%s170 + $0x18] sm:$0x7f] %vm896, %v721
    %900 = vst.msk [vmem:[%s170 + $0x20] sm:$0xff] %vm894, %v723
    %901 = vst.msk [vmem:[%s170 + $0x28] sm:$0x7f] %vm896, %v725
    %902 = vst.msk [vmem:[%s170 + $0x30] sm:$0xff] %vm894, %v727
    %903 = vst.msk [vmem:[%s170 + $0x38] sm:$0x7f] %vm896, %v729
    %904 = vst.msk [vmem:[%s170 + $0x40] sm:$0xff] %vm894, %v731
    %905 = vst.msk [vmem:[%s170 + $0x48] sm:$0x7f] %vm896, %v733
    %906 = vst.msk [vmem:[%s170 + $0x50] sm:$0xff] %vm894, %v735
    %907 = vst.msk [vmem:[%s170 + $0x58] sm:$0x7f] %vm896, %v737
    %908 = vst.msk [vmem:[%s170 + $0x60] sm:$0xff] %vm894, %v739
    %909 = vst.msk [vmem:[%s170 + $0x68] sm:$0x7f] %vm896, %v741
    %910 = vst.msk [vmem:[%s170 + $0x70] sm:$0xff] %vm894, %v743
    %911 = vst.msk [vmem:[%s170 + $0x78] sm:$0x7f] %vm896, %v745
    %912 = vst.msk [vmem:[%s170 + $0x80] sm:$0xff] %vm894, %v747
    %913 = vst.msk [vmem:[%s170 + $0x88] sm:$0x7f] %vm896, %v749
    %914 = vst.msk [vmem:[%s170 + $0x90] sm:$0xff] %vm894, %v751
    %915 = vst.msk [vmem:[%s170 + $0x98] sm:$0x7f] %vm896, %v753
    %916 = vst.msk [vmem:[%s170 + $0xa0] sm:$0xff] %vm894, %v755
    %917 = vst.msk [vmem:[%s170 + $0xa8] sm:$0x7f] %vm896, %v757
    %918 = vst.msk [vmem:[%s170 + $0xb0] sm:$0xff] %vm894, %v759
    %919 = vst.msk [vmem:[%s170 + $0xb8] sm:$0x7f] %vm896, %v761
    %920 = vst.msk [vmem:[%s170 + $0xc0] sm:$0xff] %vm894, %v763
    %921 = vst.msk [vmem:[%s170 + $0xc8] sm:$0x7f] %vm896, %v765
    %922 = vst.msk [vmem:[%s170 + $0xd0] sm:$0xff] %vm894, %v767
    %923 = vst.msk [vmem:[%s170 + $0xd8] sm:$0x7f] %vm896, %v769
    %924 = vst.msk [vmem:[%s170 + $0xe0] sm:$0xff] %vm894, %v771
    %925 = vst.msk [vmem:[%s170 + $0xe8] sm:$0x7f] %vm896, %v773
    %926 = vst.msk [vmem:[%s170 + $0x100] sm:$0xff] %vm894, %v775
    %927 = vst.msk [vmem:[%s170 + $0x108] sm:$0x7f] %vm896, %v777
    %928 = vst.msk [vmem:[%s170 + $0x110] sm:$0xff] %vm894, %v779
    %929 = vst.msk [vmem:[%s170 + $0x118] sm:$0x7f] %vm896, %v781
    %930 = vst.msk [vmem:[%s170 + $0x120] sm:$0xff] %vm894, %v783
    %931 = vst.msk [vmem:[%s170 + $0x128] sm:$0x7f] %vm896, %v785
    %932 = vst.msk [vmem:[%s170 + $0x130] sm:$0xff] %vm894, %v787
    %933 = vst.msk [vmem:[%s170 + $0x138] sm:$0x7f] %vm896, %v789
    %934 = vst.msk [vmem:[%s170 + $0x140] sm:$0xff] %vm894, %v791
    %935 = vst.msk [vmem:[%s170 + $0x148] sm:$0x7f] %vm896, %v793
    %936 = vst.msk [vmem:[%s170 + $0x150] sm:$0xff] %vm894, %v795
    %937 = vst.msk [vmem:[%s170 + $0x158] sm:$0x7f] %vm896, %v797
    %938 = vst.msk [vmem:[%s170 + $0x160] sm:$0xff] %vm894, %v799
    %939 = vst.msk [vmem:[%s170 + $0x168] sm:$0x7f] %vm896, %v801
    %940 = vst.msk [vmem:[%s170 + $0x170] sm:$0xff] %vm894, %v803
    %941 = vst.msk [vmem:[%s170 + $0x178] sm:$0x7f] %vm896, %v805
    %942 = vst.msk [vmem:[%s170 + $0x180] sm:$0xff] %vm894, %v807
    %943 = vst.msk [vmem:[%s170 + $0x188] sm:$0x7f] %vm896, %v809
    %944 = vst.msk [vmem:[%s170 + $0x190] sm:$0xff] %vm894, %v811
    %945 = vst.msk [vmem:[%s170 + $0x198] sm:$0x7f] %vm896, %v813
    %946 = vst.msk [vmem:[%s170 + $0x1a0] sm:$0xff] %vm894, %v815
    %947 = vst.msk [vmem:[%s170 + $0x1a8] sm:$0x7f] %vm896, %v817
    %948 = vst.msk [vmem:[%s170 + $0x1b0] sm:$0xff] %vm894, %v819
    %949 = vst.msk [vmem:[%s170 + $0x1b8] sm:$0x7f] %vm896, %v821
    %950 = vst.msk [vmem:[%s170 + $0x1c0] sm:$0xff] %vm894, %v823
    %951 = vst.msk [vmem:[%s170 + $0x1c8] sm:$0x7f] %vm896, %v825
    %952 = vst.msk [vmem:[%s170 + $0x1d0] sm:$0xff] %vm894, %v827
    %953 = vst.msk [vmem:[%s170 + $0x1d8] sm:$0x7f] %vm896, %v829
    %954 = vst.msk [vmem:[%s170 + $0x1e0] sm:$0xff] %vm894, %v831
    %955 = vst.msk [vmem:[%s170 + $0x1e8] sm:$0x7f] %vm896, %v833
    %v956 = vld [vmem:[%s0] sm:$0xff]
    %v957 = vld [vmem:[%s0 + $0x8] sm:$0x7f]
    %v958 = vld [vmem:[%s0 + $0x10] sm:$0xff]
    %v959 = vld [vmem:[%s0 + $0x18] sm:$0x7f]
    %v960 = vld [vmem:[%s0 + $0x20] sm:$0xff]
    %v961 = vld [vmem:[%s0 + $0x28] sm:$0x7f]
    %v962 = vld [vmem:[%s0 + $0x30] sm:$0xff]
    %v963 = vld [vmem:[%s0 + $0x38] sm:$0x7f]
    %v964 = vld [vmem:[%s0 + $0x40] sm:$0xff]
    %v965 = vld [vmem:[%s0 + $0x48] sm:$0x7f]
    %v966 = vld [vmem:[%s0 + $0x50] sm:$0xff]
    %v967 = vld [vmem:[%s0 + $0x58] sm:$0x7f]
    %v968 = vld [vmem:[%s0 + $0x60] sm:$0xff]
    %v969 = vld [vmem:[%s0 + $0x68] sm:$0x7f]
    %v970 = vld [vmem:[%s0 + $0x70] sm:$0xff]
    %v971 = vld [vmem:[%s0 + $0x78] sm:$0x7f]
    %v972 = vld [vmem:[%s0 + $0x80] sm:$0xff]
    %v973 = vld [vmem:[%s0 + $0x88] sm:$0x7f]
    %v974 = vld [vmem:[%s0 + $0x90] sm:$0xff]
    %v975 = vld [vmem:[%s0 + $0x98] sm:$0x7f]
    %v976 = vld [vmem:[%s0 + $0xa0] sm:$0xff]
    %v977 = vld [vmem:[%s0 + $0xa8] sm:$0x7f]
    %v978 = vld [vmem:[%s0 + $0xb0] sm:$0xff]
    %v979 = vld [vmem:[%s0 + $0xb8] sm:$0x7f]
    %v980 = vld [vmem:[%s0 + $0xc0] sm:$0xff]
    %v981 = vld [vmem:[%s0 + $0xc8] sm:$0x7f]
    %v982 = vld [vmem:[%s0 + $0xd0] sm:$0xff]
    %v983 = vld [vmem:[%s0 + $0xd8] sm:$0x7f]
    %v984 = vld [vmem:[%s0 + $0xe0] sm:$0xff]
    %v985 = vld [vmem:[%s0 + $0xe8] sm:$0x7f]
    %v986 = vld [vmem:[%s0 + $0xf0] sm:$0xff]
    %v987 = vld [vmem:[%s0 + $0xf8] sm:$0x7f]
    %v988 = vld [vmem:[%s0 + $0x100] sm:$0xff]
    %v989 = vld [vmem:[%s0 + $0x108] sm:$0x7f]
    %v990 = vld [vmem:[%s0 + $0x110] sm:$0xff]
    %v991 = vld [vmem:[%s0 + $0x118] sm:$0x7f]
    %v992 = vld [vmem:[%s0 + $0x120] sm:$0xff]
    %v993 = vld [vmem:[%s0 + $0x128] sm:$0x7f]
    %v994 = vld [vmem:[%s0 + $0x130] sm:$0xff]
    %v995 = vld [vmem:[%s0 + $0x138] sm:$0x7f]
    %v996 = vld [vmem:[%s0 + $0x140] sm:$0xff]
    %v997 = vld [vmem:[%s0 + $0x148] sm:$0x7f]
    %v998 = vld [vmem:[%s0 + $0x150] sm:$0xff]
    %v999 = vld [vmem:[%s0 + $0x158] sm:$0x7f]
    %v1000 = vld [vmem:[%s0 + $0x160] sm:$0xff]
    %v1001 = vld [vmem:[%s0 + $0x168] sm:$0x7f]
    %v1002 = vld [vmem:[%s0 + $0x170] sm:$0xff]
    %v1003 = vld [vmem:[%s0 + $0x178] sm:$0x7f]
    %v1004 = vld [vmem:[%s0 + $0x180] sm:$0xff]
    %v1005 = vld [vmem:[%s0 + $0x188] sm:$0x7f]
    %v1006 = vld [vmem:[%s0 + $0x190] sm:$0xff]
    %v1007 = vld [vmem:[%s0 + $0x198] sm:$0x7f]
    %v1008 = vld [vmem:[%s0 + $0x1a0] sm:$0xff]
    %v1009 = vld [vmem:[%s0 + $0x1a8] sm:$0x7f]
    %v1010 = vld [vmem:[%s0 + $0x1b0] sm:$0xff]
    %v1011 = vld [vmem:[%s0 + $0x1b8] sm:$0x7f]
    %v1012 = vld [vmem:[%s0 + $0x1c0] sm:$0xff]
    %v1013 = vld [vmem:[%s0 + $0x1c8] sm:$0x7f]
    %v1014 = vld [vmem:[%s0 + $0x1d0] sm:$0xff]
    %v1015 = vld [vmem:[%s0 + $0x1d8] sm:$0x7f]
    %v1016 = vld [vmem:[%s0 + $0x1e0] sm:$0xff]
    %v1017 = vld [vmem:[%s0 + $0x1e8] sm:$0x7f]
    %v1018 = vld [vmem:[%s0 + $0x1f0] sm:$0xff]
    %v1019 = vld [vmem:[%s0 + $0x1f8] sm:$0x7f]
    %1084 = vrot.lane.b32.xlu0 %v956, 12
    %v1085 = vpop.permute.xlu0 %1084
    %1086 = vrot.lane.b32.xlu0 %v957, 12
    %v1087 = vpop.permute.xlu0 %1086
    %1088 = vrot.lane.b32.xlu0 %v958, 12
    %v1089 = vpop.permute.xlu0 %1088
    %1090 = vrot.lane.b32.xlu0 %v959, 12
    %v1091 = vpop.permute.xlu0 %1090
    %1092 = vrot.lane.b32.xlu0 %v960, 12
    %v1093 = vpop.permute.xlu0 %1092
    %1094 = vrot.lane.b32.xlu0 %v961, 12
    %v1095 = vpop.permute.xlu0 %1094
    %1096 = vrot.lane.b32.xlu0 %v962, 12
    %v1097 = vpop.permute.xlu0 %1096
    %1098 = vrot.lane.b32.xlu0 %v963, 12
    %v1099 = vpop.permute.xlu0 %1098
    %1100 = vrot.lane.b32.xlu0 %v964, 12
    %v1101 = vpop.permute.xlu0 %1100
    %1102 = vrot.lane.b32.xlu0 %v965, 12
    %v1103 = vpop.permute.xlu0 %1102
    %1104 = vrot.lane.b32.xlu0 %v966, 12
    %v1105 = vpop.permute.xlu0 %1104
    %1106 = vrot.lane.b32.xlu0 %v967, 12
    %v1107 = vpop.permute.xlu0 %1106
    %1108 = vrot.lane.b32.xlu0 %v968, 12
    %v1109 = vpop.permute.xlu0 %1108
    %1110 = vrot.lane.b32.xlu0 %v969, 12
    %v1111 = vpop.permute.xlu0 %1110
    %1112 = vrot.lane.b32.xlu0 %v970, 12
    %v1113 = vpop.permute.xlu0 %1112
    %1114 = vrot.lane.b32.xlu0 %v971, 12
    %v1115 = vpop.permute.xlu0 %1114
    %1116 = vrot.lane.b32.xlu0 %v972, 12
    %v1117 = vpop.permute.xlu0 %1116
    %1118 = vrot.lane.b32.xlu0 %v973, 12
    %v1119 = vpop.permute.xlu0 %1118
    %1120 = vrot.lane.b32.xlu0 %v974, 12
    %v1121 = vpop.permute.xlu0 %1120
    %1122 = vrot.lane.b32.xlu0 %v975, 12
    %v1123 = vpop.permute.xlu0 %1122
    %1124 = vrot.lane.b32.xlu0 %v976, 12
    %v1125 = vpop.permute.xlu0 %1124
    %1126 = vrot.lane.b32.xlu0 %v977, 12
    %v1127 = vpop.permute.xlu0 %1126
    %1128 = vrot.lane.b32.xlu0 %v978, 12
    %v1129 = vpop.permute.xlu0 %1128
    %1130 = vrot.lane.b32.xlu0 %v979, 12
    %v1131 = vpop.permute.xlu0 %1130
    %1132 = vrot.lane.b32.xlu0 %v980, 12
    %v1133 = vpop.permute.xlu0 %1132
    %1134 = vrot.lane.b32.xlu0 %v981, 12
    %v1135 = vpop.permute.xlu0 %1134
    %1136 = vrot.lane.b32.xlu0 %v982, 12
    %v1137 = vpop.permute.xlu0 %1136
    %1138 = vrot.lane.b32.xlu0 %v983, 12
    %v1139 = vpop.permute.xlu0 %1138
    %1140 = vrot.lane.b32.xlu0 %v984, 12
    %v1141 = vpop.permute.xlu0 %1140
    %1142 = vrot.lane.b32.xlu0 %v985, 12
    %v1143 = vpop.permute.xlu0 %1142
    %1144 = vrot.lane.b32.xlu0 %v986, 12
    %v1145 = vpop.permute.xlu0 %1144
    %1146 = vrot.lane.b32.xlu0 %v987, 12
    %v1147 = vpop.permute.xlu0 %1146
    %1148 = vrot.lane.b32.xlu0 %v988, 12
    %v1149 = vpop.permute.xlu0 %1148
    %1150 = vrot.lane.b32.xlu0 %v989, 12
    %v1151 = vpop.permute.xlu0 %1150
    %1152 = vrot.lane.b32.xlu0 %v990, 12
    %v1153 = vpop.permute.xlu0 %1152
    %1154 = vrot.lane.b32.xlu0 %v991, 12
    %v1155 = vpop.permute.xlu0 %1154
    %1156 = vrot.lane.b32.xlu0 %v992, 12
    %v1157 = vpop.permute.xlu0 %1156
    %1158 = vrot.lane.b32.xlu0 %v993, 12
    %v1159 = vpop.permute.xlu0 %1158
    %1160 = vrot.lane.b32.xlu0 %v994, 12
    %v1161 = vpop.permute.xlu0 %1160
    %1162 = vrot.lane.b32.xlu0 %v995, 12
    %v1163 = vpop.permute.xlu0 %1162
    %1164 = vrot.lane.b32.xlu0 %v996, 12
    %v1165 = vpop.permute.xlu0 %1164
    %1166 = vrot.lane.b32.xlu0 %v997, 12
    %v1167 = vpop.permute.xlu0 %1166
    %1168 = vrot.lane.b32.xlu0 %v998, 12
    %v1169 = vpop.permute.xlu0 %1168
    %1170 = vrot.lane.b32.xlu0 %v999, 12
    %v1171 = vpop.permute.xlu0 %1170
    %1172 = vrot.lane.b32.xlu0 %v1000, 12
    %v1173 = vpop.permute.xlu0 %1172
    %1174 = vrot.lane.b32.xlu0 %v1001, 12
    %v1175 = vpop.permute.xlu0 %1174
    %1176 = vrot.lane.b32.xlu0 %v1002, 12
    %v1177 = vpop.permute.xlu0 %1176
    %1178 = vrot.lane.b32.xlu0 %v1003, 12
    %v1179 = vpop.permute.xlu0 %1178
    %1180 = vrot.lane.b32.xlu0 %v1004, 12
    %v1181 = vpop.permute.xlu0 %1180
    %1182 = vrot.lane.b32.xlu0 %v1005, 12
    %v1183 = vpop.permute.xlu0 %1182
    %1184 = vrot.lane.b32.xlu0 %v1006, 12
    %v1185 = vpop.permute.xlu0 %1184
    %1186 = vrot.lane.b32.xlu0 %v1007, 12
    %v1187 = vpop.permute.xlu0 %1186
    %1188 = vrot.lane.b32.xlu0 %v1008, 12
    %v1189 = vpop.permute.xlu0 %1188
    %1190 = vrot.lane.b32.xlu0 %v1009, 12
    %v1191 = vpop.permute.xlu0 %1190
    %1192 = vrot.lane.b32.xlu0 %v1010, 12
    %v1193 = vpop.permute.xlu0 %1192
    %1194 = vrot.lane.b32.xlu0 %v1011, 12
    %v1195 = vpop.permute.xlu0 %1194
    %1196 = vrot.lane.b32.xlu0 %v1012, 12
    %v1197 = vpop.permute.xlu0 %1196
    %1198 = vrot.lane.b32.xlu0 %v1013, 12
    %v1199 = vpop.permute.xlu0 %1198
    %1200 = vrot.lane.b32.xlu0 %v1014, 12
    %v1201 = vpop.permute.xlu0 %1200
    %1202 = vrot.lane.b32.xlu0 %v1015, 12
    %v1203 = vpop.permute.xlu0 %1202
    %1204 = vrot.lane.b32.xlu0 %v1016, 12
    %v1205 = vpop.permute.xlu0 %1204
    %1206 = vrot.lane.b32.xlu0 %v1017, 12
    %v1207 = vpop.permute.xlu0 %1206
    %1208 = vrot.lane.b32.xlu0 %v1018, 12
    %v1209 = vpop.permute.xlu0 %1208
    %1210 = vrot.lane.b32.xlu0 %v1019, 12
    %v1211 = vpop.permute.xlu0 %1210
    %vm1276 = vcmask 130144
    %1277 = vst.msk [vmem:[#allocation2 + $0x1] sm:$0xff] %vm1276, %v1085
    %vm1278 = vcmask 129120
    %1279 = vst.msk [vmem:[#allocation2 + $0x9] sm:$0x7f] %vm1278, %v1087
    %1280 = vst.msk [vmem:[#allocation2 + $0x11] sm:$0xff] %vm1276, %v1089
    %1281 = vst.msk [vmem:[#allocation2 + $0x19] sm:$0x7f] %vm1278, %v1091
    %1282 = vst.msk [vmem:[#allocation2 + $0x21] sm:$0xff] %vm1276, %v1093
    %1283 = vst.msk [vmem:[#allocation2 + $0x29] sm:$0x7f] %vm1278, %v1095
    %1284 = vst.msk [vmem:[#allocation2 + $0x31] sm:$0xff] %vm1276, %v1097
    %1285 = vst.msk [vmem:[#allocation2 + $0x39] sm:$0x7f] %vm1278, %v1099
    %1286 = vst.msk [vmem:[#allocation2 + $0x41] sm:$0xff] %vm1276, %v1101
    %1287 = vst.msk [vmem:[#allocation2 + $0x49] sm:$0x7f] %vm1278, %v1103
    %1288 = vst.msk [vmem:[#allocation2 + $0x51] sm:$0xff] %vm1276, %v1105
    %1289 = vst.msk [vmem:[#allocation2 + $0x59] sm:$0x7f] %vm1278, %v1107
    %1290 = vst.msk [vmem:[#allocation2 + $0x61] sm:$0xff] %vm1276, %v1109
    %1291 = vst.msk [vmem:[#allocation2 + $0x69] sm:$0x7f] %vm1278, %v1111
    %1292 = vst.msk [vmem:[#allocation2 + $0x71] sm:$0xff] %vm1276, %v1113
    %1293 = vst.msk [vmem:[#allocation2 + $0x79] sm:$0x7f] %vm1278, %v1115
    %1294 = vst.msk [vmem:[#allocation2 + $0x81] sm:$0xff] %vm1276, %v1117
    %1295 = vst.msk [vmem:[#allocation2 + $0x89] sm:$0x7f] %vm1278, %v1119
    %1296 = vst.msk [vmem:[#allocation2 + $0x91] sm:$0xff] %vm1276, %v1121
    %1297 = vst.msk [vmem:[#allocation2 + $0x99] sm:$0x7f] %vm1278, %v1123
    %1298 = vst.msk [vmem:[#allocation2 + $0xa1] sm:$0xff] %vm1276, %v1125
    %1299 = vst.msk [vmem:[#allocation2 + $0xa9] sm:$0x7f] %vm1278, %v1127
    %1300 = vst.msk [vmem:[#allocation2 + $0xb1] sm:$0xff] %vm1276, %v1129
    %1301 = vst.msk [vmem:[#allocation2 + $0xb9] sm:$0x7f] %vm1278, %v1131
    %1302 = vst.msk [vmem:[#allocation2 + $0xc1] sm:$0xff] %vm1276, %v1133
    %1303 = vst.msk [vmem:[#allocation2 + $0xc9] sm:$0x7f] %vm1278, %v1135
    %1304 = vst.msk [vmem:[#allocation2 + $0xd1] sm:$0xff] %vm1276, %v1137
    %1305 = vst.msk [vmem:[#allocation2 + $0xd9] sm:$0x7f] %vm1278, %v1139
    %1306 = vst.msk [vmem:[#allocation2 + $0xe1] sm:$0xff] %vm1276, %v1141
    %1307 = vst.msk [vmem:[#allocation2 + $0xe9] sm:$0x7f] %vm1278, %v1143
    %1308 = vst.msk [vmem:[#allocation2 + $0xf1] sm:$0xff] %vm1276, %v1145
    %1309 = vst.msk [vmem:[#allocation2 + $0xf9] sm:$0x7f] %vm1278, %v1147
    %1310 = vst.msk [vmem:[#allocation2 + $0x101] sm:$0xff] %vm1276, %v1149
    %1311 = vst.msk [vmem:[#allocation2 + $0x109] sm:$0x7f] %vm1278, %v1151
    %1312 = vst.msk [vmem:[#allocation2 + $0x111] sm:$0xff] %vm1276, %v1153
    %1313 = vst.msk [vmem:[#allocation2 + $0x119] sm:$0x7f] %vm1278, %v1155
    %1314 = vst.msk [vmem:[#allocation2 + $0x121] sm:$0xff] %vm1276, %v1157
    %1315 = vst.msk [vmem:[#allocation2 + $0x129] sm:$0x7f] %vm1278, %v1159
    %1316 = vst.msk [vmem:[#allocation2 + $0x131] sm:$0xff] %vm1276, %v1161
    %1317 = vst.msk [vmem:[#allocation2 + $0x139] sm:$0x7f] %vm1278, %v1163
    %1318 = vst.msk [vmem:[#allocation2 + $0x141] sm:$0xff] %vm1276, %v1165
    %1319 = vst.msk [vmem:[#allocation2 + $0x149] sm:$0x7f] %vm1278, %v1167
    %1320 = vst.msk [vmem:[#allocation2 + $0x151] sm:$0xff] %vm1276, %v1169
    %1321 = vst.msk [vmem:[#allocation2 + $0x159] sm:$0x7f] %vm1278, %v1171
    %1322 = vst.msk [vmem:[#allocation2 + $0x161] sm:$0xff] %vm1276, %v1173
    %1323 = vst.msk [vmem:[#allocation2 + $0x169] sm:$0x7f] %vm1278, %v1175
    %1324 = vst.msk [vmem:[#allocation2 + $0x171] sm:$0xff] %vm1276, %v1177
    %1325 = vst.msk [vmem:[#allocation2 + $0x179] sm:$0x7f] %vm1278, %v1179
    %1326 = vst.msk [vmem:[#allocation2 + $0x181] sm:$0xff] %vm1276, %v1181
    %1327 = vst.msk [vmem:[#allocation2 + $0x189] sm:$0x7f] %vm1278, %v1183
    %1328 = vst.msk [vmem:[#allocation2 + $0x191] sm:$0xff] %vm1276, %v1185
    %1329 = vst.msk [vmem:[#allocation2 + $0x199] sm:$0x7f] %vm1278, %v1187
    %1330 = vst.msk [vmem:[#allocation2 + $0x1a1] sm:$0xff] %vm1276, %v1189
    %1331 = vst.msk [vmem:[#allocation2 + $0x1a9] sm:$0x7f] %vm1278, %v1191
    %1332 = vst.msk [vmem:[#allocation2 + $0x1b1] sm:$0xff] %vm1276, %v1193
    %1333 = vst.msk [vmem:[#allocation2 + $0x1b9] sm:$0x7f] %vm1278, %v1195
    %1334 = vst.msk [vmem:[#allocation2 + $0x1c1] sm:$0xff] %vm1276, %v1197
    %1335 = vst.msk [vmem:[#allocation2 + $0x1c9] sm:$0x7f] %vm1278, %v1199
    %1336 = vst.msk [vmem:[#allocation2 + $0x1d1] sm:$0xff] %vm1276, %v1201
    %1337 = vst.msk [vmem:[#allocation2 + $0x1d9] sm:$0x7f] %vm1278, %v1203
    %1338 = vst.msk [vmem:[#allocation2 + $0x1e1] sm:$0xff] %vm1276, %v1205
    %1339 = vst.msk [vmem:[#allocation2 + $0x1e9] sm:$0x7f] %vm1278, %v1207
    %1340 = vst.msk [vmem:[#allocation2 + $0x1f1] sm:$0xff] %vm1276, %v1209
    %1341 = vst.msk [vmem:[#allocation2 + $0x1f9] sm:$0x7f] %vm1278, %v1211
    %v1342 = vld [vmem:[%s0] sm:$0xff]
    %v1343 = vld [vmem:[%s0 + $0x8] sm:$0xff]
    %v1344 = vld [vmem:[%s0 + $0x10] sm:$0xff]
    %v1345 = vld [vmem:[%s0 + $0x18] sm:$0xff]
    %v1346 = vld [vmem:[%s0 + $0x20] sm:$0xff]
    %v1347 = vld [vmem:[%s0 + $0x28] sm:$0xff]
    %v1348 = vld [vmem:[%s0 + $0x30] sm:$0xff]
    %v1349 = vld [vmem:[%s0 + $0x38] sm:$0xff]
    %v1350 = vld [vmem:[%s0 + $0x40] sm:$0xff]
    %v1351 = vld [vmem:[%s0 + $0x48] sm:$0xff]
    %v1352 = vld [vmem:[%s0 + $0x50] sm:$0xff]
    %v1353 = vld [vmem:[%s0 + $0x58] sm:$0xff]
    %v1354 = vld [vmem:[%s0 + $0x60] sm:$0xff]
    %v1355 = vld [vmem:[%s0 + $0x68] sm:$0xff]
    %v1356 = vld [vmem:[%s0 + $0x70] sm:$0xff]
    %v1357 = vld [vmem:[%s0 + $0x78] sm:$0xff]
    %v1358 = vld [vmem:[%s0 + $0x80] sm:$0xff]
    %v1359 = vld [vmem:[%s0 + $0x88] sm:$0xff]
    %v1360 = vld [vmem:[%s0 + $0x90] sm:$0xff]
    %v1361 = vld [vmem:[%s0 + $0x98] sm:$0xff]
    %v1362 = vld [vmem:[%s0 + $0xa0] sm:$0xff]
    %v1363 = vld [vmem:[%s0 + $0xa8] sm:$0xff]
    %v1364 = vld [vmem:[%s0 + $0xb0] sm:$0xff]
    %v1365 = vld [vmem:[%s0 + $0xb8] sm:$0xff]
    %v1366 = vld [vmem:[%s0 + $0xc0] sm:$0xff]
    %v1367 = vld [vmem:[%s0 + $0xc8] sm:$0xff]
    %v1368 = vld [vmem:[%s0 + $0xd0] sm:$0xff]
    %v1369 = vld [vmem:[%s0 + $0xd8] sm:$0xff]
    %v1370 = vld [vmem:[%s0 + $0xe0] sm:$0xff]
    %v1371 = vld [vmem:[%s0 + $0xe8] sm:$0xff]
    %v1372 = vld [vmem:[%s0 + $0xf0] sm:$0xff]
    %v1373 = vld [vmem:[%s0 + $0xf8] sm:$0xff]
    %v1374 = vld [vmem:[%s0 + $0x100] sm:$0xff]
    %v1375 = vld [vmem:[%s0 + $0x108] sm:$0xff]
    %v1376 = vld [vmem:[%s0 + $0x110] sm:$0xff]
    %v1377 = vld [vmem:[%s0 + $0x118] sm:$0xff]
    %v1378 = vld [vmem:[%s0 + $0x120] sm:$0xff]
    %v1379 = vld [vmem:[%s0 + $0x128] sm:$0xff]
    %v1380 = vld [vmem:[%s0 + $0x130] sm:$0xff]
    %v1381 = vld [vmem:[%s0 + $0x138] sm:$0xff]
    %v1382 = vld [vmem:[%s0 + $0x140] sm:$0xff]
    %v1383 = vld [vmem:[%s0 + $0x148] sm:$0xff]
    %v1384 = vld [vmem:[%s0 + $0x150] sm:$0xff]
    %v1385 = vld [vmem:[%s0 + $0x158] sm:$0xff]
    %v1386 = vld [vmem:[%s0 + $0x160] sm:$0xff]
    %v1387 = vld [vmem:[%s0 + $0x168] sm:$0xff]
    %v1388 = vld [vmem:[%s0 + $0x170] sm:$0xff]
    %v1389 = vld [vmem:[%s0 + $0x178] sm:$0xff]
    %v1390 = vld [vmem:[%s0 + $0x180] sm:$0xff]
    %v1391 = vld [vmem:[%s0 + $0x188] sm:$0xff]
    %v1392 = vld [vmem:[%s0 + $0x190] sm:$0xff]
    %v1393 = vld [vmem:[%s0 + $0x198] sm:$0xff]
    %v1394 = vld [vmem:[%s0 + $0x1a0] sm:$0xff]
    %v1395 = vld [vmem:[%s0 + $0x1a8] sm:$0xff]
    %v1396 = vld [vmem:[%s0 + $0x1b0] sm:$0xff]
    %v1397 = vld [vmem:[%s0 + $0x1b8] sm:$0xff]
    %v1398 = vld [vmem:[%s0 + $0x1c0] sm:$0xff]
    %v1399 = vld [vmem:[%s0 + $0x1c8] sm:$0xff]
    %v1400 = vld [vmem:[%s0 + $0x1d0] sm:$0xff]
    %v1401 = vld [vmem:[%s0 + $0x1d8] sm:$0xff]
    %v1402 = vld [vmem:[%s0 + $0x1e0] sm:$0xff]
    %v1403 = vld [vmem:[%s0 + $0x1e8] sm:$0xff]
    %v1404 = vld [vmem:[%s0 + $0x1f0] sm:$0xff]
    %v1405 = vld [vmem:[%s0 + $0x1f8] sm:$0xff]
    %1470 = vrot.lane.b32.xlu0 %v1342, 16
    %v1471 = vpop.permute.xlu0 %1470
    %1472 = vrot.lane.b32.xlu0 %v1343, 16
    %v1473 = vpop.permute.xlu0 %1472
    %1474 = vrot.lane.b32.xlu0 %v1344, 16
    %v1475 = vpop.permute.xlu0 %1474
    %1476 = vrot.lane.b32.xlu0 %v1345, 16
    %v1477 = vpop.permute.xlu0 %1476
    %1478 = vrot.lane.b32.xlu0 %v1346, 16
    %v1479 = vpop.permute.xlu0 %1478
    %1480 = vrot.lane.b32.xlu0 %v1347, 16
    %v1481 = vpop.permute.xlu0 %1480
    %1482 = vrot.lane.b32.xlu0 %v1348, 16
    %v1483 = vpop.permute.xlu0 %1482
    %1484 = vrot.lane.b32.xlu0 %v1349, 16
    %v1485 = vpop.permute.xlu0 %1484
    %1486 = vrot.lane.b32.xlu0 %v1350, 16
    %v1487 = vpop.permute.xlu0 %1486
    %1488 = vrot.lane.b32.xlu0 %v1351, 16
    %v1489 = vpop.permute.xlu0 %1488
    %1490 = vrot.lane.b32.xlu0 %v1352, 16
    %v1491 = vpop.permute.xlu0 %1490
    %1492 = vrot.lane.b32.xlu0 %v1353, 16
    %v1493 = vpop.permute.xlu0 %1492
    %1494 = vrot.lane.b32.xlu0 %v1354, 16
    %v1495 = vpop.permute.xlu0 %1494
    %1496 = vrot.lane.b32.xlu0 %v1355, 16
    %v1497 = vpop.permute.xlu0 %1496
    %1498 = vrot.lane.b32.xlu0 %v1356, 16
    %v1499 = vpop.permute.xlu0 %1498
    %1500 = vrot.lane.b32.xlu0 %v1357, 16
    %v1501 = vpop.permute.xlu0 %1500
    %1502 = vrot.lane.b32.xlu0 %v1358, 16
    %v1503 = vpop.permute.xlu0 %1502
    %1504 = vrot.lane.b32.xlu0 %v1359, 16
    %v1505 = vpop.permute.xlu0 %1504
    %1506 = vrot.lane.b32.xlu0 %v1360, 16
    %v1507 = vpop.permute.xlu0 %1506
    %1508 = vrot.lane.b32.xlu0 %v1361, 16
    %v1509 = vpop.permute.xlu0 %1508
    %1510 = vrot.lane.b32.xlu0 %v1362, 16
    %v1511 = vpop.permute.xlu0 %1510
    %1512 = vrot.lane.b32.xlu0 %v1363, 16
    %v1513 = vpop.permute.xlu0 %1512
    %1514 = vrot.lane.b32.xlu0 %v1364, 16
    %v1515 = vpop.permute.xlu0 %1514
    %1516 = vrot.lane.b32.xlu0 %v1365, 16
    %v1517 = vpop.permute.xlu0 %1516
    %1518 = vrot.lane.b32.xlu0 %v1366, 16
    %v1519 = vpop.permute.xlu0 %1518
    %1520 = vrot.lane.b32.xlu0 %v1367, 16
    %v1521 = vpop.permute.xlu0 %1520
    %1522 = vrot.lane.b32.xlu0 %v1368, 16
    %v1523 = vpop.permute.xlu0 %1522
    %1524 = vrot.lane.b32.xlu0 %v1369, 16
    %v1525 = vpop.permute.xlu0 %1524
    %1526 = vrot.lane.b32.xlu0 %v1370, 16
    %v1527 = vpop.permute.xlu0 %1526
    %1528 = vrot.lane.b32.xlu0 %v1371, 16
    %v1529 = vpop.permute.xlu0 %1528
    %1530 = vrot.lane.b32.xlu0 %v1372, 16
    %v1531 = vpop.permute.xlu0 %1530
    %1532 = vrot.lane.b32.xlu0 %v1373, 16
    %v1533 = vpop.permute.xlu0 %1532
    %1534 = vrot.lane.b32.xlu0 %v1374, 16
    %v1535 = vpop.permute.xlu0 %1534
    %1536 = vrot.lane.b32.xlu0 %v1375, 16
    %v1537 = vpop.permute.xlu0 %1536
    %1538 = vrot.lane.b32.xlu0 %v1376, 16
    %v1539 = vpop.permute.xlu0 %1538
    %1540 = vrot.lane.b32.xlu0 %v1377, 16
    %v1541 = vpop.permute.xlu0 %1540
    %1542 = vrot.lane.b32.xlu0 %v1378, 16
    %v1543 = vpop.permute.xlu0 %1542
    %1544 = vrot.lane.b32.xlu0 %v1379, 16
    %v1545 = vpop.permute.xlu0 %1544
    %1546 = vrot.lane.b32.xlu0 %v1380, 16
    %v1547 = vpop.permute.xlu0 %1546
    %1548 = vrot.lane.b32.xlu0 %v1381, 16
    %v1549 = vpop.permute.xlu0 %1548
    %1550 = vrot.lane.b32.xlu0 %v1382, 16
    %v1551 = vpop.permute.xlu0 %1550
    %1552 = vrot.lane.b32.xlu0 %v1383, 16
    %v1553 = vpop.permute.xlu0 %1552
    %1554 = vrot.lane.b32.xlu0 %v1384, 16
    %v1555 = vpop.permute.xlu0 %1554
    %1556 = vrot.lane.b32.xlu0 %v1385, 16
    %v1557 = vpop.permute.xlu0 %1556
    %1558 = vrot.lane.b32.xlu0 %v1386, 16
    %v1559 = vpop.permute.xlu0 %1558
    %1560 = vrot.lane.b32.xlu0 %v1387, 16
    %v1561 = vpop.permute.xlu0 %1560
    %1562 = vrot.lane.b32.xlu0 %v1388, 16
    %v1563 = vpop.permute.xlu0 %1562
    %1564 = vrot.lane.b32.xlu0 %v1389, 16
    %v1565 = vpop.permute.xlu0 %1564
    %1566 = vrot.lane.b32.xlu0 %v1390, 16
    %v1567 = vpop.permute.xlu0 %1566
    %1568 = vrot.lane.b32.xlu0 %v1391, 16
    %v1569 = vpop.permute.xlu0 %1568
    %1570 = vrot.lane.b32.xlu0 %v1392, 16
    %v1571 = vpop.permute.xlu0 %1570
    %1572 = vrot.lane.b32.xlu0 %v1393, 16
    %v1573 = vpop.permute.xlu0 %1572
    %1574 = vrot.lane.b32.xlu0 %v1394, 16
    %v1575 = vpop.permute.xlu0 %1574
    %1576 = vrot.lane.b32.xlu0 %v1395, 16
    %v1577 = vpop.permute.xlu0 %1576
    %1578 = vrot.lane.b32.xlu0 %v1396, 16
    %v1579 = vpop.permute.xlu0 %1578
    %1580 = vrot.lane.b32.xlu0 %v1397, 16
    %v1581 = vpop.permute.xlu0 %1580
    %1582 = vrot.lane.b32.xlu0 %v1398, 16
    %v1583 = vpop.permute.xlu0 %1582
    %1584 = vrot.lane.b32.xlu0 %v1399, 16
    %v1585 = vpop.permute.xlu0 %1584
    %1586 = vrot.lane.b32.xlu0 %v1400, 16
    %v1587 = vpop.permute.xlu0 %1586
    %1588 = vrot.lane.b32.xlu0 %v1401, 16
    %v1589 = vpop.permute.xlu0 %1588
    %1590 = vrot.lane.b32.xlu0 %v1402, 16
    %v1591 = vpop.permute.xlu0 %1590
    %1592 = vrot.lane.b32.xlu0 %v1403, 16
    %v1593 = vpop.permute.xlu0 %1592
    %1594 = vrot.lane.b32.xlu0 %v1404, 16
    %v1595 = vpop.permute.xlu0 %1594
    %1596 = vrot.lane.b32.xlu0 %v1405, 16
    %v1597 = vpop.permute.xlu0 %1596
    %vm1662 = vcmask 162944
    %1663 = vst.msk [vmem:[#allocation2] sm:$0xff] %vm1662, %v1471
    %1664 = vst.msk [vmem:[#allocation2 + $0x8] sm:$0xff] %vm1662, %v1473
    %1665 = vst.msk [vmem:[#allocation2 + $0x10] sm:$0xff] %vm1662, %v1475
    %1666 = vst.msk [vmem:[#allocation2 + $0x18] sm:$0xff] %vm1662, %v1477
    %1667 = vst.msk [vmem:[#allocation2 + $0x20] sm:$0xff] %vm1662, %v1479
    %1668 = vst.msk [vmem:[#allocation2 + $0x28] sm:$0xff] %vm1662, %v1481
    %1669 = vst.msk [vmem:[#allocation2 + $0x30] sm:$0xff] %vm1662, %v1483
    %1670 = vst.msk [vmem:[#allocation2 + $0x38] sm:$0xff] %vm1662, %v1485
    %1671 = vst.msk [vmem:[#allocation2 + $0x40] sm:$0xff] %vm1662, %v1487
    %1672 = vst.msk [vmem:[#allocation2 + $0x48] sm:$0xff] %vm1662, %v1489
    %1673 = vst.msk [vmem:[#allocation2 + $0x50] sm:$0xff] %vm1662, %v1491
    %1674 = vst.msk [vmem:[#allocation2 + $0x58] sm:$0xff] %vm1662, %v1493
    %1675 = vst.msk [vmem:[#allocation2 + $0x60] sm:$0xff] %vm1662, %v1495
    %1676 = vst.msk [vmem:[#allocation2 + $0x68] sm:$0xff] %vm1662, %v1497
    %1677 = vst.msk [vmem:[#allocation2 + $0x70] sm:$0xff] %vm1662, %v1499
    %1678 = vst.msk [vmem:[#allocation2 + $0x78] sm:$0xff] %vm1662, %v1501
    %1679 = vst.msk [vmem:[#allocation2 + $0x80] sm:$0xff] %vm1662, %v1503
    %1680 = vst.msk [vmem:[#allocation2 + $0x88] sm:$0xff] %vm1662, %v1505
    %1681 = vst.msk [vmem:[#allocation2 + $0x90] sm:$0xff] %vm1662, %v1507
    %1682 = vst.msk [vmem:[#allocation2 + $0x98] sm:$0xff] %vm1662, %v1509
    %1683 = vst.msk [vmem:[#allocation2 + $0xa0] sm:$0xff] %vm1662, %v1511
    %1684 = vst.msk [vmem:[#allocation2 + $0xa8] sm:$0xff] %vm1662, %v1513
    %1685 = vst.msk [vmem:[#allocation2 + $0xb0] sm:$0xff] %vm1662, %v1515
    %1686 = vst.msk [vmem:[#allocation2 + $0xb8] sm:$0xff] %vm1662, %v1517
    %1687 = vst.msk [vmem:[#allocation2 + $0xc0] sm:$0xff] %vm1662, %v1519
    %1688 = vst.msk [vmem:[#allocation2 + $0xc8] sm:$0xff] %vm1662, %v1521
    %1689 = vst.msk [vmem:[#allocation2 + $0xd0] sm:$0xff] %vm1662, %v1523
    %1690 = vst.msk [vmem:[#allocation2 + $0xd8] sm:$0xff] %vm1662, %v1525
    %1691 = vst.msk [vmem:[#allocation2 + $0xe0] sm:$0xff] %vm1662, %v1527
    %1692 = vst.msk [vmem:[#allocation2 + $0xe8] sm:$0xff] %vm1662, %v1529
    %1693 = vst.msk [vmem:[#allocation2 + $0xf0] sm:$0xff] %vm1662, %v1531
    %1694 = vst.msk [vmem:[#allocation2 + $0xf8] sm:$0xff] %vm1662, %v1533
    %1695 = vst.msk [vmem:[#allocation2 + $0x100] sm:$0xff] %vm1662, %v1535
    %1696 = vst.msk [vmem:[#allocation2 + $0x108] sm:$0xff] %vm1662, %v1537
    %1697 = vst.msk [vmem:[#allocation2 + $0x110] sm:$0xff] %vm1662, %v1539
    %1698 = vst.msk [vmem:[#allocation2 + $0x118] sm:$0xff] %vm1662, %v1541
    %1699 = vst.msk [vmem:[#allocation2 + $0x120] sm:$0xff] %vm1662, %v1543
    %1700 = vst.msk [vmem:[#allocation2 + $0x128] sm:$0xff] %vm1662, %v1545
    %1701 = vst.msk [vmem:[#allocation2 + $0x130] sm:$0xff] %vm1662, %v1547
    %1702 = vst.msk [vmem:[#allocation2 + $0x138] sm:$0xff] %vm1662, %v1549
    %1703 = vst.msk [vmem:[#allocation2 + $0x140] sm:$0xff] %vm1662, %v1551
    %1704 = vst.msk [vmem:[#allocation2 + $0x148] sm:$0xff] %vm1662, %v1553
    %1705 = vst.msk [vmem:[#allocation2 + $0x150] sm:$0xff] %vm1662, %v1555
    %1706 = vst.msk [vmem:[#allocation2 + $0x158] sm:$0xff] %vm1662, %v1557
    %1707 = vst.msk [vmem:[#allocation2 + $0x160] sm:$0xff] %vm1662, %v1559
    %1708 = vst.msk [vmem:[#allocation2 + $0x168] sm:$0xff] %vm1662, %v1561
    %1709 = vst.msk [vmem:[#allocation2 + $0x170] sm:$0xff] %vm1662, %v1563
    %1710 = vst.msk [vmem:[#allocation2 + $0x178] sm:$0xff] %vm1662, %v1565
    %1711 = vst.msk [vmem:[#allocation2 + $0x180] sm:$0xff] %vm1662, %v1567
    %1712 = vst.msk [vmem:[#allocation2 + $0x188] sm:$0xff] %vm1662, %v1569
    %1713 = vst.msk [vmem:[#allocation2 + $0x190] sm:$0xff] %vm1662, %v1571
    %1714 = vst.msk [vmem:[#allocation2 + $0x198] sm:$0xff] %vm1662, %v1573
    %1715 = vst.msk [vmem:[#allocation2 + $0x1a0] sm:$0xff] %vm1662, %v1575
    %1716 = vst.msk [vmem:[#allocation2 + $0x1a8] sm:$0xff] %vm1662, %v1577
    %1717 = vst.msk [vmem:[#allocation2 + $0x1b0] sm:$0xff] %vm1662, %v1579
    %1718 = vst.msk [vmem:[#allocation2 + $0x1b8] sm:$0xff] %vm1662, %v1581
    %1719 = vst.msk [vmem:[#allocation2 + $0x1c0] sm:$0xff] %vm1662, %v1583
    %1720 = vst.msk [vmem:[#allocation2 + $0x1c8] sm:$0xff] %vm1662, %v1585
    %1721 = vst.msk [vmem:[#allocation2 + $0x1d0] sm:$0xff] %vm1662, %v1587
    %1722 = vst.msk [vmem:[#allocation2 + $0x1d8] sm:$0xff] %vm1662, %v1589
    %1723 = vst.msk [vmem:[#allocation2 + $0x1e0] sm:$0xff] %vm1662, %v1591
    %1724 = vst.msk [vmem:[#allocation2 + $0x1e8] sm:$0xff] %vm1662, %v1593
    %1725 = vst.msk [vmem:[#allocation2 + $0x1f0] sm:$0xff] %vm1662, %v1595
    %1726 = vst.msk [vmem:[#allocation2 + $0x1f8] sm:$0xff] %vm1662, %v1597
    %v1727 = vld [vmem:[%s0 + $0x1] sm:$0xff]
    %v1728 = vld [vmem:[%s0 + $0x9] sm:$0x7f]
    %v1729 = vld [vmem:[%s0 + $0x11] sm:$0xff]
    %v1730 = vld [vmem:[%s0 + $0x19] sm:$0x7f]
    %v1731 = vld [vmem:[%s0 + $0x21] sm:$0xff]
    %v1732 = vld [vmem:[%s0 + $0x29] sm:$0x7f]
    %v1733 = vld [vmem:[%s0 + $0x31] sm:$0xff]
    %v1734 = vld [vmem:[%s0 + $0x39] sm:$0x7f]
    %v1735 = vld [vmem:[%s0 + $0x41] sm:$0xff]
    %v1736 = vld [vmem:[%s0 + $0x49] sm:$0x7f]
    %v1737 = vld [vmem:[%s0 + $0x51] sm:$0xff]
    %v1738 = vld [vmem:[%s0 + $0x59] sm:$0x7f]
    %v1739 = vld [vmem:[%s0 + $0x61] sm:$0xff]
    %v1740 = vld [vmem:[%s0 + $0x69] sm:$0x7f]
    %v1741 = vld [vmem:[%s0 + $0x71] sm:$0xff]
    %v1742 = vld [vmem:[%s0 + $0x79] sm:$0x7f]
    %v1743 = vld [vmem:[%s0 + $0x81] sm:$0xff]
    %v1744 = vld [vmem:[%s0 + $0x89] sm:$0x7f]
    %v1745 = vld [vmem:[%s0 + $0x91] sm:$0xff]
    %v1746 = vld [vmem:[%s0 + $0x99] sm:$0x7f]
    %v1747 = vld [vmem:[%s0 + $0xa1] sm:$0xff]
    %v1748 = vld [vmem:[%s0 + $0xa9] sm:$0x7f]
    %v1749 = vld [vmem:[%s0 + $0xb1] sm:$0xff]
    %v1750 = vld [vmem:[%s0 + $0xb9] sm:$0x7f]
    %v1751 = vld [vmem:[%s0 + $0xc1] sm:$0xff]
    %v1752 = vld [vmem:[%s0 + $0xc9] sm:$0x7f]
    %v1753 = vld [vmem:[%s0 + $0xd1] sm:$0xff]
    %v1754 = vld [vmem:[%s0 + $0xd9] sm:$0x7f]
    %v1755 = vld [vmem:[%s0 + $0xe1] sm:$0xff]
    %v1756 = vld [vmem:[%s0 + $0xe9] sm:$0x7f]
    %v1757 = vld [vmem:[%s0 + $0xf1] sm:$0xff]
    %v1758 = vld [vmem:[%s0 + $0xf9] sm:$0x7f]
    %v1759 = vld [vmem:[%s0 + $0x101] sm:$0xff]
    %v1760 = vld [vmem:[%s0 + $0x109] sm:$0x7f]
    %v1761 = vld [vmem:[%s0 + $0x111] sm:$0xff]
    %v1762 = vld [vmem:[%s0 + $0x119] sm:$0x7f]
    %v1763 = vld [vmem:[%s0 + $0x121] sm:$0xff]
    %v1764 = vld [vmem:[%s0 + $0x129] sm:$0x7f]
    %v1765 = vld [vmem:[%s0 + $0x131] sm:$0xff]
    %v1766 = vld [vmem:[%s0 + $0x139] sm:$0x7f]
    %v1767 = vld [vmem:[%s0 + $0x141] sm:$0xff]
    %v1768 = vld [vmem:[%s0 + $0x149] sm:$0x7f]
    %v1769 = vld [vmem:[%s0 + $0x151] sm:$0xff]
    %v1770 = vld [vmem:[%s0 + $0x159] sm:$0x7f]
    %v1771 = vld [vmem:[%s0 + $0x161] sm:$0xff]
    %v1772 = vld [vmem:[%s0 + $0x169] sm:$0x7f]
    %v1773 = vld [vmem:[%s0 + $0x171] sm:$0xff]
    %v1774 = vld [vmem:[%s0 + $0x179] sm:$0x7f]
    %v1775 = vld [vmem:[%s0 + $0x181] sm:$0xff]
    %v1776 = vld [vmem:[%s0 + $0x189] sm:$0x7f]
    %v1777 = vld [vmem:[%s0 + $0x191] sm:$0xff]
    %v1778 = vld [vmem:[%s0 + $0x199] sm:$0x7f]
    %v1779 = vld [vmem:[%s0 + $0x1a1] sm:$0xff]
    %v1780 = vld [vmem:[%s0 + $0x1a9] sm:$0x7f]
    %v1781 = vld [vmem:[%s0 + $0x1b1] sm:$0xff]
    %v1782 = vld [vmem:[%s0 + $0x1b9] sm:$0x7f]
    %v1783 = vld [vmem:[%s0 + $0x1c1] sm:$0xff]
    %v1784 = vld [vmem:[%s0 + $0x1c9] sm:$0x7f]
    %v1785 = vld [vmem:[%s0 + $0x1d1] sm:$0xff]
    %v1786 = vld [vmem:[%s0 + $0x1d9] sm:$0x7f]
    %v1787 = vld [vmem:[%s0 + $0x1e1] sm:$0xff]
    %v1788 = vld [vmem:[%s0 + $0x1e9] sm:$0x7f]
    %v1789 = vld [vmem:[%s0 + $0x1f1] sm:$0xff]
    %v1790 = vld [vmem:[%s0 + $0x1f9] sm:$0x7f]
    %1855 = vrot.lane.b32.xlu0 %v1727, 20
    %v1856 = vpop.permute.xlu0 %1855
    %1857 = vrot.lane.b32.xlu0 %v1728, 20
    %v1858 = vpop.permute.xlu0 %1857
    %1859 = vrot.lane.b32.xlu0 %v1729, 20
    %v1860 = vpop.permute.xlu0 %1859
    %1861 = vrot.lane.b32.xlu0 %v1730, 20
    %v1862 = vpop.permute.xlu0 %1861
    %1863 = vrot.lane.b32.xlu0 %v1731, 20
    %v1864 = vpop.permute.xlu0 %1863
    %1865 = vrot.lane.b32.xlu0 %v1732, 20
    %v1866 = vpop.permute.xlu0 %1865
    %1867 = vrot.lane.b32.xlu0 %v1733, 20
    %v1868 = vpop.permute.xlu0 %1867
    %1869 = vrot.lane.b32.xlu0 %v1734, 20
    %v1870 = vpop.permute.xlu0 %1869
    %1871 = vrot.lane.b32.xlu0 %v1735, 20
    %v1872 = vpop.permute.xlu0 %1871
    %1873 = vrot.lane.b32.xlu0 %v1736, 20
    %v1874 = vpop.permute.xlu0 %1873
    %1875 = vrot.lane.b32.xlu0 %v1737, 20
    %v1876 = vpop.permute.xlu0 %1875
    %1877 = vrot.lane.b32.xlu0 %v1738, 20
    %v1878 = vpop.permute.xlu0 %1877
    %1879 = vrot.lane.b32.xlu0 %v1739, 20
    %v1880 = vpop.permute.xlu0 %1879
    %1881 = vrot.lane.b32.xlu0 %v1740, 20
    %v1882 = vpop.permute.xlu0 %1881
    %1883 = vrot.lane.b32.xlu0 %v1741, 20
    %v1884 = vpop.permute.xlu0 %1883
    %1885 = vrot.lane.b32.xlu0 %v1742, 20
    %v1886 = vpop.permute.xlu0 %1885
    %1887 = vrot.lane.b32.xlu0 %v1743, 20
    %v1888 = vpop.permute.xlu0 %1887
    %1889 = vrot.lane.b32.xlu0 %v1744, 20
    %v1890 = vpop.permute.xlu0 %1889
    %1891 = vrot.lane.b32.xlu0 %v1745, 20
    %v1892 = vpop.permute.xlu0 %1891
    %1893 = vrot.lane.b32.xlu0 %v1746, 20
    %v1894 = vpop.permute.xlu0 %1893
    %1895 = vrot.lane.b32.xlu0 %v1747, 20
    %v1896 = vpop.permute.xlu0 %1895
    %1897 = vrot.lane.b32.xlu0 %v1748, 20
    %v1898 = vpop.permute.xlu0 %1897
    %1899 = vrot.lane.b32.xlu0 %v1749, 20
    %v1900 = vpop.permute.xlu0 %1899
    %1901 = vrot.lane.b32.xlu0 %v1750, 20
    %v1902 = vpop.permute.xlu0 %1901
    %1903 = vrot.lane.b32.xlu0 %v1751, 20
    %v1904 = vpop.permute.xlu0 %1903
    %1905 = vrot.lane.b32.xlu0 %v1752, 20
    %v1906 = vpop.permute.xlu0 %1905
    %1907 = vrot.lane.b32.xlu0 %v1753, 20
    %v1908 = vpop.permute.xlu0 %1907
    %1909 = vrot.lane.b32.xlu0 %v1754, 20
    %v1910 = vpop.permute.xlu0 %1909
    %1911 = vrot.lane.b32.xlu0 %v1755, 20
    %v1912 = vpop.permute.xlu0 %1911
    %1913 = vrot.lane.b32.xlu0 %v1756, 20
    %v1914 = vpop.permute.xlu0 %1913
    %1915 = vrot.lane.b32.xlu0 %v1757, 20
    %v1916 = vpop.permute.xlu0 %1915
    %1917 = vrot.lane.b32.xlu0 %v1758, 20
    %v1918 = vpop.permute.xlu0 %1917
    %1919 = vrot.lane.b32.xlu0 %v1759, 20
    %v1920 = vpop.permute.xlu0 %1919
    %1921 = vrot.lane.b32.xlu0 %v1760, 20
    %v1922 = vpop.permute.xlu0 %1921
    %1923 = vrot.lane.b32.xlu0 %v1761, 20
    %v1924 = vpop.permute.xlu0 %1923
    %1925 = vrot.lane.b32.xlu0 %v1762, 20
    %v1926 = vpop.permute.xlu0 %1925
    %1927 = vrot.lane.b32.xlu0 %v1763, 20
    %v1928 = vpop.permute.xlu0 %1927
    %1929 = vrot.lane.b32.xlu0 %v1764, 20
    %v1930 = vpop.permute.xlu0 %1929
    %1931 = vrot.lane.b32.xlu0 %v1765, 20
    %v1932 = vpop.permute.xlu0 %1931
    %1933 = vrot.lane.b32.xlu0 %v1766, 20
    %v1934 = vpop.permute.xlu0 %1933
    %1935 = vrot.lane.b32.xlu0 %v1767, 20
    %v1936 = vpop.permute.xlu0 %1935
    %1937 = vrot.lane.b32.xlu0 %v1768, 20
    %v1938 = vpop.permute.xlu0 %1937
    %1939 = vrot.lane.b32.xlu0 %v1769, 20
    %v1940 = vpop.permute.xlu0 %1939
    %1941 = vrot.lane.b32.xlu0 %v1770, 20
    %v1942 = vpop.permute.xlu0 %1941
    %1943 = vrot.lane.b32.xlu0 %v1771, 20
    %v1944 = vpop.permute.xlu0 %1943
    %1945 = vrot.lane.b32.xlu0 %v1772, 20
    %v1946 = vpop.permute.xlu0 %1945
    %1947 = vrot.lane.b32.xlu0 %v1773, 20
    %v1948 = vpop.permute.xlu0 %1947
    %1949 = vrot.lane.b32.xlu0 %v1774, 20
    %v1950 = vpop.permute.xlu0 %1949
    %1951 = vrot.lane.b32.xlu0 %v1775, 20
    %v1952 = vpop.permute.xlu0 %1951
    %1953 = vrot.lane.b32.xlu0 %v1776, 20
    %v1954 = vpop.permute.xlu0 %1953
    %1955 = vrot.lane.b32.xlu0 %v1777, 20
    %v1956 = vpop.permute.xlu0 %1955
    %1957 = vrot.lane.b32.xlu0 %v1778, 20
    %v1958 = vpop.permute.xlu0 %1957
    %1959 = vrot.lane.b32.xlu0 %v1779, 20
    %v1960 = vpop.permute.xlu0 %1959
    %1961 = vrot.lane.b32.xlu0 %v1780, 20
    %v1962 = vpop.permute.xlu0 %1961
    %1963 = vrot.lane.b32.xlu0 %v1781, 20
    %v1964 = vpop.permute.xlu0 %1963
    %1965 = vrot.lane.b32.xlu0 %v1782, 20
    %v1966 = vpop.permute.xlu0 %1965
    %1967 = vrot.lane.b32.xlu0 %v1783, 20
    %v1968 = vpop.permute.xlu0 %1967
    %1969 = vrot.lane.b32.xlu0 %v1784, 20
    %v1970 = vpop.permute.xlu0 %1969
    %1971 = vrot.lane.b32.xlu0 %v1785, 20
    %v1972 = vpop.permute.xlu0 %1971
    %1973 = vrot.lane.b32.xlu0 %v1786, 20
    %v1974 = vpop.permute.xlu0 %1973
    %1975 = vrot.lane.b32.xlu0 %v1787, 20
    %v1976 = vpop.permute.xlu0 %1975
    %1977 = vrot.lane.b32.xlu0 %v1788, 20
    %v1978 = vpop.permute.xlu0 %1977
    %1979 = vrot.lane.b32.xlu0 %v1789, 20
    %v1980 = vpop.permute.xlu0 %1979
    %1981 = vrot.lane.b32.xlu0 %v1790, 20
    %v1982 = vpop.permute.xlu0 %1981
    %vm2047 = vcmask 195744
    %2048 = vst.msk [vmem:[#allocation2] sm:$0xff] %vm2047, %v1856
    %vm2049 = vcmask 194720
    %2050 = vst.msk [vmem:[#allocation2 + $0x8] sm:$0x7f] %vm2049, %v1858
    %2051 = vst.msk [vmem:[#allocation2 + $0x10] sm:$0xff] %vm2047, %v1860
    %2052 = vst.msk [vmem:[#allocation2 + $0x18] sm:$0x7f] %vm2049, %v1862
    %2053 = vst.msk [vmem:[#allocation2 + $0x20] sm:$0xff] %vm2047, %v1864
    %2054 = vst.msk [vmem:[#allocation2 + $0x28] sm:$0x7f] %vm2049, %v1866
    %2055 = vst.msk [vmem:[#allocation2 + $0x30] sm:$0xff] %vm2047, %v1868
    %2056 = vst.msk [vmem:[#allocation2 + $0x38] sm:$0x7f] %vm2049, %v1870
    %2057 = vst.msk [vmem:[#allocation2 + $0x40] sm:$0xff] %vm2047, %v1872
    %2058 = vst.msk [vmem:[#allocation2 + $0x48] sm:$0x7f] %vm2049, %v1874
    %2059 = vst.msk [vmem:[#allocation2 + $0x50] sm:$0xff] %vm2047, %v1876
    %2060 = vst.msk [vmem:[#allocation2 + $0x58] sm:$0x7f] %vm2049, %v1878
    %2061 = vst.msk [vmem:[#allocation2 + $0x60] sm:$0xff] %vm2047, %v1880
    %2062 = vst.msk [vmem:[#allocation2 + $0x68] sm:$0x7f] %vm2049, %v1882
    %2063 = vst.msk [vmem:[#allocation2 + $0x70] sm:$0xff] %vm2047, %v1884
    %2064 = vst.msk [vmem:[#allocation2 + $0x78] sm:$0x7f] %vm2049, %v1886
    %2065 = vst.msk [vmem:[#allocation2 + $0x80] sm:$0xff] %vm2047, %v1888
    %2066 = vst.msk [vmem:[#allocation2 + $0x88] sm:$0x7f] %vm2049, %v1890
    %2067 = vst.msk [vmem:[#allocation2 + $0x90] sm:$0xff] %vm2047, %v1892
    %2068 = vst.msk [vmem:[#allocation2 + $0x98] sm:$0x7f] %vm2049, %v1894
    %2069 = vst.msk [vmem:[#allocation2 + $0xa0] sm:$0xff] %vm2047, %v1896
    %2070 = vst.msk [vmem:[#allocation2 + $0xa8] sm:$0x7f] %vm2049, %v1898
    %2071 = vst.msk [vmem:[#allocation2 + $0xb0] sm:$0xff] %vm2047, %v1900
    %2072 = vst.msk [vmem:[#allocation2 + $0xb8] sm:$0x7f] %vm2049, %v1902
    %2073 = vst.msk [vmem:[#allocation2 + $0xc0] sm:$0xff] %vm2047, %v1904
    %2074 = vst.msk [vmem:[#allocation2 + $0xc8] sm:$0x7f] %vm2049, %v1906
    %2075 = vst.msk [vmem:[#allocation2 + $0xd0] sm:$0xff] %vm2047, %v1908
    %2076 = vst.msk [vmem:[#allocation2 + $0xd8] sm:$0x7f] %vm2049, %v1910
    %2077 = vst.msk [vmem:[#allocation2 + $0xe0] sm:$0xff] %vm2047, %v1912
    %2078 = vst.msk [vmem:[#allocation2 + $0xe8] sm:$0x7f] %vm2049, %v1914
    %2079 = vst.msk [vmem:[#allocation2 + $0xf0] sm:$0xff] %vm2047, %v1916
    %2080 = vst.msk [vmem:[#allocation2 + $0xf8] sm:$0x7f] %vm2049, %v1918
    %2081 = vst.msk [vmem:[#allocation2 + $0x100] sm:$0xff] %vm2047, %v1920
    %2082 = vst.msk [vmem:[#allocation2 + $0x108] sm:$0x7f] %vm2049, %v1922
    %2083 = vst.msk [vmem:[#allocation2 + $0x110] sm:$0xff] %vm2047, %v1924
    %2084 = vst.msk [vmem:[#allocation2 + $0x118] sm:$0x7f] %vm2049, %v1926
    %2085 = vst.msk [vmem:[#allocation2 + $0x120] sm:$0xff] %vm2047, %v1928
    %2086 = vst.msk [vmem:[#allocation2 + $0x128] sm:$0x7f] %vm2049, %v1930
    %2087 = vst.msk [vmem:[#allocation2 + $0x130] sm:$0xff] %vm2047, %v1932
    %2088 = vst.msk [vmem:[#allocation2 + $0x138] sm:$0x7f] %vm2049, %v1934
    %2089 = vst.msk [vmem:[#allocation2 + $0x140] sm:$0xff] %vm2047, %v1936
    %2090 = vst.msk [vmem:[#allocation2 + $0x148] sm:$0x7f] %vm2049, %v1938
    %2091 = vst.msk [vmem:[#allocation2 + $0x150] sm:$0xff] %vm2047, %v1940
    %2092 = vst.msk [vmem:[#allocation2 + $0x158] sm:$0x7f] %vm2049, %v1942
    %2093 = vst.msk [vmem:[#allocation2 + $0x160] sm:$0xff] %vm2047, %v1944
    %2094 = vst.msk [vmem:[#allocation2 + $0x168] sm:$0x7f] %vm2049, %v1946
    %2095 = vst.msk [vmem:[#allocation2 + $0x170] sm:$0xff] %vm2047, %v1948
    %2096 = vst.msk [vmem:[#allocation2 + $0x178] sm:$0x7f] %vm2049, %v1950
    %2097 = vst.msk [vmem:[#allocation2 + $0x180] sm:$0xff] %vm2047, %v1952
    %2098 = vst.msk [vmem:[#allocation2 + $0x188] sm:$0x7f] %vm2049, %v1954
    %2099 = vst.msk [vmem:[#allocation2 + $0x190] sm:$0xff] %vm2047, %v1956
    %2100 = vst.msk [vmem:[#allocation2 + $0x198] sm:$0x7f] %vm2049, %v1958
    %2101 = vst.msk [vmem:[#allocation2 + $0x1a0] sm:$0xff] %vm2047, %v1960
    %2102 = vst.msk [vmem:[#allocation2 + $0x1a8] sm:$0x7f] %vm2049, %v1962
    %2103 = vst.msk [vmem:[#allocation2 + $0x1b0] sm:$0xff] %vm2047, %v1964
    %2104 = vst.msk [vmem:[#allocation2 + $0x1b8] sm:$0x7f] %vm2049, %v1966
    %2105 = vst.msk [vmem:[#allocation2 + $0x1c0] sm:$0xff] %vm2047, %v1968
    %2106 = vst.msk [vmem:[#allocation2 + $0x1c8] sm:$0x7f] %vm2049, %v1970
    %2107 = vst.msk [vmem:[#allocation2 + $0x1d0] sm:$0xff] %vm2047, %v1972
    %2108 = vst.msk [vmem:[#allocation2 + $0x1d8] sm:$0x7f] %vm2049, %v1974
    %2109 = vst.msk [vmem:[#allocation2 + $0x1e0] sm:$0xff] %vm2047, %v1976
    %2110 = vst.msk [vmem:[#allocation2 + $0x1e8] sm:$0x7f] %vm2049, %v1978
    %2111 = vst.msk [vmem:[#allocation2 + $0x1f0] sm:$0xff] %vm2047, %v1980
    %2112 = vst.msk [vmem:[#allocation2 + $0x1f8] sm:$0x7f] %vm2049, %v1982
    %s2113 = scalar_lea.vmem %s0, 16
    %v2114 = vld [vmem:[%s2113] sm:$0xff]
    %v2115 = vld [vmem:[%s2113 + $0x8] sm:$0x7f]
    %v2116 = vld [vmem:[%s2113 + $0x10] sm:$0xff]
    %v2117 = vld [vmem:[%s2113 + $0x18] sm:$0x7f]
    %v2118 = vld [vmem:[%s2113 + $0x20] sm:$0xff]
    %v2119 = vld [vmem:[%s2113 + $0x28] sm:$0x7f]
    %v2120 = vld [vmem:[%s2113 + $0x30] sm:$0xff]
    %v2121 = vld [vmem:[%s2113 + $0x38] sm:$0x7f]
    %v2122 = vld [vmem:[%s2113 + $0x40] sm:$0xff]
    %v2123 = vld [vmem:[%s2113 + $0x48] sm:$0x7f]
    %v2124 = vld [vmem:[%s2113 + $0x50] sm:$0xff]
    %v2125 = vld [vmem:[%s2113 + $0x58] sm:$0x7f]
    %v2126 = vld [vmem:[%s2113 + $0x60] sm:$0xff]
    %v2127 = vld [vmem:[%s2113 + $0x68] sm:$0x7f]
    %v2128 = vld [vmem:[%s2113 + $0x70] sm:$0xff]
    %v2129 = vld [vmem:[%s2113 + $0x78] sm:$0x7f]
    %v2130 = vld [vmem:[%s2113 + $0x80] sm:$0xff]
    %v2131 = vld [vmem:[%s2113 + $0x88] sm:$0x7f]
    %v2132 = vld [vmem:[%s2113 + $0x90] sm:$0xff]
    %v2133 = vld [vmem:[%s2113 + $0x98] sm:$0x7f]
    %v2134 = vld [vmem:[%s2113 + $0xa0] sm:$0xff]
    %v2135 = vld [vmem:[%s2113 + $0xa8] sm:$0x7f]
    %v2136 = vld [vmem:[%s2113 + $0xb0] sm:$0xff]
    %v2137 = vld [vmem:[%s2113 + $0xb8] sm:$0x7f]
    %v2138 = vld [vmem:[%s2113 + $0xc0] sm:$0xff]
    %v2139 = vld [vmem:[%s2113 + $0xc8] sm:$0x7f]
    %v2140 = vld [vmem:[%s2113 + $0xd0] sm:$0xff]
    %v2141 = vld [vmem:[%s2113 + $0xd8] sm:$0x7f]
    %v2142 = vld [vmem:[%s2113 + $0xe0] sm:$0xff]
    %v2143 = vld [vmem:[%s2113 + $0xe8] sm:$0x7f]
    %v2144 = vld [vmem:[%s2113 + $0x100] sm:$0xff]
    %v2145 = vld [vmem:[%s2113 + $0x108] sm:$0x7f]
    %v2146 = vld [vmem:[%s2113 + $0x110] sm:$0xff]
    %v2147 = vld [vmem:[%s2113 + $0x118] sm:$0x7f]
    %v2148 = vld [vmem:[%s2113 + $0x120] sm:$0xff]
    %v2149 = vld [vmem:[%s2113 + $0x128] sm:$0x7f]
    %v2150 = vld [vmem:[%s2113 + $0x130] sm:$0xff]
    %v2151 = vld [vmem:[%s2113 + $0x138] sm:$0x7f]
    %v2152 = vld [vmem:[%s2113 + $0x140] sm:$0xff]
    %v2153 = vld [vmem:[%s2113 + $0x148] sm:$0x7f]
    %v2154 = vld [vmem:[%s2113 + $0x150] sm:$0xff]
    %v2155 = vld [vmem:[%s2113 + $0x158] sm:$0x7f]
    %v2156 = vld [vmem:[%s2113 + $0x160] sm:$0xff]
    %v2157 = vld [vmem:[%s2113 + $0x168] sm:$0x7f]
    %v2158 = vld [vmem:[%s2113 + $0x170] sm:$0xff]
    %v2159 = vld [vmem:[%s2113 + $0x178] sm:$0x7f]
    %v2160 = vld [vmem:[%s2113 + $0x180] sm:$0xff]
    %v2161 = vld [vmem:[%s2113 + $0x188] sm:$0x7f]
    %v2162 = vld [vmem:[%s2113 + $0x190] sm:$0xff]
    %v2163 = vld [vmem:[%s2113 + $0x198] sm:$0x7f]
    %v2164 = vld [vmem:[%s2113 + $0x1a0] sm:$0xff]
    %v2165 = vld [vmem:[%s2113 + $0x1a8] sm:$0x7f]
    %v2166 = vld [vmem:[%s2113 + $0x1b0] sm:$0xff]
    %v2167 = vld [vmem:[%s2113 + $0x1b8] sm:$0x7f]
    %v2168 = vld [vmem:[%s2113 + $0x1c0] sm:$0xff]
    %v2169 = vld [vmem:[%s2113 + $0x1c8] sm:$0x7f]
    %v2170 = vld [vmem:[%s2113 + $0x1d0] sm:$0xff]
    %v2171 = vld [vmem:[%s2113 + $0x1d8] sm:$0x7f]
    %v2172 = vld [vmem:[%s2113 + $0x1e0] sm:$0xff]
    %v2173 = vld [vmem:[%s2113 + $0x1e8] sm:$0x7f]
    %2234 = vrot.lane.b32.xlu0 %v2114, 24
    %v2235 = vpop.permute.xlu0 %2234
    %2236 = vrot.lane.b32.xlu0 %v2115, 24
    %v2237 = vpop.permute.xlu0 %2236
    %2238 = vrot.lane.b32.xlu0 %v2116, 24
    %v2239 = vpop.permute.xlu0 %2238
    %2240 = vrot.lane.b32.xlu0 %v2117, 24
    %v2241 = vpop.permute.xlu0 %2240
    %2242 = vrot.lane.b32.xlu0 %v2118, 24
    %v2243 = vpop.permute.xlu0 %2242
    %2244 = vrot.lane.b32.xlu0 %v2119, 24
    %v2245 = vpop.permute.xlu0 %2244
    %2246 = vrot.lane.b32.xlu0 %v2120, 24
    %v2247 = vpop.permute.xlu0 %2246
    %2248 = vrot.lane.b32.xlu0 %v2121, 24
    %v2249 = vpop.permute.xlu0 %2248
    %2250 = vrot.lane.b32.xlu0 %v2122, 24
    %v2251 = vpop.permute.xlu0 %2250
    %2252 = vrot.lane.b32.xlu0 %v2123, 24
    %v2253 = vpop.permute.xlu0 %2252
    %2254 = vrot.lane.b32.xlu0 %v2124, 24
    %v2255 = vpop.permute.xlu0 %2254
    %2256 = vrot.lane.b32.xlu0 %v2125, 24
    %v2257 = vpop.permute.xlu0 %2256
    %2258 = vrot.lane.b32.xlu0 %v2126, 24
    %v2259 = vpop.permute.xlu0 %2258
    %2260 = vrot.lane.b32.xlu0 %v2127, 24
    %v2261 = vpop.permute.xlu0 %2260
    %2262 = vrot.lane.b32.xlu0 %v2128, 24
    %v2263 = vpop.permute.xlu0 %2262
    %2264 = vrot.lane.b32.xlu0 %v2129, 24
    %v2265 = vpop.permute.xlu0 %2264
    %2266 = vrot.lane.b32.xlu0 %v2130, 24
    %v2267 = vpop.permute.xlu0 %2266
    %2268 = vrot.lane.b32.xlu0 %v2131, 24
    %v2269 = vpop.permute.xlu0 %2268
    %2270 = vrot.lane.b32.xlu0 %v2132, 24
    %v2271 = vpop.permute.xlu0 %2270
    %2272 = vrot.lane.b32.xlu0 %v2133, 24
    %v2273 = vpop.permute.xlu0 %2272
    %2274 = vrot.lane.b32.xlu0 %v2134, 24
    %v2275 = vpop.permute.xlu0 %2274
    %2276 = vrot.lane.b32.xlu0 %v2135, 24
    %v2277 = vpop.permute.xlu0 %2276
    %2278 = vrot.lane.b32.xlu0 %v2136, 24
    %v2279 = vpop.permute.xlu0 %2278
    %2280 = vrot.lane.b32.xlu0 %v2137, 24
    %v2281 = vpop.permute.xlu0 %2280
    %2282 = vrot.lane.b32.xlu0 %v2138, 24
    %v2283 = vpop.permute.xlu0 %2282
    %2284 = vrot.lane.b32.xlu0 %v2139, 24
    %v2285 = vpop.permute.xlu0 %2284
    %2286 = vrot.lane.b32.xlu0 %v2140, 24
    %v2287 = vpop.permute.xlu0 %2286
    %2288 = vrot.lane.b32.xlu0 %v2141, 24
    %v2289 = vpop.permute.xlu0 %2288
    %2290 = vrot.lane.b32.xlu0 %v2142, 24
    %v2291 = vpop.permute.xlu0 %2290
    %2292 = vrot.lane.b32.xlu0 %v2143, 24
    %v2293 = vpop.permute.xlu0 %2292
    %2294 = vrot.lane.b32.xlu0 %v2144, 24
    %v2295 = vpop.permute.xlu0 %2294
    %2296 = vrot.lane.b32.xlu0 %v2145, 24
    %v2297 = vpop.permute.xlu0 %2296
    %2298 = vrot.lane.b32.xlu0 %v2146, 24
    %v2299 = vpop.permute.xlu0 %2298
    %2300 = vrot.lane.b32.xlu0 %v2147, 24
    %v2301 = vpop.permute.xlu0 %2300
    %2302 = vrot.lane.b32.xlu0 %v2148, 24
    %v2303 = vpop.permute.xlu0 %2302
    %2304 = vrot.lane.b32.xlu0 %v2149, 24
    %v2305 = vpop.permute.xlu0 %2304
    %2306 = vrot.lane.b32.xlu0 %v2150, 24
    %v2307 = vpop.permute.xlu0 %2306
    %2308 = vrot.lane.b32.xlu0 %v2151, 24
    %v2309 = vpop.permute.xlu0 %2308
    %2310 = vrot.lane.b32.xlu0 %v2152, 24
    %v2311 = vpop.permute.xlu0 %2310
    %2312 = vrot.lane.b32.xlu0 %v2153, 24
    %v2313 = vpop.permute.xlu0 %2312
    %2314 = vrot.lane.b32.xlu0 %v2154, 24
    %v2315 = vpop.permute.xlu0 %2314
    %2316 = vrot.lane.b32.xlu0 %v2155, 24
    %v2317 = vpop.permute.xlu0 %2316
    %2318 = vrot.lane.b32.xlu0 %v2156, 24
    %v2319 = vpop.permute.xlu0 %2318
    %2320 = vrot.lane.b32.xlu0 %v2157, 24
    %v2321 = vpop.permute.xlu0 %2320
    %2322 = vrot.lane.b32.xlu0 %v2158, 24
    %v2323 = vpop.permute.xlu0 %2322
    %2324 = vrot.lane.b32.xlu0 %v2159, 24
    %v2325 = vpop.permute.xlu0 %2324
    %2326 = vrot.lane.b32.xlu0 %v2160, 24
    %v2327 = vpop.permute.xlu0 %2326
    %2328 = vrot.lane.b32.xlu0 %v2161, 24
    %v2329 = vpop.permute.xlu0 %2328
    %2330 = vrot.lane.b32.xlu0 %v2162, 24
    %v2331 = vpop.permute.xlu0 %2330
    %2332 = vrot.lane.b32.xlu0 %v2163, 24
    %v2333 = vpop.permute.xlu0 %2332
    %2334 = vrot.lane.b32.xlu0 %v2164, 24
    %v2335 = vpop.permute.xlu0 %2334
    %2336 = vrot.lane.b32.xlu0 %v2165, 24
    %v2337 = vpop.permute.xlu0 %2336
    %2338 = vrot.lane.b32.xlu0 %v2166, 24
    %v2339 = vpop.permute.xlu0 %2338
    %2340 = vrot.lane.b32.xlu0 %v2167, 24
    %v2341 = vpop.permute.xlu0 %2340
    %2342 = vrot.lane.b32.xlu0 %v2168, 24
    %v2343 = vpop.permute.xlu0 %2342
    %2344 = vrot.lane.b32.xlu0 %v2169, 24
    %v2345 = vpop.permute.xlu0 %2344
    %2346 = vrot.lane.b32.xlu0 %v2170, 24
    %v2347 = vpop.permute.xlu0 %2346
    %2348 = vrot.lane.b32.xlu0 %v2171, 24
    %v2349 = vpop.permute.xlu0 %2348
    %2350 = vrot.lane.b32.xlu0 %v2172, 24
    %v2351 = vpop.permute.xlu0 %2350
    %2352 = vrot.lane.b32.xlu0 %v2173, 24
    %v2353 = vpop.permute.xlu0 %2352
    %vm2414 = vcmask 228544
    %2415 = vst.msk [vmem:[#allocation2 + $0x1] sm:$0xff] %vm2414, %v2235
    %vm2416 = vcmask 227520
    %2417 = vst.msk [vmem:[#allocation2 + $0x9] sm:$0x7f] %vm2416, %v2237
    %2418 = vst.msk [vmem:[#allocation2 + $0x11] sm:$0xff] %vm2414, %v2239
    %2419 = vst.msk [vmem:[#allocation2 + $0x19] sm:$0x7f] %vm2416, %v2241
    %2420 = vst.msk [vmem:[#allocation2 + $0x21] sm:$0xff] %vm2414, %v2243
    %2421 = vst.msk [vmem:[#allocation2 + $0x29] sm:$0x7f] %vm2416, %v2245
    %2422 = vst.msk [vmem:[#allocation2 + $0x31] sm:$0xff] %vm2414, %v2247
    %2423 = vst.msk [vmem:[#allocation2 + $0x39] sm:$0x7f] %vm2416, %v2249
    %2424 = vst.msk [vmem:[#allocation2 + $0x41] sm:$0xff] %vm2414, %v2251
    %2425 = vst.msk [vmem:[#allocation2 + $0x49] sm:$0x7f] %vm2416, %v2253
    %2426 = vst.msk [vmem:[#allocation2 + $0x51] sm:$0xff] %vm2414, %v2255
    %2427 = vst.msk [vmem:[#allocation2 + $0x59] sm:$0x7f] %vm2416, %v2257
    %2428 = vst.msk [vmem:[#allocation2 + $0x61] sm:$0xff] %vm2414, %v2259
    %2429 = vst.msk [vmem:[#allocation2 + $0x69] sm:$0x7f] %vm2416, %v2261
    %2430 = vst.msk [vmem:[#allocation2 + $0x71] sm:$0xff] %vm2414, %v2263
    %2431 = vst.msk [vmem:[#allocation2 + $0x79] sm:$0x7f] %vm2416, %v2265
    %2432 = vst.msk [vmem:[#allocation2 + $0x81] sm:$0xff] %vm2414, %v2267
    %2433 = vst.msk [vmem:[#allocation2 + $0x89] sm:$0x7f] %vm2416, %v2269
    %2434 = vst.msk [vmem:[#allocation2 + $0x91] sm:$0xff] %vm2414, %v2271
    %2435 = vst.msk [vmem:[#allocation2 + $0x99] sm:$0x7f] %vm2416, %v2273
    %2436 = vst.msk [vmem:[#allocation2 + $0xa1] sm:$0xff] %vm2414, %v2275
    %2437 = vst.msk [vmem:[#allocation2 + $0xa9] sm:$0x7f] %vm2416, %v2277
    %2438 = vst.msk [vmem:[#allocation2 + $0xb1] sm:$0xff] %vm2414, %v2279
    %2439 = vst.msk [vmem:[#allocation2 + $0xb9] sm:$0x7f] %vm2416, %v2281
    %2440 = vst.msk [vmem:[#allocation2 + $0xc1] sm:$0xff] %vm2414, %v2283
    %2441 = vst.msk [vmem:[#allocation2 + $0xc9] sm:$0x7f] %vm2416, %v2285
    %2442 = vst.msk [vmem:[#allocation2 + $0xd1] sm:$0xff] %vm2414, %v2287
    %2443 = vst.msk [vmem:[#allocation2 + $0xd9] sm:$0x7f] %vm2416, %v2289
    %2444 = vst.msk [vmem:[#allocation2 + $0xe1] sm:$0xff] %vm2414, %v2291
    %2445 = vst.msk [vmem:[#allocation2 + $0xe9] sm:$0x7f] %vm2416, %v2293
    %2446 = vst.msk [vmem:[#allocation2 + $0x101] sm:$0xff] %vm2414, %v2295
    %2447 = vst.msk [vmem:[#allocation2 + $0x109] sm:$0x7f] %vm2416, %v2297
    %2448 = vst.msk [vmem:[#allocation2 + $0x111] sm:$0xff] %vm2414, %v2299
    %2449 = vst.msk [vmem:[#allocation2 + $0x119] sm:$0x7f] %vm2416, %v2301
    %2450 = vst.msk [vmem:[#allocation2 + $0x121] sm:$0xff] %vm2414, %v2303
    %2451 = vst.msk [vmem:[#allocation2 + $0x129] sm:$0x7f] %vm2416, %v2305
    %2452 = vst.msk [vmem:[#allocation2 + $0x131] sm:$0xff] %vm2414, %v2307
    %2453 = vst.msk [vmem:[#allocation2 + $0x139] sm:$0x7f] %vm2416, %v2309
    %2454 = vst.msk [vmem:[#allocation2 + $0x141] sm:$0xff] %vm2414, %v2311
    %2455 = vst.msk [vmem:[#allocation2 + $0x149] sm:$0x7f] %vm2416, %v2313
    %2456 = vst.msk [vmem:[#allocation2 + $0x151] sm:$0xff] %vm2414, %v2315
    %2457 = vst.msk [vmem:[#allocation2 + $0x159] sm:$0x7f] %vm2416, %v2317
    %2458 = vst.msk [vmem:[#allocation2 + $0x161] sm:$0xff] %vm2414, %v2319
    %2459 = vst.msk [vmem:[#allocation2 + $0x169] sm:$0x7f] %vm2416, %v2321
    %2460 = vst.msk [vmem:[#allocation2 + $0x171] sm:$0xff] %vm2414, %v2323
    %2461 = vst.msk [vmem:[#allocation2 + $0x179] sm:$0x7f] %vm2416, %v2325
    %2462 = vst.msk [vmem:[#allocation2 + $0x181] sm:$0xff] %vm2414, %v2327
    %2463 = vst.msk [vmem:[#allocation2 + $0x189] sm:$0x7f] %vm2416, %v2329
    %2464 = vst.msk [vmem:[#allocation2 + $0x191] sm:$0xff] %vm2414, %v2331
    %2465 = vst.msk [vmem:[#allocation2 + $0x199] sm:$0x7f] %vm2416, %v2333
    %2466 = vst.msk [vmem:[#allocation2 + $0x1a1] sm:$0xff] %vm2414, %v2335
    %2467 = vst.msk [vmem:[#allocation2 + $0x1a9] sm:$0x7f] %vm2416, %v2337
    %2468 = vst.msk [vmem:[#allocation2 + $0x1b1] sm:$0xff] %vm2414, %v2339
    %2469 = vst.msk [vmem:[#allocation2 + $0x1b9] sm:$0x7f] %vm2416, %v2341
    %2470 = vst.msk [vmem:[#allocation2 + $0x1c1] sm:$0xff] %vm2414, %v2343
    %2471 = vst.msk [vmem:[#allocation2 + $0x1c9] sm:$0x7f] %vm2416, %v2345
    %2472 = vst.msk [vmem:[#allocation2 + $0x1d1] sm:$0xff] %vm2414, %v2347
    %2473 = vst.msk [vmem:[#allocation2 + $0x1d9] sm:$0x7f] %vm2416, %v2349
    %2474 = vst.msk [vmem:[#allocation2 + $0x1e1] sm:$0xff] %vm2414, %v2351
    %2475 = vst.msk [vmem:[#allocation2 + $0x1e9] sm:$0x7f] %vm2416, %v2353
    %v2476 = vld [vmem:[%s2113] sm:$0xff]
    %v2477 = vld [vmem:[%s2113 + $0x8] sm:$0xff]
    %v2478 = vld [vmem:[%s2113 + $0x10] sm:$0xff]
    %v2479 = vld [vmem:[%s2113 + $0x18] sm:$0xff]
    %v2480 = vld [vmem:[%s2113 + $0x20] sm:$0xff]
    %v2481 = vld [vmem:[%s2113 + $0x28] sm:$0xff]
    %v2482 = vld [vmem:[%s2113 + $0x30] sm:$0xff]
    %v2483 = vld [vmem:[%s2113 + $0x38] sm:$0xff]
    %v2484 = vld [vmem:[%s2113 + $0x40] sm:$0xff]
    %v2485 = vld [vmem:[%s2113 + $0x48] sm:$0xff]
    %v2486 = vld [vmem:[%s2113 + $0x50] sm:$0xff]
    %v2487 = vld [vmem:[%s2113 + $0x58] sm:$0xff]
    %v2488 = vld [vmem:[%s2113 + $0x60] sm:$0xff]
    %v2489 = vld [vmem:[%s2113 + $0x68] sm:$0xff]
    %v2490 = vld [vmem:[%s2113 + $0x70] sm:$0xff]
    %v2491 = vld [vmem:[%s2113 + $0x78] sm:$0xff]
    %v2492 = vld [vmem:[%s2113 + $0x80] sm:$0xff]
    %v2493 = vld [vmem:[%s2113 + $0x88] sm:$0xff]
    %v2494 = vld [vmem:[%s2113 + $0x90] sm:$0xff]
    %v2495 = vld [vmem:[%s2113 + $0x98] sm:$0xff]
    %v2496 = vld [vmem:[%s2113 + $0xa0] sm:$0xff]
    %v2497 = vld [vmem:[%s2113 + $0xa8] sm:$0xff]
    %v2498 = vld [vmem:[%s2113 + $0xb0] sm:$0xff]
    %v2499 = vld [vmem:[%s2113 + $0xb8] sm:$0xff]
    %v2500 = vld [vmem:[%s2113 + $0xc0] sm:$0xff]
    %v2501 = vld [vmem:[%s2113 + $0xc8] sm:$0xff]
    %v2502 = vld [vmem:[%s2113 + $0xd0] sm:$0xff]
    %v2503 = vld [vmem:[%s2113 + $0xd8] sm:$0xff]
    %v2504 = vld [vmem:[%s2113 + $0xe0] sm:$0xff]
    %v2505 = vld [vmem:[%s2113 + $0xe8] sm:$0xff]
    %v2506 = vld [vmem:[%s2113 + $0x100] sm:$0xff]
    %v2507 = vld [vmem:[%s2113 + $0x108] sm:$0xff]
    %v2508 = vld [vmem:[%s2113 + $0x110] sm:$0xff]
    %v2509 = vld [vmem:[%s2113 + $0x118] sm:$0xff]
    %v2510 = vld [vmem:[%s2113 + $0x120] sm:$0xff]
    %v2511 = vld [vmem:[%s2113 + $0x128] sm:$0xff]
    %v2512 = vld [vmem:[%s2113 + $0x130] sm:$0xff]
    %v2513 = vld [vmem:[%s2113 + $0x138] sm:$0xff]
    %v2514 = vld [vmem:[%s2113 + $0x140] sm:$0xff]
    %v2515 = vld [vmem:[%s2113 + $0x148] sm:$0xff]
    %v2516 = vld [vmem:[%s2113 + $0x150] sm:$0xff]
    %v2517 = vld [vmem:[%s2113 + $0x158] sm:$0xff]
    %v2518 = vld [vmem:[%s2113 + $0x160] sm:$0xff]
    %v2519 = vld [vmem:[%s2113 + $0x168] sm:$0xff]
    %v2520 = vld [vmem:[%s2113 + $0x170] sm:$0xff]
    %v2521 = vld [vmem:[%s2113 + $0x178] sm:$0xff]
    %v2522 = vld [vmem:[%s2113 + $0x180] sm:$0xff]
    %v2523 = vld [vmem:[%s2113 + $0x188] sm:$0xff]
    %v2524 = vld [vmem:[%s2113 + $0x190] sm:$0xff]
    %v2525 = vld [vmem:[%s2113 + $0x198] sm:$0xff]
    %v2526 = vld [vmem:[%s2113 + $0x1a0] sm:$0xff]
    %v2527 = vld [vmem:[%s2113 + $0x1a8] sm:$0xff]
    %v2528 = vld [vmem:[%s2113 + $0x1b0] sm:$0xff]
    %v2529 = vld [vmem:[%s2113 + $0x1b8] sm:$0xff]
    %v2530 = vld [vmem:[%s2113 + $0x1c0] sm:$0xff]
    %v2531 = vld [vmem:[%s2113 + $0x1c8] sm:$0xff]
    %v2532 = vld [vmem:[%s2113 + $0x1d0] sm:$0xff]
    %v2533 = vld [vmem:[%s2113 + $0x1d8] sm:$0xff]
    %v2534 = vld [vmem:[%s2113 + $0x1e0] sm:$0xff]
    %v2535 = vld [vmem:[%s2113 + $0x1e8] sm:$0xff]
    %2596 = vrot.lane.b32.xlu0 %v2476, 28
    %v2597 = vpop.permute.xlu0 %2596
    %2598 = vrot.lane.b32.xlu0 %v2477, 28
    %v2599 = vpop.permute.xlu0 %2598
    %2600 = vrot.lane.b32.xlu0 %v2478, 28
    %v2601 = vpop.permute.xlu0 %2600
    %2602 = vrot.lane.b32.xlu0 %v2479, 28
    %v2603 = vpop.permute.xlu0 %2602
    %2604 = vrot.lane.b32.xlu0 %v2480, 28
    %v2605 = vpop.permute.xlu0 %2604
    %2606 = vrot.lane.b32.xlu0 %v2481, 28
    %v2607 = vpop.permute.xlu0 %2606
    %2608 = vrot.lane.b32.xlu0 %v2482, 28
    %v2609 = vpop.permute.xlu0 %2608
    %2610 = vrot.lane.b32.xlu0 %v2483, 28
    %v2611 = vpop.permute.xlu0 %2610
    %2612 = vrot.lane.b32.xlu0 %v2484, 28
    %v2613 = vpop.permute.xlu0 %2612
    %2614 = vrot.lane.b32.xlu0 %v2485, 28
    %v2615 = vpop.permute.xlu0 %2614
    %2616 = vrot.lane.b32.xlu0 %v2486, 28
    %v2617 = vpop.permute.xlu0 %2616
    %2618 = vrot.lane.b32.xlu0 %v2487, 28
    %v2619 = vpop.permute.xlu0 %2618
    %2620 = vrot.lane.b32.xlu0 %v2488, 28
    %v2621 = vpop.permute.xlu0 %2620
    %2622 = vrot.lane.b32.xlu0 %v2489, 28
    %v2623 = vpop.permute.xlu0 %2622
    %2624 = vrot.lane.b32.xlu0 %v2490, 28
    %v2625 = vpop.permute.xlu0 %2624
    %2626 = vrot.lane.b32.xlu0 %v2491, 28
    %v2627 = vpop.permute.xlu0 %2626
    %2628 = vrot.lane.b32.xlu0 %v2492, 28
    %v2629 = vpop.permute.xlu0 %2628
    %2630 = vrot.lane.b32.xlu0 %v2493, 28
    %v2631 = vpop.permute.xlu0 %2630
    %2632 = vrot.lane.b32.xlu0 %v2494, 28
    %v2633 = vpop.permute.xlu0 %2632
    %2634 = vrot.lane.b32.xlu0 %v2495, 28
    %v2635 = vpop.permute.xlu0 %2634
    %2636 = vrot.lane.b32.xlu0 %v2496, 28
    %v2637 = vpop.permute.xlu0 %2636
    %2638 = vrot.lane.b32.xlu0 %v2497, 28
    %v2639 = vpop.permute.xlu0 %2638
    %2640 = vrot.lane.b32.xlu0 %v2498, 28
    %v2641 = vpop.permute.xlu0 %2640
    %2642 = vrot.lane.b32.xlu0 %v2499, 28
    %v2643 = vpop.permute.xlu0 %2642
    %2644 = vrot.lane.b32.xlu0 %v2500, 28
    %v2645 = vpop.permute.xlu0 %2644
    %2646 = vrot.lane.b32.xlu0 %v2501, 28
    %v2647 = vpop.permute.xlu0 %2646
    %2648 = vrot.lane.b32.xlu0 %v2502, 28
    %v2649 = vpop.permute.xlu0 %2648
    %2650 = vrot.lane.b32.xlu0 %v2503, 28
    %v2651 = vpop.permute.xlu0 %2650
    %2652 = vrot.lane.b32.xlu0 %v2504, 28
    %v2653 = vpop.permute.xlu0 %2652
    %2654 = vrot.lane.b32.xlu0 %v2505, 28
    %v2655 = vpop.permute.xlu0 %2654
    %2656 = vrot.lane.b32.xlu0 %v2506, 28
    %v2657 = vpop.permute.xlu0 %2656
    %2658 = vrot.lane.b32.xlu0 %v2507, 28
    %v2659 = vpop.permute.xlu0 %2658
    %2660 = vrot.lane.b32.xlu0 %v2508, 28
    %v2661 = vpop.permute.xlu0 %2660
    %2662 = vrot.lane.b32.xlu0 %v2509, 28
    %v2663 = vpop.permute.xlu0 %2662
    %2664 = vrot.lane.b32.xlu0 %v2510, 28
    %v2665 = vpop.permute.xlu0 %2664
    %2666 = vrot.lane.b32.xlu0 %v2511, 28
    %v2667 = vpop.permute.xlu0 %2666
    %2668 = vrot.lane.b32.xlu0 %v2512, 28
    %v2669 = vpop.permute.xlu0 %2668
    %2670 = vrot.lane.b32.xlu0 %v2513, 28
    %v2671 = vpop.permute.xlu0 %2670
    %2672 = vrot.lane.b32.xlu0 %v2514, 28
    %v2673 = vpop.permute.xlu0 %2672
    %2674 = vrot.lane.b32.xlu0 %v2515, 28
    %v2675 = vpop.permute.xlu0 %2674
    %2676 = vrot.lane.b32.xlu0 %v2516, 28
    %v2677 = vpop.permute.xlu0 %2676
    %2678 = vrot.lane.b32.xlu0 %v2517, 28
    %v2679 = vpop.permute.xlu0 %2678
    %2680 = vrot.lane.b32.xlu0 %v2518, 28
    %v2681 = vpop.permute.xlu0 %2680
    %2682 = vrot.lane.b32.xlu0 %v2519, 28
    %v2683 = vpop.permute.xlu0 %2682
    %2684 = vrot.lane.b32.xlu0 %v2520, 28
    %v2685 = vpop.permute.xlu0 %2684
    %2686 = vrot.lane.b32.xlu0 %v2521, 28
    %v2687 = vpop.permute.xlu0 %2686
    %2688 = vrot.lane.b32.xlu0 %v2522, 28
    %v2689 = vpop.permute.xlu0 %2688
    %2690 = vrot.lane.b32.xlu0 %v2523, 28
    %v2691 = vpop.permute.xlu0 %2690
    %2692 = vrot.lane.b32.xlu0 %v2524, 28
    %v2693 = vpop.permute.xlu0 %2692
    %2694 = vrot.lane.b32.xlu0 %v2525, 28
    %v2695 = vpop.permute.xlu0 %2694
    %2696 = vrot.lane.b32.xlu0 %v2526, 28
    %v2697 = vpop.permute.xlu0 %2696
    %2698 = vrot.lane.b32.xlu0 %v2527, 28
    %v2699 = vpop.permute.xlu0 %2698
    %2700 = vrot.lane.b32.xlu0 %v2528, 28
    %v2701 = vpop.permute.xlu0 %2700
    %2702 = vrot.lane.b32.xlu0 %v2529, 28
    %v2703 = vpop.permute.xlu0 %2702
    %2704 = vrot.lane.b32.xlu0 %v2530, 28
    %v2705 = vpop.permute.xlu0 %2704
    %2706 = vrot.lane.b32.xlu0 %v2531, 28
    %v2707 = vpop.permute.xlu0 %2706
    %2708 = vrot.lane.b32.xlu0 %v2532, 28
    %v2709 = vpop.permute.xlu0 %2708
    %2710 = vrot.lane.b32.xlu0 %v2533, 28
    %v2711 = vpop.permute.xlu0 %2710
    %2712 = vrot.lane.b32.xlu0 %v2534, 28
    %v2713 = vpop.permute.xlu0 %2712
    %2714 = vrot.lane.b32.xlu0 %v2535, 28
    %v2715 = vpop.permute.xlu0 %2714
    %vm2776 = vcmask 261344
    %2777 = vst.msk [vmem:[#allocation2] sm:$0xff] %vm2776, %v2597
    %2778 = vst.msk [vmem:[#allocation2 + $0x8] sm:$0xff] %vm2776, %v2599
    %2779 = vst.msk [vmem:[#allocation2 + $0x10] sm:$0xff] %vm2776, %v2601
    %2780 = vst.msk [vmem:[#allocation2 + $0x18] sm:$0xff] %vm2776, %v2603
    %2781 = vst.msk [vmem:[#allocation2 + $0x20] sm:$0xff] %vm2776, %v2605
    %2782 = vst.msk [vmem:[#allocation2 + $0x28] sm:$0xff] %vm2776, %v2607
    %2783 = vst.msk [vmem:[#allocation2 + $0x30] sm:$0xff] %vm2776, %v2609
    %2784 = vst.msk [vmem:[#allocation2 + $0x38] sm:$0xff] %vm2776, %v2611
    %2785 = vst.msk [vmem:[#allocation2 + $0x40] sm:$0xff] %vm2776, %v2613
    %2786 = vst.msk [vmem:[#allocation2 + $0x48] sm:$0xff] %vm2776, %v2615
    %2787 = vst.msk [vmem:[#allocation2 + $0x50] sm:$0xff] %vm2776, %v2617
    %2788 = vst.msk [vmem:[#allocation2 + $0x58] sm:$0xff] %vm2776, %v2619
    %2789 = vst.msk [vmem:[#allocation2 + $0x60] sm:$0xff] %vm2776, %v2621
    %2790 = vst.msk [vmem:[#allocation2 + $0x68] sm:$0xff] %vm2776, %v2623
    %2791 = vst.msk [vmem:[#allocation2 + $0x70] sm:$0xff] %vm2776, %v2625
    %2792 = vst.msk [vmem:[#allocation2 + $0x78] sm:$0xff] %vm2776, %v2627
    %2793 = vst.msk [vmem:[#allocation2 + $0x80] sm:$0xff] %vm2776, %v2629
    %2794 = vst.msk [vmem:[#allocation2 + $0x88] sm:$0xff] %vm2776, %v2631
    %2795 = vst.msk [vmem:[#allocation2 + $0x90] sm:$0xff] %vm2776, %v2633
    %2796 = vst.msk [vmem:[#allocation2 + $0x98] sm:$0xff] %vm2776, %v2635
    %2797 = vst.msk [vmem:[#allocation2 + $0xa0] sm:$0xff] %vm2776, %v2637
    %2798 = vst.msk [vmem:[#allocation2 + $0xa8] sm:$0xff] %vm2776, %v2639
    %2799 = vst.msk [vmem:[#allocation2 + $0xb0] sm:$0xff] %vm2776, %v2641
    %2800 = vst.msk [vmem:[#allocation2 + $0xb8] sm:$0xff] %vm2776, %v2643
    %2801 = vst.msk [vmem:[#allocation2 + $0xc0] sm:$0xff] %vm2776, %v2645
    %2802 = vst.msk [vmem:[#allocation2 + $0xc8] sm:$0xff] %vm2776, %v2647
    %2803 = vst.msk [vmem:[#allocation2 + $0xd0] sm:$0xff] %vm2776, %v2649
    %2804 = vst.msk [vmem:[#allocation2 + $0xd8] sm:$0xff] %vm2776, %v2651
    %2805 = vst.msk [vmem:[#allocation2 + $0xe0] sm:$0xff] %vm2776, %v2653
    %2806 = vst.msk [vmem:[#allocation2 + $0xe8] sm:$0xff] %vm2776, %v2655
    %2807 = vst.msk [vmem:[#allocation2 + $0x100] sm:$0xff] %vm2776, %v2657
    %2808 = vst.msk [vmem:[#allocation2 + $0x108] sm:$0xff] %vm2776, %v2659
    %2809 = vst.msk [vmem:[#allocation2 + $0x110] sm:$0xff] %vm2776, %v2661
    %2810 = vst.msk [vmem:[#allocation2 + $0x118] sm:$0xff] %vm2776, %v2663
    %2811 = vst.msk [vmem:[#allocation2 + $0x120] sm:$0xff] %vm2776, %v2665
    %2812 = vst.msk [vmem:[#allocation2 + $0x128] sm:$0xff] %vm2776, %v2667
    %2813 = vst.msk [vmem:[#allocation2 + $0x130] sm:$0xff] %vm2776, %v2669
    %2814 = vst.msk [vmem:[#allocation2 + $0x138] sm:$0xff] %vm2776, %v2671
    %2815 = vst.msk [vmem:[#allocation2 + $0x140] sm:$0xff] %vm2776, %v2673
    %2816 = vst.msk [vmem:[#allocation2 + $0x148] sm:$0xff] %vm2776, %v2675
    %2817 = vst.msk [vmem:[#allocation2 + $0x150] sm:$0xff] %vm2776, %v2677
    %2818 = vst.msk [vmem:[#allocation2 + $0x158] sm:$0xff] %vm2776, %v2679
    %2819 = vst.msk [vmem:[#allocation2 + $0x160] sm:$0xff] %vm2776, %v2681
    %2820 = vst.msk [vmem:[#allocation2 + $0x168] sm:$0xff] %vm2776, %v2683
    %2821 = vst.msk [vmem:[#allocation2 + $0x170] sm:$0xff] %vm2776, %v2685
    %2822 = vst.msk [vmem:[#allocation2 + $0x178] sm:$0xff] %vm2776, %v2687
    %2823 = vst.msk [vmem:[#allocation2 + $0x180] sm:$0xff] %vm2776, %v2689
    %2824 = vst.msk [vmem:[#allocation2 + $0x188] sm:$0xff] %vm2776, %v2691
    %2825 = vst.msk [vmem:[#allocation2 + $0x190] sm:$0xff] %vm2776, %v2693
    %2826 = vst.msk [vmem:[#allocation2 + $0x198] sm:$0xff] %vm2776, %v2695
    %2827 = vst.msk [vmem:[#allocation2 + $0x1a0] sm:$0xff] %vm2776, %v2697
    %2828 = vst.msk [vmem:[#allocation2 + $0x1a8] sm:$0xff] %vm2776, %v2699
    %2829 = vst.msk [vmem:[#allocation2 + $0x1b0] sm:$0xff] %vm2776, %v2701
    %2830 = vst.msk [vmem:[#allocation2 + $0x1b8] sm:$0xff] %vm2776, %v2703
    %2831 = vst.msk [vmem:[#allocation2 + $0x1c0] sm:$0xff] %vm2776, %v2705
    %2832 = vst.msk [vmem:[#allocation2 + $0x1c8] sm:$0xff] %vm2776, %v2707
    %2833 = vst.msk [vmem:[#allocation2 + $0x1d0] sm:$0xff] %vm2776, %v2709
    %2834 = vst.msk [vmem:[#allocation2 + $0x1d8] sm:$0xff] %vm2776, %v2711
    %2835 = vst.msk [vmem:[#allocation2 + $0x1e0] sm:$0xff] %vm2776, %v2713
    %2836 = vst.msk [vmem:[#allocation2 + $0x1e8] sm:$0xff] %vm2776, %v2715
    %v2837 = vld [vmem:[%s2113 + $0x1] sm:$0xff]
    %v2838 = vld [vmem:[%s2113 + $0x9] sm:$0x7f]
    %v2839 = vld [vmem:[%s2113 + $0x11] sm:$0xff]
    %v2840 = vld [vmem:[%s2113 + $0x19] sm:$0x7f]
    %v2841 = vld [vmem:[%s2113 + $0x21] sm:$0xff]
    %v2842 = vld [vmem:[%s2113 + $0x29] sm:$0x7f]
    %v2843 = vld [vmem:[%s2113 + $0x31] sm:$0xff]
    %v2844 = vld [vmem:[%s2113 + $0x39] sm:$0x7f]
    %v2845 = vld [vmem:[%s2113 + $0x41] sm:$0xff]
    %v2846 = vld [vmem:[%s2113 + $0x49] sm:$0x7f]
    %v2847 = vld [vmem:[%s2113 + $0x51] sm:$0xff]
    %v2848 = vld [vmem:[%s2113 + $0x59] sm:$0x7f]
    %v2849 = vld [vmem:[%s2113 + $0x61] sm:$0xff]
    %v2850 = vld [vmem:[%s2113 + $0x69] sm:$0x7f]
    %v2851 = vld [vmem:[%s2113 + $0x71] sm:$0xff]
    %v2852 = vld [vmem:[%s2113 + $0x79] sm:$0x7f]
    %v2853 = vld [vmem:[%s2113 + $0x81] sm:$0xff]
    %v2854 = vld [vmem:[%s2113 + $0x89] sm:$0x7f]
    %v2855 = vld [vmem:[%s2113 + $0x91] sm:$0xff]
    %v2856 = vld [vmem:[%s2113 + $0x99] sm:$0x7f]
    %v2857 = vld [vmem:[%s2113 + $0xa1] sm:$0xff]
    %v2858 = vld [vmem:[%s2113 + $0xa9] sm:$0x7f]
    %v2859 = vld [vmem:[%s2113 + $0xb1] sm:$0xff]
    %v2860 = vld [vmem:[%s2113 + $0xb9] sm:$0x7f]
    %v2861 = vld [vmem:[%s2113 + $0xc1] sm:$0xff]
    %v2862 = vld [vmem:[%s2113 + $0xc9] sm:$0x7f]
    %v2863 = vld [vmem:[%s2113 + $0xd1] sm:$0xff]
    %v2864 = vld [vmem:[%s2113 + $0xd9] sm:$0x7f]
    %v2865 = vld [vmem:[%s2113 + $0xe1] sm:$0xff]
    %v2866 = vld [vmem:[%s2113 + $0xe9] sm:$0x7f]
    %v2867 = vld [vmem:[%s2113 + $0x101] sm:$0xff]
    %v2868 = vld [vmem:[%s2113 + $0x109] sm:$0x7f]
    %v2869 = vld [vmem:[%s2113 + $0x111] sm:$0xff]
    %v2870 = vld [vmem:[%s2113 + $0x119] sm:$0x7f]
    %v2871 = vld [vmem:[%s2113 + $0x121] sm:$0xff]
    %v2872 = vld [vmem:[%s2113 + $0x129] sm:$0x7f]
    %v2873 = vld [vmem:[%s2113 + $0x131] sm:$0xff]
    %v2874 = vld [vmem:[%s2113 + $0x139] sm:$0x7f]
    %v2875 = vld [vmem:[%s2113 + $0x141] sm:$0xff]
    %v2876 = vld [vmem:[%s2113 + $0x149] sm:$0x7f]
    %v2877 = vld [vmem:[%s2113 + $0x151] sm:$0xff]
    %v2878 = vld [vmem:[%s2113 + $0x159] sm:$0x7f]
    %v2879 = vld [vmem:[%s2113 + $0x161] sm:$0xff]
    %v2880 = vld [vmem:[%s2113 + $0x169] sm:$0x7f]
    %v2881 = vld [vmem:[%s2113 + $0x171] sm:$0xff]
    %v2882 = vld [vmem:[%s2113 + $0x179] sm:$0x7f]
    %v2883 = vld [vmem:[%s2113 + $0x181] sm:$0xff]
    %v2884 = vld [vmem:[%s2113 + $0x189] sm:$0x7f]
    %v2885 = vld [vmem:[%s2113 + $0x191] sm:$0xff]
    %v2886 = vld [vmem:[%s2113 + $0x199] sm:$0x7f]
    %v2887 = vld [vmem:[%s2113 + $0x1a1] sm:$0xff]
    %v2888 = vld [vmem:[%s2113 + $0x1a9] sm:$0x7f]
    %v2889 = vld [vmem:[%s2113 + $0x1b1] sm:$0xff]
    %v2890 = vld [vmem:[%s2113 + $0x1b9] sm:$0x7f]
    %v2891 = vld [vmem:[%s2113 + $0x1c1] sm:$0xff]
    %v2892 = vld [vmem:[%s2113 + $0x1c9] sm:$0x7f]
    %v2893 = vld [vmem:[%s2113 + $0x1d1] sm:$0xff]
    %v2894 = vld [vmem:[%s2113 + $0x1d9] sm:$0x7f]
    %v2895 = vld [vmem:[%s2113 + $0x1e1] sm:$0xff]
    %v2896 = vld [vmem:[%s2113 + $0x1e9] sm:$0x7f]
    %2957 = vrot.lane.b32.xlu0 %v2837, 32
    %v2958 = vpop.permute.xlu0 %2957
    %2959 = vrot.lane.b32.xlu0 %v2838, 32
    %v2960 = vpop.permute.xlu0 %2959
    %2961 = vrot.lane.b32.xlu0 %v2839, 32
    %v2962 = vpop.permute.xlu0 %2961
    %2963 = vrot.lane.b32.xlu0 %v2840, 32
    %v2964 = vpop.permute.xlu0 %2963
    %2965 = vrot.lane.b32.xlu0 %v2841, 32
    %v2966 = vpop.permute.xlu0 %2965
    %2967 = vrot.lane.b32.xlu0 %v2842, 32
    %v2968 = vpop.permute.xlu0 %2967
    %2969 = vrot.lane.b32.xlu0 %v2843, 32
    %v2970 = vpop.permute.xlu0 %2969
    %2971 = vrot.lane.b32.xlu0 %v2844, 32
    %v2972 = vpop.permute.xlu0 %2971
    %2973 = vrot.lane.b32.xlu0 %v2845, 32
    %v2974 = vpop.permute.xlu0 %2973
    %2975 = vrot.lane.b32.xlu0 %v2846, 32
    %v2976 = vpop.permute.xlu0 %2975
    %2977 = vrot.lane.b32.xlu0 %v2847, 32
    %v2978 = vpop.permute.xlu0 %2977
    %2979 = vrot.lane.b32.xlu0 %v2848, 32
    %v2980 = vpop.permute.xlu0 %2979
    %2981 = vrot.lane.b32.xlu0 %v2849, 32
    %v2982 = vpop.permute.xlu0 %2981
    %2983 = vrot.lane.b32.xlu0 %v2850, 32
    %v2984 = vpop.permute.xlu0 %2983
    %2985 = vrot.lane.b32.xlu0 %v2851, 32
    %v2986 = vpop.permute.xlu0 %2985
    %2987 = vrot.lane.b32.xlu0 %v2852, 32
    %v2988 = vpop.permute.xlu0 %2987
    %2989 = vrot.lane.b32.xlu0 %v2853, 32
    %v2990 = vpop.permute.xlu0 %2989
    %2991 = vrot.lane.b32.xlu0 %v2854, 32
    %v2992 = vpop.permute.xlu0 %2991
    %2993 = vrot.lane.b32.xlu0 %v2855, 32
    %v2994 = vpop.permute.xlu0 %2993
    %2995 = vrot.lane.b32.xlu0 %v2856, 32
    %v2996 = vpop.permute.xlu0 %2995
    %2997 = vrot.lane.b32.xlu0 %v2857, 32
    %v2998 = vpop.permute.xlu0 %2997
    %2999 = vrot.lane.b32.xlu0 %v2858, 32
    %v3000 = vpop.permute.xlu0 %2999
    %3001 = vrot.lane.b32.xlu0 %v2859, 32
    %v3002 = vpop.permute.xlu0 %3001
    %3003 = vrot.lane.b32.xlu0 %v2860, 32
    %v3004 = vpop.permute.xlu0 %3003
    %3005 = vrot.lane.b32.xlu0 %v2861, 32
    %v3006 = vpop.permute.xlu0 %3005
    %3007 = vrot.lane.b32.xlu0 %v2862, 32
    %v3008 = vpop.permute.xlu0 %3007
    %3009 = vrot.lane.b32.xlu0 %v2863, 32
    %v3010 = vpop.permute.xlu0 %3009
    %3011 = vrot.lane.b32.xlu0 %v2864, 32
    %v3012 = vpop.permute.xlu0 %3011
    %3013 = vrot.lane.b32.xlu0 %v2865, 32
    %v3014 = vpop.permute.xlu0 %3013
    %3015 = vrot.lane.b32.xlu0 %v2866, 32
    %v3016 = vpop.permute.xlu0 %3015
    %3017 = vrot.lane.b32.xlu0 %v2867, 32
    %v3018 = vpop.permute.xlu0 %3017
    %3019 = vrot.lane.b32.xlu0 %v2868, 32
    %v3020 = vpop.permute.xlu0 %3019
    %3021 = vrot.lane.b32.xlu0 %v2869, 32
    %v3022 = vpop.permute.xlu0 %3021
    %3023 = vrot.lane.b32.xlu0 %v2870, 32
    %v3024 = vpop.permute.xlu0 %3023
    %3025 = vrot.lane.b32.xlu0 %v2871, 32
    %v3026 = vpop.permute.xlu0 %3025
    %3027 = vrot.lane.b32.xlu0 %v2872, 32
    %v3028 = vpop.permute.xlu0 %3027
    %3029 = vrot.lane.b32.xlu0 %v2873, 32
    %v3030 = vpop.permute.xlu0 %3029
    %3031 = vrot.lane.b32.xlu0 %v2874, 32
    %v3032 = vpop.permute.xlu0 %3031
    %3033 = vrot.lane.b32.xlu0 %v2875, 32
    %v3034 = vpop.permute.xlu0 %3033
    %3035 = vrot.lane.b32.xlu0 %v2876, 32
    %v3036 = vpop.permute.xlu0 %3035
    %3037 = vrot.lane.b32.xlu0 %v2877, 32
    %v3038 = vpop.permute.xlu0 %3037
    %3039 = vrot.lane.b32.xlu0 %v2878, 32
    %v3040 = vpop.permute.xlu0 %3039
    %3041 = vrot.lane.b32.xlu0 %v2879, 32
    %v3042 = vpop.permute.xlu0 %3041
    %3043 = vrot.lane.b32.xlu0 %v2880, 32
    %v3044 = vpop.permute.xlu0 %3043
    %3045 = vrot.lane.b32.xlu0 %v2881, 32
    %v3046 = vpop.permute.xlu0 %3045
    %3047 = vrot.lane.b32.xlu0 %v2882, 32
    %v3048 = vpop.permute.xlu0 %3047
    %3049 = vrot.lane.b32.xlu0 %v2883, 32
    %v3050 = vpop.permute.xlu0 %3049
    %3051 = vrot.lane.b32.xlu0 %v2884, 32
    %v3052 = vpop.permute.xlu0 %3051
    %3053 = vrot.lane.b32.xlu0 %v2885, 32
    %v3054 = vpop.permute.xlu0 %3053
    %3055 = vrot.lane.b32.xlu0 %v2886, 32
    %v3056 = vpop.permute.xlu0 %3055
    %3057 = vrot.lane.b32.xlu0 %v2887, 32
    %v3058 = vpop.permute.xlu0 %3057
    %3059 = vrot.lane.b32.xlu0 %v2888, 32
    %v3060 = vpop.permute.xlu0 %3059
    %3061 = vrot.lane.b32.xlu0 %v2889, 32
    %v3062 = vpop.permute.xlu0 %3061
    %3063 = vrot.lane.b32.xlu0 %v2890, 32
    %v3064 = vpop.permute.xlu0 %3063
    %3065 = vrot.lane.b32.xlu0 %v2891, 32
    %v3066 = vpop.permute.xlu0 %3065
    %3067 = vrot.lane.b32.xlu0 %v2892, 32
    %v3068 = vpop.permute.xlu0 %3067
    %3069 = vrot.lane.b32.xlu0 %v2893, 32
    %v3070 = vpop.permute.xlu0 %3069
    %3071 = vrot.lane.b32.xlu0 %v2894, 32
    %v3072 = vpop.permute.xlu0 %3071
    %3073 = vrot.lane.b32.xlu0 %v2895, 32
    %v3074 = vpop.permute.xlu0 %3073
    %3075 = vrot.lane.b32.xlu0 %v2896, 32
    %v3076 = vpop.permute.xlu0 %3075
    %vm3137 = vcmask 294144
    %3138 = vst.msk [vmem:[#allocation2] sm:$0xff] %vm3137, %v2958
    %vm3139 = vcmask 293120
    %3140 = vst.msk [vmem:[#allocation2 + $0x8] sm:$0x7f] %vm3139, %v2960
    %3141 = vst.msk [vmem:[#allocation2 + $0x10] sm:$0xff] %vm3137, %v2962
    %3142 = vst.msk [vmem:[#allocation2 + $0x18] sm:$0x7f] %vm3139, %v2964
    %3143 = vst.msk [vmem:[#allocation2 + $0x20] sm:$0xff] %vm3137, %v2966
    %3144 = vst.msk [vmem:[#allocation2 + $0x28] sm:$0x7f] %vm3139, %v2968
    %3145 = vst.msk [vmem:[#allocation2 + $0x30] sm:$0xff] %vm3137, %v2970
    %3146 = vst.msk [vmem:[#allocation2 + $0x38] sm:$0x7f] %vm3139, %v2972
    %3147 = vst.msk [vmem:[#allocation2 + $0x40] sm:$0xff] %vm3137, %v2974
    %3148 = vst.msk [vmem:[#allocation2 + $0x48] sm:$0x7f] %vm3139, %v2976
    %3149 = vst.msk [vmem:[#allocation2 + $0x50] sm:$0xff] %vm3137, %v2978
    %3150 = vst.msk [vmem:[#allocation2 + $0x58] sm:$0x7f] %vm3139, %v2980
    %3151 = vst.msk [vmem:[#allocation2 + $0x60] sm:$0xff] %vm3137, %v2982
    %3152 = vst.msk [vmem:[#allocation2 + $0x68] sm:$0x7f] %vm3139, %v2984
    %3153 = vst.msk [vmem:[#allocation2 + $0x70] sm:$0xff] %vm3137, %v2986
    %3154 = vst.msk [vmem:[#allocation2 + $0x78] sm:$0x7f] %vm3139, %v2988
    %3155 = vst.msk [vmem:[#allocation2 + $0x80] sm:$0xff] %vm3137, %v2990
    %3156 = vst.msk [vmem:[#allocation2 + $0x88] sm:$0x7f] %vm3139, %v2992
    %3157 = vst.msk [vmem:[#allocation2 + $0x90] sm:$0xff] %vm3137, %v2994
    %3158 = vst.msk [vmem:[#allocation2 + $0x98] sm:$0x7f] %vm3139, %v2996
    %3159 = vst.msk [vmem:[#allocation2 + $0xa0] sm:$0xff] %vm3137, %v2998
    %3160 = vst.msk [vmem:[#allocation2 + $0xa8] sm:$0x7f] %vm3139, %v3000
    %3161 = vst.msk [vmem:[#allocation2 + $0xb0] sm:$0xff] %vm3137, %v3002
    %3162 = vst.msk [vmem:[#allocation2 + $0xb8] sm:$0x7f] %vm3139, %v3004
    %3163 = vst.msk [vmem:[#allocation2 + $0xc0] sm:$0xff] %vm3137, %v3006
    %3164 = vst.msk [vmem:[#allocation2 + $0xc8] sm:$0x7f] %vm3139, %v3008
    %3165 = vst.msk [vmem:[#allocation2 + $0xd0] sm:$0xff] %vm3137, %v3010
    %3166 = vst.msk [vmem:[#allocation2 + $0xd8] sm:$0x7f] %vm3139, %v3012
    %3167 = vst.msk [vmem:[#allocation2 + $0xe0] sm:$0xff] %vm3137, %v3014
    %3168 = vst.msk [vmem:[#allocation2 + $0xe8] sm:$0x7f] %vm3139, %v3016
    %3169 = vst.msk [vmem:[#allocation2 + $0x100] sm:$0xff] %vm3137, %v3018
    %3170 = vst.msk [vmem:[#allocation2 + $0x108] sm:$0x7f] %vm3139, %v3020
    %3171 = vst.msk [vmem:[#allocation2 + $0x110] sm:$0xff] %vm3137, %v3022
    %3172 = vst.msk [vmem:[#allocation2 + $0x118] sm:$0x7f] %vm3139, %v3024
    %3173 = vst.msk [vmem:[#allocation2 + $0x120] sm:$0xff] %vm3137, %v3026
    %3174 = vst.msk [vmem:[#allocation2 + $0x128] sm:$0x7f] %vm3139, %v3028
    %3175 = vst.msk [vmem:[#allocation2 + $0x130] sm:$0xff] %vm3137, %v3030
    %3176 = vst.msk [vmem:[#allocation2 + $0x138] sm:$0x7f] %vm3139, %v3032
    %3177 = vst.msk [vmem:[#allocation2 + $0x140] sm:$0xff] %vm3137, %v3034
    %3178 = vst.msk [vmem:[#allocation2 + $0x148] sm:$0x7f] %vm3139, %v3036
    %3179 = vst.msk [vmem:[#allocation2 + $0x150] sm:$0xff] %vm3137, %v3038
    %3180 = vst.msk [vmem:[#allocation2 + $0x158] sm:$0x7f] %vm3139, %v3040
    %3181 = vst.msk [vmem:[#allocation2 + $0x160] sm:$0xff] %vm3137, %v3042
    %3182 = vst.msk [vmem:[#allocation2 + $0x168] sm:$0x7f] %vm3139, %v3044
    %3183 = vst.msk [vmem:[#allocation2 + $0x170] sm:$0xff] %vm3137, %v3046
    %3184 = vst.msk [vmem:[#allocation2 + $0x178] sm:$0x7f] %vm3139, %v3048
    %3185 = vst.msk [vmem:[#allocation2 + $0x180] sm:$0xff] %vm3137, %v3050
    %3186 = vst.msk [vmem:[#allocation2 + $0x188] sm:$0x7f] %vm3139, %v3052
    %3187 = vst.msk [vmem:[#allocation2 + $0x190] sm:$0xff] %vm3137, %v3054
    %3188 = vst.msk [vmem:[#allocation2 + $0x198] sm:$0x7f] %vm3139, %v3056
    %3189 = vst.msk [vmem:[#allocation2 + $0x1a0] sm:$0xff] %vm3137, %v3058
    %3190 = vst.msk [vmem:[#allocation2 + $0x1a8] sm:$0x7f] %vm3139, %v3060
    %3191 = vst.msk [vmem:[#allocation2 + $0x1b0] sm:$0xff] %vm3137, %v3062
    %3192 = vst.msk [vmem:[#allocation2 + $0x1b8] sm:$0x7f] %vm3139, %v3064
    %3193 = vst.msk [vmem:[#allocation2 + $0x1c0] sm:$0xff] %vm3137, %v3066
    %3194 = vst.msk [vmem:[#allocation2 + $0x1c8] sm:$0x7f] %vm3139, %v3068
    %3195 = vst.msk [vmem:[#allocation2 + $0x1d0] sm:$0xff] %vm3137, %v3070
    %3196 = vst.msk [vmem:[#allocation2 + $0x1d8] sm:$0x7f] %vm3139, %v3072
    %3197 = vst.msk [vmem:[#allocation2 + $0x1e0] sm:$0xff] %vm3137, %v3074
    %3198 = vst.msk [vmem:[#allocation2 + $0x1e8] sm:$0x7f] %vm3139, %v3076
    %v3199 = vld [vmem:[#allocation2] sm:$0xff]
    %v3200 = vld [vmem:[#allocation2 + $0x8] sm:$0xff]
    %v3201 = vld [vmem:[#allocation2 + $0x10] sm:$0xff]
    %v3202 = vld [vmem:[#allocation2 + $0x18] sm:$0xff]
    %v3203 = vld [vmem:[#allocation2 + $0x20] sm:$0xff]
    %v3204 = vld [vmem:[#allocation2 + $0x28] sm:$0xff]
    %v3205 = vld [vmem:[#allocation2 + $0x30] sm:$0xff]
    %v3206 = vld [vmem:[#allocation2 + $0x38] sm:$0xff]
    %v3207 = vld [vmem:[#allocation2 + $0x40] sm:$0xff]
    %v3208 = vld [vmem:[#allocation2 + $0x48] sm:$0xff]
    %v3209 = vld [vmem:[#allocation2 + $0x50] sm:$0xff]
    %v3210 = vld [vmem:[#allocation2 + $0x58] sm:$0xff]
    %v3211 = vld [vmem:[#allocation2 + $0x60] sm:$0xff]
    %v3212 = vld [vmem:[#allocation2 + $0x68] sm:$0xff]
    %v3213 = vld [vmem:[#allocation2 + $0x70] sm:$0xff]
    %v3214 = vld [vmem:[#allocation2 + $0x78] sm:$0xff]
    %v3215 = vld [vmem:[#allocation2 + $0x80] sm:$0xff]
    %v3216 = vld [vmem:[#allocation2 + $0x88] sm:$0xff]
    %v3217 = vld [vmem:[#allocation2 + $0x90] sm:$0xff]
    %v3218 = vld [vmem:[#allocation2 + $0x98] sm:$0xff]
    %v3219 = vld [vmem:[#allocation2 + $0xa0] sm:$0xff]
    %v3220 = vld [vmem:[#allocation2 + $0xa8] sm:$0xff]
    %v3221 = vld [vmem:[#allocation2 + $0xb0] sm:$0xff]
    %v3222 = vld [vmem:[#allocation2 + $0xb8] sm:$0xff]
    %v3223 = vld [vmem:[#allocation2 + $0xc0] sm:$0xff]
    %v3224 = vld [vmem:[#allocation2 + $0xc8] sm:$0xff]
    %v3225 = vld [vmem:[#allocation2 + $0xd0] sm:$0xff]
    %v3226 = vld [vmem:[#allocation2 + $0xd8] sm:$0xff]
    %v3227 = vld [vmem:[#allocation2 + $0xe0] sm:$0xff]
    %v3228 = vld [vmem:[#allocation2 + $0xe8] sm:$0xff]
    %v3229 = vld [vmem:[#allocation2 + $0xf0] sm:$0xff]
    %v3230 = vld [vmem:[#allocation2 + $0xf8] sm:$0xff]
    %v3231 = vld [vmem:[#allocation2 + $0x100] sm:$0xff]
    %v3232 = vld [vmem:[#allocation2 + $0x108] sm:$0xff]
    %v3233 = vld [vmem:[#allocation2 + $0x110] sm:$0xff]
    %v3234 = vld [vmem:[#allocation2 + $0x118] sm:$0xff]
    %v3235 = vld [vmem:[#allocation2 + $0x120] sm:$0xff]
    %v3236 = vld [vmem:[#allocation2 + $0x128] sm:$0xff]
    %v3237 = vld [vmem:[#allocation2 + $0x130] sm:$0xff]
    %v3238 = vld [vmem:[#allocation2 + $0x138] sm:$0xff]
    %v3239 = vld [vmem:[#allocation2 + $0x140] sm:$0xff]
    %v3240 = vld [vmem:[#allocation2 + $0x148] sm:$0xff]
    %v3241 = vld [vmem:[#allocation2 + $0x150] sm:$0xff]
    %v3242 = vld [vmem:[#allocation2 + $0x158] sm:$0xff]
    %v3243 = vld [vmem:[#allocation2 + $0x160] sm:$0xff]
    %v3244 = vld [vmem:[#allocation2 + $0x168] sm:$0xff]
    %v3245 = vld [vmem:[#allocation2 + $0x170] sm:$0xff]
    %v3246 = vld [vmem:[#allocation2 + $0x178] sm:$0xff]
    %v3247 = vld [vmem:[#allocation2 + $0x180] sm:$0xff]
    %v3248 = vld [vmem:[#allocation2 + $0x188] sm:$0xff]
    %v3249 = vld [vmem:[#allocation2 + $0x190] sm:$0xff]
    %v3250 = vld [vmem:[#allocation2 + $0x198] sm:$0xff]
    %v3251 = vld [vmem:[#allocation2 + $0x1a0] sm:$0xff]
    %v3252 = vld [vmem:[#allocation2 + $0x1a8] sm:$0xff]
    %v3253 = vld [vmem:[#allocation2 + $0x1b0] sm:$0xff]
    %v3254 = vld [vmem:[#allocation2 + $0x1b8] sm:$0xff]
    %v3255 = vld [vmem:[#allocation2 + $0x1c0] sm:$0xff]
    %v3256 = vld [vmem:[#allocation2 + $0x1c8] sm:$0xff]
    %v3257 = vld [vmem:[#allocation2 + $0x1d0] sm:$0xff]
    %v3258 = vld [vmem:[#allocation2 + $0x1d8] sm:$0xff]
    %v3259 = vld [vmem:[#allocation2 + $0x1e0] sm:$0xff]
    %v3260 = vld [vmem:[#allocation2 + $0x1e8] sm:$0xff]
    %v3261 = vld [vmem:[#allocation2 + $0x1f0] sm:$0xff]
    %v3262 = vld [vmem:[#allocation2 + $0x1f8] sm:$0xff]
    %v3263 = vld [vmem:[%s1] sm:$0xff]
    %v3264 = vld [vmem:[%s1 + $0x8] sm:$0xff]
    %v3265 = vld [vmem:[%s1 + $0x10] sm:$0xff]
    %v3266 = vld [vmem:[%s1 + $0x18] sm:$0xff]
    %v3267 = vld [vmem:[%s1 + $0x20] sm:$0xf]
    %v3268 = vld [vmem:[%s2] sm:$0x1]
    %v3270 = vlaneseq
    %v3271 = vshrl.u32 %v3270, 7
    %v3272 = vsub.s32 0, %v3271
    %v3273 = vrot.slane %v3268, %v3272
    %v3276 = vsel %vm45, %v3199, 0
    %v3279 = vsel %vm45, %v3200, 0
    %v3282 = vsel %vm45, %v3201, 0
    %v3285 = vsel %vm45, %v3202, 0
    %v3288 = vsel %vm45, %v3203, 0
    %v3291 = vsel %vm45, %v3204, 0
    %v3294 = vsel %vm45, %v3205, 0
    %v3297 = vsel %vm45, %v3206, 0
    %v3300 = vsel %vm45, %v3207, 0
    %v3303 = vsel %vm45, %v3208, 0
    %v3306 = vsel %vm45, %v3209, 0
    %v3309 = vsel %vm45, %v3210, 0
    %v3312 = vsel %vm45, %v3211, 0
    %v3315 = vsel %vm45, %v3212, 0
    %v3318 = vsel %vm45, %v3213, 0
    %v3321 = vsel %vm45, %v3214, 0
    %v3324 = vsel %vm45, %v3215, 0
    %v3327 = vsel %vm45, %v3216, 0
    %v3330 = vsel %vm45, %v3217, 0
    %v3333 = vsel %vm45, %v3218, 0
    %v3336 = vsel %vm45, %v3219, 0
    %v3339 = vsel %vm45, %v3220, 0
    %v3342 = vsel %vm45, %v3221, 0
    %v3345 = vsel %vm45, %v3222, 0
    %v3348 = vsel %vm45, %v3223, 0
    %v3351 = vsel %vm45, %v3224, 0
    %v3354 = vsel %vm45, %v3225, 0
    %v3357 = vsel %vm45, %v3226, 0
    %v3360 = vsel %vm45, %v3227, 0
    %v3363 = vsel %vm45, %v3228, 0
    %v3366 = vsel %vm45, %v3229, 0
    %v3369 = vsel %vm45, %v3230, 0
    %v3372 = vsel %vm45, %v3231, 0
    %v3375 = vsel %vm45, %v3232, 0
    %v3378 = vsel %vm45, %v3233, 0
    %v3381 = vsel %vm45, %v3234, 0
    %v3384 = vsel %vm45, %v3235, 0
    %v3387 = vsel %vm45, %v3236, 0
    %v3390 = vsel %vm45, %v3237, 0
    %v3393 = vsel %vm45, %v3238, 0
    %v3396 = vsel %vm45, %v3239, 0
    %v3399 = vsel %vm45, %v3240, 0
    %v3402 = vsel %vm45, %v3241, 0
    %v3405 = vsel %vm45, %v3242, 0
    %v3408 = vsel %vm45, %v3243, 0
    %v3411 = vsel %vm45, %v3244, 0
    %v3414 = vsel %vm45, %v3245, 0
    %v3417 = vsel %vm45, %v3246, 0
    %v3420 = vsel %vm45, %v3247, 0
    %v3423 = vsel %vm45, %v3248, 0
    %v3426 = vsel %vm45, %v3249, 0
    %v3429 = vsel %vm45, %v3250, 0
    %v3432 = vsel %vm45, %v3251, 0
    %v3435 = vsel %vm45, %v3252, 0
    %v3438 = vsel %vm45, %v3253, 0
    %v3441 = vsel %vm45, %v3254, 0
    %v3444 = vsel %vm45, %v3255, 0
    %v3447 = vsel %vm45, %v3256, 0
    %v3450 = vsel %vm45, %v3257, 0
    %v3453 = vsel %vm45, %v3258, 0
    %v3456 = vsel %vm45, %v3259, 0
    %v3459 = vsel %vm45, %v3260, 0
    %v3462 = vsel %vm45, %v3261, 0
    %v3465 = vsel %vm45, %v3262, 0
    %vm3467 = vcmask 1043456
    %v3469 = vsel %vm3467, %v3267, 0
    %3471 = vmatprep.subr.mxu0 0.0
    %3472 = vmatpush1.msra.mxu0 %v3263
    %3473 = vmatprep.subr.mxu0 0.0
    %3474 = vmatpush1.msra.mxu0 %v3264
    %3475 = vmatprep.subr.mxu0 0.0
    %3476 = vmatpush1.msra.mxu0 %v3265
    %3477 = vmatprep.subr.mxu0 0.0
    %3478 = vmatpush1.msra.mxu0 %v3266
    %3479 = vmatprep.subr.mxu0 0.0
    %3480 = vmatpush1.msra.mxu0 %v3469
    %3481 = vmatprep.subr.mxu0 0.0
    %3482 = vmatpush1.msra.mxu0 0.0
    %3483 = vmatprep.subr.mxu0 0.0
    %3484 = vmatpush1.msra.mxu0 0.0
    %3485 = vmatprep.subr.mxu0 0.0
    %3486 = vmatpush1.msra.mxu0 0.0
    %3487 = vmatprep.subr.mxu0 0.0
    %3488 = vmatpush1.msra.mxu0 0.0
    %3489 = vmatprep.subr.mxu0 0.0
    %3490 = vmatpush1.msra.mxu0 0.0
    %3491 = vmatprep.subr.mxu0 0.0
    %3492 = vmatpush1.msra.mxu0 0.0
    %3493 = vmatprep.subr.mxu0 0.0
    %3494 = vmatpush1.msra.mxu0 0.0
    %3495 = vmatprep.subr.mxu0 0.0
    %3496 = vmatpush1.msra.mxu0 0.0
    %3497 = vmatprep.subr.mxu0 0.0
    %3498 = vmatpush1.msra.mxu0 0.0
    %3499 = vmatprep.subr.mxu0 0.0
    %3500 = vmatpush1.msra.mxu0 0.0
    %3501 = vmatprep.subr.mxu0 0.0
    %3502 = vmatpush1.msra.mxu0 0.0
    %3503 = vmatprep.subr.mxu0 0.0
    %3504 = vmatpush1.msra.mxu0 0.0
    %3505 = vmatprep.subr.mxu0 0.0
    %3506 = vmatpush1.msra.mxu0 0.0
    %3507 = vmatprep.subr.mxu0 0.0
    %3508 = vmatpush1.msra.mxu0 0.0
    %3509 = vmatprep.subr.mxu0 0.0
    %3510 = vmatpush1.msra.mxu0 0.0
    %3511 = vmatprep.subr.mxu0 0.0
    %3512 = vmatpush1.msra.mxu0 0.0
    %3513 = vmatprep.subr.mxu0 0.0
    %3514 = vmatpush1.msra.mxu0 0.0
    %3515 = vmatprep.subr.mxu0 0.0
    %3516 = vmatpush1.msra.mxu0 0.0
    %3517 = vmatprep.subr.mxu0 0.0
    %3518 = vmatpush1.msra.mxu0 0.0
    %3519 = vmatprep.subr.mxu0 0.0
    %3520 = vmatpush1.msra.mxu0 0.0
    %3521 = vmatprep.subr.mxu0 0.0
    %3522 = vmatpush1.msra.mxu0 0.0
    %3523 = vmatprep.subr.mxu0 0.0
    %3524 = vmatpush1.msra.mxu0 0.0
    %3525 = vmatprep.subr.mxu0 0.0
    %3526 = vmatpush1.msra.mxu0 0.0
    %3527 = vmatprep.subr.mxu0 0.0
    %3528 = vmatpush1.msra.mxu0 0.0
    %3529 = vmatprep.subr.mxu0 0.0
    %3530 = vmatpush1.msra.mxu0 0.0
    %3531 = vmatprep.subr.mxu0 0.0
    %3532 = vmatpush1.msra.mxu0 0.0
    %3533 = vmatprep.subr.mxu0 0.0
    %3534 = vmatpush1.msra.mxu0 0.0
    %3535 = vmatprep.mubr.f32.mxu0 0.0
    %3536 = vmatmul.mubr.f32.gmra.mrb[0].mxu0 %v3276
    %v3537 = vpop.f32.mrb[0].mxu0
    %v3538 = vadd.f32 %v3273, %v3537
    %v3539 = vpop.f32.mrb[0].mxu0
    %3540 = vmatprep.mubr.f32.mxu0 0.0
    %3541 = vmatmul.mubr.f32.gmra.mrb[0].mxu0 %v3279
    %v3542 = vpop.f32.mrb[0].mxu0
    %v3543 = vadd.f32 %v3273, %v3542
    %v3544 = vpop.f32.mrb[0].mxu0
    %3545 = vmatprep.mubr.f32.mxu0 0.0
    %3546 = vmatmul.mubr.f32.gmra.mrb[0].mxu0 %v3282
    %v3547 = vpop.f32.mrb[0].mxu0
    %v3548 = vadd.f32 %v3273, %v3547
    %v3549 = vpop.f32.mrb[0].mxu0
    %3550 = vmatprep.mubr.f32.mxu0 0.0
    %3551 = vmatmul.mubr.f32.gmra.mrb[0].mxu0 %v3285
    %v3552 = vpop.f32.mrb[0].mxu0
    %v3553 = vadd.f32 %v3273, %v3552
    %v3554 = vpop.f32.mrb[0].mxu0
    %3555 = vmatprep.mubr.f32.mxu0 0.0
    %3556 = vmatmul.mubr.f32.gmra.mrb[0].mxu0 %v3288
    %v3557 = vpop.f32.mrb[0].mxu0
    %v3558 = vadd.f32 %v3273, %v3557
    %v3559 = vpop.f32.mrb[0].mxu0
    %3560 = vmatprep.mubr.f32.mxu0 0.0
    %3561 = vmatmul.mubr.f32.gmra.mrb[0].mxu0 %v3291
    %v3562 = vpop.f32.mrb[0].mxu0
    %v3563 = vadd.f32 %v3273, %v3562
    %v3564 = vpop.f32.mrb[0].mxu0
    %3565 = vmatprep.mubr.f32.mxu0 0.0
    %3566 = vmatmul.mubr.f32.gmra.mrb[0].mxu0 %v3294
    %v3567 = vpop.f32.mrb[0].mxu0
    %v3568 = vadd.f32 %v3273, %v3567
    %v3569 = vpop.f32.mrb[0].mxu0
    %3570 = vmatprep.mubr.f32.mxu0 0.0
    %3571 = vmatmul.mubr.f32.gmra.mrb[0].mxu0 %v3297
    %v3572 = vpop.f32.mrb[0].mxu0
    %v3573 = vadd.f32 %v3273, %v3572
    %v3574 = vpop.f32.mrb[0].mxu0
    %3575 = vmatprep.mubr.f32.mxu0 0.0
    %3576 = vmatmul.mubr.f32.gmra.mrb[0].mxu0 %v3300
    %v3577 = vpop.f32.mrb[0].mxu0
    %v3578 = vadd.f32 %v3273, %v3577
    %v3579 = vpop.f32.mrb[0].mxu0
    %3580 = vmatprep.mubr.f32.mxu0 0.0
    %3581 = vmatmul.mubr.f32.gmra.mrb[0].mxu0 %v3303
    %v3582 = vpop.f32.mrb[0].mxu0
    %v3583 = vadd.f32 %v3273, %v3582
    %v3584 = vpop.f32.mrb[0].mxu0
    %3585 = vmatprep.mubr.f32.mxu0 0.0
    %3586 = vmatmul.mubr.f32.gmra.mrb[0].mxu0 %v3306
    %v3587 = vpop.f32.mrb[0].mxu0
    %v3588 = vadd.f32 %v3273, %v3587
    %v3589 = vpop.f32.mrb[0].mxu0
    %3590 = vmatprep.mubr.f32.mxu0 0.0
    %3591 = vmatmul.mubr.f32.gmra.mrb[0].mxu0 %v3309
    %v3592 = vpop.f32.mrb[0].mxu0
    %v3593 = vadd.f32 %v3273, %v3592
    %v3594 = vpop.f32.mrb[0].mxu0
    %3595 = vmatprep.mubr.f32.mxu0 0.0
    %3596 = vmatmul.mubr.f32.gmra.mrb[0].mxu0 %v3312
    %v3597 = vpop.f32.mrb[0].mxu0
    %v3598 = vadd.f32 %v3273, %v3597
    %v3599 = vpop.f32.mrb[0].mxu0
    %3600 = vmatprep.mubr.f32.mxu0 0.0
    %3601 = vmatmul.mubr.f32.gmra.mrb[0].mxu0 %v3315
    %v3602 = vpop.f32.mrb[0].mxu0
    %v3603 = vadd.f32 %v3273, %v3602
    %v3604 = vpop.f32.mrb[0].mxu0
    %3605 = vmatprep.mubr.f32.mxu0 0.0
    %3606 = vmatmul.mubr.f32.gmra.mrb[0].mxu0 %v3318
    %v3607 = vpop.f32.mrb[0].mxu0
    %v3608 = vadd.f32 %v3273, %v3607
    %v3609 = vpop.f32.mrb[0].mxu0
    %3610 = vmatprep.mubr.f32.mxu0 0.0
    %3611 = vmatmul.mubr.f32.gmra.mrb[0].mxu0 %v3321
    %v3612 = vpop.f32.mrb[0].mxu0
    %v3613 = vadd.f32 %v3273, %v3612
    %v3614 = vpop.f32.mrb[0].mxu0
    %3615 = vmatprep.mubr.f32.mxu0 0.0
    %3616 = vmatmul.mubr.f32.gmra.mrb[0].mxu0 %v3324
    %v3617 = vpop.f32.mrb[0].mxu0
    %v3618 = vadd.f32 %v3273, %v3617
    %v3619 = vpop.f32.mrb[0].mxu0
    %3620 = vmatprep.mubr.f32.mxu0 0.0
    %3621 = vmatmul.mubr.f32.gmra.mrb[0].mxu0 %v3327
    %v3622 = vpop.f32.mrb[0].mxu0
    %v3623 = vadd.f32 %v3273, %v3622
    %v3624 = vpop.f32.mrb[0].mxu0
    %3625 = vmatprep.mubr.f32.mxu0 0.0
    %3626 = vmatmul.mubr.f32.gmra.mrb[0].mxu0 %v3330
    %v3627 = vpop.f32.mrb[0].mxu0
    %v3628 = vadd.f32 %v3273, %v3627
    %v3629 = vpop.f32.mrb[0].mxu0
    %3630 = vmatprep.mubr.f32.mxu0 0.0
    %3631 = vmatmul.mubr.f32.gmra.mrb[0].mxu0 %v3333
    %v3632 = vpop.f32.mrb[0].mxu0
    %v3633 = vadd.f32 %v3273, %v3632
    %v3634 = vpop.f32.mrb[0].mxu0
    %3635 = vmatprep.mubr.f32.mxu0 0.0
    %3636 = vmatmul.mubr.f32.gmra.mrb[0].mxu0 %v3336
    %v3637 = vpop.f32.mrb[0].mxu0
    %v3638 = vadd.f32 %v3273, %v3637
    %v3639 = vpop.f32.mrb[0].mxu0
    %3640 = vmatprep.mubr.f32.mxu0 0.0
    %3641 = vmatmul.mubr.f32.gmra.mrb[0].mxu0 %v3339
    %v3642 = vpop.f32.mrb[0].mxu0
    %v3643 = vadd.f32 %v3273, %v3642
    %v3644 = vpop.f32.mrb[0].mxu0
    %3645 = vmatprep.mubr.f32.mxu0 0.0
    %3646 = vmatmul.mubr.f32.gmra.mrb[0].mxu0 %v3342
    %v3647 = vpop.f32.mrb[0].mxu0
    %v3648 = vadd.f32 %v3273, %v3647
    %v3649 = vpop.f32.mrb[0].mxu0
    %3650 = vmatprep.mubr.f32.mxu0 0.0
    %3651 = vmatmul.mubr.f32.gmra.mrb[0].mxu0 %v3345
    %v3652 = vpop.f32.mrb[0].mxu0
    %v3653 = vadd.f32 %v3273, %v3652
    %v3654 = vpop.f32.mrb[0].mxu0
    %3655 = vmatprep.mubr.f32.mxu0 0.0
    %3656 = vmatmul.mubr.f32.gmra.mrb[0].mxu0 %v3348
    %v3657 = vpop.f32.mrb[0].mxu0
    %v3658 = vadd.f32 %v3273, %v3657
    %v3659 = vpop.f32.mrb[0].mxu0
    %3660 = vmatprep.mubr.f32.mxu0 0.0
    %3661 = vmatmul.mubr.f32.gmra.mrb[0].mxu0 %v3351
    %v3662 = vpop.f32.mrb[0].mxu0
    %v3663 = vadd.f32 %v3273, %v3662
    %v3664 = vpop.f32.mrb[0].mxu0
    %3665 = vmatprep.mubr.f32.mxu0 0.0
    %3666 = vmatmul.mubr.f32.gmra.mrb[0].mxu0 %v3354
    %v3667 = vpop.f32.mrb[0].mxu0
    %v3668 = vadd.f32 %v3273, %v3667
    %v3669 = vpop.f32.mrb[0].mxu0
    %3670 = vmatprep.mubr.f32.mxu0 0.0
    %3671 = vmatmul.mubr.f32.gmra.mrb[0].mxu0 %v3357
    %v3672 = vpop.f32.mrb[0].mxu0
    %v3673 = vadd.f32 %v3273, %v3672
    %v3674 = vpop.f32.mrb[0].mxu0
    %3675 = vmatprep.mubr.f32.mxu0 0.0
    %3676 = vmatmul.mubr.f32.gmra.mrb[0].mxu0 %v3360
    %v3677 = vpop.f32.mrb[0].mxu0
    %v3678 = vadd.f32 %v3273, %v3677
    %v3679 = vpop.f32.mrb[0].mxu0
    %3680 = vmatprep.mubr.f32.mxu0 0.0
    %3681 = vmatmul.mubr.f32.gmra.mrb[0].mxu0 %v3363
    %v3682 = vpop.f32.mrb[0].mxu0
    %v3683 = vadd.f32 %v3273, %v3682
    %v3684 = vpop.f32.mrb[0].mxu0
    %3685 = vmatprep.mubr.f32.mxu0 0.0
    %3686 = vmatmul.mubr.f32.gmra.mrb[0].mxu0 %v3366
    %v3687 = vpop.f32.mrb[0].mxu0
    %v3688 = vadd.f32 %v3273, %v3687
    %v3689 = vpop.f32.mrb[0].mxu0
    %3690 = vmatprep.mubr.f32.mxu0 0.0
    %3691 = vmatmul.mubr.f32.gmra.mrb[0].mxu0 %v3369
    %v3692 = vpop.f32.mrb[0].mxu0
    %v3693 = vadd.f32 %v3273, %v3692
    %v3694 = vpop.f32.mrb[0].mxu0
    %3695 = vmatprep.mubr.f32.mxu0 0.0
    %3696 = vmatmul.mubr.f32.gmra.mrb[0].mxu0 %v3372
    %v3697 = vpop.f32.mrb[0].mxu0
    %v3698 = vadd.f32 %v3273, %v3697
    %v3699 = vpop.f32.mrb[0].mxu0
    %3700 = vmatprep.mubr.f32.mxu0 0.0
    %3701 = vmatmul.mubr.f32.gmra.mrb[0].mxu0 %v3375
    %v3702 = vpop.f32.mrb[0].mxu0
    %v3703 = vadd.f32 %v3273, %v3702
    %v3704 = vpop.f32.mrb[0].mxu0
    %3705 = vmatprep.mubr.f32.mxu0 0.0
    %3706 = vmatmul.mubr.f32.gmra.mrb[0].mxu0 %v3378
    %v3707 = vpop.f32.mrb[0].mxu0
    %v3708 = vadd.f32 %v3273, %v3707
    %v3709 = vpop.f32.mrb[0].mxu0
    %3710 = vmatprep.mubr.f32.mxu0 0.0
    %3711 = vmatmul.mubr.f32.gmra.mrb[0].mxu0 %v3381
    %v3712 = vpop.f32.mrb[0].mxu0
    %v3713 = vadd.f32 %v3273, %v3712
    %v3714 = vpop.f32.mrb[0].mxu0
    %3715 = vmatprep.mubr.f32.mxu0 0.0
    %3716 = vmatmul.mubr.f32.gmra.mrb[0].mxu0 %v3384
    %v3717 = vpop.f32.mrb[0].mxu0
    %v3718 = vadd.f32 %v3273, %v3717
    %v3719 = vpop.f32.mrb[0].mxu0
    %3720 = vmatprep.mubr.f32.mxu0 0.0
    %3721 = vmatmul.mubr.f32.gmra.mrb[0].mxu0 %v3387
    %v3722 = vpop.f32.mrb[0].mxu0
    %v3723 = vadd.f32 %v3273, %v3722
    %v3724 = vpop.f32.mrb[0].mxu0
    %3725 = vmatprep.mubr.f32.mxu0 0.0
    %3726 = vmatmul.mubr.f32.gmra.mrb[0].mxu0 %v3390
    %v3727 = vpop.f32.mrb[0].mxu0
    %v3728 = vadd.f32 %v3273, %v3727
    %v3729 = vpop.f32.mrb[0].mxu0
    %3730 = vmatprep.mubr.f32.mxu0 0.0
    %3731 = vmatmul.mubr.f32.gmra.mrb[0].mxu0 %v3393
    %v3732 = vpop.f32.mrb[0].mxu0
    %v3733 = vadd.f32 %v3273, %v3732
    %v3734 = vpop.f32.mrb[0].mxu0
    %3735 = vmatprep.mubr.f32.mxu0 0.0
    %3736 = vmatmul.mubr.f32.gmra.mrb[0].mxu0 %v3396
    %v3737 = vpop.f32.mrb[0].mxu0
    %v3738 = vadd.f32 %v3273, %v3737
    %v3739 = vpop.f32.mrb[0].mxu0
    %3740 = vmatprep.mubr.f32.mxu0 0.0
    %3741 = vmatmul.mubr.f32.gmra.mrb[0].mxu0 %v3399
    %v3742 = vpop.f32.mrb[0].mxu0
    %v3743 = vadd.f32 %v3273, %v3742
    %v3744 = vpop.f32.mrb[0].mxu0
    %3745 = vmatprep.mubr.f32.mxu0 0.0
    %3746 = vmatmul.mubr.f32.gmra.mrb[0].mxu0 %v3402
    %v3747 = vpop.f32.mrb[0].mxu0
    %v3748 = vadd.f32 %v3273, %v3747
    %v3749 = vpop.f32.mrb[0].mxu0
    %3750 = vmatprep.mubr.f32.mxu0 0.0
    %3751 = vmatmul.mubr.f32.gmra.mrb[0].mxu0 %v3405
    %v3752 = vpop.f32.mrb[0].mxu0
    %v3753 = vadd.f32 %v3273, %v3752
    %v3754 = vpop.f32.mrb[0].mxu0
    %3755 = vmatprep.mubr.f32.mxu0 0.0
    %3756 = vmatmul.mubr.f32.gmra.mrb[0].mxu0 %v3408
    %v3757 = vpop.f32.mrb[0].mxu0
    %v3758 = vadd.f32 %v3273, %v3757
    %v3759 = vpop.f32.mrb[0].mxu0
    %3760 = vmatprep.mubr.f32.mxu0 0.0
    %3761 = vmatmul.mubr.f32.gmra.mrb[0].mxu0 %v3411
    %v3762 = vpop.f32.mrb[0].mxu0
    %v3763 = vadd.f32 %v3273, %v3762
    %v3764 = vpop.f32.mrb[0].mxu0
    %3765 = vmatprep.mubr.f32.mxu0 0.0
    %3766 = vmatmul.mubr.f32.gmra.mrb[0].mxu0 %v3414
    %v3767 = vpop.f32.mrb[0].mxu0
    %v3768 = vadd.f32 %v3273, %v3767
    %v3769 = vpop.f32.mrb[0].mxu0
    %3770 = vmatprep.mubr.f32.mxu0 0.0
    %3771 = vmatmul.mubr.f32.gmra.mrb[0].mxu0 %v3417
    %v3772 = vpop.f32.mrb[0].mxu0
    %v3773 = vadd.f32 %v3273, %v3772
    %v3774 = vpop.f32.mrb[0].mxu0
    %3775 = vmatprep.mubr.f32.mxu0 0.0
    %3776 = vmatmul.mubr.f32.gmra.mrb[0].mxu0 %v3420
    %v3777 = vpop.f32.mrb[0].mxu0
    %v3778 = vadd.f32 %v3273, %v3777
    %v3779 = vpop.f32.mrb[0].mxu0
    %3780 = vmatprep.mubr.f32.mxu0 0.0
    %3781 = vmatmul.mubr.f32.gmra.mrb[0].mxu0 %v3423
    %v3782 = vpop.f32.mrb[0].mxu0
    %v3783 = vadd.f32 %v3273, %v3782
    %v3784 = vpop.f32.mrb[0].mxu0
    %3785 = vmatprep.mubr.f32.mxu0 0.0
    %3786 = vmatmul.mubr.f32.gmra.mrb[0].mxu0 %v3426
    %v3787 = vpop.f32.mrb[0].mxu0
    %v3788 = vadd.f32 %v3273, %v3787
    %v3789 = vpop.f32.mrb[0].mxu0
    %3790 = vmatprep.mubr.f32.mxu0 0.0
    %3791 = vmatmul.mubr.f32.gmra.mrb[0].mxu0 %v3429
    %v3792 = vpop.f32.mrb[0].mxu0
    %v3793 = vadd.f32 %v3273, %v3792
    %v3794 = vpop.f32.mrb[0].mxu0
    %3795 = vmatprep.mubr.f32.mxu0 0.0
    %3796 = vmatmul.mubr.f32.gmra.mrb[0].mxu0 %v3432
    %v3797 = vpop.f32.mrb[0].mxu0
    %v3798 = vadd.f32 %v3273, %v3797
    %v3799 = vpop.f32.mrb[0].mxu0
    %3800 = vmatprep.mubr.f32.mxu0 0.0
    %3801 = vmatmul.mubr.f32.gmra.mrb[0].mxu0 %v3435
    %v3802 = vpop.f32.mrb[0].mxu0
    %v3803 = vadd.f32 %v3273, %v3802
    %v3804 = vpop.f32.mrb[0].mxu0
    %3805 = vmatprep.mubr.f32.mxu0 0.0
    %3806 = vmatmul.mubr.f32.gmra.mrb[0].mxu0 %v3438
    %v3807 = vpop.f32.mrb[0].mxu0
    %v3808 = vadd.f32 %v3273, %v3807
    %v3809 = vpop.f32.mrb[0].mxu0
    %3810 = vmatprep.mubr.f32.mxu0 0.0
    %3811 = vmatmul.mubr.f32.gmra.mrb[0].mxu0 %v3441
    %v3812 = vpop.f32.mrb[0].mxu0
    %v3813 = vadd.f32 %v3273, %v3812
    %v3814 = vpop.f32.mrb[0].mxu0
    %3815 = vmatprep.mubr.f32.mxu0 0.0
    %3816 = vmatmul.mubr.f32.gmra.mrb[0].mxu0 %v3444
    %v3817 = vpop.f32.mrb[0].mxu0
    %v3818 = vadd.f32 %v3273, %v3817
    %v3819 = vpop.f32.mrb[0].mxu0
    %3820 = vmatprep.mubr.f32.mxu0 0.0
    %3821 = vmatmul.mubr.f32.gmra.mrb[0].mxu0 %v3447
    %v3822 = vpop.f32.mrb[0].mxu0
    %v3823 = vadd.f32 %v3273, %v3822
    %v3824 = vpop.f32.mrb[0].mxu0
    %3825 = vmatprep.mubr.f32.mxu0 0.0
    %3826 = vmatmul.mubr.f32.gmra.mrb[0].mxu0 %v3450
    %v3827 = vpop.f32.mrb[0].mxu0
    %v3828 = vadd.f32 %v3273, %v3827
    %v3829 = vpop.f32.mrb[0].mxu0
    %3830 = vmatprep.mubr.f32.mxu0 0.0
    %3831 = vmatmul.mubr.f32.gmra.mrb[0].mxu0 %v3453
    %v3832 = vpop.f32.mrb[0].mxu0
    %v3833 = vadd.f32 %v3273, %v3832
    %v3834 = vpop.f32.mrb[0].mxu0
    %3835 = vmatprep.mubr.f32.mxu0 0.0
    %3836 = vmatmul.mubr.f32.gmra.mrb[0].mxu0 %v3456
    %v3837 = vpop.f32.mrb[0].mxu0
    %v3838 = vadd.f32 %v3273, %v3837
    %v3839 = vpop.f32.mrb[0].mxu0
    %3840 = vmatprep.mubr.f32.mxu0 0.0
    %3841 = vmatmul.mubr.f32.gmra.mrb[0].mxu0 %v3459
    %v3842 = vpop.f32.mrb[0].mxu0
    %v3843 = vadd.f32 %v3273, %v3842
    %v3844 = vpop.f32.mrb[0].mxu0
    %3845 = vmatprep.mubr.f32.mxu0 0.0
    %3846 = vmatmul.mubr.f32.gmra.mrb[0].mxu0 %v3462
    %v3847 = vpop.f32.mrb[0].mxu0
    %v3848 = vadd.f32 %v3273, %v3847
    %v3849 = vpop.f32.mrb[0].mxu0
    %3850 = vmatprep.mubr.f32.mxu0 0.0
    %3851 = vmatmul.mubr.f32.gmra.mrb[0].mxu0 %v3465
    %v3852 = vpop.f32.mrb[0].mxu0
    %v3853 = vadd.f32 %v3273, %v3852
    %v3854 = vpop.f32.mrb[0].mxu0
    %3855 = vdwg.mxu0
    %v3856 = vmax.f32 %v3538, 0.0
    %v3857 = vmax.f32 %v3543, 0.0
    %v3858 = vmax.f32 %v3548, 0.0
    %v3859 = vmax.f32 %v3553, 0.0
    %v3860 = vmax.f32 %v3558, 0.0
    %v3861 = vmax.f32 %v3563, 0.0
    %v3862 = vmax.f32 %v3568, 0.0
    %v3863 = vmax.f32 %v3573, 0.0
    %v3864 = vmax.f32 %v3578, 0.0
    %v3865 = vmax.f32 %v3583, 0.0
    %v3866 = vmax.f32 %v3588, 0.0
    %v3867 = vmax.f32 %v3593, 0.0
    %v3868 = vmax.f32 %v3598, 0.0
    %v3869 = vmax.f32 %v3603, 0.0
    %v3870 = vmax.f32 %v3608, 0.0
    %v3871 = vmax.f32 %v3613, 0.0
    %v3872 = vmax.f32 %v3618, 0.0
    %v3873 = vmax.f32 %v3623, 0.0
    %v3874 = vmax.f32 %v3628, 0.0
    %v3875 = vmax.f32 %v3633, 0.0
    %v3876 = vmax.f32 %v3638, 0.0
    %v3877 = vmax.f32 %v3643, 0.0
    %v3878 = vmax.f32 %v3648, 0.0
    %v3879 = vmax.f32 %v3653, 0.0
    %v3880 = vmax.f32 %v3658, 0.0
    %v3881 = vmax.f32 %v3663, 0.0
    %v3882 = vmax.f32 %v3668, 0.0
    %v3883 = vmax.f32 %v3673, 0.0
    %v3884 = vmax.f32 %v3678, 0.0
    %v3885 = vmax.f32 %v3683, 0.0
    %v3886 = vmax.f32 %v3688, 0.0
    %v3887 = vmax.f32 %v3693, 0.0
    %v3888 = vmax.f32 %v3698, 0.0
    %v3889 = vmax.f32 %v3703, 0.0
    %v3890 = vmax.f32 %v3708, 0.0
    %v3891 = vmax.f32 %v3713, 0.0
    %v3892 = vmax.f32 %v3718, 0.0
    %v3893 = vmax.f32 %v3723, 0.0
    %v3894 = vmax.f32 %v3728, 0.0
    %v3895 = vmax.f32 %v3733, 0.0
    %v3896 = vmax.f32 %v3738, 0.0
    %v3897 = vmax.f32 %v3743, 0.0
    %v3898 = vmax.f32 %v3748, 0.0
    %v3899 = vmax.f32 %v3753, 0.0
    %v3900 = vmax.f32 %v3758, 0.0
    %v3901 = vmax.f32 %v3763, 0.0
    %v3902 = vmax.f32 %v3768, 0.0
    %v3903 = vmax.f32 %v3773, 0.0
    %v3904 = vmax.f32 %v3778, 0.0
    %v3905 = vmax.f32 %v3783, 0.0
    %v3906 = vmax.f32 %v3788, 0.0
    %v3907 = vmax.f32 %v3793, 0.0
    %v3908 = vmax.f32 %v3798, 0.0
    %v3909 = vmax.f32 %v3803, 0.0
    %v3910 = vmax.f32 %v3808, 0.0
    %v3911 = vmax.f32 %v3813, 0.0
    %v3912 = vmax.f32 %v3818, 0.0
    %v3913 = vmax.f32 %v3823, 0.0
    %v3914 = vmax.f32 %v3828, 0.0
    %v3915 = vmax.f32 %v3833, 0.0
    %v3916 = vmax.f32 %v3838, 0.0
    %v3917 = vmax.f32 %v3843, 0.0
    %v3918 = vmax.f32 %v3848, 0.0
    %v3919 = vmax.f32 %v3853, 0.0
    %vm3920 = vcmask 64512
    %3921 = vst.msk [vmem:[#allocation4] sm:$0xff] %vm3920, %v3856
    %3922 = vst.msk [vmem:[#allocation4 + $0x8] sm:$0xff] %vm3920, %v3857
    %3923 = vst.msk [vmem:[#allocation4 + $0x10] sm:$0xff] %vm3920, %v3858
    %3924 = vst.msk [vmem:[#allocation4 + $0x18] sm:$0xff] %vm3920, %v3859
    %3925 = vst.msk [vmem:[#allocation4 + $0x20] sm:$0xff] %vm3920, %v3860
    %3926 = vst.msk [vmem:[#allocation4 + $0x28] sm:$0xff] %vm3920, %v3861
    %3927 = vst.msk [vmem:[#allocation4 + $0x30] sm:$0xff] %vm3920, %v3862
    %3928 = vst.msk [vmem:[#allocation4 + $0x38] sm:$0xff] %vm3920, %v3863
    %3929 = vst.msk [vmem:[#allocation4 + $0x40] sm:$0xff] %vm3920, %v3864
    %3930 = vst.msk [vmem:[#allocation4 + $0x48] sm:$0xff] %vm3920, %v3865
    %3931 = vst.msk [vmem:[#allocation4 + $0x50] sm:$0xff] %vm3920, %v3866
    %3932 = vst.msk [vmem:[#allocation4 + $0x58] sm:$0xff] %vm3920, %v3867
    %3933 = vst.msk [vmem:[#allocation4 + $0x60] sm:$0xff] %vm3920, %v3868
    %3934 = vst.msk [vmem:[#allocation4 + $0x68] sm:$0xff] %vm3920, %v3869
    %3935 = vst.msk [vmem:[#allocation4 + $0x70] sm:$0xff] %vm3920, %v3870
    %3936 = vst.msk [vmem:[#allocation4 + $0x78] sm:$0xff] %vm3920, %v3871
    %3937 = vst.msk [vmem:[#allocation4 + $0x80] sm:$0xff] %vm3920, %v3872
    %3938 = vst.msk [vmem:[#allocation4 + $0x88] sm:$0xff] %vm3920, %v3873
    %3939 = vst.msk [vmem:[#allocation4 + $0x90] sm:$0xff] %vm3920, %v3874
    %3940 = vst.msk [vmem:[#allocation4 + $0x98] sm:$0xff] %vm3920, %v3875
    %3941 = vst.msk [vmem:[#allocation4 + $0xa0] sm:$0xff] %vm3920, %v3876
    %3942 = vst.msk [vmem:[#allocation4 + $0xa8] sm:$0xff] %vm3920, %v3877
    %3943 = vst.msk [vmem:[#allocation4 + $0xb0] sm:$0xff] %vm3920, %v3878
    %3944 = vst.msk [vmem:[#allocation4 + $0xb8] sm:$0xff] %vm3920, %v3879
    %3945 = vst.msk [vmem:[#allocation4 + $0xc0] sm:$0xff] %vm3920, %v3880
    %3946 = vst.msk [vmem:[#allocation4 + $0xc8] sm:$0xff] %vm3920, %v3881
    %3947 = vst.msk [vmem:[#allocation4 + $0xd0] sm:$0xff] %vm3920, %v3882
    %3948 = vst.msk [vmem:[#allocation4 + $0xd8] sm:$0xff] %vm3920, %v3883
    %3949 = vst.msk [vmem:[#allocation4 + $0xe0] sm:$0xff] %vm3920, %v3884
    %3950 = vst.msk [vmem:[#allocation4 + $0xe8] sm:$0xff] %vm3920, %v3885
    %3951 = vst.msk [vmem:[#allocation4 + $0xf0] sm:$0xff] %vm3920, %v3886
    %3952 = vst.msk [vmem:[#allocation4 + $0xf8] sm:$0xff] %vm3920, %v3887
    %3953 = vst.msk [vmem:[#allocation4 + $0x100] sm:$0xff] %vm3920, %v3888
    %3954 = vst.msk [vmem:[#allocation4 + $0x108] sm:$0xff] %vm3920, %v3889
    %3955 = vst.msk [vmem:[#allocation4 + $0x110] sm:$0xff] %vm3920, %v3890
    %3956 = vst.msk [vmem:[#allocation4 + $0x118] sm:$0xff] %vm3920, %v3891
    %3957 = vst.msk [vmem:[#allocation4 + $0x120] sm:$0xff] %vm3920, %v3892
    %3958 = vst.msk [vmem:[#allocation4 + $0x128] sm:$0xff] %vm3920, %v3893
    %3959 = vst.msk [vmem:[#allocation4 + $0x130] sm:$0xff] %vm3920, %v3894
    %3960 = vst.msk [vmem:[#allocation4 + $0x138] sm:$0xff] %vm3920, %v3895
    %3961 = vst.msk [vmem:[#allocation4 + $0x140] sm:$0xff] %vm3920, %v3896
    %3962 = vst.msk [vmem:[#allocation4 + $0x148] sm:$0xff] %vm3920, %v3897
    %3963 = vst.msk [vmem:[#allocation4 + $0x150] sm:$0xff] %vm3920, %v3898
    %3964 = vst.msk [vmem:[#allocation4 + $0x158] sm:$0xff] %vm3920, %v3899
    %3965 = vst.msk [vmem:[#allocation4 + $0x160] sm:$0xff] %vm3920, %v3900
    %3966 = vst.msk [vmem:[#allocation4 + $0x168] sm:$0xff] %vm3920, %v3901
    %3967 = vst.msk [vmem:[#allocation4 + $0x170] sm:$0xff] %vm3920, %v3902
    %3968 = vst.msk [vmem:[#allocation4 + $0x178] sm:$0xff] %vm3920, %v3903
    %3969 = vst.msk [vmem:[#allocation4 + $0x180] sm:$0xff] %vm3920, %v3904
    %3970 = vst.msk [vmem:[#allocation4 + $0x188] sm:$0xff] %vm3920, %v3905
    %3971 = vst.msk [vmem:[#allocation4 + $0x190] sm:$0xff] %vm3920, %v3906
    %3972 = vst.msk [vmem:[#allocation4 + $0x198] sm:$0xff] %vm3920, %v3907
    %3973 = vst.msk [vmem:[#allocation4 + $0x1a0] sm:$0xff] %vm3920, %v3908
    %3974 = vst.msk [vmem:[#allocation4 + $0x1a8] sm:$0xff] %vm3920, %v3909
    %3975 = vst.msk [vmem:[#allocation4 + $0x1b0] sm:$0xff] %vm3920, %v3910
    %3976 = vst.msk [vmem:[#allocation4 + $0x1b8] sm:$0xff] %vm3920, %v3911
    %3977 = vst.msk [vmem:[#allocation4 + $0x1c0] sm:$0xff] %vm3920, %v3912
    %3978 = vst.msk [vmem:[#allocation4 + $0x1c8] sm:$0xff] %vm3920, %v3913
    %3979 = vst.msk [vmem:[#allocation4 + $0x1d0] sm:$0xff] %vm3920, %v3914
    %3980 = vst.msk [vmem:[#allocation4 + $0x1d8] sm:$0xff] %vm3920, %v3915
    %3981 = vst.msk [vmem:[#allocation4 + $0x1e0] sm:$0xff] %vm3920, %v3916
    %3982 = vst.msk [vmem:[#allocation4 + $0x1e8] sm:$0xff] %vm3920, %v3917
    %3983 = vst.msk [vmem:[#allocation4 + $0x1f0] sm:$0xff] %vm3920, %v3918
    %3984 = vst.msk [vmem:[#allocation4 + $0x1f8] sm:$0xff] %vm3920, %v3919
    %vm3985 = vcmask 588800
    %3986 = vst.msk [vmem:[#allocation3] sm:$0xff] %vm3985, 0.0
    %3987 = vst.msk [vmem:[#allocation3 + $0x8] sm:$0xff] %vm3985, 0.0
    %3988 = vst.msk [vmem:[#allocation3 + $0x10] sm:$0xff] %vm3985, 0.0
    %3989 = vst.msk [vmem:[#allocation3 + $0x18] sm:$0xff] %vm3985, 0.0
    %3990 = vst.msk [vmem:[#allocation3 + $0x20] sm:$0xff] %vm3985, 0.0
    %3991 = vst.msk [vmem:[#allocation3 + $0x28] sm:$0xff] %vm3985, 0.0
    %3992 = vst.msk [vmem:[#allocation3 + $0x30] sm:$0xff] %vm3985, 0.0
    %3993 = vst.msk [vmem:[#allocation3 + $0x38] sm:$0xff] %vm3985, 0.0
    %3994 = vst.msk [vmem:[#allocation3 + $0x40] sm:$0xff] %vm3985, 0.0
    %3995 = vst.msk [vmem:[#allocation3 + $0x48] sm:$0xff] %vm3985, 0.0
    %3996 = vst.msk [vmem:[#allocation3 + $0x50] sm:$0xff] %vm3985, 0.0
    %3997 = vst.msk [vmem:[#allocation3 + $0x58] sm:$0xff] %vm3985, 0.0
    %3998 = vst.msk [vmem:[#allocation3 + $0x60] sm:$0xff] %vm3985, 0.0
    %3999 = vst.msk [vmem:[#allocation3 + $0x68] sm:$0xff] %vm3985, 0.0
    %4000 = vst.msk [vmem:[#allocation3 + $0x70] sm:$0xff] %vm3985, 0.0
    %4001 = vst.msk [vmem:[#allocation3 + $0x78] sm:$0xff] %vm3985, 0.0
    %4002 = vst.msk [vmem:[#allocation3 + $0x80] sm:$0xff] %vm3985, 0.0
    %4003 = vst.msk [vmem:[#allocation3 + $0x88] sm:$0xff] %vm3985, 0.0
    %4004 = vst.msk [vmem:[#allocation3 + $0x90] sm:$0xff] %vm3985, 0.0
    %4005 = vst.msk [vmem:[#allocation3 + $0x98] sm:$0xff] %vm3985, 0.0
    %4006 = vst.msk [vmem:[#allocation3 + $0xa0] sm:$0xff] %vm3985, 0.0
    %4007 = vst.msk [vmem:[#allocation3 + $0xa8] sm:$0xff] %vm3985, 0.0
    %4008 = vst.msk [vmem:[#allocation3 + $0xb0] sm:$0xff] %vm3985, 0.0
    %4009 = vst.msk [vmem:[#allocation3 + $0xb8] sm:$0xff] %vm3985, 0.0
    %4010 = vst.msk [vmem:[#allocation3 + $0xc0] sm:$0xff] %vm3985, 0.0
    %4011 = vst.msk [vmem:[#allocation3 + $0xc8] sm:$0xff] %vm3985, 0.0
    %4012 = vst.msk [vmem:[#allocation3 + $0xd0] sm:$0xff] %vm3985, 0.0
    %4013 = vst.msk [vmem:[#allocation3 + $0xd8] sm:$0xff] %vm3985, 0.0
    %4014 = vst.msk [vmem:[#allocation3 + $0xe0] sm:$0xff] %vm3985, 0.0
    %4015 = vst.msk [vmem:[#allocation3 + $0xe8] sm:$0xff] %vm3985, 0.0
    %4016 = vst.msk [vmem:[#allocation3 + $0xf0] sm:$0xff] %vm3985, 0.0
    %4017 = vst.msk [vmem:[#allocation3 + $0xf8] sm:$0xff] %vm3985, 0.0
    %4018 = vst.msk [vmem:[#allocation3 + $0x100] sm:$0xff] %vm3985, 0.0
    %4019 = vst.msk [vmem:[#allocation3 + $0x108] sm:$0xff] %vm3985, 0.0
    %4020 = vst.msk [vmem:[#allocation3 + $0x110] sm:$0xff] %vm3985, 0.0
    %4021 = vst.msk [vmem:[#allocation3 + $0x118] sm:$0xff] %vm3985, 0.0
    %4022 = vst.msk [vmem:[#allocation3 + $0x120] sm:$0xff] %vm3985, 0.0
    %4023 = vst.msk [vmem:[#allocation3 + $0x128] sm:$0xff] %vm3985, 0.0
    %4024 = vst.msk [vmem:[#allocation3 + $0x130] sm:$0xff] %vm3985, 0.0
    %4025 = vst.msk [vmem:[#allocation3 + $0x138] sm:$0xff] %vm3985, 0.0
    %4026 = vst.msk [vmem:[#allocation3 + $0x140] sm:$0xff] %vm3985, 0.0
    %4027 = vst.msk [vmem:[#allocation3 + $0x148] sm:$0xff] %vm3985, 0.0
    %4028 = vst.msk [vmem:[#allocation3 + $0x150] sm:$0xff] %vm3985, 0.0
    %4029 = vst.msk [vmem:[#allocation3 + $0x158] sm:$0xff] %vm3985, 0.0
    %4030 = vst.msk [vmem:[#allocation3 + $0x160] sm:$0xff] %vm3985, 0.0
    %4031 = vst.msk [vmem:[#allocation3 + $0x168] sm:$0xff] %vm3985, 0.0
    %4032 = vst.msk [vmem:[#allocation3 + $0x170] sm:$0xff] %vm3985, 0.0
    %4033 = vst.msk [vmem:[#allocation3 + $0x178] sm:$0xff] %vm3985, 0.0
    %4034 = vst.msk [vmem:[#allocation3 + $0x180] sm:$0xff] %vm3985, 0.0
    %4035 = vst.msk [vmem:[#allocation3 + $0x188] sm:$0xff] %vm3985, 0.0
    %4036 = vst.msk [vmem:[#allocation3 + $0x190] sm:$0xff] %vm3985, 0.0
    %4037 = vst.msk [vmem:[#allocation3 + $0x198] sm:$0xff] %vm3985, 0.0
    %4038 = vst.msk [vmem:[#allocation3 + $0x1a0] sm:$0xff] %vm3985, 0.0
    %4039 = vst.msk [vmem:[#allocation3 + $0x1a8] sm:$0xff] %vm3985, 0.0
    %4040 = vst.msk [vmem:[#allocation3 + $0x1b0] sm:$0xff] %vm3985, 0.0
    %4041 = vst.msk [vmem:[#allocation3 + $0x1b8] sm:$0xff] %vm3985, 0.0
    %4042 = vst.msk [vmem:[#allocation3 + $0x1c0] sm:$0xff] %vm3985, 0.0
    %4043 = vst.msk [vmem:[#allocation3 + $0x1c8] sm:$0xff] %vm3985, 0.0
    %4044 = vst.msk [vmem:[#allocation3 + $0x1d0] sm:$0xff] %vm3985, 0.0
    %4045 = vst.msk [vmem:[#allocation3 + $0x1d8] sm:$0xff] %vm3985, 0.0
    %4046 = vst.msk [vmem:[#allocation3 + $0x1e0] sm:$0xff] %vm3985, 0.0
    %4047 = vst.msk [vmem:[#allocation3 + $0x1e8] sm:$0xff] %vm3985, 0.0
    %4048 = vst.msk [vmem:[#allocation3 + $0x1f0] sm:$0xff] %vm3985, 0.0
    %4049 = vst.msk [vmem:[#allocation3 + $0x1f8] sm:$0xff] %vm3985, 0.0
    %v4050 = vld [vmem:[#allocation4] sm:$0xff]
    %v4051 = vld [vmem:[#allocation4 + $0x8] sm:$0x7f]
    %v4052 = vld [vmem:[#allocation4 + $0x10] sm:$0xff]
    %v4053 = vld [vmem:[#allocation4 + $0x18] sm:$0x7f]
    %v4054 = vld [vmem:[#allocation4 + $0x20] sm:$0xff]
    %v4055 = vld [vmem:[#allocation4 + $0x28] sm:$0x7f]
    %v4056 = vld [vmem:[#allocation4 + $0x30] sm:$0xff]
    %v4057 = vld [vmem:[#allocation4 + $0x38] sm:$0x7f]
    %v4058 = vld [vmem:[#allocation4 + $0x40] sm:$0xff]
    %v4059 = vld [vmem:[#allocation4 + $0x48] sm:$0x7f]
    %v4060 = vld [vmem:[#allocation4 + $0x50] sm:$0xff]
    %v4061 = vld [vmem:[#allocation4 + $0x58] sm:$0x7f]
    %v4062 = vld [vmem:[#allocation4 + $0x60] sm:$0xff]
    %v4063 = vld [vmem:[#allocation4 + $0x68] sm:$0x7f]
    %v4064 = vld [vmem:[#allocation4 + $0x70] sm:$0xff]
    %v4065 = vld [vmem:[#allocation4 + $0x78] sm:$0x7f]
    %v4066 = vld [vmem:[#allocation4 + $0x80] sm:$0xff]
    %v4067 = vld [vmem:[#allocation4 + $0x88] sm:$0x7f]
    %v4068 = vld [vmem:[#allocation4 + $0x90] sm:$0xff]
    %v4069 = vld [vmem:[#allocation4 + $0x98] sm:$0x7f]
    %v4070 = vld [vmem:[#allocation4 + $0xa0] sm:$0xff]
    %v4071 = vld [vmem:[#allocation4 + $0xa8] sm:$0x7f]
    %v4072 = vld [vmem:[#allocation4 + $0xb0] sm:$0xff]
    %v4073 = vld [vmem:[#allocation4 + $0xb8] sm:$0x7f]
    %v4074 = vld [vmem:[#allocation4 + $0xc0] sm:$0xff]
    %v4075 = vld [vmem:[#allocation4 + $0xc8] sm:$0x7f]
    %v4076 = vld [vmem:[#allocation4 + $0xd0] sm:$0xff]
    %v4077 = vld [vmem:[#allocation4 + $0xd8] sm:$0x7f]
    %v4078 = vld [vmem:[#allocation4 + $0xe0] sm:$0xff]
    %v4079 = vld [vmem:[#allocation4 + $0xe8] sm:$0x7f]
    %v4080 = vld [vmem:[#allocation4 + $0x100] sm:$0xff]
    %v4081 = vld [vmem:[#allocation4 + $0x108] sm:$0x7f]
    %v4082 = vld [vmem:[#allocation4 + $0x110] sm:$0xff]
    %v4083 = vld [vmem:[#allocation4 + $0x118] sm:$0x7f]
    %v4084 = vld [vmem:[#allocation4 + $0x120] sm:$0xff]
    %v4085 = vld [vmem:[#allocation4 + $0x128] sm:$0x7f]
    %v4086 = vld [vmem:[#allocation4 + $0x130] sm:$0xff]
    %v4087 = vld [vmem:[#allocation4 + $0x138] sm:$0x7f]
    %v4088 = vld [vmem:[#allocation4 + $0x140] sm:$0xff]
    %v4089 = vld [vmem:[#allocation4 + $0x148] sm:$0x7f]
    %v4090 = vld [vmem:[#allocation4 + $0x150] sm:$0xff]
    %v4091 = vld [vmem:[#allocation4 + $0x158] sm:$0x7f]
    %v4092 = vld [vmem:[#allocation4 + $0x160] sm:$0xff]
    %v4093 = vld [vmem:[#allocation4 + $0x168] sm:$0x7f]
    %v4094 = vld [vmem:[#allocation4 + $0x170] sm:$0xff]
    %v4095 = vld [vmem:[#allocation4 + $0x178] sm:$0x7f]
    %v4096 = vld [vmem:[#allocation4 + $0x180] sm:$0xff]
    %v4097 = vld [vmem:[#allocation4 + $0x188] sm:$0x7f]
    %v4098 = vld [vmem:[#allocation4 + $0x190] sm:$0xff]
    %v4099 = vld [vmem:[#allocation4 + $0x198] sm:$0x7f]
    %v4100 = vld [vmem:[#allocation4 + $0x1a0] sm:$0xff]
    %v4101 = vld [vmem:[#allocation4 + $0x1a8] sm:$0x7f]
    %v4102 = vld [vmem:[#allocation4 + $0x1b0] sm:$0xff]
    %v4103 = vld [vmem:[#allocation4 + $0x1b8] sm:$0x7f]
    %v4104 = vld [vmem:[#allocation4 + $0x1c0] sm:$0xff]
    %v4105 = vld [vmem:[#allocation4 + $0x1c8] sm:$0x7f]
    %v4106 = vld [vmem:[#allocation4 + $0x1d0] sm:$0xff]
    %v4107 = vld [vmem:[#allocation4 + $0x1d8] sm:$0x7f]
    %v4108 = vld [vmem:[#allocation4 + $0x1e0] sm:$0xff]
    %v4109 = vld [vmem:[#allocation4 + $0x1e8] sm:$0x7f]
    %s4110 = scalar_lea.vmem [#allocation3], 16
    %4111 = vst.msk [vmem:[%s4110 + $0x1] sm:$0xff] %vm3920, %v4050
    %vm4112 = vcmask 63488
    %4113 = vst.msk [vmem:[%s4110 + $0x9] sm:$0x7f] %vm4112, %v4051
    %4114 = vst.msk [vmem:[%s4110 + $0x11] sm:$0xff] %vm3920, %v4052
    %4115 = vst.msk [vmem:[%s4110 + $0x19] sm:$0x7f] %vm4112, %v4053
    %4116 = vst.msk [vmem:[%s4110 + $0x21] sm:$0xff] %vm3920, %v4054
    %4117 = vst.msk [vmem:[%s4110 + $0x29] sm:$0x7f] %vm4112, %v4055
    %4118 = vst.msk [vmem:[%s4110 + $0x31] sm:$0xff] %vm3920, %v4056
    %4119 = vst.msk [vmem:[%s4110 + $0x39] sm:$0x7f] %vm4112, %v4057
    %4120 = vst.msk [vmem:[%s4110 + $0x41] sm:$0xff] %vm3920, %v4058
    %4121 = vst.msk [vmem:[%s4110 + $0x49] sm:$0x7f] %vm4112, %v4059
    %4122 = vst.msk [vmem:[%s4110 + $0x51] sm:$0xff] %vm3920, %v4060
    %4123 = vst.msk [vmem:[%s4110 + $0x59] sm:$0x7f] %vm4112, %v4061
    %4124 = vst.msk [vmem:[%s4110 + $0x61] sm:$0xff] %vm3920, %v4062
    %4125 = vst.msk [vmem:[%s4110 + $0x69] sm:$0x7f] %vm4112, %v4063
    %4126 = vst.msk [vmem:[%s4110 + $0x71] sm:$0xff] %vm3920, %v4064
    %4127 = vst.msk [vmem:[%s4110 + $0x79] sm:$0x7f] %vm4112, %v4065
    %4128 = vst.msk [vmem:[%s4110 + $0x81] sm:$0xff] %vm3920, %v4066
    %4129 = vst.msk [vmem:[%s4110 + $0x89] sm:$0x7f] %vm4112, %v4067
    %4130 = vst.msk [vmem:[%s4110 + $0x91] sm:$0xff] %vm3920, %v4068
    %4131 = vst.msk [vmem:[%s4110 + $0x99] sm:$0x7f] %vm4112, %v4069
    %4132 = vst.msk [vmem:[%s4110 + $0xa1] sm:$0xff] %vm3920, %v4070
    %4133 = vst.msk [vmem:[%s4110 + $0xa9] sm:$0x7f] %vm4112, %v4071
    %4134 = vst.msk [vmem:[%s4110 + $0xb1] sm:$0xff] %vm3920, %v4072
    %4135 = vst.msk [vmem:[%s4110 + $0xb9] sm:$0x7f] %vm4112, %v4073
    %4136 = vst.msk [vmem:[%s4110 + $0xc1] sm:$0xff] %vm3920, %v4074
    %4137 = vst.msk [vmem:[%s4110 + $0xc9] sm:$0x7f] %vm4112, %v4075
    %4138 = vst.msk [vmem:[%s4110 + $0xd1] sm:$0xff] %vm3920, %v4076
    %4139 = vst.msk [vmem:[%s4110 + $0xd9] sm:$0x7f] %vm4112, %v4077
    %4140 = vst.msk [vmem:[%s4110 + $0xe1] sm:$0xff] %vm3920, %v4078
    %4141 = vst.msk [vmem:[%s4110 + $0xe9] sm:$0x7f] %vm4112, %v4079
    %4142 = vst.msk [vmem:[%s4110 + $0x101] sm:$0xff] %vm3920, %v4080
    %4143 = vst.msk [vmem:[%s4110 + $0x109] sm:$0x7f] %vm4112, %v4081
    %4144 = vst.msk [vmem:[%s4110 + $0x111] sm:$0xff] %vm3920, %v4082
    %4145 = vst.msk [vmem:[%s4110 + $0x119] sm:$0x7f] %vm4112, %v4083
    %4146 = vst.msk [vmem:[%s4110 + $0x121] sm:$0xff] %vm3920, %v4084
    %4147 = vst.msk [vmem:[%s4110 + $0x129] sm:$0x7f] %vm4112, %v4085
    %4148 = vst.msk [vmem:[%s4110 + $0x131] sm:$0xff] %vm3920, %v4086
    %4149 = vst.msk [vmem:[%s4110 + $0x139] sm:$0x7f] %vm4112, %v4087
    %4150 = vst.msk [vmem:[%s4110 + $0x141] sm:$0xff] %vm3920, %v4088
    %4151 = vst.msk [vmem:[%s4110 + $0x149] sm:$0x7f] %vm4112, %v4089
    %4152 = vst.msk [vmem:[%s4110 + $0x151] sm:$0xff] %vm3920, %v4090
    %4153 = vst.msk [vmem:[%s4110 + $0x159] sm:$0x7f] %vm4112, %v4091
    %4154 = vst.msk [vmem:[%s4110 + $0x161] sm:$0xff] %vm3920, %v4092
    %4155 = vst.msk [vmem:[%s4110 + $0x169] sm:$0x7f] %vm4112, %v4093
    %4156 = vst.msk [vmem:[%s4110 + $0x171] sm:$0xff] %vm3920, %v4094
    %4157 = vst.msk [vmem:[%s4110 + $0x179] sm:$0x7f] %vm4112, %v4095
    %4158 = vst.msk [vmem:[%s4110 + $0x181] sm:$0xff] %vm3920, %v4096
    %4159 = vst.msk [vmem:[%s4110 + $0x189] sm:$0x7f] %vm4112, %v4097
    %4160 = vst.msk [vmem:[%s4110 + $0x191] sm:$0xff] %vm3920, %v4098
    %4161 = vst.msk [vmem:[%s4110 + $0x199] sm:$0x7f] %vm4112, %v4099
    %4162 = vst.msk [vmem:[%s4110 + $0x1a1] sm:$0xff] %vm3920, %v4100
    %4163 = vst.msk [vmem:[%s4110 + $0x1a9] sm:$0x7f] %vm4112, %v4101
    %4164 = vst.msk [vmem:[%s4110 + $0x1b1] sm:$0xff] %vm3920, %v4102
    %4165 = vst.msk [vmem:[%s4110 + $0x1b9] sm:$0x7f] %vm4112, %v4103
    %4166 = vst.msk [vmem:[%s4110 + $0x1c1] sm:$0xff] %vm3920, %v4104
    %4167 = vst.msk [vmem:[%s4110 + $0x1c9] sm:$0x7f] %vm4112, %v4105
    %4168 = vst.msk [vmem:[%s4110 + $0x1d1] sm:$0xff] %vm3920, %v4106
    %4169 = vst.msk [vmem:[%s4110 + $0x1d9] sm:$0x7f] %vm4112, %v4107
    %4170 = vst.msk [vmem:[%s4110 + $0x1e1] sm:$0xff] %vm3920, %v4108
    %4171 = vst.msk [vmem:[%s4110 + $0x1e9] sm:$0x7f] %vm4112, %v4109
    %v4172 = vld [vmem:[#allocation4] sm:$0xff]
    %v4173 = vld [vmem:[#allocation4 + $0x8] sm:$0xff]
    %v4174 = vld [vmem:[#allocation4 + $0x10] sm:$0xff]
    %v4175 = vld [vmem:[#allocation4 + $0x18] sm:$0xff]
    %v4176 = vld [vmem:[#allocation4 + $0x20] sm:$0xff]
    %v4177 = vld [vmem:[#allocation4 + $0x28] sm:$0xff]
    %v4178 = vld [vmem:[#allocation4 + $0x30] sm:$0xff]
    %v4179 = vld [vmem:[#allocation4 + $0x38] sm:$0xff]
    %v4180 = vld [vmem:[#allocation4 + $0x40] sm:$0xff]
    %v4181 = vld [vmem:[#allocation4 + $0x48] sm:$0xff]
    %v4182 = vld [vmem:[#allocation4 + $0x50] sm:$0xff]
    %v4183 = vld [vmem:[#allocation4 + $0x58] sm:$0xff]
    %v4184 = vld [vmem:[#allocation4 + $0x60] sm:$0xff]
    %v4185 = vld [vmem:[#allocation4 + $0x68] sm:$0xff]
    %v4186 = vld [vmem:[#allocation4 + $0x70] sm:$0xff]
    %v4187 = vld [vmem:[#allocation4 + $0x78] sm:$0xff]
    %v4188 = vld [vmem:[#allocation4 + $0x80] sm:$0xff]
    %v4189 = vld [vmem:[#allocation4 + $0x88] sm:$0xff]
    %v4190 = vld [vmem:[#allocation4 + $0x90] sm:$0xff]
    %v4191 = vld [vmem:[#allocation4 + $0x98] sm:$0xff]
    %v4192 = vld [vmem:[#allocation4 + $0xa0] sm:$0xff]
    %v4193 = vld [vmem:[#allocation4 + $0xa8] sm:$0xff]
    %v4194 = vld [vmem:[#allocation4 + $0xb0] sm:$0xff]
    %v4195 = vld [vmem:[#allocation4 + $0xb8] sm:$0xff]
    %v4196 = vld [vmem:[#allocation4 + $0xc0] sm:$0xff]
    %v4197 = vld [vmem:[#allocation4 + $0xc8] sm:$0xff]
    %v4198 = vld [vmem:[#allocation4 + $0xd0] sm:$0xff]
    %v4199 = vld [vmem:[#allocation4 + $0xd8] sm:$0xff]
    %v4200 = vld [vmem:[#allocation4 + $0xe0] sm:$0xff]
    %v4201 = vld [vmem:[#allocation4 + $0xe8] sm:$0xff]
    %v4202 = vld [vmem:[#allocation4 + $0x100] sm:$0xff]
    %v4203 = vld [vmem:[#allocation4 + $0x108] sm:$0xff]
    %v4204 = vld [vmem:[#allocation4 + $0x110] sm:$0xff]
    %v4205 = vld [vmem:[#allocation4 + $0x118] sm:$0xff]
    %v4206 = vld [vmem:[#allocation4 + $0x120] sm:$0xff]
    %v4207 = vld [vmem:[#allocation4 + $0x128] sm:$0xff]
    %v4208 = vld [vmem:[#allocation4 + $0x130] sm:$0xff]
    %v4209 = vld [vmem:[#allocation4 + $0x138] sm:$0xff]
    %v4210 = vld [vmem:[#allocation4 + $0x140] sm:$0xff]
    %v4211 = vld [vmem:[#allocation4 + $0x148] sm:$0xff]
    %v4212 = vld [vmem:[#allocation4 + $0x150] sm:$0xff]
    %v4213 = vld [vmem:[#allocation4 + $0x158] sm:$0xff]
    %v4214 = vld [vmem:[#allocation4 + $0x160] sm:$0xff]
    %v4215 = vld [vmem:[#allocation4 + $0x168] sm:$0xff]
    %v4216 = vld [vmem:[#allocation4 + $0x170] sm:$0xff]
    %v4217 = vld [vmem:[#allocation4 + $0x178] sm:$0xff]
    %v4218 = vld [vmem:[#allocation4 + $0x180] sm:$0xff]
    %v4219 = vld [vmem:[#allocation4 + $0x188] sm:$0xff]
    %v4220 = vld [vmem:[#allocation4 + $0x190] sm:$0xff]
    %v4221 = vld [vmem:[#allocation4 + $0x198] sm:$0xff]
    %v4222 = vld [vmem:[#allocation4 + $0x1a0] sm:$0xff]
    %v4223 = vld [vmem:[#allocation4 + $0x1a8] sm:$0xff]
    %v4224 = vld [vmem:[#allocation4 + $0x1b0] sm:$0xff]
    %v4225 = vld [vmem:[#allocation4 + $0x1b8] sm:$0xff]
    %v4226 = vld [vmem:[#allocation4 + $0x1c0] sm:$0xff]
    %v4227 = vld [vmem:[#allocation4 + $0x1c8] sm:$0xff]
    %v4228 = vld [vmem:[#allocation4 + $0x1d0] sm:$0xff]
    %v4229 = vld [vmem:[#allocation4 + $0x1d8] sm:$0xff]
    %v4230 = vld [vmem:[#allocation4 + $0x1e0] sm:$0xff]
    %v4231 = vld [vmem:[#allocation4 + $0x1e8] sm:$0xff]
    %4292 = vrot.lane.b32.xlu0 %v4172, 8
    %v4293 = vpop.permute.xlu0 %4292
    %4294 = vrot.lane.b32.xlu0 %v4173, 8
    %v4295 = vpop.permute.xlu0 %4294
    %4296 = vrot.lane.b32.xlu0 %v4174, 8
    %v4297 = vpop.permute.xlu0 %4296
    %4298 = vrot.lane.b32.xlu0 %v4175, 8
    %v4299 = vpop.permute.xlu0 %4298
    %4300 = vrot.lane.b32.xlu0 %v4176, 8
    %v4301 = vpop.permute.xlu0 %4300
    %4302 = vrot.lane.b32.xlu0 %v4177, 8
    %v4303 = vpop.permute.xlu0 %4302
    %4304 = vrot.lane.b32.xlu0 %v4178, 8
    %v4305 = vpop.permute.xlu0 %4304
    %4306 = vrot.lane.b32.xlu0 %v4179, 8
    %v4307 = vpop.permute.xlu0 %4306
    %4308 = vrot.lane.b32.xlu0 %v4180, 8
    %v4309 = vpop.permute.xlu0 %4308
    %4310 = vrot.lane.b32.xlu0 %v4181, 8
    %v4311 = vpop.permute.xlu0 %4310
    %4312 = vrot.lane.b32.xlu0 %v4182, 8
    %v4313 = vpop.permute.xlu0 %4312
    %4314 = vrot.lane.b32.xlu0 %v4183, 8
    %v4315 = vpop.permute.xlu0 %4314
    %4316 = vrot.lane.b32.xlu0 %v4184, 8
    %v4317 = vpop.permute.xlu0 %4316
    %4318 = vrot.lane.b32.xlu0 %v4185, 8
    %v4319 = vpop.permute.xlu0 %4318
    %4320 = vrot.lane.b32.xlu0 %v4186, 8
    %v4321 = vpop.permute.xlu0 %4320
    %4322 = vrot.lane.b32.xlu0 %v4187, 8
    %v4323 = vpop.permute.xlu0 %4322
    %4324 = vrot.lane.b32.xlu0 %v4188, 8
    %v4325 = vpop.permute.xlu0 %4324
    %4326 = vrot.lane.b32.xlu0 %v4189, 8
    %v4327 = vpop.permute.xlu0 %4326
    %4328 = vrot.lane.b32.xlu0 %v4190, 8
    %v4329 = vpop.permute.xlu0 %4328
    %4330 = vrot.lane.b32.xlu0 %v4191, 8
    %v4331 = vpop.permute.xlu0 %4330
    %4332 = vrot.lane.b32.xlu0 %v4192, 8
    %v4333 = vpop.permute.xlu0 %4332
    %4334 = vrot.lane.b32.xlu0 %v4193, 8
    %v4335 = vpop.permute.xlu0 %4334
    %4336 = vrot.lane.b32.xlu0 %v4194, 8
    %v4337 = vpop.permute.xlu0 %4336
    %4338 = vrot.lane.b32.xlu0 %v4195, 8
    %v4339 = vpop.permute.xlu0 %4338
    %4340 = vrot.lane.b32.xlu0 %v4196, 8
    %v4341 = vpop.permute.xlu0 %4340
    %4342 = vrot.lane.b32.xlu0 %v4197, 8
    %v4343 = vpop.permute.xlu0 %4342
    %4344 = vrot.lane.b32.xlu0 %v4198, 8
    %v4345 = vpop.permute.xlu0 %4344
    %4346 = vrot.lane.b32.xlu0 %v4199, 8
    %v4347 = vpop.permute.xlu0 %4346
    %4348 = vrot.lane.b32.xlu0 %v4200, 8
    %v4349 = vpop.permute.xlu0 %4348
    %4350 = vrot.lane.b32.xlu0 %v4201, 8
    %v4351 = vpop.permute.xlu0 %4350
    %4352 = vrot.lane.b32.xlu0 %v4202, 8
    %v4353 = vpop.permute.xlu0 %4352
    %4354 = vrot.lane.b32.xlu0 %v4203, 8
    %v4355 = vpop.permute.xlu0 %4354
    %4356 = vrot.lane.b32.xlu0 %v4204, 8
    %v4357 = vpop.permute.xlu0 %4356
    %4358 = vrot.lane.b32.xlu0 %v4205, 8
    %v4359 = vpop.permute.xlu0 %4358
    %4360 = vrot.lane.b32.xlu0 %v4206, 8
    %v4361 = vpop.permute.xlu0 %4360
    %4362 = vrot.lane.b32.xlu0 %v4207, 8
    %v4363 = vpop.permute.xlu0 %4362
    %4364 = vrot.lane.b32.xlu0 %v4208, 8
    %v4365 = vpop.permute.xlu0 %4364
    %4366 = vrot.lane.b32.xlu0 %v4209, 8
    %v4367 = vpop.permute.xlu0 %4366
    %4368 = vrot.lane.b32.xlu0 %v4210, 8
    %v4369 = vpop.permute.xlu0 %4368
    %4370 = vrot.lane.b32.xlu0 %v4211, 8
    %v4371 = vpop.permute.xlu0 %4370
    %4372 = vrot.lane.b32.xlu0 %v4212, 8
    %v4373 = vpop.permute.xlu0 %4372
    %4374 = vrot.lane.b32.xlu0 %v4213, 8
    %v4375 = vpop.permute.xlu0 %4374
    %4376 = vrot.lane.b32.xlu0 %v4214, 8
    %v4377 = vpop.permute.xlu0 %4376
    %4378 = vrot.lane.b32.xlu0 %v4215, 8
    %v4379 = vpop.permute.xlu0 %4378
    %4380 = vrot.lane.b32.xlu0 %v4216, 8
    %v4381 = vpop.permute.xlu0 %4380
    %4382 = vrot.lane.b32.xlu0 %v4217, 8
    %v4383 = vpop.permute.xlu0 %4382
    %4384 = vrot.lane.b32.xlu0 %v4218, 8
    %v4385 = vpop.permute.xlu0 %4384
    %4386 = vrot.lane.b32.xlu0 %v4219, 8
    %v4387 = vpop.permute.xlu0 %4386
    %4388 = vrot.lane.b32.xlu0 %v4220, 8
    %v4389 = vpop.permute.xlu0 %4388
    %4390 = vrot.lane.b32.xlu0 %v4221, 8
    %v4391 = vpop.permute.xlu0 %4390
    %4392 = vrot.lane.b32.xlu0 %v4222, 8
    %v4393 = vpop.permute.xlu0 %4392
    %4394 = vrot.lane.b32.xlu0 %v4223, 8
    %v4395 = vpop.permute.xlu0 %4394
    %4396 = vrot.lane.b32.xlu0 %v4224, 8
    %v4397 = vpop.permute.xlu0 %4396
    %4398 = vrot.lane.b32.xlu0 %v4225, 8
    %v4399 = vpop.permute.xlu0 %4398
    %4400 = vrot.lane.b32.xlu0 %v4226, 8
    %v4401 = vpop.permute.xlu0 %4400
    %4402 = vrot.lane.b32.xlu0 %v4227, 8
    %v4403 = vpop.permute.xlu0 %4402
    %4404 = vrot.lane.b32.xlu0 %v4228, 8
    %v4405 = vpop.permute.xlu0 %4404
    %4406 = vrot.lane.b32.xlu0 %v4229, 8
    %v4407 = vpop.permute.xlu0 %4406
    %4408 = vrot.lane.b32.xlu0 %v4230, 8
    %v4409 = vpop.permute.xlu0 %4408
    %4410 = vrot.lane.b32.xlu0 %v4231, 8
    %v4411 = vpop.permute.xlu0 %4410
    %vm4472 = vcmask 130112
    %4473 = vst.msk [vmem:[%s4110] sm:$0xff] %vm4472, %v4293
    %4474 = vst.msk [vmem:[%s4110 + $0x8] sm:$0xff] %vm4472, %v4295
    %4475 = vst.msk [vmem:[%s4110 + $0x10] sm:$0xff] %vm4472, %v4297
    %4476 = vst.msk [vmem:[%s4110 + $0x18] sm:$0xff] %vm4472, %v4299
    %4477 = vst.msk [vmem:[%s4110 + $0x20] sm:$0xff] %vm4472, %v4301
    %4478 = vst.msk [vmem:[%s4110 + $0x28] sm:$0xff] %vm4472, %v4303
    %4479 = vst.msk [vmem:[%s4110 + $0x30] sm:$0xff] %vm4472, %v4305
    %4480 = vst.msk [vmem:[%s4110 + $0x38] sm:$0xff] %vm4472, %v4307
    %4481 = vst.msk [vmem:[%s4110 + $0x40] sm:$0xff] %vm4472, %v4309
    %4482 = vst.msk [vmem:[%s4110 + $0x48] sm:$0xff] %vm4472, %v4311
    %4483 = vst.msk [vmem:[%s4110 + $0x50] sm:$0xff] %vm4472, %v4313
    %4484 = vst.msk [vmem:[%s4110 + $0x58] sm:$0xff] %vm4472, %v4315
    %4485 = vst.msk [vmem:[%s4110 + $0x60] sm:$0xff] %vm4472, %v4317
    %4486 = vst.msk [vmem:[%s4110 + $0x68] sm:$0xff] %vm4472, %v4319
    %4487 = vst.msk [vmem:[%s4110 + $0x70] sm:$0xff] %vm4472, %v4321
    %4488 = vst.msk [vmem:[%s4110 + $0x78] sm:$0xff] %vm4472, %v4323
    %4489 = vst.msk [vmem:[%s4110 + $0x80] sm:$0xff] %vm4472, %v4325
    %4490 = vst.msk [vmem:[%s4110 + $0x88] sm:$0xff] %vm4472, %v4327
    %4491 = vst.msk [vmem:[%s4110 + $0x90] sm:$0xff] %vm4472, %v4329
    %4492 = vst.msk [vmem:[%s4110 + $0x98] sm:$0xff] %vm4472, %v4331
    %4493 = vst.msk [vmem:[%s4110 + $0xa0] sm:$0xff] %vm4472, %v4333
    %4494 = vst.msk [vmem:[%s4110 + $0xa8] sm:$0xff] %vm4472, %v4335
    %4495 = vst.msk [vmem:[%s4110 + $0xb0] sm:$0xff] %vm4472, %v4337
    %4496 = vst.msk [vmem:[%s4110 + $0xb8] sm:$0xff] %vm4472, %v4339
    %4497 = vst.msk [vmem:[%s4110 + $0xc0] sm:$0xff] %vm4472, %v4341
    %4498 = vst.msk [vmem:[%s4110 + $0xc8] sm:$0xff] %vm4472, %v4343
    %4499 = vst.msk [vmem:[%s4110 + $0xd0] sm:$0xff] %vm4472, %v4345
    %4500 = vst.msk [vmem:[%s4110 + $0xd8] sm:$0xff] %vm4472, %v4347
    %4501 = vst.msk [vmem:[%s4110 + $0xe0] sm:$0xff] %vm4472, %v4349
    %4502 = vst.msk [vmem:[%s4110 + $0xe8] sm:$0xff] %vm4472, %v4351
    %4503 = vst.msk [vmem:[%s4110 + $0x100] sm:$0xff] %vm4472, %v4353
    %4504 = vst.msk [vmem:[%s4110 + $0x108] sm:$0xff] %vm4472, %v4355
    %4505 = vst.msk [vmem:[%s4110 + $0x110] sm:$0xff] %vm4472, %v4357
    %4506 = vst.msk [vmem:[%s4110 + $0x118] sm:$0xff] %vm4472, %v4359
    %4507 = vst.msk [vmem:[%s4110 + $0x120] sm:$0xff] %vm4472, %v4361
    %4508 = vst.msk [vmem:[%s4110 + $0x128] sm:$0xff] %vm4472, %v4363
    %4509 = vst.msk [vmem:[%s4110 + $0x130] sm:$0xff] %vm4472, %v4365
    %4510 = vst.msk [vmem:[%s4110 + $0x138] sm:$0xff] %vm4472, %v4367
    %4511 = vst.msk [vmem:[%s4110 + $0x140] sm:$0xff] %vm4472, %v4369
    %4512 = vst.msk [vmem:[%s4110 + $0x148] sm:$0xff] %vm4472, %v4371
    %4513 = vst.msk [vmem:[%s4110 + $0x150] sm:$0xff] %vm4472, %v4373
    %4514 = vst.msk [vmem:[%s4110 + $0x158] sm:$0xff] %vm4472, %v4375
    %4515 = vst.msk [vmem:[%s4110 + $0x160] sm:$0xff] %vm4472, %v4377
    %4516 = vst.msk [vmem:[%s4110 + $0x168] sm:$0xff] %vm4472, %v4379
    %4517 = vst.msk [vmem:[%s4110 + $0x170] sm:$0xff] %vm4472, %v4381
    %4518 = vst.msk [vmem:[%s4110 + $0x178] sm:$0xff] %vm4472, %v4383
    %4519 = vst.msk [vmem:[%s4110 + $0x180] sm:$0xff] %vm4472, %v4385
    %4520 = vst.msk [vmem:[%s4110 + $0x188] sm:$0xff] %vm4472, %v4387
    %4521 = vst.msk [vmem:[%s4110 + $0x190] sm:$0xff] %vm4472, %v4389
    %4522 = vst.msk [vmem:[%s4110 + $0x198] sm:$0xff] %vm4472, %v4391
    %4523 = vst.msk [vmem:[%s4110 + $0x1a0] sm:$0xff] %vm4472, %v4393
    %4524 = vst.msk [vmem:[%s4110 + $0x1a8] sm:$0xff] %vm4472, %v4395
    %4525 = vst.msk [vmem:[%s4110 + $0x1b0] sm:$0xff] %vm4472, %v4397
    %4526 = vst.msk [vmem:[%s4110 + $0x1b8] sm:$0xff] %vm4472, %v4399
    %4527 = vst.msk [vmem:[%s4110 + $0x1c0] sm:$0xff] %vm4472, %v4401
    %4528 = vst.msk [vmem:[%s4110 + $0x1c8] sm:$0xff] %vm4472, %v4403
    %4529 = vst.msk [vmem:[%s4110 + $0x1d0] sm:$0xff] %vm4472, %v4405
    %4530 = vst.msk [vmem:[%s4110 + $0x1d8] sm:$0xff] %vm4472, %v4407
    %4531 = vst.msk [vmem:[%s4110 + $0x1e0] sm:$0xff] %vm4472, %v4409
    %4532 = vst.msk [vmem:[%s4110 + $0x1e8] sm:$0xff] %vm4472, %v4411
    %v4533 = vld [vmem:[#allocation4 + $0x1] sm:$0xff]
    %v4534 = vld [vmem:[#allocation4 + $0x9] sm:$0x7f]
    %v4535 = vld [vmem:[#allocation4 + $0x11] sm:$0xff]
    %v4536 = vld [vmem:[#allocation4 + $0x19] sm:$0x7f]
    %v4537 = vld [vmem:[#allocation4 + $0x21] sm:$0xff]
    %v4538 = vld [vmem:[#allocation4 + $0x29] sm:$0x7f]
    %v4539 = vld [vmem:[#allocation4 + $0x31] sm:$0xff]
    %v4540 = vld [vmem:[#allocation4 + $0x39] sm:$0x7f]
    %v4541 = vld [vmem:[#allocation4 + $0x41] sm:$0xff]
    %v4542 = vld [vmem:[#allocation4 + $0x49] sm:$0x7f]
    %v4543 = vld [vmem:[#allocation4 + $0x51] sm:$0xff]
    %v4544 = vld [vmem:[#allocation4 + $0x59] sm:$0x7f]
    %v4545 = vld [vmem:[#allocation4 + $0x61] sm:$0xff]
    %v4546 = vld [vmem:[#allocation4 + $0x69] sm:$0x7f]
    %v4547 = vld [vmem:[#allocation4 + $0x71] sm:$0xff]
    %v4548 = vld [vmem:[#allocation4 + $0x79] sm:$0x7f]
    %v4549 = vld [vmem:[#allocation4 + $0x81] sm:$0xff]
    %v4550 = vld [vmem:[#allocation4 + $0x89] sm:$0x7f]
    %v4551 = vld [vmem:[#allocation4 + $0x91] sm:$0xff]
    %v4552 = vld [vmem:[#allocation4 + $0x99] sm:$0x7f]
    %v4553 = vld [vmem:[#allocation4 + $0xa1] sm:$0xff]
    %v4554 = vld [vmem:[#allocation4 + $0xa9] sm:$0x7f]
    %v4555 = vld [vmem:[#allocation4 + $0xb1] sm:$0xff]
    %v4556 = vld [vmem:[#allocation4 + $0xb9] sm:$0x7f]
    %v4557 = vld [vmem:[#allocation4 + $0xc1] sm:$0xff]
    %v4558 = vld [vmem:[#allocation4 + $0xc9] sm:$0x7f]
    %v4559 = vld [vmem:[#allocation4 + $0xd1] sm:$0xff]
    %v4560 = vld [vmem:[#allocation4 + $0xd9] sm:$0x7f]
    %v4561 = vld [vmem:[#allocation4 + $0xe1] sm:$0xff]
    %v4562 = vld [vmem:[#allocation4 + $0xe9] sm:$0x7f]
    %v4563 = vld [vmem:[#allocation4 + $0x101] sm:$0xff]
    %v4564 = vld [vmem:[#allocation4 + $0x109] sm:$0x7f]
    %v4565 = vld [vmem:[#allocation4 + $0x111] sm:$0xff]
    %v4566 = vld [vmem:[#allocation4 + $0x119] sm:$0x7f]
    %v4567 = vld [vmem:[#allocation4 + $0x121] sm:$0xff]
    %v4568 = vld [vmem:[#allocation4 + $0x129] sm:$0x7f]
    %v4569 = vld [vmem:[#allocation4 + $0x131] sm:$0xff]
    %v4570 = vld [vmem:[#allocation4 + $0x139] sm:$0x7f]
    %v4571 = vld [vmem:[#allocation4 + $0x141] sm:$0xff]
    %v4572 = vld [vmem:[#allocation4 + $0x149] sm:$0x7f]
    %v4573 = vld [vmem:[#allocation4 + $0x151] sm:$0xff]
    %v4574 = vld [vmem:[#allocation4 + $0x159] sm:$0x7f]
    %v4575 = vld [vmem:[#allocation4 + $0x161] sm:$0xff]
    %v4576 = vld [vmem:[#allocation4 + $0x169] sm:$0x7f]
    %v4577 = vld [vmem:[#allocation4 + $0x171] sm:$0xff]
    %v4578 = vld [vmem:[#allocation4 + $0x179] sm:$0x7f]
    %v4579 = vld [vmem:[#allocation4 + $0x181] sm:$0xff]
    %v4580 = vld [vmem:[#allocation4 + $0x189] sm:$0x7f]
    %v4581 = vld [vmem:[#allocation4 + $0x191] sm:$0xff]
    %v4582 = vld [vmem:[#allocation4 + $0x199] sm:$0x7f]
    %v4583 = vld [vmem:[#allocation4 + $0x1a1] sm:$0xff]
    %v4584 = vld [vmem:[#allocation4 + $0x1a9] sm:$0x7f]
    %v4585 = vld [vmem:[#allocation4 + $0x1b1] sm:$0xff]
    %v4586 = vld [vmem:[#allocation4 + $0x1b9] sm:$0x7f]
    %v4587 = vld [vmem:[#allocation4 + $0x1c1] sm:$0xff]
    %v4588 = vld [vmem:[#allocation4 + $0x1c9] sm:$0x7f]
    %v4589 = vld [vmem:[#allocation4 + $0x1d1] sm:$0xff]
    %v4590 = vld [vmem:[#allocation4 + $0x1d9] sm:$0x7f]
    %v4591 = vld [vmem:[#allocation4 + $0x1e1] sm:$0xff]
    %v4592 = vld [vmem:[#allocation4 + $0x1e9] sm:$0x7f]
    %4653 = vrot.lane.b32.xlu0 %v4533, 16
    %v4654 = vpop.permute.xlu0 %4653
    %4655 = vrot.lane.b32.xlu0 %v4534, 16
    %v4656 = vpop.permute.xlu0 %4655
    %4657 = vrot.lane.b32.xlu0 %v4535, 16
    %v4658 = vpop.permute.xlu0 %4657
    %4659 = vrot.lane.b32.xlu0 %v4536, 16
    %v4660 = vpop.permute.xlu0 %4659
    %4661 = vrot.lane.b32.xlu0 %v4537, 16
    %v4662 = vpop.permute.xlu0 %4661
    %4663 = vrot.lane.b32.xlu0 %v4538, 16
    %v4664 = vpop.permute.xlu0 %4663
    %4665 = vrot.lane.b32.xlu0 %v4539, 16
    %v4666 = vpop.permute.xlu0 %4665
    %4667 = vrot.lane.b32.xlu0 %v4540, 16
    %v4668 = vpop.permute.xlu0 %4667
    %4669 = vrot.lane.b32.xlu0 %v4541, 16
    %v4670 = vpop.permute.xlu0 %4669
    %4671 = vrot.lane.b32.xlu0 %v4542, 16
    %v4672 = vpop.permute.xlu0 %4671
    %4673 = vrot.lane.b32.xlu0 %v4543, 16
    %v4674 = vpop.permute.xlu0 %4673
    %4675 = vrot.lane.b32.xlu0 %v4544, 16
    %v4676 = vpop.permute.xlu0 %4675
    %4677 = vrot.lane.b32.xlu0 %v4545, 16
    %v4678 = vpop.permute.xlu0 %4677
    %4679 = vrot.lane.b32.xlu0 %v4546, 16
    %v4680 = vpop.permute.xlu0 %4679
    %4681 = vrot.lane.b32.xlu0 %v4547, 16
    %v4682 = vpop.permute.xlu0 %4681
    %4683 = vrot.lane.b32.xlu0 %v4548, 16
    %v4684 = vpop.permute.xlu0 %4683
    %4685 = vrot.lane.b32.xlu0 %v4549, 16
    %v4686 = vpop.permute.xlu0 %4685
    %4687 = vrot.lane.b32.xlu0 %v4550, 16
    %v4688 = vpop.permute.xlu0 %4687
    %4689 = vrot.lane.b32.xlu0 %v4551, 16
    %v4690 = vpop.permute.xlu0 %4689
    %4691 = vrot.lane.b32.xlu0 %v4552, 16
    %v4692 = vpop.permute.xlu0 %4691
    %4693 = vrot.lane.b32.xlu0 %v4553, 16
    %v4694 = vpop.permute.xlu0 %4693
    %4695 = vrot.lane.b32.xlu0 %v4554, 16
    %v4696 = vpop.permute.xlu0 %4695
    %4697 = vrot.lane.b32.xlu0 %v4555, 16
    %v4698 = vpop.permute.xlu0 %4697
    %4699 = vrot.lane.b32.xlu0 %v4556, 16
    %v4700 = vpop.permute.xlu0 %4699
    %4701 = vrot.lane.b32.xlu0 %v4557, 16
    %v4702 = vpop.permute.xlu0 %4701
    %4703 = vrot.lane.b32.xlu0 %v4558, 16
    %v4704 = vpop.permute.xlu0 %4703
    %4705 = vrot.lane.b32.xlu0 %v4559, 16
    %v4706 = vpop.permute.xlu0 %4705
    %4707 = vrot.lane.b32.xlu0 %v4560, 16
    %v4708 = vpop.permute.xlu0 %4707
    %4709 = vrot.lane.b32.xlu0 %v4561, 16
    %v4710 = vpop.permute.xlu0 %4709
    %4711 = vrot.lane.b32.xlu0 %v4562, 16
    %v4712 = vpop.permute.xlu0 %4711
    %4713 = vrot.lane.b32.xlu0 %v4563, 16
    %v4714 = vpop.permute.xlu0 %4713
    %4715 = vrot.lane.b32.xlu0 %v4564, 16
    %v4716 = vpop.permute.xlu0 %4715
    %4717 = vrot.lane.b32.xlu0 %v4565, 16
    %v4718 = vpop.permute.xlu0 %4717
    %4719 = vrot.lane.b32.xlu0 %v4566, 16
    %v4720 = vpop.permute.xlu0 %4719
    %4721 = vrot.lane.b32.xlu0 %v4567, 16
    %v4722 = vpop.permute.xlu0 %4721
    %4723 = vrot.lane.b32.xlu0 %v4568, 16
    %v4724 = vpop.permute.xlu0 %4723
    %4725 = vrot.lane.b32.xlu0 %v4569, 16
    %v4726 = vpop.permute.xlu0 %4725
    %4727 = vrot.lane.b32.xlu0 %v4570, 16
    %v4728 = vpop.permute.xlu0 %4727
    %4729 = vrot.lane.b32.xlu0 %v4571, 16
    %v4730 = vpop.permute.xlu0 %4729
    %4731 = vrot.lane.b32.xlu0 %v4572, 16
    %v4732 = vpop.permute.xlu0 %4731
    %4733 = vrot.lane.b32.xlu0 %v4573, 16
    %v4734 = vpop.permute.xlu0 %4733
    %4735 = vrot.lane.b32.xlu0 %v4574, 16
    %v4736 = vpop.permute.xlu0 %4735
    %4737 = vrot.lane.b32.xlu0 %v4575, 16
    %v4738 = vpop.permute.xlu0 %4737
    %4739 = vrot.lane.b32.xlu0 %v4576, 16
    %v4740 = vpop.permute.xlu0 %4739
    %4741 = vrot.lane.b32.xlu0 %v4577, 16
    %v4742 = vpop.permute.xlu0 %4741
    %4743 = vrot.lane.b32.xlu0 %v4578, 16
    %v4744 = vpop.permute.xlu0 %4743
    %4745 = vrot.lane.b32.xlu0 %v4579, 16
    %v4746 = vpop.permute.xlu0 %4745
    %4747 = vrot.lane.b32.xlu0 %v4580, 16
    %v4748 = vpop.permute.xlu0 %4747
    %4749 = vrot.lane.b32.xlu0 %v4581, 16
    %v4750 = vpop.permute.xlu0 %4749
    %4751 = vrot.lane.b32.xlu0 %v4582, 16
    %v4752 = vpop.permute.xlu0 %4751
    %4753 = vrot.lane.b32.xlu0 %v4583, 16
    %v4754 = vpop.permute.xlu0 %4753
    %4755 = vrot.lane.b32.xlu0 %v4584, 16
    %v4756 = vpop.permute.xlu0 %4755
    %4757 = vrot.lane.b32.xlu0 %v4585, 16
    %v4758 = vpop.permute.xlu0 %4757
    %4759 = vrot.lane.b32.xlu0 %v4586, 16
    %v4760 = vpop.permute.xlu0 %4759
    %4761 = vrot.lane.b32.xlu0 %v4587, 16
    %v4762 = vpop.permute.xlu0 %4761
    %4763 = vrot.lane.b32.xlu0 %v4588, 16
    %v4764 = vpop.permute.xlu0 %4763
    %4765 = vrot.lane.b32.xlu0 %v4589, 16
    %v4766 = vpop.permute.xlu0 %4765
    %4767 = vrot.lane.b32.xlu0 %v4590, 16
    %v4768 = vpop.permute.xlu0 %4767
    %4769 = vrot.lane.b32.xlu0 %v4591, 16
    %v4770 = vpop.permute.xlu0 %4769
    %4771 = vrot.lane.b32.xlu0 %v4592, 16
    %v4772 = vpop.permute.xlu0 %4771
    %vm4833 = vcmask 195712
    %4834 = vst.msk [vmem:[%s4110] sm:$0xff] %vm4833, %v4654
    %vm4835 = vcmask 194688
    %4836 = vst.msk [vmem:[%s4110 + $0x8] sm:$0x7f] %vm4835, %v4656
    %4837 = vst.msk [vmem:[%s4110 + $0x10] sm:$0xff] %vm4833, %v4658
    %4838 = vst.msk [vmem:[%s4110 + $0x18] sm:$0x7f] %vm4835, %v4660
    %4839 = vst.msk [vmem:[%s4110 + $0x20] sm:$0xff] %vm4833, %v4662
    %4840 = vst.msk [vmem:[%s4110 + $0x28] sm:$0x7f] %vm4835, %v4664
    %4841 = vst.msk [vmem:[%s4110 + $0x30] sm:$0xff] %vm4833, %v4666
    %4842 = vst.msk [vmem:[%s4110 + $0x38] sm:$0x7f] %vm4835, %v4668
    %4843 = vst.msk [vmem:[%s4110 + $0x40] sm:$0xff] %vm4833, %v4670
    %4844 = vst.msk [vmem:[%s4110 + $0x48] sm:$0x7f] %vm4835, %v4672
    %4845 = vst.msk [vmem:[%s4110 + $0x50] sm:$0xff] %vm4833, %v4674
    %4846 = vst.msk [vmem:[%s4110 + $0x58] sm:$0x7f] %vm4835, %v4676
    %4847 = vst.msk [vmem:[%s4110 + $0x60] sm:$0xff] %vm4833, %v4678
    %4848 = vst.msk [vmem:[%s4110 + $0x68] sm:$0x7f] %vm4835, %v4680
    %4849 = vst.msk [vmem:[%s4110 + $0x70] sm:$0xff] %vm4833, %v4682
    %4850 = vst.msk [vmem:[%s4110 + $0x78] sm:$0x7f] %vm4835, %v4684
    %4851 = vst.msk [vmem:[%s4110 + $0x80] sm:$0xff] %vm4833, %v4686
    %4852 = vst.msk [vmem:[%s4110 + $0x88] sm:$0x7f] %vm4835, %v4688
    %4853 = vst.msk [vmem:[%s4110 + $0x90] sm:$0xff] %vm4833, %v4690
    %4854 = vst.msk [vmem:[%s4110 + $0x98] sm:$0x7f] %vm4835, %v4692
    %4855 = vst.msk [vmem:[%s4110 + $0xa0] sm:$0xff] %vm4833, %v4694
    %4856 = vst.msk [vmem:[%s4110 + $0xa8] sm:$0x7f] %vm4835, %v4696
    %4857 = vst.msk [vmem:[%s4110 + $0xb0] sm:$0xff] %vm4833, %v4698
    %4858 = vst.msk [vmem:[%s4110 + $0xb8] sm:$0x7f] %vm4835, %v4700
    %4859 = vst.msk [vmem:[%s4110 + $0xc0] sm:$0xff] %vm4833, %v4702
    %4860 = vst.msk [vmem:[%s4110 + $0xc8] sm:$0x7f] %vm4835, %v4704
    %4861 = vst.msk [vmem:[%s4110 + $0xd0] sm:$0xff] %vm4833, %v4706
    %4862 = vst.msk [vmem:[%s4110 + $0xd8] sm:$0x7f] %vm4835, %v4708
    %4863 = vst.msk [vmem:[%s4110 + $0xe0] sm:$0xff] %vm4833, %v4710
    %4864 = vst.msk [vmem:[%s4110 + $0xe8] sm:$0x7f] %vm4835, %v4712
    %4865 = vst.msk [vmem:[%s4110 + $0x100] sm:$0xff] %vm4833, %v4714
    %4866 = vst.msk [vmem:[%s4110 + $0x108] sm:$0x7f] %vm4835, %v4716
    %4867 = vst.msk [vmem:[%s4110 + $0x110] sm:$0xff] %vm4833, %v4718
    %4868 = vst.msk [vmem:[%s4110 + $0x118] sm:$0x7f] %vm4835, %v4720
    %4869 = vst.msk [vmem:[%s4110 + $0x120] sm:$0xff] %vm4833, %v4722
    %4870 = vst.msk [vmem:[%s4110 + $0x128] sm:$0x7f] %vm4835, %v4724
    %4871 = vst.msk [vmem:[%s4110 + $0x130] sm:$0xff] %vm4833, %v4726
    %4872 = vst.msk [vmem:[%s4110 + $0x138] sm:$0x7f] %vm4835, %v4728
    %4873 = vst.msk [vmem:[%s4110 + $0x140] sm:$0xff] %vm4833, %v4730
    %4874 = vst.msk [vmem:[%s4110 + $0x148] sm:$0x7f] %vm4835, %v4732
    %4875 = vst.msk [vmem:[%s4110 + $0x150] sm:$0xff] %vm4833, %v4734
    %4876 = vst.msk [vmem:[%s4110 + $0x158] sm:$0x7f] %vm4835, %v4736
    %4877 = vst.msk [vmem:[%s4110 + $0x160] sm:$0xff] %vm4833, %v4738
    %4878 = vst.msk [vmem:[%s4110 + $0x168] sm:$0x7f] %vm4835, %v4740
    %4879 = vst.msk [vmem:[%s4110 + $0x170] sm:$0xff] %vm4833, %v4742
    %4880 = vst.msk [vmem:[%s4110 + $0x178] sm:$0x7f] %vm4835, %v4744
    %4881 = vst.msk [vmem:[%s4110 + $0x180] sm:$0xff] %vm4833, %v4746
    %4882 = vst.msk [vmem:[%s4110 + $0x188] sm:$0x7f] %vm4835, %v4748
    %4883 = vst.msk [vmem:[%s4110 + $0x190] sm:$0xff] %vm4833, %v4750
    %4884 = vst.msk [vmem:[%s4110 + $0x198] sm:$0x7f] %vm4835, %v4752
    %4885 = vst.msk [vmem:[%s4110 + $0x1a0] sm:$0xff] %vm4833, %v4754
    %4886 = vst.msk [vmem:[%s4110 + $0x1a8] sm:$0x7f] %vm4835, %v4756
    %4887 = vst.msk [vmem:[%s4110 + $0x1b0] sm:$0xff] %vm4833, %v4758
    %4888 = vst.msk [vmem:[%s4110 + $0x1b8] sm:$0x7f] %vm4835, %v4760
    %4889 = vst.msk [vmem:[%s4110 + $0x1c0] sm:$0xff] %vm4833, %v4762
    %4890 = vst.msk [vmem:[%s4110 + $0x1c8] sm:$0x7f] %vm4835, %v4764
    %4891 = vst.msk [vmem:[%s4110 + $0x1d0] sm:$0xff] %vm4833, %v4766
    %4892 = vst.msk [vmem:[%s4110 + $0x1d8] sm:$0x7f] %vm4835, %v4768
    %4893 = vst.msk [vmem:[%s4110 + $0x1e0] sm:$0xff] %vm4833, %v4770
    %4894 = vst.msk [vmem:[%s4110 + $0x1e8] sm:$0x7f] %vm4835, %v4772
    %v4895 = vld [vmem:[#allocation4] sm:$0xff]
    %v4896 = vld [vmem:[#allocation4 + $0x8] sm:$0x7f]
    %v4897 = vld [vmem:[#allocation4 + $0x10] sm:$0xff]
    %v4898 = vld [vmem:[#allocation4 + $0x18] sm:$0x7f]
    %v4899 = vld [vmem:[#allocation4 + $0x20] sm:$0xff]
    %v4900 = vld [vmem:[#allocation4 + $0x28] sm:$0x7f]
    %v4901 = vld [vmem:[#allocation4 + $0x30] sm:$0xff]
    %v4902 = vld [vmem:[#allocation4 + $0x38] sm:$0x7f]
    %v4903 = vld [vmem:[#allocation4 + $0x40] sm:$0xff]
    %v4904 = vld [vmem:[#allocation4 + $0x48] sm:$0x7f]
    %v4905 = vld [vmem:[#allocation4 + $0x50] sm:$0xff]
    %v4906 = vld [vmem:[#allocation4 + $0x58] sm:$0x7f]
    %v4907 = vld [vmem:[#allocation4 + $0x60] sm:$0xff]
    %v4908 = vld [vmem:[#allocation4 + $0x68] sm:$0x7f]
    %v4909 = vld [vmem:[#allocation4 + $0x70] sm:$0xff]
    %v4910 = vld [vmem:[#allocation4 + $0x78] sm:$0x7f]
    %v4911 = vld [vmem:[#allocation4 + $0x80] sm:$0xff]
    %v4912 = vld [vmem:[#allocation4 + $0x88] sm:$0x7f]
    %v4913 = vld [vmem:[#allocation4 + $0x90] sm:$0xff]
    %v4914 = vld [vmem:[#allocation4 + $0x98] sm:$0x7f]
    %v4915 = vld [vmem:[#allocation4 + $0xa0] sm:$0xff]
    %v4916 = vld [vmem:[#allocation4 + $0xa8] sm:$0x7f]
    %v4917 = vld [vmem:[#allocation4 + $0xb0] sm:$0xff]
    %v4918 = vld [vmem:[#allocation4 + $0xb8] sm:$0x7f]
    %v4919 = vld [vmem:[#allocation4 + $0xc0] sm:$0xff]
    %v4920 = vld [vmem:[#allocation4 + $0xc8] sm:$0x7f]
    %v4921 = vld [vmem:[#allocation4 + $0xd0] sm:$0xff]
    %v4922 = vld [vmem:[#allocation4 + $0xd8] sm:$0x7f]
    %v4923 = vld [vmem:[#allocation4 + $0xe0] sm:$0xff]
    %v4924 = vld [vmem:[#allocation4 + $0xe8] sm:$0x7f]
    %v4925 = vld [vmem:[#allocation4 + $0xf0] sm:$0xff]
    %v4926 = vld [vmem:[#allocation4 + $0xf8] sm:$0x7f]
    %v4927 = vld [vmem:[#allocation4 + $0x100] sm:$0xff]
    %v4928 = vld [vmem:[#allocation4 + $0x108] sm:$0x7f]
    %v4929 = vld [vmem:[#allocation4 + $0x110] sm:$0xff]
    %v4930 = vld [vmem:[#allocation4 + $0x118] sm:$0x7f]
    %v4931 = vld [vmem:[#allocation4 + $0x120] sm:$0xff]
    %v4932 = vld [vmem:[#allocation4 + $0x128] sm:$0x7f]
    %v4933 = vld [vmem:[#allocation4 + $0x130] sm:$0xff]
    %v4934 = vld [vmem:[#allocation4 + $0x138] sm:$0x7f]
    %v4935 = vld [vmem:[#allocation4 + $0x140] sm:$0xff]
    %v4936 = vld [vmem:[#allocation4 + $0x148] sm:$0x7f]
    %v4937 = vld [vmem:[#allocation4 + $0x150] sm:$0xff]
    %v4938 = vld [vmem:[#allocation4 + $0x158] sm:$0x7f]
    %v4939 = vld [vmem:[#allocation4 + $0x160] sm:$0xff]
    %v4940 = vld [vmem:[#allocation4 + $0x168] sm:$0x7f]
    %v4941 = vld [vmem:[#allocation4 + $0x170] sm:$0xff]
    %v4942 = vld [vmem:[#allocation4 + $0x178] sm:$0x7f]
    %v4943 = vld [vmem:[#allocation4 + $0x180] sm:$0xff]
    %v4944 = vld [vmem:[#allocation4 + $0x188] sm:$0x7f]
    %v4945 = vld [vmem:[#allocation4 + $0x190] sm:$0xff]
    %v4946 = vld [vmem:[#allocation4 + $0x198] sm:$0x7f]
    %v4947 = vld [vmem:[#allocation4 + $0x1a0] sm:$0xff]
    %v4948 = vld [vmem:[#allocation4 + $0x1a8] sm:$0x7f]
    %v4949 = vld [vmem:[#allocation4 + $0x1b0] sm:$0xff]
    %v4950 = vld [vmem:[#allocation4 + $0x1b8] sm:$0x7f]
    %v4951 = vld [vmem:[#allocation4 + $0x1c0] sm:$0xff]
    %v4952 = vld [vmem:[#allocation4 + $0x1c8] sm:$0x7f]
    %v4953 = vld [vmem:[#allocation4 + $0x1d0] sm:$0xff]
    %v4954 = vld [vmem:[#allocation4 + $0x1d8] sm:$0x7f]
    %v4955 = vld [vmem:[#allocation4 + $0x1e0] sm:$0xff]
    %v4956 = vld [vmem:[#allocation4 + $0x1e8] sm:$0x7f]
    %v4957 = vld [vmem:[#allocation4 + $0x1f0] sm:$0xff]
    %v4958 = vld [vmem:[#allocation4 + $0x1f8] sm:$0x7f]
    %5023 = vrot.lane.b32.xlu0 %v4895, 24
    %v5024 = vpop.permute.xlu0 %5023
    %5025 = vrot.lane.b32.xlu0 %v4896, 24
    %v5026 = vpop.permute.xlu0 %5025
    %5027 = vrot.lane.b32.xlu0 %v4897, 24
    %v5028 = vpop.permute.xlu0 %5027
    %5029 = vrot.lane.b32.xlu0 %v4898, 24
    %v5030 = vpop.permute.xlu0 %5029
    %5031 = vrot.lane.b32.xlu0 %v4899, 24
    %v5032 = vpop.permute.xlu0 %5031
    %5033 = vrot.lane.b32.xlu0 %v4900, 24
    %v5034 = vpop.permute.xlu0 %5033
    %5035 = vrot.lane.b32.xlu0 %v4901, 24
    %v5036 = vpop.permute.xlu0 %5035
    %5037 = vrot.lane.b32.xlu0 %v4902, 24
    %v5038 = vpop.permute.xlu0 %5037
    %5039 = vrot.lane.b32.xlu0 %v4903, 24
    %v5040 = vpop.permute.xlu0 %5039
    %5041 = vrot.lane.b32.xlu0 %v4904, 24
    %v5042 = vpop.permute.xlu0 %5041
    %5043 = vrot.lane.b32.xlu0 %v4905, 24
    %v5044 = vpop.permute.xlu0 %5043
    %5045 = vrot.lane.b32.xlu0 %v4906, 24
    %v5046 = vpop.permute.xlu0 %5045
    %5047 = vrot.lane.b32.xlu0 %v4907, 24
    %v5048 = vpop.permute.xlu0 %5047
    %5049 = vrot.lane.b32.xlu0 %v4908, 24
    %v5050 = vpop.permute.xlu0 %5049
    %5051 = vrot.lane.b32.xlu0 %v4909, 24
    %v5052 = vpop.permute.xlu0 %5051
    %5053 = vrot.lane.b32.xlu0 %v4910, 24
    %v5054 = vpop.permute.xlu0 %5053
    %5055 = vrot.lane.b32.xlu0 %v4911, 24
    %v5056 = vpop.permute.xlu0 %5055
    %5057 = vrot.lane.b32.xlu0 %v4912, 24
    %v5058 = vpop.permute.xlu0 %5057
    %5059 = vrot.lane.b32.xlu0 %v4913, 24
    %v5060 = vpop.permute.xlu0 %5059
    %5061 = vrot.lane.b32.xlu0 %v4914, 24
    %v5062 = vpop.permute.xlu0 %5061
    %5063 = vrot.lane.b32.xlu0 %v4915, 24
    %v5064 = vpop.permute.xlu0 %5063
    %5065 = vrot.lane.b32.xlu0 %v4916, 24
    %v5066 = vpop.permute.xlu0 %5065
    %5067 = vrot.lane.b32.xlu0 %v4917, 24
    %v5068 = vpop.permute.xlu0 %5067
    %5069 = vrot.lane.b32.xlu0 %v4918, 24
    %v5070 = vpop.permute.xlu0 %5069
    %5071 = vrot.lane.b32.xlu0 %v4919, 24
    %v5072 = vpop.permute.xlu0 %5071
    %5073 = vrot.lane.b32.xlu0 %v4920, 24
    %v5074 = vpop.permute.xlu0 %5073
    %5075 = vrot.lane.b32.xlu0 %v4921, 24
    %v5076 = vpop.permute.xlu0 %5075
    %5077 = vrot.lane.b32.xlu0 %v4922, 24
    %v5078 = vpop.permute.xlu0 %5077
    %5079 = vrot.lane.b32.xlu0 %v4923, 24
    %v5080 = vpop.permute.xlu0 %5079
    %5081 = vrot.lane.b32.xlu0 %v4924, 24
    %v5082 = vpop.permute.xlu0 %5081
    %5083 = vrot.lane.b32.xlu0 %v4925, 24
    %v5084 = vpop.permute.xlu0 %5083
    %5085 = vrot.lane.b32.xlu0 %v4926, 24
    %v5086 = vpop.permute.xlu0 %5085
    %5087 = vrot.lane.b32.xlu0 %v4927, 24
    %v5088 = vpop.permute.xlu0 %5087
    %5089 = vrot.lane.b32.xlu0 %v4928, 24
    %v5090 = vpop.permute.xlu0 %5089
    %5091 = vrot.lane.b32.xlu0 %v4929, 24
    %v5092 = vpop.permute.xlu0 %5091
    %5093 = vrot.lane.b32.xlu0 %v4930, 24
    %v5094 = vpop.permute.xlu0 %5093
    %5095 = vrot.lane.b32.xlu0 %v4931, 24
    %v5096 = vpop.permute.xlu0 %5095
    %5097 = vrot.lane.b32.xlu0 %v4932, 24
    %v5098 = vpop.permute.xlu0 %5097
    %5099 = vrot.lane.b32.xlu0 %v4933, 24
    %v5100 = vpop.permute.xlu0 %5099
    %5101 = vrot.lane.b32.xlu0 %v4934, 24
    %v5102 = vpop.permute.xlu0 %5101
    %5103 = vrot.lane.b32.xlu0 %v4935, 24
    %v5104 = vpop.permute.xlu0 %5103
    %5105 = vrot.lane.b32.xlu0 %v4936, 24
    %v5106 = vpop.permute.xlu0 %5105
    %5107 = vrot.lane.b32.xlu0 %v4937, 24
    %v5108 = vpop.permute.xlu0 %5107
    %5109 = vrot.lane.b32.xlu0 %v4938, 24
    %v5110 = vpop.permute.xlu0 %5109
    %5111 = vrot.lane.b32.xlu0 %v4939, 24
    %v5112 = vpop.permute.xlu0 %5111
    %5113 = vrot.lane.b32.xlu0 %v4940, 24
    %v5114 = vpop.permute.xlu0 %5113
    %5115 = vrot.lane.b32.xlu0 %v4941, 24
    %v5116 = vpop.permute.xlu0 %5115
    %5117 = vrot.lane.b32.xlu0 %v4942, 24
    %v5118 = vpop.permute.xlu0 %5117
    %5119 = vrot.lane.b32.xlu0 %v4943, 24
    %v5120 = vpop.permute.xlu0 %5119
    %5121 = vrot.lane.b32.xlu0 %v4944, 24
    %v5122 = vpop.permute.xlu0 %5121
    %5123 = vrot.lane.b32.xlu0 %v4945, 24
    %v5124 = vpop.permute.xlu0 %5123
    %5125 = vrot.lane.b32.xlu0 %v4946, 24
    %v5126 = vpop.permute.xlu0 %5125
    %5127 = vrot.lane.b32.xlu0 %v4947, 24
    %v5128 = vpop.permute.xlu0 %5127
    %5129 = vrot.lane.b32.xlu0 %v4948, 24
    %v5130 = vpop.permute.xlu0 %5129
    %5131 = vrot.lane.b32.xlu0 %v4949, 24
    %v5132 = vpop.permute.xlu0 %5131
    %5133 = vrot.lane.b32.xlu0 %v4950, 24
    %v5134 = vpop.permute.xlu0 %5133
    %5135 = vrot.lane.b32.xlu0 %v4951, 24
    %v5136 = vpop.permute.xlu0 %5135
    %5137 = vrot.lane.b32.xlu0 %v4952, 24
    %v5138 = vpop.permute.xlu0 %5137
    %5139 = vrot.lane.b32.xlu0 %v4953, 24
    %v5140 = vpop.permute.xlu0 %5139
    %5141 = vrot.lane.b32.xlu0 %v4954, 24
    %v5142 = vpop.permute.xlu0 %5141
    %5143 = vrot.lane.b32.xlu0 %v4955, 24
    %v5144 = vpop.permute.xlu0 %5143
    %5145 = vrot.lane.b32.xlu0 %v4956, 24
    %v5146 = vpop.permute.xlu0 %5145
    %5147 = vrot.lane.b32.xlu0 %v4957, 24
    %v5148 = vpop.permute.xlu0 %5147
    %5149 = vrot.lane.b32.xlu0 %v4958, 24
    %v5150 = vpop.permute.xlu0 %5149
    %vm5215 = vcmask 261312
    %5216 = vst.msk [vmem:[#allocation3 + $0x1] sm:$0xff] %vm5215, %v5024
    %vm5217 = vcmask 260288
    %5218 = vst.msk [vmem:[#allocation3 + $0x9] sm:$0x7f] %vm5217, %v5026
    %5219 = vst.msk [vmem:[#allocation3 + $0x11] sm:$0xff] %vm5215, %v5028
    %5220 = vst.msk [vmem:[#allocation3 + $0x19] sm:$0x7f] %vm5217, %v5030
    %5221 = vst.msk [vmem:[#allocation3 + $0x21] sm:$0xff] %vm5215, %v5032
    %5222 = vst.msk [vmem:[#allocation3 + $0x29] sm:$0x7f] %vm5217, %v5034
    %5223 = vst.msk [vmem:[#allocation3 + $0x31] sm:$0xff] %vm5215, %v5036
    %5224 = vst.msk [vmem:[#allocation3 + $0x39] sm:$0x7f] %vm5217, %v5038
    %5225 = vst.msk [vmem:[#allocation3 + $0x41] sm:$0xff] %vm5215, %v5040
    %5226 = vst.msk [vmem:[#allocation3 + $0x49] sm:$0x7f] %vm5217, %v5042
    %5227 = vst.msk [vmem:[#allocation3 + $0x51] sm:$0xff] %vm5215, %v5044
    %5228 = vst.msk [vmem:[#allocation3 + $0x59] sm:$0x7f] %vm5217, %v5046
    %5229 = vst.msk [vmem:[#allocation3 + $0x61] sm:$0xff] %vm5215, %v5048
    %5230 = vst.msk [vmem:[#allocation3 + $0x69] sm:$0x7f] %vm5217, %v5050
    %5231 = vst.msk [vmem:[#allocation3 + $0x71] sm:$0xff] %vm5215, %v5052
    %5232 = vst.msk [vmem:[#allocation3 + $0x79] sm:$0x7f] %vm5217, %v5054
    %5233 = vst.msk [vmem:[#allocation3 + $0x81] sm:$0xff] %vm5215, %v5056
    %5234 = vst.msk [vmem:[#allocation3 + $0x89] sm:$0x7f] %vm5217, %v5058
    %5235 = vst.msk [vmem:[#allocation3 + $0x91] sm:$0xff] %vm5215, %v5060
    %5236 = vst.msk [vmem:[#allocation3 + $0x99] sm:$0x7f] %vm5217, %v5062
    %5237 = vst.msk [vmem:[#allocation3 + $0xa1] sm:$0xff] %vm5215, %v5064
    %5238 = vst.msk [vmem:[#allocation3 + $0xa9] sm:$0x7f] %vm5217, %v5066
    %5239 = vst.msk [vmem:[#allocation3 + $0xb1] sm:$0xff] %vm5215, %v5068
    %5240 = vst.msk [vmem:[#allocation3 + $0xb9] sm:$0x7f] %vm5217, %v5070
    %5241 = vst.msk [vmem:[#allocation3 + $0xc1] sm:$0xff] %vm5215, %v5072
    %5242 = vst.msk [vmem:[#allocation3 + $0xc9] sm:$0x7f] %vm5217, %v5074
    %5243 = vst.msk [vmem:[#allocation3 + $0xd1] sm:$0xff] %vm5215, %v5076
    %5244 = vst.msk [vmem:[#allocation3 + $0xd9] sm:$0x7f] %vm5217, %v5078
    %5245 = vst.msk [vmem:[#allocation3 + $0xe1] sm:$0xff] %vm5215, %v5080
    %5246 = vst.msk [vmem:[#allocation3 + $0xe9] sm:$0x7f] %vm5217, %v5082
    %5247 = vst.msk [vmem:[#allocation3 + $0xf1] sm:$0xff] %vm5215, %v5084
    %5248 = vst.msk [vmem:[#allocation3 + $0xf9] sm:$0x7f] %vm5217, %v5086
    %5249 = vst.msk [vmem:[#allocation3 + $0x101] sm:$0xff] %vm5215, %v5088
    %5250 = vst.msk [vmem:[#allocation3 + $0x109] sm:$0x7f] %vm5217, %v5090
    %5251 = vst.msk [vmem:[#allocation3 + $0x111] sm:$0xff] %vm5215, %v5092
    %5252 = vst.msk [vmem:[#allocation3 + $0x119] sm:$0x7f] %vm5217, %v5094
    %5253 = vst.msk [vmem:[#allocation3 + $0x121] sm:$0xff] %vm5215, %v5096
    %5254 = vst.msk [vmem:[#allocation3 + $0x129] sm:$0x7f] %vm5217, %v5098
    %5255 = vst.msk [vmem:[#allocation3 + $0x131] sm:$0xff] %vm5215, %v5100
    %5256 = vst.msk [vmem:[#allocation3 + $0x139] sm:$0x7f] %vm5217, %v5102
    %5257 = vst.msk [vmem:[#allocation3 + $0x141] sm:$0xff] %vm5215, %v5104
    %5258 = vst.msk [vmem:[#allocation3 + $0x149] sm:$0x7f] %vm5217, %v5106
    %5259 = vst.msk [vmem:[#allocation3 + $0x151] sm:$0xff] %vm5215, %v5108
    %5260 = vst.msk [vmem:[#allocation3 + $0x159] sm:$0x7f] %vm5217, %v5110
    %5261 = vst.msk [vmem:[#allocation3 + $0x161] sm:$0xff] %vm5215, %v5112
    %5262 = vst.msk [vmem:[#allocation3 + $0x169] sm:$0x7f] %vm5217, %v5114
    %5263 = vst.msk [vmem:[#allocation3 + $0x171] sm:$0xff] %vm5215, %v5116
    %5264 = vst.msk [vmem:[#allocation3 + $0x179] sm:$0x7f] %vm5217, %v5118
    %5265 = vst.msk [vmem:[#allocation3 + $0x181] sm:$0xff] %vm5215, %v5120
    %5266 = vst.msk [vmem:[#allocation3 + $0x189] sm:$0x7f] %vm5217, %v5122
    %5267 = vst.msk [vmem:[#allocation3 + $0x191] sm:$0xff] %vm5215, %v5124
    %5268 = vst.msk [vmem:[#allocation3 + $0x199] sm:$0x7f] %vm5217, %v5126
    %5269 = vst.msk [vmem:[#allocation3 + $0x1a1] sm:$0xff] %vm5215, %v5128
    %5270 = vst.msk [vmem:[#allocation3 + $0x1a9] sm:$0x7f] %vm5217, %v5130
    %5271 = vst.msk [vmem:[#allocation3 + $0x1b1] sm:$0xff] %vm5215, %v5132
    %5272 = vst.msk [vmem:[#allocation3 + $0x1b9] sm:$0x7f] %vm5217, %v5134
    %5273 = vst.msk [vmem:[#allocation3 + $0x1c1] sm:$0xff] %vm5215, %v5136
    %5274 = vst.msk [vmem:[#allocation3 + $0x1c9] sm:$0x7f] %vm5217, %v5138
    %5275 = vst.msk [vmem:[#allocation3 + $0x1d1] sm:$0xff] %vm5215, %v5140
    %5276 = vst.msk [vmem:[#allocation3 + $0x1d9] sm:$0x7f] %vm5217, %v5142
    %5277 = vst.msk [vmem:[#allocation3 + $0x1e1] sm:$0xff] %vm5215, %v5144
    %5278 = vst.msk [vmem:[#allocation3 + $0x1e9] sm:$0x7f] %vm5217, %v5146
    %5279 = vst.msk [vmem:[#allocation3 + $0x1f1] sm:$0xff] %vm5215, %v5148
    %5280 = vst.msk [vmem:[#allocation3 + $0x1f9] sm:$0x7f] %vm5217, %v5150
    %v5281 = vld [vmem:[#allocation4] sm:$0xff]
    %v5282 = vld [vmem:[#allocation4 + $0x8] sm:$0xff]
    %v5283 = vld [vmem:[#allocation4 + $0x10] sm:$0xff]
    %v5284 = vld [vmem:[#allocation4 + $0x18] sm:$0xff]
    %v5285 = vld [vmem:[#allocation4 + $0x20] sm:$0xff]
    %v5286 = vld [vmem:[#allocation4 + $0x28] sm:$0xff]
    %v5287 = vld [vmem:[#allocation4 + $0x30] sm:$0xff]
    %v5288 = vld [vmem:[#allocation4 + $0x38] sm:$0xff]
    %v5289 = vld [vmem:[#allocation4 + $0x40] sm:$0xff]
    %v5290 = vld [vmem:[#allocation4 + $0x48] sm:$0xff]
    %v5291 = vld [vmem:[#allocation4 + $0x50] sm:$0xff]
    %v5292 = vld [vmem:[#allocation4 + $0x58] sm:$0xff]
    %v5293 = vld [vmem:[#allocation4 + $0x60] sm:$0xff]
    %v5294 = vld [vmem:[#allocation4 + $0x68] sm:$0xff]
    %v5295 = vld [vmem:[#allocation4 + $0x70] sm:$0xff]
    %v5296 = vld [vmem:[#allocation4 + $0x78] sm:$0xff]
    %v5297 = vld [vmem:[#allocation4 + $0x80] sm:$0xff]
    %v5298 = vld [vmem:[#allocation4 + $0x88] sm:$0xff]
    %v5299 = vld [vmem:[#allocation4 + $0x90] sm:$0xff]
    %v5300 = vld [vmem:[#allocation4 + $0x98] sm:$0xff]
    %v5301 = vld [vmem:[#allocation4 + $0xa0] sm:$0xff]
    %v5302 = vld [vmem:[#allocation4 + $0xa8] sm:$0xff]
    %v5303 = vld [vmem:[#allocation4 + $0xb0] sm:$0xff]
    %v5304 = vld [vmem:[#allocation4 + $0xb8] sm:$0xff]
    %v5305 = vld [vmem:[#allocation4 + $0xc0] sm:$0xff]
    %v5306 = vld [vmem:[#allocation4 + $0xc8] sm:$0xff]
    %v5307 = vld [vmem:[#allocation4 + $0xd0] sm:$0xff]
    %v5308 = vld [vmem:[#allocation4 + $0xd8] sm:$0xff]
    %v5309 = vld [vmem:[#allocation4 + $0xe0] sm:$0xff]
    %v5310 = vld [vmem:[#allocation4 + $0xe8] sm:$0xff]
    %v5311 = vld [vmem:[#allocation4 + $0xf0] sm:$0xff]
    %v5312 = vld [vmem:[#allocation4 + $0xf8] sm:$0xff]
    %v5313 = vld [vmem:[#allocation4 + $0x100] sm:$0xff]
    %v5314 = vld [vmem:[#allocation4 + $0x108] sm:$0xff]
    %v5315 = vld [vmem:[#allocation4 + $0x110] sm:$0xff]
    %v5316 = vld [vmem:[#allocation4 + $0x118] sm:$0xff]
    %v5317 = vld [vmem:[#allocation4 + $0x120] sm:$0xff]
    %v5318 = vld [vmem:[#allocation4 + $0x128] sm:$0xff]
    %v5319 = vld [vmem:[#allocation4 + $0x130] sm:$0xff]
    %v5320 = vld [vmem:[#allocation4 + $0x138] sm:$0xff]
    %v5321 = vld [vmem:[#allocation4 + $0x140] sm:$0xff]
    %v5322 = vld [vmem:[#allocation4 + $0x148] sm:$0xff]
    %v5323 = vld [vmem:[#allocation4 + $0x150] sm:$0xff]
    %v5324 = vld [vmem:[#allocation4 + $0x158] sm:$0xff]
    %v5325 = vld [vmem:[#allocation4 + $0x160] sm:$0xff]
    %v5326 = vld [vmem:[#allocation4 + $0x168] sm:$0xff]
    %v5327 = vld [vmem:[#allocation4 + $0x170] sm:$0xff]
    %v5328 = vld [vmem:[#allocation4 + $0x178] sm:$0xff]
    %v5329 = vld [vmem:[#allocation4 + $0x180] sm:$0xff]
    %v5330 = vld [vmem:[#allocation4 + $0x188] sm:$0xff]
    %v5331 = vld [vmem:[#allocation4 + $0x190] sm:$0xff]
    %v5332 = vld [vmem:[#allocation4 + $0x198] sm:$0xff]
    %v5333 = vld [vmem:[#allocation4 + $0x1a0] sm:$0xff]
    %v5334 = vld [vmem:[#allocation4 + $0x1a8] sm:$0xff]
    %v5335 = vld [vmem:[#allocation4 + $0x1b0] sm:$0xff]
    %v5336 = vld [vmem:[#allocation4 + $0x1b8] sm:$0xff]
    %v5337 = vld [vmem:[#allocation4 + $0x1c0] sm:$0xff]
    %v5338 = vld [vmem:[#allocation4 + $0x1c8] sm:$0xff]
    %v5339 = vld [vmem:[#allocation4 + $0x1d0] sm:$0xff]
    %v5340 = vld [vmem:[#allocation4 + $0x1d8] sm:$0xff]
    %v5341 = vld [vmem:[#allocation4 + $0x1e0] sm:$0xff]
    %v5342 = vld [vmem:[#allocation4 + $0x1e8] sm:$0xff]
    %v5343 = vld [vmem:[#allocation4 + $0x1f0] sm:$0xff]
    %v5344 = vld [vmem:[#allocation4 + $0x1f8] sm:$0xff]
    %5409 = vrot.lane.b32.xlu0 %v5281, 32
    %v5410 = vpop.permute.xlu0 %5409
    %5411 = vrot.lane.b32.xlu0 %v5282, 32
    %v5412 = vpop.permute.xlu0 %5411
    %5413 = vrot.lane.b32.xlu0 %v5283, 32
    %v5414 = vpop.permute.xlu0 %5413
    %5415 = vrot.lane.b32.xlu0 %v5284, 32
    %v5416 = vpop.permute.xlu0 %5415
    %5417 = vrot.lane.b32.xlu0 %v5285, 32
    %v5418 = vpop.permute.xlu0 %5417
    %5419 = vrot.lane.b32.xlu0 %v5286, 32
    %v5420 = vpop.permute.xlu0 %5419
    %5421 = vrot.lane.b32.xlu0 %v5287, 32
    %v5422 = vpop.permute.xlu0 %5421
    %5423 = vrot.lane.b32.xlu0 %v5288, 32
    %v5424 = vpop.permute.xlu0 %5423
    %5425 = vrot.lane.b32.xlu0 %v5289, 32
    %v5426 = vpop.permute.xlu0 %5425
    %5427 = vrot.lane.b32.xlu0 %v5290, 32
    %v5428 = vpop.permute.xlu0 %5427
    %5429 = vrot.lane.b32.xlu0 %v5291, 32
    %v5430 = vpop.permute.xlu0 %5429
    %5431 = vrot.lane.b32.xlu0 %v5292, 32
    %v5432 = vpop.permute.xlu0 %5431
    %5433 = vrot.lane.b32.xlu0 %v5293, 32
    %v5434 = vpop.permute.xlu0 %5433
    %5435 = vrot.lane.b32.xlu0 %v5294, 32
    %v5436 = vpop.permute.xlu0 %5435
    %5437 = vrot.lane.b32.xlu0 %v5295, 32
    %v5438 = vpop.permute.xlu0 %5437
    %5439 = vrot.lane.b32.xlu0 %v5296, 32
    %v5440 = vpop.permute.xlu0 %5439
    %5441 = vrot.lane.b32.xlu0 %v5297, 32
    %v5442 = vpop.permute.xlu0 %5441
    %5443 = vrot.lane.b32.xlu0 %v5298, 32
    %v5444 = vpop.permute.xlu0 %5443
    %5445 = vrot.lane.b32.xlu0 %v5299, 32
    %v5446 = vpop.permute.xlu0 %5445
    %5447 = vrot.lane.b32.xlu0 %v5300, 32
    %v5448 = vpop.permute.xlu0 %5447
    %5449 = vrot.lane.b32.xlu0 %v5301, 32
    %v5450 = vpop.permute.xlu0 %5449
    %5451 = vrot.lane.b32.xlu0 %v5302, 32
    %v5452 = vpop.permute.xlu0 %5451
    %5453 = vrot.lane.b32.xlu0 %v5303, 32
    %v5454 = vpop.permute.xlu0 %5453
    %5455 = vrot.lane.b32.xlu0 %v5304, 32
    %v5456 = vpop.permute.xlu0 %5455
    %5457 = vrot.lane.b32.xlu0 %v5305, 32
    %v5458 = vpop.permute.xlu0 %5457
    %5459 = vrot.lane.b32.xlu0 %v5306, 32
    %v5460 = vpop.permute.xlu0 %5459
    %5461 = vrot.lane.b32.xlu0 %v5307, 32
    %v5462 = vpop.permute.xlu0 %5461
    %5463 = vrot.lane.b32.xlu0 %v5308, 32
    %v5464 = vpop.permute.xlu0 %5463
    %5465 = vrot.lane.b32.xlu0 %v5309, 32
    %v5466 = vpop.permute.xlu0 %5465
    %5467 = vrot.lane.b32.xlu0 %v5310, 32
    %v5468 = vpop.permute.xlu0 %5467
    %5469 = vrot.lane.b32.xlu0 %v5311, 32
    %v5470 = vpop.permute.xlu0 %5469
    %5471 = vrot.lane.b32.xlu0 %v5312, 32
    %v5472 = vpop.permute.xlu0 %5471
    %5473 = vrot.lane.b32.xlu0 %v5313, 32
    %v5474 = vpop.permute.xlu0 %5473
    %5475 = vrot.lane.b32.xlu0 %v5314, 32
    %v5476 = vpop.permute.xlu0 %5475
    %5477 = vrot.lane.b32.xlu0 %v5315, 32
    %v5478 = vpop.permute.xlu0 %5477
    %5479 = vrot.lane.b32.xlu0 %v5316, 32
    %v5480 = vpop.permute.xlu0 %5479
    %5481 = vrot.lane.b32.xlu0 %v5317, 32
    %v5482 = vpop.permute.xlu0 %5481
    %5483 = vrot.lane.b32.xlu0 %v5318, 32
    %v5484 = vpop.permute.xlu0 %5483
    %5485 = vrot.lane.b32.xlu0 %v5319, 32
    %v5486 = vpop.permute.xlu0 %5485
    %5487 = vrot.lane.b32.xlu0 %v5320, 32
    %v5488 = vpop.permute.xlu0 %5487
    %5489 = vrot.lane.b32.xlu0 %v5321, 32
    %v5490 = vpop.permute.xlu0 %5489
    %5491 = vrot.lane.b32.xlu0 %v5322, 32
    %v5492 = vpop.permute.xlu0 %5491
    %5493 = vrot.lane.b32.xlu0 %v5323, 32
    %v5494 = vpop.permute.xlu0 %5493
    %5495 = vrot.lane.b32.xlu0 %v5324, 32
    %v5496 = vpop.permute.xlu0 %5495
    %5497 = vrot.lane.b32.xlu0 %v5325, 32
    %v5498 = vpop.permute.xlu0 %5497
    %5499 = vrot.lane.b32.xlu0 %v5326, 32
    %v5500 = vpop.permute.xlu0 %5499
    %5501 = vrot.lane.b32.xlu0 %v5327, 32
    %v5502 = vpop.permute.xlu0 %5501
    %5503 = vrot.lane.b32.xlu0 %v5328, 32
    %v5504 = vpop.permute.xlu0 %5503
    %5505 = vrot.lane.b32.xlu0 %v5329, 32
    %v5506 = vpop.permute.xlu0 %5505
    %5507 = vrot.lane.b32.xlu0 %v5330, 32
    %v5508 = vpop.permute.xlu0 %5507
    %5509 = vrot.lane.b32.xlu0 %v5331, 32
    %v5510 = vpop.permute.xlu0 %5509
    %5511 = vrot.lane.b32.xlu0 %v5332, 32
    %v5512 = vpop.permute.xlu0 %5511
    %5513 = vrot.lane.b32.xlu0 %v5333, 32
    %v5514 = vpop.permute.xlu0 %5513
    %5515 = vrot.lane.b32.xlu0 %v5334, 32
    %v5516 = vpop.permute.xlu0 %5515
    %5517 = vrot.lane.b32.xlu0 %v5335, 32
    %v5518 = vpop.permute.xlu0 %5517
    %5519 = vrot.lane.b32.xlu0 %v5336, 32
    %v5520 = vpop.permute.xlu0 %5519
    %5521 = vrot.lane.b32.xlu0 %v5337, 32
    %v5522 = vpop.permute.xlu0 %5521
    %5523 = vrot.lane.b32.xlu0 %v5338, 32
    %v5524 = vpop.permute.xlu0 %5523
    %5525 = vrot.lane.b32.xlu0 %v5339, 32
    %v5526 = vpop.permute.xlu0 %5525
    %5527 = vrot.lane.b32.xlu0 %v5340, 32
    %v5528 = vpop.permute.xlu0 %5527
    %5529 = vrot.lane.b32.xlu0 %v5341, 32
    %v5530 = vpop.permute.xlu0 %5529
    %5531 = vrot.lane.b32.xlu0 %v5342, 32
    %v5532 = vpop.permute.xlu0 %5531
    %5533 = vrot.lane.b32.xlu0 %v5343, 32
    %v5534 = vpop.permute.xlu0 %5533
    %5535 = vrot.lane.b32.xlu0 %v5344, 32
    %v5536 = vpop.permute.xlu0 %5535
    %vm5601 = vcmask 326912
    %5602 = vst.msk [vmem:[#allocation3] sm:$0xff] %vm5601, %v5410
    %5603 = vst.msk [vmem:[#allocation3 + $0x8] sm:$0xff] %vm5601, %v5412
    %5604 = vst.msk [vmem:[#allocation3 + $0x10] sm:$0xff] %vm5601, %v5414
    %5605 = vst.msk [vmem:[#allocation3 + $0x18] sm:$0xff] %vm5601, %v5416
    %5606 = vst.msk [vmem:[#allocation3 + $0x20] sm:$0xff] %vm5601, %v5418
    %5607 = vst.msk [vmem:[#allocation3 + $0x28] sm:$0xff] %vm5601, %v5420
    %5608 = vst.msk [vmem:[#allocation3 + $0x30] sm:$0xff] %vm5601, %v5422
    %5609 = vst.msk [vmem:[#allocation3 + $0x38] sm:$0xff] %vm5601, %v5424
    %5610 = vst.msk [vmem:[#allocation3 + $0x40] sm:$0xff] %vm5601, %v5426
    %5611 = vst.msk [vmem:[#allocation3 + $0x48] sm:$0xff] %vm5601, %v5428
    %5612 = vst.msk [vmem:[#allocation3 + $0x50] sm:$0xff] %vm5601, %v5430
    %5613 = vst.msk [vmem:[#allocation3 + $0x58] sm:$0xff] %vm5601, %v5432
    %5614 = vst.msk [vmem:[#allocation3 + $0x60] sm:$0xff] %vm5601, %v5434
    %5615 = vst.msk [vmem:[#allocation3 + $0x68] sm:$0xff] %vm5601, %v5436
    %5616 = vst.msk [vmem:[#allocation3 + $0x70] sm:$0xff] %vm5601, %v5438
    %5617 = vst.msk [vmem:[#allocation3 + $0x78] sm:$0xff] %vm5601, %v5440
    %5618 = vst.msk [vmem:[#allocation3 + $0x80] sm:$0xff] %vm5601, %v5442
    %5619 = vst.msk [vmem:[#allocation3 + $0x88] sm:$0xff] %vm5601, %v5444
    %5620 = vst.msk [vmem:[#allocation3 + $0x90] sm:$0xff] %vm5601, %v5446
    %5621 = vst.msk [vmem:[#allocation3 + $0x98] sm:$0xff] %vm5601, %v5448
    %5622 = vst.msk [vmem:[#allocation3 + $0xa0] sm:$0xff] %vm5601, %v5450
    %5623 = vst.msk [vmem:[#allocation3 + $0xa8] sm:$0xff] %vm5601, %v5452
    %5624 = vst.msk [vmem:[#allocation3 + $0xb0] sm:$0xff] %vm5601, %v5454
    %5625 = vst.msk [vmem:[#allocation3 + $0xb8] sm:$0xff] %vm5601, %v5456
    %5626 = vst.msk [vmem:[#allocation3 + $0xc0] sm:$0xff] %vm5601, %v5458
    %5627 = vst.msk [vmem:[#allocation3 + $0xc8] sm:$0xff] %vm5601, %v5460
    %5628 = vst.msk [vmem:[#allocation3 + $0xd0] sm:$0xff] %vm5601, %v5462
    %5629 = vst.msk [vmem:[#allocation3 + $0xd8] sm:$0xff] %vm5601, %v5464
    %5630 = vst.msk [vmem:[#allocation3 + $0xe0] sm:$0xff] %vm5601, %v5466
    %5631 = vst.msk [vmem:[#allocation3 + $0xe8] sm:$0xff] %vm5601, %v5468
    %5632 = vst.msk [vmem:[#allocation3 + $0xf0] sm:$0xff] %vm5601, %v5470
    %5633 = vst.msk [vmem:[#allocation3 + $0xf8] sm:$0xff] %vm5601, %v5472
    %5634 = vst.msk [vmem:[#allocation3 + $0x100] sm:$0xff] %vm5601, %v5474
    %5635 = vst.msk [vmem:[#allocation3 + $0x108] sm:$0xff] %vm5601, %v5476
    %5636 = vst.msk [vmem:[#allocation3 + $0x110] sm:$0xff] %vm5601, %v5478
    %5637 = vst.msk [vmem:[#allocation3 + $0x118] sm:$0xff] %vm5601, %v5480
    %5638 = vst.msk [vmem:[#allocation3 + $0x120] sm:$0xff] %vm5601, %v5482
    %5639 = vst.msk [vmem:[#allocation3 + $0x128] sm:$0xff] %vm5601, %v5484
    %5640 = vst.msk [vmem:[#allocation3 + $0x130] sm:$0xff] %vm5601, %v5486
    %5641 = vst.msk [vmem:[#allocation3 + $0x138] sm:$0xff] %vm5601, %v5488
    %5642 = vst.msk [vmem:[#allocation3 + $0x140] sm:$0xff] %vm5601, %v5490
    %5643 = vst.msk [vmem:[#allocation3 + $0x148] sm:$0xff] %vm5601, %v5492
    %5644 = vst.msk [vmem:[#allocation3 + $0x150] sm:$0xff] %vm5601, %v5494
    %5645 = vst.msk [vmem:[#allocation3 + $0x158] sm:$0xff] %vm5601, %v5496
    %5646 = vst.msk [vmem:[#allocation3 + $0x160] sm:$0xff] %vm5601, %v5498
    %5647 = vst.msk [vmem:[#allocation3 + $0x168] sm:$0xff] %vm5601, %v5500
    %5648 = vst.msk [vmem:[#allocation3 + $0x170] sm:$0xff] %vm5601, %v5502
    %5649 = vst.msk [vmem:[#allocation3 + $0x178] sm:$0xff] %vm5601, %v5504
    %5650 = vst.msk [vmem:[#allocation3 + $0x180] sm:$0xff] %vm5601, %v5506
    %5651 = vst.msk [vmem:[#allocation3 + $0x188] sm:$0xff] %vm5601, %v5508
    %5652 = vst.msk [vmem:[#allocation3 + $0x190] sm:$0xff] %vm5601, %v5510
    %5653 = vst.msk [vmem:[#allocation3 + $0x198] sm:$0xff] %vm5601, %v5512
    %5654 = vst.msk [vmem:[#allocation3 + $0x1a0] sm:$0xff] %vm5601, %v5514
    %5655 = vst.msk [vmem:[#allocation3 + $0x1a8] sm:$0xff] %vm5601, %v5516
    %5656 = vst.msk [vmem:[#allocation3 + $0x1b0] sm:$0xff] %vm5601, %v5518
    %5657 = vst.msk [vmem:[#allocation3 + $0x1b8] sm:$0xff] %vm5601, %v5520
    %5658 = vst.msk [vmem:[#allocation3 + $0x1c0] sm:$0xff] %vm5601, %v5522
    %5659 = vst.msk [vmem:[#allocation3 + $0x1c8] sm:$0xff] %vm5601, %v5524
    %5660 = vst.msk [vmem:[#allocation3 + $0x1d0] sm:$0xff] %vm5601, %v5526
    %5661 = vst.msk [vmem:[#allocation3 + $0x1d8] sm:$0xff] %vm5601, %v5528
    %5662 = vst.msk [vmem:[#allocation3 + $0x1e0] sm:$0xff] %vm5601, %v5530
    %5663 = vst.msk [vmem:[#allocation3 + $0x1e8] sm:$0xff] %vm5601, %v5532
    %5664 = vst.msk [vmem:[#allocation3 + $0x1f0] sm:$0xff] %vm5601, %v5534
    %5665 = vst.msk [vmem:[#allocation3 + $0x1f8] sm:$0xff] %vm5601, %v5536
    %v5666 = vld [vmem:[#allocation4 + $0x1] sm:$0xff]
    %v5667 = vld [vmem:[#allocation4 + $0x9] sm:$0x7f]
    %v5668 = vld [vmem:[#allocation4 + $0x11] sm:$0xff]
    %v5669 = vld [vmem:[#allocation4 + $0x19] sm:$0x7f]
    %v5670 = vld [vmem:[#allocation4 + $0x21] sm:$0xff]
    %v5671 = vld [vmem:[#allocation4 + $0x29] sm:$0x7f]
    %v5672 = vld [vmem:[#allocation4 + $0x31] sm:$0xff]
    %v5673 = vld [vmem:[#allocation4 + $0x39] sm:$0x7f]
    %v5674 = vld [vmem:[#allocation4 + $0x41] sm:$0xff]
    %v5675 = vld [vmem:[#allocation4 + $0x49] sm:$0x7f]
    %v5676 = vld [vmem:[#allocation4 + $0x51] sm:$0xff]
    %v5677 = vld [vmem:[#allocation4 + $0x59] sm:$0x7f]
    %v5678 = vld [vmem:[#allocation4 + $0x61] sm:$0xff]
    %v5679 = vld [vmem:[#allocation4 + $0x69] sm:$0x7f]
    %v5680 = vld [vmem:[#allocation4 + $0x71] sm:$0xff]
    %v5681 = vld [vmem:[#allocation4 + $0x79] sm:$0x7f]
    %v5682 = vld [vmem:[#allocation4 + $0x81] sm:$0xff]
    %v5683 = vld [vmem:[#allocation4 + $0x89] sm:$0x7f]
    %v5684 = vld [vmem:[#allocation4 + $0x91] sm:$0xff]
    %v5685 = vld [vmem:[#allocation4 + $0x99] sm:$0x7f]
    %v5686 = vld [vmem:[#allocation4 + $0xa1] sm:$0xff]
    %v5687 = vld [vmem:[#allocation4 + $0xa9] sm:$0x7f]
    %v5688 = vld [vmem:[#allocation4 + $0xb1] sm:$0xff]
    %v5689 = vld [vmem:[#allocation4 + $0xb9] sm:$0x7f]
    %v5690 = vld [vmem:[#allocation4 + $0xc1] sm:$0xff]
    %v5691 = vld [vmem:[#allocation4 + $0xc9] sm:$0x7f]
    %v5692 = vld [vmem:[#allocation4 + $0xd1] sm:$0xff]
    %v5693 = vld [vmem:[#allocation4 + $0xd9] sm:$0x7f]
    %v5694 = vld [vmem:[#allocation4 + $0xe1] sm:$0xff]
    %v5695 = vld [vmem:[#allocation4 + $0xe9] sm:$0x7f]
    %v5696 = vld [vmem:[#allocation4 + $0xf1] sm:$0xff]
    %v5697 = vld [vmem:[#allocation4 + $0xf9] sm:$0x7f]
    %v5698 = vld [vmem:[#allocation4 + $0x101] sm:$0xff]
    %v5699 = vld [vmem:[#allocation4 + $0x109] sm:$0x7f]
    %v5700 = vld [vmem:[#allocation4 + $0x111] sm:$0xff]
    %v5701 = vld [vmem:[#allocation4 + $0x119] sm:$0x7f]
    %v5702 = vld [vmem:[#allocation4 + $0x121] sm:$0xff]
    %v5703 = vld [vmem:[#allocation4 + $0x129] sm:$0x7f]
    %v5704 = vld [vmem:[#allocation4 + $0x131] sm:$0xff]
    %v5705 = vld [vmem:[#allocation4 + $0x139] sm:$0x7f]
    %v5706 = vld [vmem:[#allocation4 + $0x141] sm:$0xff]
    %v5707 = vld [vmem:[#allocation4 + $0x149] sm:$0x7f]
    %v5708 = vld [vmem:[#allocation4 + $0x151] sm:$0xff]
    %v5709 = vld [vmem:[#allocation4 + $0x159] sm:$0x7f]
    %v5710 = vld [vmem:[#allocation4 + $0x161] sm:$0xff]
    %v5711 = vld [vmem:[#allocation4 + $0x169] sm:$0x7f]
    %v5712 = vld [vmem:[#allocation4 + $0x171] sm:$0xff]
    %v5713 = vld [vmem:[#allocation4 + $0x179] sm:$0x7f]
    %v5714 = vld [vmem:[#allocation4 + $0x181] sm:$0xff]
    %v5715 = vld [vmem:[#allocation4 + $0x189] sm:$0x7f]
    %v5716 = vld [vmem:[#allocation4 + $0x191] sm:$0xff]
    %v5717 = vld [vmem:[#allocation4 + $0x199] sm:$0x7f]
    %v5718 = vld [vmem:[#allocation4 + $0x1a1] sm:$0xff]
    %v5719 = vld [vmem:[#allocation4 + $0x1a9] sm:$0x7f]
    %v5720 = vld [vmem:[#allocation4 + $0x1b1] sm:$0xff]
    %v5721 = vld [vmem:[#allocation4 + $0x1b9] sm:$0x7f]
    %v5722 = vld [vmem:[#allocation4 + $0x1c1] sm:$0xff]
    %v5723 = vld [vmem:[#allocation4 + $0x1c9] sm:$0x7f]
    %v5724 = vld [vmem:[#allocation4 + $0x1d1] sm:$0xff]
    %v5725 = vld [vmem:[#allocation4 + $0x1d9] sm:$0x7f]
    %v5726 = vld [vmem:[#allocation4 + $0x1e1] sm:$0xff]
    %v5727 = vld [vmem:[#allocation4 + $0x1e9] sm:$0x7f]
    %v5728 = vld [vmem:[#allocation4 + $0x1f1] sm:$0xff]
    %v5729 = vld [vmem:[#allocation4 + $0x1f9] sm:$0x7f]
    %5794 = vrot.lane.b32.xlu0 %v5666, 40
    %v5795 = vpop.permute.xlu0 %5794
    %5796 = vrot.lane.b32.xlu0 %v5667, 40
    %v5797 = vpop.permute.xlu0 %5796
    %5798 = vrot.lane.b32.xlu0 %v5668, 40
    %v5799 = vpop.permute.xlu0 %5798
    %5800 = vrot.lane.b32.xlu0 %v5669, 40
    %v5801 = vpop.permute.xlu0 %5800
    %5802 = vrot.lane.b32.xlu0 %v5670, 40
    %v5803 = vpop.permute.xlu0 %5802
    %5804 = vrot.lane.b32.xlu0 %v5671, 40
    %v5805 = vpop.permute.xlu0 %5804
    %5806 = vrot.lane.b32.xlu0 %v5672, 40
    %v5807 = vpop.permute.xlu0 %5806
    %5808 = vrot.lane.b32.xlu0 %v5673, 40
    %v5809 = vpop.permute.xlu0 %5808
    %5810 = vrot.lane.b32.xlu0 %v5674, 40
    %v5811 = vpop.permute.xlu0 %5810
    %5812 = vrot.lane.b32.xlu0 %v5675, 40
    %v5813 = vpop.permute.xlu0 %5812
    %5814 = vrot.lane.b32.xlu0 %v5676, 40
    %v5815 = vpop.permute.xlu0 %5814
    %5816 = vrot.lane.b32.xlu0 %v5677, 40
    %v5817 = vpop.permute.xlu0 %5816
    %5818 = vrot.lane.b32.xlu0 %v5678, 40
    %v5819 = vpop.permute.xlu0 %5818
    %5820 = vrot.lane.b32.xlu0 %v5679, 40
    %v5821 = vpop.permute.xlu0 %5820
    %5822 = vrot.lane.b32.xlu0 %v5680, 40
    %v5823 = vpop.permute.xlu0 %5822
    %5824 = vrot.lane.b32.xlu0 %v5681, 40
    %v5825 = vpop.permute.xlu0 %5824
    %5826 = vrot.lane.b32.xlu0 %v5682, 40
    %v5827 = vpop.permute.xlu0 %5826
    %5828 = vrot.lane.b32.xlu0 %v5683, 40
    %v5829 = vpop.permute.xlu0 %5828
    %5830 = vrot.lane.b32.xlu0 %v5684, 40
    %v5831 = vpop.permute.xlu0 %5830
    %5832 = vrot.lane.b32.xlu0 %v5685, 40
    %v5833 = vpop.permute.xlu0 %5832
    %5834 = vrot.lane.b32.xlu0 %v5686, 40
    %v5835 = vpop.permute.xlu0 %5834
    %5836 = vrot.lane.b32.xlu0 %v5687, 40
    %v5837 = vpop.permute.xlu0 %5836
    %5838 = vrot.lane.b32.xlu0 %v5688, 40
    %v5839 = vpop.permute.xlu0 %5838
    %5840 = vrot.lane.b32.xlu0 %v5689, 40
    %v5841 = vpop.permute.xlu0 %5840
    %5842 = vrot.lane.b32.xlu0 %v5690, 40
    %v5843 = vpop.permute.xlu0 %5842
    %5844 = vrot.lane.b32.xlu0 %v5691, 40
    %v5845 = vpop.permute.xlu0 %5844
    %5846 = vrot.lane.b32.xlu0 %v5692, 40
    %v5847 = vpop.permute.xlu0 %5846
    %5848 = vrot.lane.b32.xlu0 %v5693, 40
    %v5849 = vpop.permute.xlu0 %5848
    %5850 = vrot.lane.b32.xlu0 %v5694, 40
    %v5851 = vpop.permute.xlu0 %5850
    %5852 = vrot.lane.b32.xlu0 %v5695, 40
    %v5853 = vpop.permute.xlu0 %5852
    %5854 = vrot.lane.b32.xlu0 %v5696, 40
    %v5855 = vpop.permute.xlu0 %5854
    %5856 = vrot.lane.b32.xlu0 %v5697, 40
    %v5857 = vpop.permute.xlu0 %5856
    %5858 = vrot.lane.b32.xlu0 %v5698, 40
    %v5859 = vpop.permute.xlu0 %5858
    %5860 = vrot.lane.b32.xlu0 %v5699, 40
    %v5861 = vpop.permute.xlu0 %5860
    %5862 = vrot.lane.b32.xlu0 %v5700, 40
    %v5863 = vpop.permute.xlu0 %5862
    %5864 = vrot.lane.b32.xlu0 %v5701, 40
    %v5865 = vpop.permute.xlu0 %5864
    %5866 = vrot.lane.b32.xlu0 %v5702, 40
    %v5867 = vpop.permute.xlu0 %5866
    %5868 = vrot.lane.b32.xlu0 %v5703, 40
    %v5869 = vpop.permute.xlu0 %5868
    %5870 = vrot.lane.b32.xlu0 %v5704, 40
    %v5871 = vpop.permute.xlu0 %5870
    %5872 = vrot.lane.b32.xlu0 %v5705, 40
    %v5873 = vpop.permute.xlu0 %5872
    %5874 = vrot.lane.b32.xlu0 %v5706, 40
    %v5875 = vpop.permute.xlu0 %5874
    %5876 = vrot.lane.b32.xlu0 %v5707, 40
    %v5877 = vpop.permute.xlu0 %5876
    %5878 = vrot.lane.b32.xlu0 %v5708, 40
    %v5879 = vpop.permute.xlu0 %5878
    %5880 = vrot.lane.b32.xlu0 %v5709, 40
    %v5881 = vpop.permute.xlu0 %5880
    %5882 = vrot.lane.b32.xlu0 %v5710, 40
    %v5883 = vpop.permute.xlu0 %5882
    %5884 = vrot.lane.b32.xlu0 %v5711, 40
    %v5885 = vpop.permute.xlu0 %5884
    %5886 = vrot.lane.b32.xlu0 %v5712, 40
    %v5887 = vpop.permute.xlu0 %5886
    %5888 = vrot.lane.b32.xlu0 %v5713, 40
    %v5889 = vpop.permute.xlu0 %5888
    %5890 = vrot.lane.b32.xlu0 %v5714, 40
    %v5891 = vpop.permute.xlu0 %5890
    %5892 = vrot.lane.b32.xlu0 %v5715, 40
    %v5893 = vpop.permute.xlu0 %5892
    %5894 = vrot.lane.b32.xlu0 %v5716, 40
    %v5895 = vpop.permute.xlu0 %5894
    %5896 = vrot.lane.b32.xlu0 %v5717, 40
    %v5897 = vpop.permute.xlu0 %5896
    %5898 = vrot.lane.b32.xlu0 %v5718, 40
    %v5899 = vpop.permute.xlu0 %5898
    %5900 = vrot.lane.b32.xlu0 %v5719, 40
    %v5901 = vpop.permute.xlu0 %5900
    %5902 = vrot.lane.b32.xlu0 %v5720, 40
    %v5903 = vpop.permute.xlu0 %5902
    %5904 = vrot.lane.b32.xlu0 %v5721, 40
    %v5905 = vpop.permute.xlu0 %5904
    %5906 = vrot.lane.b32.xlu0 %v5722, 40
    %v5907 = vpop.permute.xlu0 %5906
    %5908 = vrot.lane.b32.xlu0 %v5723, 40
    %v5909 = vpop.permute.xlu0 %5908
    %5910 = vrot.lane.b32.xlu0 %v5724, 40
    %v5911 = vpop.permute.xlu0 %5910
    %5912 = vrot.lane.b32.xlu0 %v5725, 40
    %v5913 = vpop.permute.xlu0 %5912
    %5914 = vrot.lane.b32.xlu0 %v5726, 40
    %v5915 = vpop.permute.xlu0 %5914
    %5916 = vrot.lane.b32.xlu0 %v5727, 40
    %v5917 = vpop.permute.xlu0 %5916
    %5918 = vrot.lane.b32.xlu0 %v5728, 40
    %v5919 = vpop.permute.xlu0 %5918
    %5920 = vrot.lane.b32.xlu0 %v5729, 40
    %v5921 = vpop.permute.xlu0 %5920
    %vm5986 = vcmask 392512
    %5987 = vst.msk [vmem:[#allocation3] sm:$0xff] %vm5986, %v5795
    %vm5988 = vcmask 391488
    %5989 = vst.msk [vmem:[#allocation3 + $0x8] sm:$0x7f] %vm5988, %v5797
    %5990 = vst.msk [vmem:[#allocation3 + $0x10] sm:$0xff] %vm5986, %v5799
    %5991 = vst.msk [vmem:[#allocation3 + $0x18] sm:$0x7f] %vm5988, %v5801
    %5992 = vst.msk [vmem:[#allocation3 + $0x20] sm:$0xff] %vm5986, %v5803
    %5993 = vst.msk [vmem:[#allocation3 + $0x28] sm:$0x7f] %vm5988, %v5805
    %5994 = vst.msk [vmem:[#allocation3 + $0x30] sm:$0xff] %vm5986, %v5807
    %5995 = vst.msk [vmem:[#allocation3 + $0x38] sm:$0x7f] %vm5988, %v5809
    %5996 = vst.msk [vmem:[#allocation3 + $0x40] sm:$0xff] %vm5986, %v5811
    %5997 = vst.msk [vmem:[#allocation3 + $0x48] sm:$0x7f] %vm5988, %v5813
    %5998 = vst.msk [vmem:[#allocation3 + $0x50] sm:$0xff] %vm5986, %v5815
    %5999 = vst.msk [vmem:[#allocation3 + $0x58] sm:$0x7f] %vm5988, %v5817
    %6000 = vst.msk [vmem:[#allocation3 + $0x60] sm:$0xff] %vm5986, %v5819
    %6001 = vst.msk [vmem:[#allocation3 + $0x68] sm:$0x7f] %vm5988, %v5821
    %6002 = vst.msk [vmem:[#allocation3 + $0x70] sm:$0xff] %vm5986, %v5823
    %6003 = vst.msk [vmem:[#allocation3 + $0x78] sm:$0x7f] %vm5988, %v5825
    %6004 = vst.msk [vmem:[#allocation3 + $0x80] sm:$0xff] %vm5986, %v5827
    %6005 = vst.msk [vmem:[#allocation3 + $0x88] sm:$0x7f] %vm5988, %v5829
    %6006 = vst.msk [vmem:[#allocation3 + $0x90] sm:$0xff] %vm5986, %v5831
    %6007 = vst.msk [vmem:[#allocation3 + $0x98] sm:$0x7f] %vm5988, %v5833
    %6008 = vst.msk [vmem:[#allocation3 + $0xa0] sm:$0xff] %vm5986, %v5835
    %6009 = vst.msk [vmem:[#allocation3 + $0xa8] sm:$0x7f] %vm5988, %v5837
    %6010 = vst.msk [vmem:[#allocation3 + $0xb0] sm:$0xff] %vm5986, %v5839
    %6011 = vst.msk [vmem:[#allocation3 + $0xb8] sm:$0x7f] %vm5988, %v5841
    %6012 = vst.msk [vmem:[#allocation3 + $0xc0] sm:$0xff] %vm5986, %v5843
    %6013 = vst.msk [vmem:[#allocation3 + $0xc8] sm:$0x7f] %vm5988, %v5845
    %6014 = vst.msk [vmem:[#allocation3 + $0xd0] sm:$0xff] %vm5986, %v5847
    %6015 = vst.msk [vmem:[#allocation3 + $0xd8] sm:$0x7f] %vm5988, %v5849
    %6016 = vst.msk [vmem:[#allocation3 + $0xe0] sm:$0xff] %vm5986, %v5851
    %6017 = vst.msk [vmem:[#allocation3 + $0xe8] sm:$0x7f] %vm5988, %v5853
    %6018 = vst.msk [vmem:[#allocation3 + $0xf0] sm:$0xff] %vm5986, %v5855
    %6019 = vst.msk [vmem:[#allocation3 + $0xf8] sm:$0x7f] %vm5988, %v5857
    %6020 = vst.msk [vmem:[#allocation3 + $0x100] sm:$0xff] %vm5986, %v5859
    %6021 = vst.msk [vmem:[#allocation3 + $0x108] sm:$0x7f] %vm5988, %v5861
    %6022 = vst.msk [vmem:[#allocation3 + $0x110] sm:$0xff] %vm5986, %v5863
    %6023 = vst.msk [vmem:[#allocation3 + $0x118] sm:$0x7f] %vm5988, %v5865
    %6024 = vst.msk [vmem:[#allocation3 + $0x120] sm:$0xff] %vm5986, %v5867
    %6025 = vst.msk [vmem:[#allocation3 + $0x128] sm:$0x7f] %vm5988, %v5869
    %6026 = vst.msk [vmem:[#allocation3 + $0x130] sm:$0xff] %vm5986, %v5871
    %6027 = vst.msk [vmem:[#allocation3 + $0x138] sm:$0x7f] %vm5988, %v5873
    %6028 = vst.msk [vmem:[#allocation3 + $0x140] sm:$0xff] %vm5986, %v5875
    %6029 = vst.msk [vmem:[#allocation3 + $0x148] sm:$0x7f] %vm5988, %v5877
    %6030 = vst.msk [vmem:[#allocation3 + $0x150] sm:$0xff] %vm5986, %v5879
    %6031 = vst.msk [vmem:[#allocation3 + $0x158] sm:$0x7f] %vm5988, %v5881
    %6032 = vst.msk [vmem:[#allocation3 + $0x160] sm:$0xff] %vm5986, %v5883
    %6033 = vst.msk [vmem:[#allocation3 + $0x168] sm:$0x7f] %vm5988, %v5885
    %6034 = vst.msk [vmem:[#allocation3 + $0x170] sm:$0xff] %vm5986, %v5887
    %6035 = vst.msk [vmem:[#allocation3 + $0x178] sm:$0x7f] %vm5988, %v5889
    %6036 = vst.msk [vmem:[#allocation3 + $0x180] sm:$0xff] %vm5986, %v5891
    %6037 = vst.msk [vmem:[#allocation3 + $0x188] sm:$0x7f] %vm5988, %v5893
    %6038 = vst.msk [vmem:[#allocation3 + $0x190] sm:$0xff] %vm5986, %v5895
    %6039 = vst.msk [vmem:[#allocation3 + $0x198] sm:$0x7f] %vm5988, %v5897
    %6040 = vst.msk [vmem:[#allocation3 + $0x1a0] sm:$0xff] %vm5986, %v5899
    %6041 = vst.msk [vmem:[#allocation3 + $0x1a8] sm:$0x7f] %vm5988, %v5901
    %6042 = vst.msk [vmem:[#allocation3 + $0x1b0] sm:$0xff] %vm5986, %v5903
    %6043 = vst.msk [vmem:[#allocation3 + $0x1b8] sm:$0x7f] %vm5988, %v5905
    %6044 = vst.msk [vmem:[#allocation3 + $0x1c0] sm:$0xff] %vm5986, %v5907
    %6045 = vst.msk [vmem:[#allocation3 + $0x1c8] sm:$0x7f] %vm5988, %v5909
    %6046 = vst.msk [vmem:[#allocation3 + $0x1d0] sm:$0xff] %vm5986, %v5911
    %6047 = vst.msk [vmem:[#allocation3 + $0x1d8] sm:$0x7f] %vm5988, %v5913
    %6048 = vst.msk [vmem:[#allocation3 + $0x1e0] sm:$0xff] %vm5986, %v5915
    %6049 = vst.msk [vmem:[#allocation3 + $0x1e8] sm:$0x7f] %vm5988, %v5917
    %6050 = vst.msk [vmem:[#allocation3 + $0x1f0] sm:$0xff] %vm5986, %v5919
    %6051 = vst.msk [vmem:[#allocation3 + $0x1f8] sm:$0x7f] %vm5988, %v5921
    %s6052 = scalar_lea.vmem [#allocation4], 16
    %v6053 = vld [vmem:[%s6052] sm:$0xff]
    %v6054 = vld [vmem:[%s6052 + $0x8] sm:$0x7f]
    %v6055 = vld [vmem:[%s6052 + $0x10] sm:$0xff]
    %v6056 = vld [vmem:[%s6052 + $0x18] sm:$0x7f]
    %v6057 = vld [vmem:[%s6052 + $0x20] sm:$0xff]
    %v6058 = vld [vmem:[%s6052 + $0x28] sm:$0x7f]
    %v6059 = vld [vmem:[%s6052 + $0x30] sm:$0xff]
    %v6060 = vld [vmem:[%s6052 + $0x38] sm:$0x7f]
    %v6061 = vld [vmem:[%s6052 + $0x40] sm:$0xff]
    %v6062 = vld [vmem:[%s6052 + $0x48] sm:$0x7f]
    %v6063 = vld [vmem:[%s6052 + $0x50] sm:$0xff]
    %v6064 = vld [vmem:[%s6052 + $0x58] sm:$0x7f]
    %v6065 = vld [vmem:[%s6052 + $0x60] sm:$0xff]
    %v6066 = vld [vmem:[%s6052 + $0x68] sm:$0x7f]
    %v6067 = vld [vmem:[%s6052 + $0x70] sm:$0xff]
    %v6068 = vld [vmem:[%s6052 + $0x78] sm:$0x7f]
    %v6069 = vld [vmem:[%s6052 + $0x80] sm:$0xff]
    %v6070 = vld [vmem:[%s6052 + $0x88] sm:$0x7f]
    %v6071 = vld [vmem:[%s6052 + $0x90] sm:$0xff]
    %v6072 = vld [vmem:[%s6052 + $0x98] sm:$0x7f]
    %v6073 = vld [vmem:[%s6052 + $0xa0] sm:$0xff]
    %v6074 = vld [vmem:[%s6052 + $0xa8] sm:$0x7f]
    %v6075 = vld [vmem:[%s6052 + $0xb0] sm:$0xff]
    %v6076 = vld [vmem:[%s6052 + $0xb8] sm:$0x7f]
    %v6077 = vld [vmem:[%s6052 + $0xc0] sm:$0xff]
    %v6078 = vld [vmem:[%s6052 + $0xc8] sm:$0x7f]
    %v6079 = vld [vmem:[%s6052 + $0xd0] sm:$0xff]
    %v6080 = vld [vmem:[%s6052 + $0xd8] sm:$0x7f]
    %v6081 = vld [vmem:[%s6052 + $0xe0] sm:$0xff]
    %v6082 = vld [vmem:[%s6052 + $0xe8] sm:$0x7f]
    %v6083 = vld [vmem:[%s6052 + $0x100] sm:$0xff]
    %v6084 = vld [vmem:[%s6052 + $0x108] sm:$0x7f]
    %v6085 = vld [vmem:[%s6052 + $0x110] sm:$0xff]
    %v6086 = vld [vmem:[%s6052 + $0x118] sm:$0x7f]
    %v6087 = vld [vmem:[%s6052 + $0x120] sm:$0xff]
    %v6088 = vld [vmem:[%s6052 + $0x128] sm:$0x7f]
    %v6089 = vld [vmem:[%s6052 + $0x130] sm:$0xff]
    %v6090 = vld [vmem:[%s6052 + $0x138] sm:$0x7f]
    %v6091 = vld [vmem:[%s6052 + $0x140] sm:$0xff]
    %v6092 = vld [vmem:[%s6052 + $0x148] sm:$0x7f]
    %v6093 = vld [vmem:[%s6052 + $0x150] sm:$0xff]
    %v6094 = vld [vmem:[%s6052 + $0x158] sm:$0x7f]
    %v6095 = vld [vmem:[%s6052 + $0x160] sm:$0xff]
    %v6096 = vld [vmem:[%s6052 + $0x168] sm:$0x7f]
    %v6097 = vld [vmem:[%s6052 + $0x170] sm:$0xff]
    %v6098 = vld [vmem:[%s6052 + $0x178] sm:$0x7f]
    %v6099 = vld [vmem:[%s6052 + $0x180] sm:$0xff]
    %v6100 = vld [vmem:[%s6052 + $0x188] sm:$0x7f]
    %v6101 = vld [vmem:[%s6052 + $0x190] sm:$0xff]
    %v6102 = vld [vmem:[%s6052 + $0x198] sm:$0x7f]
    %v6103 = vld [vmem:[%s6052 + $0x1a0] sm:$0xff]
    %v6104 = vld [vmem:[%s6052 + $0x1a8] sm:$0x7f]
    %v6105 = vld [vmem:[%s6052 + $0x1b0] sm:$0xff]
    %v6106 = vld [vmem:[%s6052 + $0x1b8] sm:$0x7f]
    %v6107 = vld [vmem:[%s6052 + $0x1c0] sm:$0xff]
    %v6108 = vld [vmem:[%s6052 + $0x1c8] sm:$0x7f]
    %v6109 = vld [vmem:[%s6052 + $0x1d0] sm:$0xff]
    %v6110 = vld [vmem:[%s6052 + $0x1d8] sm:$0x7f]
    %v6111 = vld [vmem:[%s6052 + $0x1e0] sm:$0xff]
    %v6112 = vld [vmem:[%s6052 + $0x1e8] sm:$0x7f]
    %6173 = vrot.lane.b32.xlu0 %v6053, 48
    %v6174 = vpop.permute.xlu0 %6173
    %6175 = vrot.lane.b32.xlu0 %v6054, 48
    %v6176 = vpop.permute.xlu0 %6175
    %6177 = vrot.lane.b32.xlu0 %v6055, 48
    %v6178 = vpop.permute.xlu0 %6177
    %6179 = vrot.lane.b32.xlu0 %v6056, 48
    %v6180 = vpop.permute.xlu0 %6179
    %6181 = vrot.lane.b32.xlu0 %v6057, 48
    %v6182 = vpop.permute.xlu0 %6181
    %6183 = vrot.lane.b32.xlu0 %v6058, 48
    %v6184 = vpop.permute.xlu0 %6183
    %6185 = vrot.lane.b32.xlu0 %v6059, 48
    %v6186 = vpop.permute.xlu0 %6185
    %6187 = vrot.lane.b32.xlu0 %v6060, 48
    %v6188 = vpop.permute.xlu0 %6187
    %6189 = vrot.lane.b32.xlu0 %v6061, 48
    %v6190 = vpop.permute.xlu0 %6189
    %6191 = vrot.lane.b32.xlu0 %v6062, 48
    %v6192 = vpop.permute.xlu0 %6191
    %6193 = vrot.lane.b32.xlu0 %v6063, 48
    %v6194 = vpop.permute.xlu0 %6193
    %6195 = vrot.lane.b32.xlu0 %v6064, 48
    %v6196 = vpop.permute.xlu0 %6195
    %6197 = vrot.lane.b32.xlu0 %v6065, 48
    %v6198 = vpop.permute.xlu0 %6197
    %6199 = vrot.lane.b32.xlu0 %v6066, 48
    %v6200 = vpop.permute.xlu0 %6199
    %6201 = vrot.lane.b32.xlu0 %v6067, 48
    %v6202 = vpop.permute.xlu0 %6201
    %6203 = vrot.lane.b32.xlu0 %v6068, 48
    %v6204 = vpop.permute.xlu0 %6203
    %6205 = vrot.lane.b32.xlu0 %v6069, 48
    %v6206 = vpop.permute.xlu0 %6205
    %6207 = vrot.lane.b32.xlu0 %v6070, 48
    %v6208 = vpop.permute.xlu0 %6207
    %6209 = vrot.lane.b32.xlu0 %v6071, 48
    %v6210 = vpop.permute.xlu0 %6209
    %6211 = vrot.lane.b32.xlu0 %v6072, 48
    %v6212 = vpop.permute.xlu0 %6211
    %6213 = vrot.lane.b32.xlu0 %v6073, 48
    %v6214 = vpop.permute.xlu0 %6213
    %6215 = vrot.lane.b32.xlu0 %v6074, 48
    %v6216 = vpop.permute.xlu0 %6215
    %6217 = vrot.lane.b32.xlu0 %v6075, 48
    %v6218 = vpop.permute.xlu0 %6217
    %6219 = vrot.lane.b32.xlu0 %v6076, 48
    %v6220 = vpop.permute.xlu0 %6219
    %6221 = vrot.lane.b32.xlu0 %v6077, 48
    %v6222 = vpop.permute.xlu0 %6221
    %6223 = vrot.lane.b32.xlu0 %v6078, 48
    %v6224 = vpop.permute.xlu0 %6223
    %6225 = vrot.lane.b32.xlu0 %v6079, 48
    %v6226 = vpop.permute.xlu0 %6225
    %6227 = vrot.lane.b32.xlu0 %v6080, 48
    %v6228 = vpop.permute.xlu0 %6227
    %6229 = vrot.lane.b32.xlu0 %v6081, 48
    %v6230 = vpop.permute.xlu0 %6229
    %6231 = vrot.lane.b32.xlu0 %v6082, 48
    %v6232 = vpop.permute.xlu0 %6231
    %6233 = vrot.lane.b32.xlu0 %v6083, 48
    %v6234 = vpop.permute.xlu0 %6233
    %6235 = vrot.lane.b32.xlu0 %v6084, 48
    %v6236 = vpop.permute.xlu0 %6235
    %6237 = vrot.lane.b32.xlu0 %v6085, 48
    %v6238 = vpop.permute.xlu0 %6237
    %6239 = vrot.lane.b32.xlu0 %v6086, 48
    %v6240 = vpop.permute.xlu0 %6239
    %6241 = vrot.lane.b32.xlu0 %v6087, 48
    %v6242 = vpop.permute.xlu0 %6241
    %6243 = vrot.lane.b32.xlu0 %v6088, 48
    %v6244 = vpop.permute.xlu0 %6243
    %6245 = vrot.lane.b32.xlu0 %v6089, 48
    %v6246 = vpop.permute.xlu0 %6245
    %6247 = vrot.lane.b32.xlu0 %v6090, 48
    %v6248 = vpop.permute.xlu0 %6247
    %6249 = vrot.lane.b32.xlu0 %v6091, 48
    %v6250 = vpop.permute.xlu0 %6249
    %6251 = vrot.lane.b32.xlu0 %v6092, 48
    %v6252 = vpop.permute.xlu0 %6251
    %6253 = vrot.lane.b32.xlu0 %v6093, 48
    %v6254 = vpop.permute.xlu0 %6253
    %6255 = vrot.lane.b32.xlu0 %v6094, 48
    %v6256 = vpop.permute.xlu0 %6255
    %6257 = vrot.lane.b32.xlu0 %v6095, 48
    %v6258 = vpop.permute.xlu0 %6257
    %6259 = vrot.lane.b32.xlu0 %v6096, 48
    %v6260 = vpop.permute.xlu0 %6259
    %6261 = vrot.lane.b32.xlu0 %v6097, 48
    %v6262 = vpop.permute.xlu0 %6261
    %6263 = vrot.lane.b32.xlu0 %v6098, 48
    %v6264 = vpop.permute.xlu0 %6263
    %6265 = vrot.lane.b32.xlu0 %v6099, 48
    %v6266 = vpop.permute.xlu0 %6265
    %6267 = vrot.lane.b32.xlu0 %v6100, 48
    %v6268 = vpop.permute.xlu0 %6267
    %6269 = vrot.lane.b32.xlu0 %v6101, 48
    %v6270 = vpop.permute.xlu0 %6269
    %6271 = vrot.lane.b32.xlu0 %v6102, 48
    %v6272 = vpop.permute.xlu0 %6271
    %6273 = vrot.lane.b32.xlu0 %v6103, 48
    %v6274 = vpop.permute.xlu0 %6273
    %6275 = vrot.lane.b32.xlu0 %v6104, 48
    %v6276 = vpop.permute.xlu0 %6275
    %6277 = vrot.lane.b32.xlu0 %v6105, 48
    %v6278 = vpop.permute.xlu0 %6277
    %6279 = vrot.lane.b32.xlu0 %v6106, 48
    %v6280 = vpop.permute.xlu0 %6279
    %6281 = vrot.lane.b32.xlu0 %v6107, 48
    %v6282 = vpop.permute.xlu0 %6281
    %6283 = vrot.lane.b32.xlu0 %v6108, 48
    %v6284 = vpop.permute.xlu0 %6283
    %6285 = vrot.lane.b32.xlu0 %v6109, 48
    %v6286 = vpop.permute.xlu0 %6285
    %6287 = vrot.lane.b32.xlu0 %v6110, 48
    %v6288 = vpop.permute.xlu0 %6287
    %6289 = vrot.lane.b32.xlu0 %v6111, 48
    %v6290 = vpop.permute.xlu0 %6289
    %6291 = vrot.lane.b32.xlu0 %v6112, 48
    %v6292 = vpop.permute.xlu0 %6291
    %vm6353 = vcmask 458112
    %6354 = vst.msk [vmem:[#allocation3 + $0x1] sm:$0xff] %vm6353, %v6174
    %vm6355 = vcmask 457088
    %6356 = vst.msk [vmem:[#allocation3 + $0x9] sm:$0x7f] %vm6355, %v6176
    %6357 = vst.msk [vmem:[#allocation3 + $0x11] sm:$0xff] %vm6353, %v6178
    %6358 = vst.msk [vmem:[#allocation3 + $0x19] sm:$0x7f] %vm6355, %v6180
    %6359 = vst.msk [vmem:[#allocation3 + $0x21] sm:$0xff] %vm6353, %v6182
    %6360 = vst.msk [vmem:[#allocation3 + $0x29] sm:$0x7f] %vm6355, %v6184
    %6361 = vst.msk [vmem:[#allocation3 + $0x31] sm:$0xff] %vm6353, %v6186
    %6362 = vst.msk [vmem:[#allocation3 + $0x39] sm:$0x7f] %vm6355, %v6188
    %6363 = vst.msk [vmem:[#allocation3 + $0x41] sm:$0xff] %vm6353, %v6190
    %6364 = vst.msk [vmem:[#allocation3 + $0x49] sm:$0x7f] %vm6355, %v6192
    %6365 = vst.msk [vmem:[#allocation3 + $0x51] sm:$0xff] %vm6353, %v6194
    %6366 = vst.msk [vmem:[#allocation3 + $0x59] sm:$0x7f] %vm6355, %v6196
    %6367 = vst.msk [vmem:[#allocation3 + $0x61] sm:$0xff] %vm6353, %v6198
    %6368 = vst.msk [vmem:[#allocation3 + $0x69] sm:$0x7f] %vm6355, %v6200
    %6369 = vst.msk [vmem:[#allocation3 + $0x71] sm:$0xff] %vm6353, %v6202
    %6370 = vst.msk [vmem:[#allocation3 + $0x79] sm:$0x7f] %vm6355, %v6204
    %6371 = vst.msk [vmem:[#allocation3 + $0x81] sm:$0xff] %vm6353, %v6206
    %6372 = vst.msk [vmem:[#allocation3 + $0x89] sm:$0x7f] %vm6355, %v6208
    %6373 = vst.msk [vmem:[#allocation3 + $0x91] sm:$0xff] %vm6353, %v6210
    %6374 = vst.msk [vmem:[#allocation3 + $0x99] sm:$0x7f] %vm6355, %v6212
    %6375 = vst.msk [vmem:[#allocation3 + $0xa1] sm:$0xff] %vm6353, %v6214
    %6376 = vst.msk [vmem:[#allocation3 + $0xa9] sm:$0x7f] %vm6355, %v6216
    %6377 = vst.msk [vmem:[#allocation3 + $0xb1] sm:$0xff] %vm6353, %v6218
    %6378 = vst.msk [vmem:[#allocation3 + $0xb9] sm:$0x7f] %vm6355, %v6220
    %6379 = vst.msk [vmem:[#allocation3 + $0xc1] sm:$0xff] %vm6353, %v6222
    %6380 = vst.msk [vmem:[#allocation3 + $0xc9] sm:$0x7f] %vm6355, %v6224
    %6381 = vst.msk [vmem:[#allocation3 + $0xd1] sm:$0xff] %vm6353, %v6226
    %6382 = vst.msk [vmem:[#allocation3 + $0xd9] sm:$0x7f] %vm6355, %v6228
    %6383 = vst.msk [vmem:[#allocation3 + $0xe1] sm:$0xff] %vm6353, %v6230
    %6384 = vst.msk [vmem:[#allocation3 + $0xe9] sm:$0x7f] %vm6355, %v6232
    %6385 = vst.msk [vmem:[#allocation3 + $0x101] sm:$0xff] %vm6353, %v6234
    %6386 = vst.msk [vmem:[#allocation3 + $0x109] sm:$0x7f] %vm6355, %v6236
    %6387 = vst.msk [vmem:[#allocation3 + $0x111] sm:$0xff] %vm6353, %v6238
    %6388 = vst.msk [vmem:[#allocation3 + $0x119] sm:$0x7f] %vm6355, %v6240
    %6389 = vst.msk [vmem:[#allocation3 + $0x121] sm:$0xff] %vm6353, %v6242
    %6390 = vst.msk [vmem:[#allocation3 + $0x129] sm:$0x7f] %vm6355, %v6244
    %6391 = vst.msk [vmem:[#allocation3 + $0x131] sm:$0xff] %vm6353, %v6246
    %6392 = vst.msk [vmem:[#allocation3 + $0x139] sm:$0x7f] %vm6355, %v6248
    %6393 = vst.msk [vmem:[#allocation3 + $0x141] sm:$0xff] %vm6353, %v6250
    %6394 = vst.msk [vmem:[#allocation3 + $0x149] sm:$0x7f] %vm6355, %v6252
    %6395 = vst.msk [vmem:[#allocation3 + $0x151] sm:$0xff] %vm6353, %v6254
    %6396 = vst.msk [vmem:[#allocation3 + $0x159] sm:$0x7f] %vm6355, %v6256
    %6397 = vst.msk [vmem:[#allocation3 + $0x161] sm:$0xff] %vm6353, %v6258
    %6398 = vst.msk [vmem:[#allocation3 + $0x169] sm:$0x7f] %vm6355, %v6260
    %6399 = vst.msk [vmem:[#allocation3 + $0x171] sm:$0xff] %vm6353, %v6262
    %6400 = vst.msk [vmem:[#allocation3 + $0x179] sm:$0x7f] %vm6355, %v6264
    %6401 = vst.msk [vmem:[#allocation3 + $0x181] sm:$0xff] %vm6353, %v6266
    %6402 = vst.msk [vmem:[#allocation3 + $0x189] sm:$0x7f] %vm6355, %v6268
    %6403 = vst.msk [vmem:[#allocation3 + $0x191] sm:$0xff] %vm6353, %v6270
    %6404 = vst.msk [vmem:[#allocation3 + $0x199] sm:$0x7f] %vm6355, %v6272
    %6405 = vst.msk [vmem:[#allocation3 + $0x1a1] sm:$0xff] %vm6353, %v6274
    %6406 = vst.msk [vmem:[#allocation3 + $0x1a9] sm:$0x7f] %vm6355, %v6276
    %6407 = vst.msk [vmem:[#allocation3 + $0x1b1] sm:$0xff] %vm6353, %v6278
    %6408 = vst.msk [vmem:[#allocation3 + $0x1b9] sm:$0x7f] %vm6355, %v6280
    %6409 = vst.msk [vmem:[#allocation3 + $0x1c1] sm:$0xff] %vm6353, %v6282
    %6410 = vst.msk [vmem:[#allocation3 + $0x1c9] sm:$0x7f] %vm6355, %v6284
    %6411 = vst.msk [vmem:[#allocation3 + $0x1d1] sm:$0xff] %vm6353, %v6286
    %6412 = vst.msk [vmem:[#allocation3 + $0x1d9] sm:$0x7f] %vm6355, %v6288
    %6413 = vst.msk [vmem:[#allocation3 + $0x1e1] sm:$0xff] %vm6353, %v6290
    %6414 = vst.msk [vmem:[#allocation3 + $0x1e9] sm:$0x7f] %vm6355, %v6292
    %v6415 = vld [vmem:[%s6052] sm:$0xff]
    %v6416 = vld [vmem:[%s6052 + $0x8] sm:$0xff]
    %v6417 = vld [vmem:[%s6052 + $0x10] sm:$0xff]
    %v6418 = vld [vmem:[%s6052 + $0x18] sm:$0xff]
    %v6419 = vld [vmem:[%s6052 + $0x20] sm:$0xff]
    %v6420 = vld [vmem:[%s6052 + $0x28] sm:$0xff]
    %v6421 = vld [vmem:[%s6052 + $0x30] sm:$0xff]
    %v6422 = vld [vmem:[%s6052 + $0x38] sm:$0xff]
    %v6423 = vld [vmem:[%s6052 + $0x40] sm:$0xff]
    %v6424 = vld [vmem:[%s6052 + $0x48] sm:$0xff]
    %v6425 = vld [vmem:[%s6052 + $0x50] sm:$0xff]
    %v6426 = vld [vmem:[%s6052 + $0x58] sm:$0xff]
    %v6427 = vld [vmem:[%s6052 + $0x60] sm:$0xff]
    %v6428 = vld [vmem:[%s6052 + $0x68] sm:$0xff]
    %v6429 = vld [vmem:[%s6052 + $0x70] sm:$0xff]
    %v6430 = vld [vmem:[%s6052 + $0x78] sm:$0xff]
    %v6431 = vld [vmem:[%s6052 + $0x80] sm:$0xff]
    %v6432 = vld [vmem:[%s6052 + $0x88] sm:$0xff]
    %v6433 = vld [vmem:[%s6052 + $0x90] sm:$0xff]
    %v6434 = vld [vmem:[%s6052 + $0x98] sm:$0xff]
    %v6435 = vld [vmem:[%s6052 + $0xa0] sm:$0xff]
    %v6436 = vld [vmem:[%s6052 + $0xa8] sm:$0xff]
    %v6437 = vld [vmem:[%s6052 + $0xb0] sm:$0xff]
    %v6438 = vld [vmem:[%s6052 + $0xb8] sm:$0xff]
    %v6439 = vld [vmem:[%s6052 + $0xc0] sm:$0xff]
    %v6440 = vld [vmem:[%s6052 + $0xc8] sm:$0xff]
    %v6441 = vld [vmem:[%s6052 + $0xd0] sm:$0xff]
    %v6442 = vld [vmem:[%s6052 + $0xd8] sm:$0xff]
    %v6443 = vld [vmem:[%s6052 + $0xe0] sm:$0xff]
    %v6444 = vld [vmem:[%s6052 + $0xe8] sm:$0xff]
    %v6445 = vld [vmem:[%s6052 + $0x100] sm:$0xff]
    %v6446 = vld [vmem:[%s6052 + $0x108] sm:$0xff]
    %v6447 = vld [vmem:[%s6052 + $0x110] sm:$0xff]
    %v6448 = vld [vmem:[%s6052 + $0x118] sm:$0xff]
    %v6449 = vld [vmem:[%s6052 + $0x120] sm:$0xff]
    %v6450 = vld [vmem:[%s6052 + $0x128] sm:$0xff]
    %v6451 = vld [vmem:[%s6052 + $0x130] sm:$0xff]
    %v6452 = vld [vmem:[%s6052 + $0x138] sm:$0xff]
    %v6453 = vld [vmem:[%s6052 + $0x140] sm:$0xff]
    %v6454 = vld [vmem:[%s6052 + $0x148] sm:$0xff]
    %v6455 = vld [vmem:[%s6052 + $0x150] sm:$0xff]
    %v6456 = vld [vmem:[%s6052 + $0x158] sm:$0xff]
    %v6457 = vld [vmem:[%s6052 + $0x160] sm:$0xff]
    %v6458 = vld [vmem:[%s6052 + $0x168] sm:$0xff]
    %v6459 = vld [vmem:[%s6052 + $0x170] sm:$0xff]
    %v6460 = vld [vmem:[%s6052 + $0x178] sm:$0xff]
    %v6461 = vld [vmem:[%s6052 + $0x180] sm:$0xff]
    %v6462 = vld [vmem:[%s6052 + $0x188] sm:$0xff]
    %v6463 = vld [vmem:[%s6052 + $0x190] sm:$0xff]
    %v6464 = vld [vmem:[%s6052 + $0x198] sm:$0xff]
    %v6465 = vld [vmem:[%s6052 + $0x1a0] sm:$0xff]
    %v6466 = vld [vmem:[%s6052 + $0x1a8] sm:$0xff]
    %v6467 = vld [vmem:[%s6052 + $0x1b0] sm:$0xff]
    %v6468 = vld [vmem:[%s6052 + $0x1b8] sm:$0xff]
    %v6469 = vld [vmem:[%s6052 + $0x1c0] sm:$0xff]
    %v6470 = vld [vmem:[%s6052 + $0x1c8] sm:$0xff]
    %v6471 = vld [vmem:[%s6052 + $0x1d0] sm:$0xff]
    %v6472 = vld [vmem:[%s6052 + $0x1d8] sm:$0xff]
    %v6473 = vld [vmem:[%s6052 + $0x1e0] sm:$0xff]
    %v6474 = vld [vmem:[%s6052 + $0x1e8] sm:$0xff]
    %6535 = vrot.lane.b32.xlu0 %v6415, 56
    %v6536 = vpop.permute.xlu0 %6535
    %6537 = vrot.lane.b32.xlu0 %v6416, 56
    %v6538 = vpop.permute.xlu0 %6537
    %6539 = vrot.lane.b32.xlu0 %v6417, 56
    %v6540 = vpop.permute.xlu0 %6539
    %6541 = vrot.lane.b32.xlu0 %v6418, 56
    %v6542 = vpop.permute.xlu0 %6541
    %6543 = vrot.lane.b32.xlu0 %v6419, 56
    %v6544 = vpop.permute.xlu0 %6543
    %6545 = vrot.lane.b32.xlu0 %v6420, 56
    %v6546 = vpop.permute.xlu0 %6545
    %6547 = vrot.lane.b32.xlu0 %v6421, 56
    %v6548 = vpop.permute.xlu0 %6547
    %6549 = vrot.lane.b32.xlu0 %v6422, 56
    %v6550 = vpop.permute.xlu0 %6549
    %6551 = vrot.lane.b32.xlu0 %v6423, 56
    %v6552 = vpop.permute.xlu0 %6551
    %6553 = vrot.lane.b32.xlu0 %v6424, 56
    %v6554 = vpop.permute.xlu0 %6553
    %6555 = vrot.lane.b32.xlu0 %v6425, 56
    %v6556 = vpop.permute.xlu0 %6555
    %6557 = vrot.lane.b32.xlu0 %v6426, 56
    %v6558 = vpop.permute.xlu0 %6557
    %6559 = vrot.lane.b32.xlu0 %v6427, 56
    %v6560 = vpop.permute.xlu0 %6559
    %6561 = vrot.lane.b32.xlu0 %v6428, 56
    %v6562 = vpop.permute.xlu0 %6561
    %6563 = vrot.lane.b32.xlu0 %v6429, 56
    %v6564 = vpop.permute.xlu0 %6563
    %6565 = vrot.lane.b32.xlu0 %v6430, 56
    %v6566 = vpop.permute.xlu0 %6565
    %6567 = vrot.lane.b32.xlu0 %v6431, 56
    %v6568 = vpop.permute.xlu0 %6567
    %6569 = vrot.lane.b32.xlu0 %v6432, 56
    %v6570 = vpop.permute.xlu0 %6569
    %6571 = vrot.lane.b32.xlu0 %v6433, 56
    %v6572 = vpop.permute.xlu0 %6571
    %6573 = vrot.lane.b32.xlu0 %v6434, 56
    %v6574 = vpop.permute.xlu0 %6573
    %6575 = vrot.lane.b32.xlu0 %v6435, 56
    %v6576 = vpop.permute.xlu0 %6575
    %6577 = vrot.lane.b32.xlu0 %v6436, 56
    %v6578 = vpop.permute.xlu0 %6577
    %6579 = vrot.lane.b32.xlu0 %v6437, 56
    %v6580 = vpop.permute.xlu0 %6579
    %6581 = vrot.lane.b32.xlu0 %v6438, 56
    %v6582 = vpop.permute.xlu0 %6581
    %6583 = vrot.lane.b32.xlu0 %v6439, 56
    %v6584 = vpop.permute.xlu0 %6583
    %6585 = vrot.lane.b32.xlu0 %v6440, 56
    %v6586 = vpop.permute.xlu0 %6585
    %6587 = vrot.lane.b32.xlu0 %v6441, 56
    %v6588 = vpop.permute.xlu0 %6587
    %6589 = vrot.lane.b32.xlu0 %v6442, 56
    %v6590 = vpop.permute.xlu0 %6589
    %6591 = vrot.lane.b32.xlu0 %v6443, 56
    %v6592 = vpop.permute.xlu0 %6591
    %6593 = vrot.lane.b32.xlu0 %v6444, 56
    %v6594 = vpop.permute.xlu0 %6593
    %6595 = vrot.lane.b32.xlu0 %v6445, 56
    %v6596 = vpop.permute.xlu0 %6595
    %6597 = vrot.lane.b32.xlu0 %v6446, 56
    %v6598 = vpop.permute.xlu0 %6597
    %6599 = vrot.lane.b32.xlu0 %v6447, 56
    %v6600 = vpop.permute.xlu0 %6599
    %6601 = vrot.lane.b32.xlu0 %v6448, 56
    %v6602 = vpop.permute.xlu0 %6601
    %6603 = vrot.lane.b32.xlu0 %v6449, 56
    %v6604 = vpop.permute.xlu0 %6603
    %6605 = vrot.lane.b32.xlu0 %v6450, 56
    %v6606 = vpop.permute.xlu0 %6605
    %6607 = vrot.lane.b32.xlu0 %v6451, 56
    %v6608 = vpop.permute.xlu0 %6607
    %6609 = vrot.lane.b32.xlu0 %v6452, 56
    %v6610 = vpop.permute.xlu0 %6609
    %6611 = vrot.lane.b32.xlu0 %v6453, 56
    %v6612 = vpop.permute.xlu0 %6611
    %6613 = vrot.lane.b32.xlu0 %v6454, 56
    %v6614 = vpop.permute.xlu0 %6613
    %6615 = vrot.lane.b32.xlu0 %v6455, 56
    %v6616 = vpop.permute.xlu0 %6615
    %6617 = vrot.lane.b32.xlu0 %v6456, 56
    %v6618 = vpop.permute.xlu0 %6617
    %6619 = vrot.lane.b32.xlu0 %v6457, 56
    %v6620 = vpop.permute.xlu0 %6619
    %6621 = vrot.lane.b32.xlu0 %v6458, 56
    %v6622 = vpop.permute.xlu0 %6621
    %6623 = vrot.lane.b32.xlu0 %v6459, 56
    %v6624 = vpop.permute.xlu0 %6623
    %6625 = vrot.lane.b32.xlu0 %v6460, 56
    %v6626 = vpop.permute.xlu0 %6625
    %6627 = vrot.lane.b32.xlu0 %v6461, 56
    %v6628 = vpop.permute.xlu0 %6627
    %6629 = vrot.lane.b32.xlu0 %v6462, 56
    %v6630 = vpop.permute.xlu0 %6629
    %6631 = vrot.lane.b32.xlu0 %v6463, 56
    %v6632 = vpop.permute.xlu0 %6631
    %6633 = vrot.lane.b32.xlu0 %v6464, 56
    %v6634 = vpop.permute.xlu0 %6633
    %6635 = vrot.lane.b32.xlu0 %v6465, 56
    %v6636 = vpop.permute.xlu0 %6635
    %6637 = vrot.lane.b32.xlu0 %v6466, 56
    %v6638 = vpop.permute.xlu0 %6637
    %6639 = vrot.lane.b32.xlu0 %v6467, 56
    %v6640 = vpop.permute.xlu0 %6639
    %6641 = vrot.lane.b32.xlu0 %v6468, 56
    %v6642 = vpop.permute.xlu0 %6641
    %6643 = vrot.lane.b32.xlu0 %v6469, 56
    %v6644 = vpop.permute.xlu0 %6643
    %6645 = vrot.lane.b32.xlu0 %v6470, 56
    %v6646 = vpop.permute.xlu0 %6645
    %6647 = vrot.lane.b32.xlu0 %v6471, 56
    %v6648 = vpop.permute.xlu0 %6647
    %6649 = vrot.lane.b32.xlu0 %v6472, 56
    %v6650 = vpop.permute.xlu0 %6649
    %6651 = vrot.lane.b32.xlu0 %v6473, 56
    %v6652 = vpop.permute.xlu0 %6651
    %6653 = vrot.lane.b32.xlu0 %v6474, 56
    %v6654 = vpop.permute.xlu0 %6653
    %vm6715 = vcmask 523712
    %6716 = vst.msk [vmem:[#allocation3] sm:$0xff] %vm6715, %v6536
    %6717 = vst.msk [vmem:[#allocation3 + $0x8] sm:$0xff] %vm6715, %v6538
    %6718 = vst.msk [vmem:[#allocation3 + $0x10] sm:$0xff] %vm6715, %v6540
    %6719 = vst.msk [vmem:[#allocation3 + $0x18] sm:$0xff] %vm6715, %v6542
    %6720 = vst.msk [vmem:[#allocation3 + $0x20] sm:$0xff] %vm6715, %v6544
    %6721 = vst.msk [vmem:[#allocation3 + $0x28] sm:$0xff] %vm6715, %v6546
    %6722 = vst.msk [vmem:[#allocation3 + $0x30] sm:$0xff] %vm6715, %v6548
    %6723 = vst.msk [vmem:[#allocation3 + $0x38] sm:$0xff] %vm6715, %v6550
    %6724 = vst.msk [vmem:[#allocation3 + $0x40] sm:$0xff] %vm6715, %v6552
    %6725 = vst.msk [vmem:[#allocation3 + $0x48] sm:$0xff] %vm6715, %v6554
    %6726 = vst.msk [vmem:[#allocation3 + $0x50] sm:$0xff] %vm6715, %v6556
    %6727 = vst.msk [vmem:[#allocation3 + $0x58] sm:$0xff] %vm6715, %v6558
    %6728 = vst.msk [vmem:[#allocation3 + $0x60] sm:$0xff] %vm6715, %v6560
    %6729 = vst.msk [vmem:[#allocation3 + $0x68] sm:$0xff] %vm6715, %v6562
    %6730 = vst.msk [vmem:[#allocation3 + $0x70] sm:$0xff] %vm6715, %v6564
    %6731 = vst.msk [vmem:[#allocation3 + $0x78] sm:$0xff] %vm6715, %v6566
    %6732 = vst.msk [vmem:[#allocation3 + $0x80] sm:$0xff] %vm6715, %v6568
    %6733 = vst.msk [vmem:[#allocation3 + $0x88] sm:$0xff] %vm6715, %v6570
    %6734 = vst.msk [vmem:[#allocation3 + $0x90] sm:$0xff] %vm6715, %v6572
    %6735 = vst.msk [vmem:[#allocation3 + $0x98] sm:$0xff] %vm6715, %v6574
    %6736 = vst.msk [vmem:[#allocation3 + $0xa0] sm:$0xff] %vm6715, %v6576
    %6737 = vst.msk [vmem:[#allocation3 + $0xa8] sm:$0xff] %vm6715, %v6578
    %6738 = vst.msk [vmem:[#allocation3 + $0xb0] sm:$0xff] %vm6715, %v6580
    %6739 = vst.msk [vmem:[#allocation3 + $0xb8] sm:$0xff] %vm6715, %v6582
    %6740 = vst.msk [vmem:[#allocation3 + $0xc0] sm:$0xff] %vm6715, %v6584
    %6741 = vst.msk [vmem:[#allocation3 + $0xc8] sm:$0xff] %vm6715, %v6586
    %6742 = vst.msk [vmem:[#allocation3 + $0xd0] sm:$0xff] %vm6715, %v6588
    %6743 = vst.msk [vmem:[#allocation3 + $0xd8] sm:$0xff] %vm6715, %v6590
    %6744 = vst.msk [vmem:[#allocation3 + $0xe0] sm:$0xff] %vm6715, %v6592
    %6745 = vst.msk [vmem:[#allocation3 + $0xe8] sm:$0xff] %vm6715, %v6594
    %6746 = vst.msk [vmem:[#allocation3 + $0x100] sm:$0xff] %vm6715, %v6596
    %6747 = vst.msk [vmem:[#allocation3 + $0x108] sm:$0xff] %vm6715, %v6598
    %6748 = vst.msk [vmem:[#allocation3 + $0x110] sm:$0xff] %vm6715, %v6600
    %6749 = vst.msk [vmem:[#allocation3 + $0x118] sm:$0xff] %vm6715, %v6602
    %6750 = vst.msk [vmem:[#allocation3 + $0x120] sm:$0xff] %vm6715, %v6604
    %6751 = vst.msk [vmem:[#allocation3 + $0x128] sm:$0xff] %vm6715, %v6606
    %6752 = vst.msk [vmem:[#allocation3 + $0x130] sm:$0xff] %vm6715, %v6608
    %6753 = vst.msk [vmem:[#allocation3 + $0x138] sm:$0xff] %vm6715, %v6610
    %6754 = vst.msk [vmem:[#allocation3 + $0x140] sm:$0xff] %vm6715, %v6612
    %6755 = vst.msk [vmem:[#allocation3 + $0x148] sm:$0xff] %vm6715, %v6614
    %6756 = vst.msk [vmem:[#allocation3 + $0x150] sm:$0xff] %vm6715, %v6616
    %6757 = vst.msk [vmem:[#allocation3 + $0x158] sm:$0xff] %vm6715, %v6618
    %6758 = vst.msk [vmem:[#allocation3 + $0x160] sm:$0xff] %vm6715, %v6620
    %6759 = vst.msk [vmem:[#allocation3 + $0x168] sm:$0xff] %vm6715, %v6622
    %6760 = vst.msk [vmem:[#allocation3 + $0x170] sm:$0xff] %vm6715, %v6624
    %6761 = vst.msk [vmem:[#allocation3 + $0x178] sm:$0xff] %vm6715, %v6626
    %6762 = vst.msk [vmem:[#allocation3 + $0x180] sm:$0xff] %vm6715, %v6628
    %6763 = vst.msk [vmem:[#allocation3 + $0x188] sm:$0xff] %vm6715, %v6630
    %6764 = vst.msk [vmem:[#allocation3 + $0x190] sm:$0xff] %vm6715, %v6632
    %6765 = vst.msk [vmem:[#allocation3 + $0x198] sm:$0xff] %vm6715, %v6634
    %6766 = vst.msk [vmem:[#allocation3 + $0x1a0] sm:$0xff] %vm6715, %v6636
    %6767 = vst.msk [vmem:[#allocation3 + $0x1a8] sm:$0xff] %vm6715, %v6638
    %6768 = vst.msk [vmem:[#allocation3 + $0x1b0] sm:$0xff] %vm6715, %v6640
    %6769 = vst.msk [vmem:[#allocation3 + $0x1b8] sm:$0xff] %vm6715, %v6642
    %6770 = vst.msk [vmem:[#allocation3 + $0x1c0] sm:$0xff] %vm6715, %v6644
    %6771 = vst.msk [vmem:[#allocation3 + $0x1c8] sm:$0xff] %vm6715, %v6646
    %6772 = vst.msk [vmem:[#allocation3 + $0x1d0] sm:$0xff] %vm6715, %v6648
    %6773 = vst.msk [vmem:[#allocation3 + $0x1d8] sm:$0xff] %vm6715, %v6650
    %6774 = vst.msk [vmem:[#allocation3 + $0x1e0] sm:$0xff] %vm6715, %v6652
    %6775 = vst.msk [vmem:[#allocation3 + $0x1e8] sm:$0xff] %vm6715, %v6654
    %v6776 = vld [vmem:[%s6052 + $0x1] sm:$0xff]
    %v6777 = vld [vmem:[%s6052 + $0x9] sm:$0x7f]
    %v6778 = vld [vmem:[%s6052 + $0x11] sm:$0xff]
    %v6779 = vld [vmem:[%s6052 + $0x19] sm:$0x7f]
    %v6780 = vld [vmem:[%s6052 + $0x21] sm:$0xff]
    %v6781 = vld [vmem:[%s6052 + $0x29] sm:$0x7f]
    %v6782 = vld [vmem:[%s6052 + $0x31] sm:$0xff]
    %v6783 = vld [vmem:[%s6052 + $0x39] sm:$0x7f]
    %v6784 = vld [vmem:[%s6052 + $0x41] sm:$0xff]
    %v6785 = vld [vmem:[%s6052 + $0x49] sm:$0x7f]
    %v6786 = vld [vmem:[%s6052 + $0x51] sm:$0xff]
    %v6787 = vld [vmem:[%s6052 + $0x59] sm:$0x7f]
    %v6788 = vld [vmem:[%s6052 + $0x61] sm:$0xff]
    %v6789 = vld [vmem:[%s6052 + $0x69] sm:$0x7f]
    %v6790 = vld [vmem:[%s6052 + $0x71] sm:$0xff]
    %v6791 = vld [vmem:[%s6052 + $0x79] sm:$0x7f]
    %v6792 = vld [vmem:[%s6052 + $0x81] sm:$0xff]
    %v6793 = vld [vmem:[%s6052 + $0x89] sm:$0x7f]
    %v6794 = vld [vmem:[%s6052 + $0x91] sm:$0xff]
    %v6795 = vld [vmem:[%s6052 + $0x99] sm:$0x7f]
    %v6796 = vld [vmem:[%s6052 + $0xa1] sm:$0xff]
    %v6797 = vld [vmem:[%s6052 + $0xa9] sm:$0x7f]
    %v6798 = vld [vmem:[%s6052 + $0xb1] sm:$0xff]
    %v6799 = vld [vmem:[%s6052 + $0xb9] sm:$0x7f]
    %v6800 = vld [vmem:[%s6052 + $0xc1] sm:$0xff]
    %v6801 = vld [vmem:[%s6052 + $0xc9] sm:$0x7f]
    %v6802 = vld [vmem:[%s6052 + $0xd1] sm:$0xff]
    %v6803 = vld [vmem:[%s6052 + $0xd9] sm:$0x7f]
    %v6804 = vld [vmem:[%s6052 + $0xe1] sm:$0xff]
    %v6805 = vld [vmem:[%s6052 + $0xe9] sm:$0x7f]
    %v6806 = vld [vmem:[%s6052 + $0x101] sm:$0xff]
    %v6807 = vld [vmem:[%s6052 + $0x109] sm:$0x7f]
    %v6808 = vld [vmem:[%s6052 + $0x111] sm:$0xff]
    %v6809 = vld [vmem:[%s6052 + $0x119] sm:$0x7f]
    %v6810 = vld [vmem:[%s6052 + $0x121] sm:$0xff]
    %v6811 = vld [vmem:[%s6052 + $0x129] sm:$0x7f]
    %v6812 = vld [vmem:[%s6052 + $0x131] sm:$0xff]
    %v6813 = vld [vmem:[%s6052 + $0x139] sm:$0x7f]
    %v6814 = vld [vmem:[%s6052 + $0x141] sm:$0xff]
    %v6815 = vld [vmem:[%s6052 + $0x149] sm:$0x7f]
    %v6816 = vld [vmem:[%s6052 + $0x151] sm:$0xff]
    %v6817 = vld [vmem:[%s6052 + $0x159] sm:$0x7f]
    %v6818 = vld [vmem:[%s6052 + $0x161] sm:$0xff]
    %v6819 = vld [vmem:[%s6052 + $0x169] sm:$0x7f]
    %v6820 = vld [vmem:[%s6052 + $0x171] sm:$0xff]
    %v6821 = vld [vmem:[%s6052 + $0x179] sm:$0x7f]
    %v6822 = vld [vmem:[%s6052 + $0x181] sm:$0xff]
    %v6823 = vld [vmem:[%s6052 + $0x189] sm:$0x7f]
    %v6824 = vld [vmem:[%s6052 + $0x191] sm:$0xff]
    %v6825 = vld [vmem:[%s6052 + $0x199] sm:$0x7f]
    %v6826 = vld [vmem:[%s6052 + $0x1a1] sm:$0xff]
    %v6827 = vld [vmem:[%s6052 + $0x1a9] sm:$0x7f]
    %v6828 = vld [vmem:[%s6052 + $0x1b1] sm:$0xff]
    %v6829 = vld [vmem:[%s6052 + $0x1b9] sm:$0x7f]
    %v6830 = vld [vmem:[%s6052 + $0x1c1] sm:$0xff]
    %v6831 = vld [vmem:[%s6052 + $0x1c9] sm:$0x7f]
    %v6832 = vld [vmem:[%s6052 + $0x1d1] sm:$0xff]
    %v6833 = vld [vmem:[%s6052 + $0x1d9] sm:$0x7f]
    %v6834 = vld [vmem:[%s6052 + $0x1e1] sm:$0xff]
    %v6835 = vld [vmem:[%s6052 + $0x1e9] sm:$0x7f]
    %6896 = vrot.lane.b32.xlu0 %v6776, 64
    %v6897 = vpop.permute.xlu0 %6896
    %6898 = vrot.lane.b32.xlu0 %v6777, 64
    %v6899 = vpop.permute.xlu0 %6898
    %6900 = vrot.lane.b32.xlu0 %v6778, 64
    %v6901 = vpop.permute.xlu0 %6900
    %6902 = vrot.lane.b32.xlu0 %v6779, 64
    %v6903 = vpop.permute.xlu0 %6902
    %6904 = vrot.lane.b32.xlu0 %v6780, 64
    %v6905 = vpop.permute.xlu0 %6904
    %6906 = vrot.lane.b32.xlu0 %v6781, 64
    %v6907 = vpop.permute.xlu0 %6906
    %6908 = vrot.lane.b32.xlu0 %v6782, 64
    %v6909 = vpop.permute.xlu0 %6908
    %6910 = vrot.lane.b32.xlu0 %v6783, 64
    %v6911 = vpop.permute.xlu0 %6910
    %6912 = vrot.lane.b32.xlu0 %v6784, 64
    %v6913 = vpop.permute.xlu0 %6912
    %6914 = vrot.lane.b32.xlu0 %v6785, 64
    %v6915 = vpop.permute.xlu0 %6914
    %6916 = vrot.lane.b32.xlu0 %v6786, 64
    %v6917 = vpop.permute.xlu0 %6916
    %6918 = vrot.lane.b32.xlu0 %v6787, 64
    %v6919 = vpop.permute.xlu0 %6918
    %6920 = vrot.lane.b32.xlu0 %v6788, 64
    %v6921 = vpop.permute.xlu0 %6920
    %6922 = vrot.lane.b32.xlu0 %v6789, 64
    %v6923 = vpop.permute.xlu0 %6922
    %6924 = vrot.lane.b32.xlu0 %v6790, 64
    %v6925 = vpop.permute.xlu0 %6924
    %6926 = vrot.lane.b32.xlu0 %v6791, 64
    %v6927 = vpop.permute.xlu0 %6926
    %6928 = vrot.lane.b32.xlu0 %v6792, 64
    %v6929 = vpop.permute.xlu0 %6928
    %6930 = vrot.lane.b32.xlu0 %v6793, 64
    %v6931 = vpop.permute.xlu0 %6930
    %6932 = vrot.lane.b32.xlu0 %v6794, 64
    %v6933 = vpop.permute.xlu0 %6932
    %6934 = vrot.lane.b32.xlu0 %v6795, 64
    %v6935 = vpop.permute.xlu0 %6934
    %6936 = vrot.lane.b32.xlu0 %v6796, 64
    %v6937 = vpop.permute.xlu0 %6936
    %6938 = vrot.lane.b32.xlu0 %v6797, 64
    %v6939 = vpop.permute.xlu0 %6938
    %6940 = vrot.lane.b32.xlu0 %v6798, 64
    %v6941 = vpop.permute.xlu0 %6940
    %6942 = vrot.lane.b32.xlu0 %v6799, 64
    %v6943 = vpop.permute.xlu0 %6942
    %6944 = vrot.lane.b32.xlu0 %v6800, 64
    %v6945 = vpop.permute.xlu0 %6944
    %6946 = vrot.lane.b32.xlu0 %v6801, 64
    %v6947 = vpop.permute.xlu0 %6946
    %6948 = vrot.lane.b32.xlu0 %v6802, 64
    %v6949 = vpop.permute.xlu0 %6948
    %6950 = vrot.lane.b32.xlu0 %v6803, 64
    %v6951 = vpop.permute.xlu0 %6950
    %6952 = vrot.lane.b32.xlu0 %v6804, 64
    %v6953 = vpop.permute.xlu0 %6952
    %6954 = vrot.lane.b32.xlu0 %v6805, 64
    %v6955 = vpop.permute.xlu0 %6954
    %6956 = vrot.lane.b32.xlu0 %v6806, 64
    %v6957 = vpop.permute.xlu0 %6956
    %6958 = vrot.lane.b32.xlu0 %v6807, 64
    %v6959 = vpop.permute.xlu0 %6958
    %6960 = vrot.lane.b32.xlu0 %v6808, 64
    %v6961 = vpop.permute.xlu0 %6960
    %6962 = vrot.lane.b32.xlu0 %v6809, 64
    %v6963 = vpop.permute.xlu0 %6962
    %6964 = vrot.lane.b32.xlu0 %v6810, 64
    %v6965 = vpop.permute.xlu0 %6964
    %6966 = vrot.lane.b32.xlu0 %v6811, 64
    %v6967 = vpop.permute.xlu0 %6966
    %6968 = vrot.lane.b32.xlu0 %v6812, 64
    %v6969 = vpop.permute.xlu0 %6968
    %6970 = vrot.lane.b32.xlu0 %v6813, 64
    %v6971 = vpop.permute.xlu0 %6970
    %6972 = vrot.lane.b32.xlu0 %v6814, 64
    %v6973 = vpop.permute.xlu0 %6972
    %6974 = vrot.lane.b32.xlu0 %v6815, 64
    %v6975 = vpop.permute.xlu0 %6974
    %6976 = vrot.lane.b32.xlu0 %v6816, 64
    %v6977 = vpop.permute.xlu0 %6976
    %6978 = vrot.lane.b32.xlu0 %v6817, 64
    %v6979 = vpop.permute.xlu0 %6978
    %6980 = vrot.lane.b32.xlu0 %v6818, 64
    %v6981 = vpop.permute.xlu0 %6980
    %6982 = vrot.lane.b32.xlu0 %v6819, 64
    %v6983 = vpop.permute.xlu0 %6982
    %6984 = vrot.lane.b32.xlu0 %v6820, 64
    %v6985 = vpop.permute.xlu0 %6984
    %6986 = vrot.lane.b32.xlu0 %v6821, 64
    %v6987 = vpop.permute.xlu0 %6986
    %6988 = vrot.lane.b32.xlu0 %v6822, 64
    %v6989 = vpop.permute.xlu0 %6988
    %6990 = vrot.lane.b32.xlu0 %v6823, 64
    %v6991 = vpop.permute.xlu0 %6990
    %6992 = vrot.lane.b32.xlu0 %v6824, 64
    %v6993 = vpop.permute.xlu0 %6992
    %6994 = vrot.lane.b32.xlu0 %v6825, 64
    %v6995 = vpop.permute.xlu0 %6994
    %6996 = vrot.lane.b32.xlu0 %v6826, 64
    %v6997 = vpop.permute.xlu0 %6996
    %6998 = vrot.lane.b32.xlu0 %v6827, 64
    %v6999 = vpop.permute.xlu0 %6998
    %7000 = vrot.lane.b32.xlu0 %v6828, 64
    %v7001 = vpop.permute.xlu0 %7000
    %7002 = vrot.lane.b32.xlu0 %v6829, 64
    %v7003 = vpop.permute.xlu0 %7002
    %7004 = vrot.lane.b32.xlu0 %v6830, 64
    %v7005 = vpop.permute.xlu0 %7004
    %7006 = vrot.lane.b32.xlu0 %v6831, 64
    %v7007 = vpop.permute.xlu0 %7006
    %7008 = vrot.lane.b32.xlu0 %v6832, 64
    %v7009 = vpop.permute.xlu0 %7008
    %7010 = vrot.lane.b32.xlu0 %v6833, 64
    %v7011 = vpop.permute.xlu0 %7010
    %7012 = vrot.lane.b32.xlu0 %v6834, 64
    %v7013 = vpop.permute.xlu0 %7012
    %7014 = vrot.lane.b32.xlu0 %v6835, 64
    %v7015 = vpop.permute.xlu0 %7014
    %vm7076 = vcmask 589312
    %7077 = vst.msk [vmem:[#allocation3] sm:$0xff] %vm7076, %v6897
    %vm7078 = vcmask 588288
    %7079 = vst.msk [vmem:[#allocation3 + $0x8] sm:$0x7f] %vm7078, %v6899
    %7080 = vst.msk [vmem:[#allocation3 + $0x10] sm:$0xff] %vm7076, %v6901
    %7081 = vst.msk [vmem:[#allocation3 + $0x18] sm:$0x7f] %vm7078, %v6903
    %7082 = vst.msk [vmem:[#allocation3 + $0x20] sm:$0xff] %vm7076, %v6905
    %7083 = vst.msk [vmem:[#allocation3 + $0x28] sm:$0x7f] %vm7078, %v6907
    %7084 = vst.msk [vmem:[#allocation3 + $0x30] sm:$0xff] %vm7076, %v6909
    %7085 = vst.msk [vmem:[#allocation3 + $0x38] sm:$0x7f] %vm7078, %v6911
    %7086 = vst.msk [vmem:[#allocation3 + $0x40] sm:$0xff] %vm7076, %v6913
    %7087 = vst.msk [vmem:[#allocation3 + $0x48] sm:$0x7f] %vm7078, %v6915
    %7088 = vst.msk [vmem:[#allocation3 + $0x50] sm:$0xff] %vm7076, %v6917
    %7089 = vst.msk [vmem:[#allocation3 + $0x58] sm:$0x7f] %vm7078, %v6919
    %7090 = vst.msk [vmem:[#allocation3 + $0x60] sm:$0xff] %vm7076, %v6921
    %7091 = vst.msk [vmem:[#allocation3 + $0x68] sm:$0x7f] %vm7078, %v6923
    %7092 = vst.msk [vmem:[#allocation3 + $0x70] sm:$0xff] %vm7076, %v6925
    %7093 = vst.msk [vmem:[#allocation3 + $0x78] sm:$0x7f] %vm7078, %v6927
    %7094 = vst.msk [vmem:[#allocation3 + $0x80] sm:$0xff] %vm7076, %v6929
    %7095 = vst.msk [vmem:[#allocation3 + $0x88] sm:$0x7f] %vm7078, %v6931
    %7096 = vst.msk [vmem:[#allocation3 + $0x90] sm:$0xff] %vm7076, %v6933
    %7097 = vst.msk [vmem:[#allocation3 + $0x98] sm:$0x7f] %vm7078, %v6935
    %7098 = vst.msk [vmem:[#allocation3 + $0xa0] sm:$0xff] %vm7076, %v6937
    %7099 = vst.msk [vmem:[#allocation3 + $0xa8] sm:$0x7f] %vm7078, %v6939
    %7100 = vst.msk [vmem:[#allocation3 + $0xb0] sm:$0xff] %vm7076, %v6941
    %7101 = vst.msk [vmem:[#allocation3 + $0xb8] sm:$0x7f] %vm7078, %v6943
    %7102 = vst.msk [vmem:[#allocation3 + $0xc0] sm:$0xff] %vm7076, %v6945
    %7103 = vst.msk [vmem:[#allocation3 + $0xc8] sm:$0x7f] %vm7078, %v6947
    %7104 = vst.msk [vmem:[#allocation3 + $0xd0] sm:$0xff] %vm7076, %v6949
    %7105 = vst.msk [vmem:[#allocation3 + $0xd8] sm:$0x7f] %vm7078, %v6951
    %7106 = vst.msk [vmem:[#allocation3 + $0xe0] sm:$0xff] %vm7076, %v6953
    %7107 = vst.msk [vmem:[#allocation3 + $0xe8] sm:$0x7f] %vm7078, %v6955
    %7108 = vst.msk [vmem:[#allocation3 + $0x100] sm:$0xff] %vm7076, %v6957
    %7109 = vst.msk [vmem:[#allocation3 + $0x108] sm:$0x7f] %vm7078, %v6959
    %7110 = vst.msk [vmem:[#allocation3 + $0x110] sm:$0xff] %vm7076, %v6961
    %7111 = vst.msk [vmem:[#allocation3 + $0x118] sm:$0x7f] %vm7078, %v6963
    %7112 = vst.msk [vmem:[#allocation3 + $0x120] sm:$0xff] %vm7076, %v6965
    %7113 = vst.msk [vmem:[#allocation3 + $0x128] sm:$0x7f] %vm7078, %v6967
    %7114 = vst.msk [vmem:[#allocation3 + $0x130] sm:$0xff] %vm7076, %v6969
    %7115 = vst.msk [vmem:[#allocation3 + $0x138] sm:$0x7f] %vm7078, %v6971
    %7116 = vst.msk [vmem:[#allocation3 + $0x140] sm:$0xff] %vm7076, %v6973
    %7117 = vst.msk [vmem:[#allocation3 + $0x148] sm:$0x7f] %vm7078, %v6975
    %7118 = vst.msk [vmem:[#allocation3 + $0x150] sm:$0xff] %vm7076, %v6977
    %7119 = vst.msk [vmem:[#allocation3 + $0x158] sm:$0x7f] %vm7078, %v6979
    %7120 = vst.msk [vmem:[#allocation3 + $0x160] sm:$0xff] %vm7076, %v6981
    %7121 = vst.msk [vmem:[#allocation3 + $0x168] sm:$0x7f] %vm7078, %v6983
    %7122 = vst.msk [vmem:[#allocation3 + $0x170] sm:$0xff] %vm7076, %v6985
    %7123 = vst.msk [vmem:[#allocation3 + $0x178] sm:$0x7f] %vm7078, %v6987
    %7124 = vst.msk [vmem:[#allocation3 + $0x180] sm:$0xff] %vm7076, %v6989
    %7125 = vst.msk [vmem:[#allocation3 + $0x188] sm:$0x7f] %vm7078, %v6991
    %7126 = vst.msk [vmem:[#allocation3 + $0x190] sm:$0xff] %vm7076, %v6993
    %7127 = vst.msk [vmem:[#allocation3 + $0x198] sm:$0x7f] %vm7078, %v6995
    %7128 = vst.msk [vmem:[#allocation3 + $0x1a0] sm:$0xff] %vm7076, %v6997
    %7129 = vst.msk [vmem:[#allocation3 + $0x1a8] sm:$0x7f] %vm7078, %v6999
    %7130 = vst.msk [vmem:[#allocation3 + $0x1b0] sm:$0xff] %vm7076, %v7001
    %7131 = vst.msk [vmem:[#allocation3 + $0x1b8] sm:$0x7f] %vm7078, %v7003
    %7132 = vst.msk [vmem:[#allocation3 + $0x1c0] sm:$0xff] %vm7076, %v7005
    %7133 = vst.msk [vmem:[#allocation3 + $0x1c8] sm:$0x7f] %vm7078, %v7007
    %7134 = vst.msk [vmem:[#allocation3 + $0x1d0] sm:$0xff] %vm7076, %v7009
    %7135 = vst.msk [vmem:[#allocation3 + $0x1d8] sm:$0x7f] %vm7078, %v7011
    %7136 = vst.msk [vmem:[#allocation3 + $0x1e0] sm:$0xff] %vm7076, %v7013
    %7137 = vst.msk [vmem:[#allocation3 + $0x1e8] sm:$0x7f] %vm7078, %v7015
    %v7138 = vld [vmem:[#allocation3] sm:$0xff]
    %v7139 = vld [vmem:[#allocation3 + $0x8] sm:$0xff]
    %v7140 = vld [vmem:[#allocation3 + $0x10] sm:$0xff]
    %v7141 = vld [vmem:[#allocation3 + $0x18] sm:$0xff]
    %v7142 = vld [vmem:[#allocation3 + $0x20] sm:$0xff]
    %v7143 = vld [vmem:[#allocation3 + $0x28] sm:$0xff]
    %v7144 = vld [vmem:[#allocation3 + $0x30] sm:$0xff]
    %v7145 = vld [vmem:[#allocation3 + $0x38] sm:$0xff]
    %v7146 = vld [vmem:[#allocation3 + $0x40] sm:$0xff]
    %v7147 = vld [vmem:[#allocation3 + $0x48] sm:$0xff]
    %v7148 = vld [vmem:[#allocation3 + $0x50] sm:$0xff]
    %v7149 = vld [vmem:[#allocation3 + $0x58] sm:$0xff]
    %v7150 = vld [vmem:[#allocation3 + $0x60] sm:$0xff]
    %v7151 = vld [vmem:[#allocation3 + $0x68] sm:$0xff]
    %v7152 = vld [vmem:[#allocation3 + $0x70] sm:$0xff]
    %v7153 = vld [vmem:[#allocation3 + $0x78] sm:$0xff]
    %v7154 = vld [vmem:[#allocation3 + $0x80] sm:$0xff]
    %v7155 = vld [vmem:[#allocation3 + $0x88] sm:$0xff]
    %v7156 = vld [vmem:[#allocation3 + $0x90] sm:$0xff]
    %v7157 = vld [vmem:[#allocation3 + $0x98] sm:$0xff]
    %v7158 = vld [vmem:[#allocation3 + $0xa0] sm:$0xff]
    %v7159 = vld [vmem:[#allocation3 + $0xa8] sm:$0xff]
    %v7160 = vld [vmem:[#allocation3 + $0xb0] sm:$0xff]
    %v7161 = vld [vmem:[#allocation3 + $0xb8] sm:$0xff]
    %v7162 = vld [vmem:[#allocation3 + $0xc0] sm:$0xff]
    %v7163 = vld [vmem:[#allocation3 + $0xc8] sm:$0xff]
    %v7164 = vld [vmem:[#allocation3 + $0xd0] sm:$0xff]
    %v7165 = vld [vmem:[#allocation3 + $0xd8] sm:$0xff]
    %v7166 = vld [vmem:[#allocation3 + $0xe0] sm:$0xff]
    %v7167 = vld [vmem:[#allocation3 + $0xe8] sm:$0xff]
    %v7168 = vld [vmem:[#allocation3 + $0xf0] sm:$0xff]
    %v7169 = vld [vmem:[#allocation3 + $0xf8] sm:$0xff]
    %v7170 = vld [vmem:[#allocation3 + $0x100] sm:$0xff]
    %v7171 = vld [vmem:[#allocation3 + $0x108] sm:$0xff]
    %v7172 = vld [vmem:[#allocation3 + $0x110] sm:$0xff]
    %v7173 = vld [vmem:[#allocation3 + $0x118] sm:$0xff]
    %v7174 = vld [vmem:[#allocation3 + $0x120] sm:$0xff]
    %v7175 = vld [vmem:[#allocation3 + $0x128] sm:$0xff]
    %v7176 = vld [vmem:[#allocation3 + $0x130] sm:$0xff]
    %v7177 = vld [vmem:[#allocation3 + $0x138] sm:$0xff]
    %v7178 = vld [vmem:[#allocation3 + $0x140] sm:$0xff]
    %v7179 = vld [vmem:[#allocation3 + $0x148] sm:$0xff]
    %v7180 = vld [vmem:[#allocation3 + $0x150] sm:$0xff]
    %v7181 = vld [vmem:[#allocation3 + $0x158] sm:$0xff]
    %v7182 = vld [vmem:[#allocation3 + $0x160] sm:$0xff]
    %v7183 = vld [vmem:[#allocation3 + $0x168] sm:$0xff]
    %v7184 = vld [vmem:[#allocation3 + $0x170] sm:$0xff]
    %v7185 = vld [vmem:[#allocation3 + $0x178] sm:$0xff]
    %v7186 = vld [vmem:[#allocation3 + $0x180] sm:$0xff]
    %v7187 = vld [vmem:[#allocation3 + $0x188] sm:$0xff]
    %v7188 = vld [vmem:[#allocation3 + $0x190] sm:$0xff]
    %v7189 = vld [vmem:[#allocation3 + $0x198] sm:$0xff]
    %v7190 = vld [vmem:[#allocation3 + $0x1a0] sm:$0xff]
    %v7191 = vld [vmem:[#allocation3 + $0x1a8] sm:$0xff]
    %v7192 = vld [vmem:[#allocation3 + $0x1b0] sm:$0xff]
    %v7193 = vld [vmem:[#allocation3 + $0x1b8] sm:$0xff]
    %v7194 = vld [vmem:[#allocation3 + $0x1c0] sm:$0xff]
    %v7195 = vld [vmem:[#allocation3 + $0x1c8] sm:$0xff]
    %v7196 = vld [vmem:[#allocation3 + $0x1d0] sm:$0xff]
    %v7197 = vld [vmem:[#allocation3 + $0x1d8] sm:$0xff]
    %v7198 = vld [vmem:[#allocation3 + $0x1e0] sm:$0xff]
    %v7199 = vld [vmem:[#allocation3 + $0x1e8] sm:$0xff]
    %v7200 = vld [vmem:[#allocation3 + $0x1f0] sm:$0xff]
    %v7201 = vld [vmem:[#allocation3 + $0x1f8] sm:$0xff]
    %v7202 = vld [vmem:[%s3] sm:$0xff]
    %v7203 = vld [vmem:[%s3 + $0x8] sm:$0xff]
    %v7204 = vld [vmem:[%s3 + $0x10] sm:$0xff]
    %v7205 = vld [vmem:[%s3 + $0x18] sm:$0xff]
    %v7206 = vld [vmem:[%s3 + $0x20] sm:$0xff]
    %v7207 = vld [vmem:[%s3 + $0x28] sm:$0xff]
    %v7208 = vld [vmem:[%s3 + $0x30] sm:$0xff]
    %v7209 = vld [vmem:[%s3 + $0x38] sm:$0xff]
    %v7210 = vld [vmem:[%s3 + $0x40] sm:$0xff]
    %v7211 = vld [vmem:[%s4] sm:$0x1]
    %v7213 = vlaneseq
    %v7214 = vshrl.u32 %v7213, 7
    %v7215 = vsub.s32 0, %v7214
    %v7216 = vrot.slane %v7211, %v7215
    %v7219 = vsel %vm3985, %v7138, 0
    %v7222 = vsel %vm3985, %v7139, 0
    %v7225 = vsel %vm3985, %v7140, 0
    %v7228 = vsel %vm3985, %v7141, 0
    %v7231 = vsel %vm3985, %v7142, 0
    %v7234 = vsel %vm3985, %v7143, 0
    %v7237 = vsel %vm3985, %v7144, 0
    %v7240 = vsel %vm3985, %v7145, 0
    %v7243 = vsel %vm3985, %v7146, 0
    %v7246 = vsel %vm3985, %v7147, 0
    %v7249 = vsel %vm3985, %v7148, 0
    %v7252 = vsel %vm3985, %v7149, 0
    %v7255 = vsel %vm3985, %v7150, 0
    %v7258 = vsel %vm3985, %v7151, 0
    %v7261 = vsel %vm3985, %v7152, 0
    %v7264 = vsel %vm3985, %v7153, 0
    %v7267 = vsel %vm3985, %v7154, 0
    %v7270 = vsel %vm3985, %v7155, 0
    %v7273 = vsel %vm3985, %v7156, 0
    %v7276 = vsel %vm3985, %v7157, 0
    %v7279 = vsel %vm3985, %v7158, 0
    %v7282 = vsel %vm3985, %v7159, 0
    %v7285 = vsel %vm3985, %v7160, 0
    %v7288 = vsel %vm3985, %v7161, 0
    %v7291 = vsel %vm3985, %v7162, 0
    %v7294 = vsel %vm3985, %v7163, 0
    %v7297 = vsel %vm3985, %v7164, 0
    %v7300 = vsel %vm3985, %v7165, 0
    %v7303 = vsel %vm3985, %v7166, 0
    %v7306 = vsel %vm3985, %v7167, 0
    %v7309 = vsel %vm3985, %v7168, 0
    %v7312 = vsel %vm3985, %v7169, 0
    %v7315 = vsel %vm3985, %v7170, 0
    %v7318 = vsel %vm3985, %v7171, 0
    %v7321 = vsel %vm3985, %v7172, 0
    %v7324 = vsel %vm3985, %v7173, 0
    %v7327 = vsel %vm3985, %v7174, 0
    %v7330 = vsel %vm3985, %v7175, 0
    %v7333 = vsel %vm3985, %v7176, 0
    %v7336 = vsel %vm3985, %v7177, 0
    %v7339 = vsel %vm3985, %v7178, 0
    %v7342 = vsel %vm3985, %v7179, 0
    %v7345 = vsel %vm3985, %v7180, 0
    %v7348 = vsel %vm3985, %v7181, 0
    %v7351 = vsel %vm3985, %v7182, 0
    %v7354 = vsel %vm3985, %v7183, 0
    %v7357 = vsel %vm3985, %v7184, 0
    %v7360 = vsel %vm3985, %v7185, 0
    %v7363 = vsel %vm3985, %v7186, 0
    %v7366 = vsel %vm3985, %v7187, 0
    %v7369 = vsel %vm3985, %v7188, 0
    %v7372 = vsel %vm3985, %v7189, 0
    %v7375 = vsel %vm3985, %v7190, 0
    %v7378 = vsel %vm3985, %v7191, 0
    %v7381 = vsel %vm3985, %v7192, 0
    %v7384 = vsel %vm3985, %v7193, 0
    %v7387 = vsel %vm3985, %v7194, 0
    %v7390 = vsel %vm3985, %v7195, 0
    %v7393 = vsel %vm3985, %v7196, 0
    %v7396 = vsel %vm3985, %v7197, 0
    %v7399 = vsel %vm3985, %v7198, 0
    %v7402 = vsel %vm3985, %v7199, 0
    %v7405 = vsel %vm3985, %v7200, 0
    %v7408 = vsel %vm3985, %v7201, 0
    %7410 = vmatprep.subr.mxu0 0.0
    %7411 = vmatpush1.msra.mxu0 %v7202
    %7412 = vmatprep.subr.mxu0 0.0
    %7413 = vmatpush1.msra.mxu0 %v7203
    %7414 = vmatprep.subr.mxu0 0.0
    %7415 = vmatpush1.msra.mxu0 %v7204
    %7416 = vmatprep.subr.mxu0 0.0
    %7417 = vmatpush1.msra.mxu0 %v7205
    %7418 = vmatprep.subr.mxu0 0.0
    %7419 = vmatpush1.msra.mxu0 %v7206
    %7420 = vmatprep.subr.mxu0 0.0
    %7421 = vmatpush1.msra.mxu0 %v7207
    %7422 = vmatprep.subr.mxu0 0.0
    %7423 = vmatpush1.msra.mxu0 %v7208
    %7424 = vmatprep.subr.mxu0 0.0
    %7425 = vmatpush1.msra.mxu0 %v7209
    %7426 = vmatprep.subr.mxu0 0.0
    %7427 = vmatpush1.msra.mxu0 %v7210
    %7428 = vmatprep.subr.mxu0 0.0
    %7429 = vmatpush1.msra.mxu0 0.0
    %7430 = vmatprep.subr.mxu0 0.0
    %7431 = vmatpush1.msra.mxu0 0.0
    %7432 = vmatprep.subr.mxu0 0.0
    %7433 = vmatpush1.msra.mxu0 0.0
    %7434 = vmatprep.subr.mxu0 0.0
    %7435 = vmatpush1.msra.mxu0 0.0
    %7436 = vmatprep.subr.mxu0 0.0
    %7437 = vmatpush1.msra.mxu0 0.0
    %7438 = vmatprep.subr.mxu0 0.0
    %7439 = vmatpush1.msra.mxu0 0.0
    %7440 = vmatprep.subr.mxu0 0.0
    %7441 = vmatpush1.msra.mxu0 0.0
    %7442 = vmatprep.subr.mxu0 0.0
    %7443 = vmatpush1.msra.mxu0 0.0
    %7444 = vmatprep.subr.mxu0 0.0
    %7445 = vmatpush1.msra.mxu0 0.0
    %7446 = vmatprep.subr.mxu0 0.0
    %7447 = vmatpush1.msra.mxu0 0.0
    %7448 = vmatprep.subr.mxu0 0.0
    %7449 = vmatpush1.msra.mxu0 0.0
    %7450 = vmatprep.subr.mxu0 0.0
    %7451 = vmatpush1.msra.mxu0 0.0
    %7452 = vmatprep.subr.mxu0 0.0
    %7453 = vmatpush1.msra.mxu0 0.0
    %7454 = vmatprep.subr.mxu0 0.0
    %7455 = vmatpush1.msra.mxu0 0.0
    %7456 = vmatprep.subr.mxu0 0.0
    %7457 = vmatpush1.msra.mxu0 0.0
    %7458 = vmatprep.subr.mxu0 0.0
    %7459 = vmatpush1.msra.mxu0 0.0
    %7460 = vmatprep.subr.mxu0 0.0
    %7461 = vmatpush1.msra.mxu0 0.0
    %7462 = vmatprep.subr.mxu0 0.0
    %7463 = vmatpush1.msra.mxu0 0.0
    %7464 = vmatprep.subr.mxu0 0.0
    %7465 = vmatpush1.msra.mxu0 0.0
    %7466 = vmatprep.subr.mxu0 0.0
    %7467 = vmatpush1.msra.mxu0 0.0
    %7468 = vmatprep.subr.mxu0 0.0
    %7469 = vmatpush1.msra.mxu0 0.0
    %7470 = vmatprep.subr.mxu0 0.0
    %7471 = vmatpush1.msra.mxu0 0.0
    %7472 = vmatprep.subr.mxu0 0.0
    %7473 = vmatpush1.msra.mxu0 0.0
    %7474 = vmatprep.mubr.f32.mxu0 0.0
    %7475 = vmatmul.mubr.f32.gmra.mrb[0].mxu0 %v7219
    %v7476 = vpop.f32.mrb[0].mxu0
    %v7477 = vadd.f32 %v7216, %v7476
    %v7478 = vpop.f32.mrb[0].mxu0
    %7479 = vmatprep.mubr.f32.mxu0 0.0
    %7480 = vmatmul.mubr.f32.gmra.mrb[0].mxu0 %v7222
    %v7481 = vpop.f32.mrb[0].mxu0
    %v7482 = vadd.f32 %v7216, %v7481
    %v7483 = vpop.f32.mrb[0].mxu0
    %7484 = vmatprep.mubr.f32.mxu0 0.0
    %7485 = vmatmul.mubr.f32.gmra.mrb[0].mxu0 %v7225
    %v7486 = vpop.f32.mrb[0].mxu0
    %v7487 = vadd.f32 %v7216, %v7486
    %v7488 = vpop.f32.mrb[0].mxu0
    %7489 = vmatprep.mubr.f32.mxu0 0.0
    %7490 = vmatmul.mubr.f32.gmra.mrb[0].mxu0 %v7228
    %v7491 = vpop.f32.mrb[0].mxu0
    %v7492 = vadd.f32 %v7216, %v7491
    %v7493 = vpop.f32.mrb[0].mxu0
    %7494 = vmatprep.mubr.f32.mxu0 0.0
    %7495 = vmatmul.mubr.f32.gmra.mrb[0].mxu0 %v7231
    %v7496 = vpop.f32.mrb[0].mxu0
    %v7497 = vadd.f32 %v7216, %v7496
    %v7498 = vpop.f32.mrb[0].mxu0
    %7499 = vmatprep.mubr.f32.mxu0 0.0
    %7500 = vmatmul.mubr.f32.gmra.mrb[0].mxu0 %v7234
    %v7501 = vpop.f32.mrb[0].mxu0
    %v7502 = vadd.f32 %v7216, %v7501
    %v7503 = vpop.f32.mrb[0].mxu0
    %7504 = vmatprep.mubr.f32.mxu0 0.0
    %7505 = vmatmul.mubr.f32.gmra.mrb[0].mxu0 %v7237
    %v7506 = vpop.f32.mrb[0].mxu0
    %v7507 = vadd.f32 %v7216, %v7506
    %v7508 = vpop.f32.mrb[0].mxu0
    %7509 = vmatprep.mubr.f32.mxu0 0.0
    %7510 = vmatmul.mubr.f32.gmra.mrb[0].mxu0 %v7240
    %v7511 = vpop.f32.mrb[0].mxu0
    %v7512 = vadd.f32 %v7216, %v7511
    %v7513 = vpop.f32.mrb[0].mxu0
    %7514 = vmatprep.mubr.f32.mxu0 0.0
    %7515 = vmatmul.mubr.f32.gmra.mrb[0].mxu0 %v7243
    %v7516 = vpop.f32.mrb[0].mxu0
    %v7517 = vadd.f32 %v7216, %v7516
    %v7518 = vpop.f32.mrb[0].mxu0
    %7519 = vmatprep.mubr.f32.mxu0 0.0
    %7520 = vmatmul.mubr.f32.gmra.mrb[0].mxu0 %v7246
    %v7521 = vpop.f32.mrb[0].mxu0
    %v7522 = vadd.f32 %v7216, %v7521
    %v7523 = vpop.f32.mrb[0].mxu0
    %7524 = vmatprep.mubr.f32.mxu0 0.0
    %7525 = vmatmul.mubr.f32.gmra.mrb[0].mxu0 %v7249
    %v7526 = vpop.f32.mrb[0].mxu0
    %v7527 = vadd.f32 %v7216, %v7526
    %v7528 = vpop.f32.mrb[0].mxu0
    %7529 = vmatprep.mubr.f32.mxu0 0.0
    %7530 = vmatmul.mubr.f32.gmra.mrb[0].mxu0 %v7252
    %v7531 = vpop.f32.mrb[0].mxu0
    %v7532 = vadd.f32 %v7216, %v7531
    %v7533 = vpop.f32.mrb[0].mxu0
    %7534 = vmatprep.mubr.f32.mxu0 0.0
    %7535 = vmatmul.mubr.f32.gmra.mrb[0].mxu0 %v7255
    %v7536 = vpop.f32.mrb[0].mxu0
    %v7537 = vadd.f32 %v7216, %v7536
    %v7538 = vpop.f32.mrb[0].mxu0
    %7539 = vmatprep.mubr.f32.mxu0 0.0
    %7540 = vmatmul.mubr.f32.gmra.mrb[0].mxu0 %v7258
    %v7541 = vpop.f32.mrb[0].mxu0
    %v7542 = vadd.f32 %v7216, %v7541
    %v7543 = vpop.f32.mrb[0].mxu0
    %7544 = vmatprep.mubr.f32.mxu0 0.0
    %7545 = vmatmul.mubr.f32.gmra.mrb[0].mxu0 %v7261
    %v7546 = vpop.f32.mrb[0].mxu0
    %v7547 = vadd.f32 %v7216, %v7546
    %v7548 = vpop.f32.mrb[0].mxu0
    %7549 = vmatprep.mubr.f32.mxu0 0.0
    %7550 = vmatmul.mubr.f32.gmra.mrb[0].mxu0 %v7264
    %v7551 = vpop.f32.mrb[0].mxu0
    %v7552 = vadd.f32 %v7216, %v7551
    %v7553 = vpop.f32.mrb[0].mxu0
    %7554 = vmatprep.mubr.f32.mxu0 0.0
    %7555 = vmatmul.mubr.f32.gmra.mrb[0].mxu0 %v7267
    %v7556 = vpop.f32.mrb[0].mxu0
    %v7557 = vadd.f32 %v7216, %v7556
    %v7558 = vpop.f32.mrb[0].mxu0
    %7559 = vmatprep.mubr.f32.mxu0 0.0
    %7560 = vmatmul.mubr.f32.gmra.mrb[0].mxu0 %v7270
    %v7561 = vpop.f32.mrb[0].mxu0
    %v7562 = vadd.f32 %v7216, %v7561
    %v7563 = vpop.f32.mrb[0].mxu0
    %7564 = vmatprep.mubr.f32.mxu0 0.0
    %7565 = vmatmul.mubr.f32.gmra.mrb[0].mxu0 %v7273
    %v7566 = vpop.f32.mrb[0].mxu0
    %v7567 = vadd.f32 %v7216, %v7566
    %v7568 = vpop.f32.mrb[0].mxu0
    %7569 = vmatprep.mubr.f32.mxu0 0.0
    %7570 = vmatmul.mubr.f32.gmra.mrb[0].mxu0 %v7276
    %v7571 = vpop.f32.mrb[0].mxu0
    %v7572 = vadd.f32 %v7216, %v7571
    %v7573 = vpop.f32.mrb[0].mxu0
    %7574 = vmatprep.mubr.f32.mxu0 0.0
    %7575 = vmatmul.mubr.f32.gmra.mrb[0].mxu0 %v7279
    %v7576 = vpop.f32.mrb[0].mxu0
    %v7577 = vadd.f32 %v7216, %v7576
    %v7578 = vpop.f32.mrb[0].mxu0
    %7579 = vmatprep.mubr.f32.mxu0 0.0
    %7580 = vmatmul.mubr.f32.gmra.mrb[0].mxu0 %v7282
    %v7581 = vpop.f32.mrb[0].mxu0
    %v7582 = vadd.f32 %v7216, %v7581
    %v7583 = vpop.f32.mrb[0].mxu0
    %7584 = vmatprep.mubr.f32.mxu0 0.0
    %7585 = vmatmul.mubr.f32.gmra.mrb[0].mxu0 %v7285
    %v7586 = vpop.f32.mrb[0].mxu0
    %v7587 = vadd.f32 %v7216, %v7586
    %v7588 = vpop.f32.mrb[0].mxu0
    %7589 = vmatprep.mubr.f32.mxu0 0.0
    %7590 = vmatmul.mubr.f32.gmra.mrb[0].mxu0 %v7288
    %v7591 = vpop.f32.mrb[0].mxu0
    %v7592 = vadd.f32 %v7216, %v7591
    %v7593 = vpop.f32.mrb[0].mxu0
    %7594 = vmatprep.mubr.f32.mxu0 0.0
    %7595 = vmatmul.mubr.f32.gmra.mrb[0].mxu0 %v7291
    %v7596 = vpop.f32.mrb[0].mxu0
    %v7597 = vadd.f32 %v7216, %v7596
    %v7598 = vpop.f32.mrb[0].mxu0
    %7599 = vmatprep.mubr.f32.mxu0 0.0
    %7600 = vmatmul.mubr.f32.gmra.mrb[0].mxu0 %v7294
    %v7601 = vpop.f32.mrb[0].mxu0
    %v7602 = vadd.f32 %v7216, %v7601
    %v7603 = vpop.f32.mrb[0].mxu0
    %7604 = vmatprep.mubr.f32.mxu0 0.0
    %7605 = vmatmul.mubr.f32.gmra.mrb[0].mxu0 %v7297
    %v7606 = vpop.f32.mrb[0].mxu0
    %v7607 = vadd.f32 %v7216, %v7606
    %v7608 = vpop.f32.mrb[0].mxu0
    %7609 = vmatprep.mubr.f32.mxu0 0.0
    %7610 = vmatmul.mubr.f32.gmra.mrb[0].mxu0 %v7300
    %v7611 = vpop.f32.mrb[0].mxu0
    %v7612 = vadd.f32 %v7216, %v7611
    %v7613 = vpop.f32.mrb[0].mxu0
    %7614 = vmatprep.mubr.f32.mxu0 0.0
    %7615 = vmatmul.mubr.f32.gmra.mrb[0].mxu0 %v7303
    %v7616 = vpop.f32.mrb[0].mxu0
    %v7617 = vadd.f32 %v7216, %v7616
    %v7618 = vpop.f32.mrb[0].mxu0
    %7619 = vmatprep.mubr.f32.mxu0 0.0
    %7620 = vmatmul.mubr.f32.gmra.mrb[0].mxu0 %v7306
    %v7621 = vpop.f32.mrb[0].mxu0
    %v7622 = vadd.f32 %v7216, %v7621
    %v7623 = vpop.f32.mrb[0].mxu0
    %7624 = vmatprep.mubr.f32.mxu0 0.0
    %7625 = vmatmul.mubr.f32.gmra.mrb[0].mxu0 %v7309
    %v7626 = vpop.f32.mrb[0].mxu0
    %v7627 = vadd.f32 %v7216, %v7626
    %v7628 = vpop.f32.mrb[0].mxu0
    %7629 = vmatprep.mubr.f32.mxu0 0.0
    %7630 = vmatmul.mubr.f32.gmra.mrb[0].mxu0 %v7312
    %v7631 = vpop.f32.mrb[0].mxu0
    %v7632 = vadd.f32 %v7216, %v7631
    %v7633 = vpop.f32.mrb[0].mxu0
    %7634 = vmatprep.mubr.f32.mxu0 0.0
    %7635 = vmatmul.mubr.f32.gmra.mrb[0].mxu0 %v7315
    %v7636 = vpop.f32.mrb[0].mxu0
    %v7637 = vadd.f32 %v7216, %v7636
    %v7638 = vpop.f32.mrb[0].mxu0
    %7639 = vmatprep.mubr.f32.mxu0 0.0
    %7640 = vmatmul.mubr.f32.gmra.mrb[0].mxu0 %v7318
    %v7641 = vpop.f32.mrb[0].mxu0
    %v7642 = vadd.f32 %v7216, %v7641
    %v7643 = vpop.f32.mrb[0].mxu0
    %7644 = vmatprep.mubr.f32.mxu0 0.0
    %7645 = vmatmul.mubr.f32.gmra.mrb[0].mxu0 %v7321
    %v7646 = vpop.f32.mrb[0].mxu0
    %v7647 = vadd.f32 %v7216, %v7646
    %v7648 = vpop.f32.mrb[0].mxu0
    %7649 = vmatprep.mubr.f32.mxu0 0.0
    %7650 = vmatmul.mubr.f32.gmra.mrb[0].mxu0 %v7324
    %v7651 = vpop.f32.mrb[0].mxu0
    %v7652 = vadd.f32 %v7216, %v7651
    %v7653 = vpop.f32.mrb[0].mxu0
    %7654 = vmatprep.mubr.f32.mxu0 0.0
    %7655 = vmatmul.mubr.f32.gmra.mrb[0].mxu0 %v7327
    %v7656 = vpop.f32.mrb[0].mxu0
    %v7657 = vadd.f32 %v7216, %v7656
    %v7658 = vpop.f32.mrb[0].mxu0
    %7659 = vmatprep.mubr.f32.mxu0 0.0
    %7660 = vmatmul.mubr.f32.gmra.mrb[0].mxu0 %v7330
    %v7661 = vpop.f32.mrb[0].mxu0
    %v7662 = vadd.f32 %v7216, %v7661
    %v7663 = vpop.f32.mrb[0].mxu0
    %7664 = vmatprep.mubr.f32.mxu0 0.0
    %7665 = vmatmul.mubr.f32.gmra.mrb[0].mxu0 %v7333
    %v7666 = vpop.f32.mrb[0].mxu0
    %v7667 = vadd.f32 %v7216, %v7666
    %v7668 = vpop.f32.mrb[0].mxu0
    %7669 = vmatprep.mubr.f32.mxu0 0.0
    %7670 = vmatmul.mubr.f32.gmra.mrb[0].mxu0 %v7336
    %v7671 = vpop.f32.mrb[0].mxu0
    %v7672 = vadd.f32 %v7216, %v7671
    %v7673 = vpop.f32.mrb[0].mxu0
    %7674 = vmatprep.mubr.f32.mxu0 0.0
    %7675 = vmatmul.mubr.f32.gmra.mrb[0].mxu0 %v7339
    %v7676 = vpop.f32.mrb[0].mxu0
    %v7677 = vadd.f32 %v7216, %v7676
    %v7678 = vpop.f32.mrb[0].mxu0
    %7679 = vmatprep.mubr.f32.mxu0 0.0
    %7680 = vmatmul.mubr.f32.gmra.mrb[0].mxu0 %v7342
    %v7681 = vpop.f32.mrb[0].mxu0
    %v7682 = vadd.f32 %v7216, %v7681
    %v7683 = vpop.f32.mrb[0].mxu0
    %7684 = vmatprep.mubr.f32.mxu0 0.0
    %7685 = vmatmul.mubr.f32.gmra.mrb[0].mxu0 %v7345
    %v7686 = vpop.f32.mrb[0].mxu0
    %v7687 = vadd.f32 %v7216, %v7686
    %v7688 = vpop.f32.mrb[0].mxu0
    %7689 = vmatprep.mubr.f32.mxu0 0.0
    %7690 = vmatmul.mubr.f32.gmra.mrb[0].mxu0 %v7348
    %v7691 = vpop.f32.mrb[0].mxu0
    %v7692 = vadd.f32 %v7216, %v7691
    %v7693 = vpop.f32.mrb[0].mxu0
    %7694 = vmatprep.mubr.f32.mxu0 0.0
    %7695 = vmatmul.mubr.f32.gmra.mrb[0].mxu0 %v7351
    %v7696 = vpop.f32.mrb[0].mxu0
    %v7697 = vadd.f32 %v7216, %v7696
    %v7698 = vpop.f32.mrb[0].mxu0
    %7699 = vmatprep.mubr.f32.mxu0 0.0
    %7700 = vmatmul.mubr.f32.gmra.mrb[0].mxu0 %v7354
    %v7701 = vpop.f32.mrb[0].mxu0
    %v7702 = vadd.f32 %v7216, %v7701
    %v7703 = vpop.f32.mrb[0].mxu0
    %7704 = vmatprep.mubr.f32.mxu0 0.0
    %7705 = vmatmul.mubr.f32.gmra.mrb[0].mxu0 %v7357
    %v7706 = vpop.f32.mrb[0].mxu0
    %v7707 = vadd.f32 %v7216, %v7706
    %v7708 = vpop.f32.mrb[0].mxu0
    %7709 = vmatprep.mubr.f32.mxu0 0.0
    %7710 = vmatmul.mubr.f32.gmra.mrb[0].mxu0 %v7360
    %v7711 = vpop.f32.mrb[0].mxu0
    %v7712 = vadd.f32 %v7216, %v7711
    %v7713 = vpop.f32.mrb[0].mxu0
    %7714 = vmatprep.mubr.f32.mxu0 0.0
    %7715 = vmatmul.mubr.f32.gmra.mrb[0].mxu0 %v7363
    %v7716 = vpop.f32.mrb[0].mxu0
    %v7717 = vadd.f32 %v7216, %v7716
    %v7718 = vpop.f32.mrb[0].mxu0
    %7719 = vmatprep.mubr.f32.mxu0 0.0
    %7720 = vmatmul.mubr.f32.gmra.mrb[0].mxu0 %v7366
    %v7721 = vpop.f32.mrb[0].mxu0
    %v7722 = vadd.f32 %v7216, %v7721
    %v7723 = vpop.f32.mrb[0].mxu0
    %7724 = vmatprep.mubr.f32.mxu0 0.0
    %7725 = vmatmul.mubr.f32.gmra.mrb[0].mxu0 %v7369
    %v7726 = vpop.f32.mrb[0].mxu0
    %v7727 = vadd.f32 %v7216, %v7726
    %v7728 = vpop.f32.mrb[0].mxu0
    %7729 = vmatprep.mubr.f32.mxu0 0.0
    %7730 = vmatmul.mubr.f32.gmra.mrb[0].mxu0 %v7372
    %v7731 = vpop.f32.mrb[0].mxu0
    %v7732 = vadd.f32 %v7216, %v7731
    %v7733 = vpop.f32.mrb[0].mxu0
    %7734 = vmatprep.mubr.f32.mxu0 0.0
    %7735 = vmatmul.mubr.f32.gmra.mrb[0].mxu0 %v7375
    %v7736 = vpop.f32.mrb[0].mxu0
    %v7737 = vadd.f32 %v7216, %v7736
    %v7738 = vpop.f32.mrb[0].mxu0
    %7739 = vmatprep.mubr.f32.mxu0 0.0
    %7740 = vmatmul.mubr.f32.gmra.mrb[0].mxu0 %v7378
    %v7741 = vpop.f32.mrb[0].mxu0
    %v7742 = vadd.f32 %v7216, %v7741
    %v7743 = vpop.f32.mrb[0].mxu0
    %7744 = vmatprep.mubr.f32.mxu0 0.0
    %7745 = vmatmul.mubr.f32.gmra.mrb[0].mxu0 %v7381
    %v7746 = vpop.f32.mrb[0].mxu0
    %v7747 = vadd.f32 %v7216, %v7746
    %v7748 = vpop.f32.mrb[0].mxu0
    %7749 = vmatprep.mubr.f32.mxu0 0.0
    %7750 = vmatmul.mubr.f32.gmra.mrb[0].mxu0 %v7384
    %v7751 = vpop.f32.mrb[0].mxu0
    %v7752 = vadd.f32 %v7216, %v7751
    %v7753 = vpop.f32.mrb[0].mxu0
    %7754 = vmatprep.mubr.f32.mxu0 0.0
    %7755 = vmatmul.mubr.f32.gmra.mrb[0].mxu0 %v7387
    %v7756 = vpop.f32.mrb[0].mxu0
    %v7757 = vadd.f32 %v7216, %v7756
    %v7758 = vpop.f32.mrb[0].mxu0
    %7759 = vmatprep.mubr.f32.mxu0 0.0
    %7760 = vmatmul.mubr.f32.gmra.mrb[0].mxu0 %v7390
    %v7761 = vpop.f32.mrb[0].mxu0
    %v7762 = vadd.f32 %v7216, %v7761
    %v7763 = vpop.f32.mrb[0].mxu0
    %7764 = vmatprep.mubr.f32.mxu0 0.0
    %7765 = vmatmul.mubr.f32.gmra.mrb[0].mxu0 %v7393
    %v7766 = vpop.f32.mrb[0].mxu0
    %v7767 = vadd.f32 %v7216, %v7766
    %v7768 = vpop.f32.mrb[0].mxu0
    %7769 = vmatprep.mubr.f32.mxu0 0.0
    %7770 = vmatmul.mubr.f32.gmra.mrb[0].mxu0 %v7396
    %v7771 = vpop.f32.mrb[0].mxu0
    %v7772 = vadd.f32 %v7216, %v7771
    %v7773 = vpop.f32.mrb[0].mxu0
    %7774 = vmatprep.mubr.f32.mxu0 0.0
    %7775 = vmatmul.mubr.f32.gmra.mrb[0].mxu0 %v7399
    %v7776 = vpop.f32.mrb[0].mxu0
    %v7777 = vadd.f32 %v7216, %v7776
    %v7778 = vpop.f32.mrb[0].mxu0
    %7779 = vmatprep.mubr.f32.mxu0 0.0
    %7780 = vmatmul.mubr.f32.gmra.mrb[0].mxu0 %v7402
    %v7781 = vpop.f32.mrb[0].mxu0
    %v7782 = vadd.f32 %v7216, %v7781
    %v7783 = vpop.f32.mrb[0].mxu0
    %7784 = vmatprep.mubr.f32.mxu0 0.0
    %7785 = vmatmul.mubr.f32.gmra.mrb[0].mxu0 %v7405
    %v7786 = vpop.f32.mrb[0].mxu0
    %v7787 = vadd.f32 %v7216, %v7786
    %v7788 = vpop.f32.mrb[0].mxu0
    %7789 = vmatprep.mubr.f32.mxu0 0.0
    %7790 = vmatmul.mubr.f32.gmra.mrb[0].mxu0 %v7408
    %v7791 = vpop.f32.mrb[0].mxu0
    %v7792 = vadd.f32 %v7216, %v7791
    %v7793 = vpop.f32.mrb[0].mxu0
    %7794 = vdwg.mxu0
    %v7795 = vmax.f32 %v7477, 0.0
    %v7796 = vmax.f32 %v7482, 0.0
    %v7797 = vmax.f32 %v7487, 0.0
    %v7798 = vmax.f32 %v7492, 0.0
    %v7799 = vmax.f32 %v7497, 0.0
    %v7800 = vmax.f32 %v7502, 0.0
    %v7801 = vmax.f32 %v7507, 0.0
    %v7802 = vmax.f32 %v7512, 0.0
    %v7803 = vmax.f32 %v7517, 0.0
    %v7804 = vmax.f32 %v7522, 0.0
    %v7805 = vmax.f32 %v7527, 0.0
    %v7806 = vmax.f32 %v7532, 0.0
    %v7807 = vmax.f32 %v7537, 0.0
    %v7808 = vmax.f32 %v7542, 0.0
    %v7809 = vmax.f32 %v7547, 0.0
    %v7810 = vmax.f32 %v7552, 0.0
    %v7811 = vmax.f32 %v7557, 0.0
    %v7812 = vmax.f32 %v7562, 0.0
    %v7813 = vmax.f32 %v7567, 0.0
    %v7814 = vmax.f32 %v7572, 0.0
    %v7815 = vmax.f32 %v7577, 0.0
    %v7816 = vmax.f32 %v7582, 0.0
    %v7817 = vmax.f32 %v7587, 0.0
    %v7818 = vmax.f32 %v7592, 0.0
    %v7819 = vmax.f32 %v7597, 0.0
    %v7820 = vmax.f32 %v7602, 0.0
    %v7821 = vmax.f32 %v7607, 0.0
    %v7822 = vmax.f32 %v7612, 0.0
    %v7823 = vmax.f32 %v7617, 0.0
    %v7824 = vmax.f32 %v7622, 0.0
    %v7825 = vmax.f32 %v7627, 0.0
    %v7826 = vmax.f32 %v7632, 0.0
    %v7827 = vmax.f32 %v7637, 0.0
    %v7828 = vmax.f32 %v7642, 0.0
    %v7829 = vmax.f32 %v7647, 0.0
    %v7830 = vmax.f32 %v7652, 0.0
    %v7831 = vmax.f32 %v7657, 0.0
    %v7832 = vmax.f32 %v7662, 0.0
    %v7833 = vmax.f32 %v7667, 0.0
    %v7834 = vmax.f32 %v7672, 0.0
    %v7835 = vmax.f32 %v7677, 0.0
    %v7836 = vmax.f32 %v7682, 0.0
    %v7837 = vmax.f32 %v7687, 0.0
    %v7838 = vmax.f32 %v7692, 0.0
    %v7839 = vmax.f32 %v7697, 0.0
    %v7840 = vmax.f32 %v7702, 0.0
    %v7841 = vmax.f32 %v7707, 0.0
    %v7842 = vmax.f32 %v7712, 0.0
    %v7843 = vmax.f32 %v7717, 0.0
    %v7844 = vmax.f32 %v7722, 0.0
    %v7845 = vmax.f32 %v7727, 0.0
    %v7846 = vmax.f32 %v7732, 0.0
    %v7847 = vmax.f32 %v7737, 0.0
    %v7848 = vmax.f32 %v7742, 0.0
    %v7849 = vmax.f32 %v7747, 0.0
    %v7850 = vmax.f32 %v7752, 0.0
    %v7851 = vmax.f32 %v7757, 0.0
    %v7852 = vmax.f32 %v7762, 0.0
    %v7853 = vmax.f32 %v7767, 0.0
    %v7854 = vmax.f32 %v7772, 0.0
    %v7855 = vmax.f32 %v7777, 0.0
    %v7856 = vmax.f32 %v7782, 0.0
    %v7857 = vmax.f32 %v7787, 0.0
    %v7858 = vmax.f32 %v7792, 0.0
    %v7859 = vld [vmem:[%s5] sm:$0xff]
    %v7860 = vld [vmem:[%s5 + $0x8] sm:$0xff]
    %v7861 = vld [vmem:[%s5 + $0x10] sm:$0xff]
    %v7862 = vld [vmem:[%s5 + $0x18] sm:$0xff]
    %v7863 = vld [vmem:[%s5 + $0x20] sm:$0xff]
    %v7864 = vld [vmem:[%s5 + $0x28] sm:$0xff]
    %v7865 = vld [vmem:[%s5 + $0x30] sm:$0xff]
    %v7866 = vld [vmem:[%s5 + $0x38] sm:$0xff]
    %v7867 = vld [vmem:[%s5 + $0x40] sm:$0xff]
    %v7868 = vld [vmem:[%s5 + $0x48] sm:$0xff]
    %v7869 = vld [vmem:[%s5 + $0x50] sm:$0xff]
    %v7870 = vld [vmem:[%s5 + $0x58] sm:$0xff]
    %v7871 = vld [vmem:[%s5 + $0x60] sm:$0xff]
    %v7872 = vld [vmem:[%s5 + $0x68] sm:$0xff]
    %v7873 = vld [vmem:[%s5 + $0x70] sm:$0xff]
    %v7874 = vld [vmem:[%s5 + $0x78] sm:$0xff]
    %v7875 = vld [vmem:[%s5 + $0x80] sm:$0xff]
    %v7876 = vld [vmem:[%s5 + $0x88] sm:$0xff]
    %v7877 = vld [vmem:[%s5 + $0x90] sm:$0xff]
    %v7878 = vld [vmem:[%s5 + $0x98] sm:$0xff]
    %v7879 = vld [vmem:[%s5 + $0xa0] sm:$0xff]
    %v7880 = vld [vmem:[%s5 + $0xa8] sm:$0xff]
    %v7881 = vld [vmem:[%s5 + $0xb0] sm:$0xff]
    %v7882 = vld [vmem:[%s5 + $0xb8] sm:$0xff]
    %v7883 = vld [vmem:[%s5 + $0xc0] sm:$0x3]
    %v7884 = vld [vmem:[%s5 + $0xc8] sm:$0x3]
    %v7885 = vld [vmem:[%s5 + $0xd0] sm:$0x3]
    %v7886 = vld [vmem:[%s5 + $0xd8] sm:$0x3]
    %7887 = vmatprep.subr.mxu0 0.0
    %7888 = vmatpush1.msra.mxu0 %v7795
    %7889 = vmatprep.subr.mxu0 0.0
    %7890 = vmatpush1.msra.mxu0 %v7796
    %7891 = vmatprep.subr.mxu0 0.0
    %7892 = vmatpush1.msra.mxu0 %v7797
    %7893 = vmatprep.subr.mxu0 0.0
    %7894 = vmatpush1.msra.mxu0 %v7798
    %7895 = vmatprep.subr.mxu0 0.0
    %7896 = vmatpush1.msra.mxu0 %v7799
    %7897 = vmatprep.subr.mxu0 0.0
    %7898 = vmatpush1.msra.mxu0 %v7800
    %7899 = vmatprep.subr.mxu0 0.0
    %7900 = vmatpush1.msra.mxu0 %v7801
    %7901 = vmatprep.subr.mxu0 0.0
    %7902 = vmatpush1.msra.mxu0 %v7802
    %7903 = vmatprep.subr.mxu0 0.0
    %7904 = vmatpush1.msra.mxu0 %v7803
    %7905 = vmatprep.subr.mxu0 0.0
    %7906 = vmatpush1.msra.mxu0 %v7804
    %7907 = vmatprep.subr.mxu0 0.0
    %7908 = vmatpush1.msra.mxu0 %v7805
    %7909 = vmatprep.subr.mxu0 0.0
    %7910 = vmatpush1.msra.mxu0 %v7806
    %7911 = vmatprep.subr.mxu0 0.0
    %7912 = vmatpush1.msra.mxu0 %v7807
    %7913 = vmatprep.subr.mxu0 0.0
    %7914 = vmatpush1.msra.mxu0 %v7808
    %7915 = vmatprep.subr.mxu0 0.0
    %7916 = vmatpush1.msra.mxu0 %v7809
    %7917 = vmatprep.subr.mxu0 0.0
    %7918 = vmatpush1.msra.mxu0 %v7810
    %7919 = vmatprep.subr.mxu0 0.0
    %7920 = vmatpush1.msra.mxu0 %v7811
    %7921 = vmatprep.subr.mxu0 0.0
    %7922 = vmatpush1.msra.mxu0 %v7812
    %7923 = vmatprep.subr.mxu0 0.0
    %7924 = vmatpush1.msra.mxu0 %v7813
    %7925 = vmatprep.subr.mxu0 0.0
    %7926 = vmatpush1.msra.mxu0 %v7814
    %7927 = vmatprep.subr.mxu0 0.0
    %7928 = vmatpush1.msra.mxu0 %v7815
    %7929 = vmatprep.subr.mxu0 0.0
    %7930 = vmatpush1.msra.mxu0 %v7816
    %7931 = vmatprep.subr.mxu0 0.0
    %7932 = vmatpush1.msra.mxu0 %v7817
    %7933 = vmatprep.subr.mxu0 0.0
    %7934 = vmatpush1.msra.mxu0 %v7818
    %7935 = vmatprep.subr.mxu0 0.0
    %7936 = vmatpush1.msra.mxu0 %v7819
    %7937 = vmatprep.subr.mxu0 0.0
    %7938 = vmatpush1.msra.mxu0 %v7820
    %7939 = vmatprep.subr.mxu0 0.0
    %7940 = vmatpush1.msra.mxu0 %v7821
    %7941 = vmatprep.subr.mxu0 0.0
    %7942 = vmatpush1.msra.mxu0 %v7822
    %7943 = vmatprep.subr.mxu0 0.0
    %7944 = vmatpush1.msra.mxu0 %v7823
    %7945 = vmatprep.subr.mxu0 0.0
    %7946 = vmatpush1.msra.mxu0 %v7824
    %7947 = vmatprep.subr.mxu0 0.0
    %7948 = vmatpush1.msra.mxu0 %v7825
    %7949 = vmatprep.subr.mxu0 0.0
    %7950 = vmatpush1.msra.mxu0 %v7826
    %7951 = vmatprep.mubr.f32.mxu0 %v7860
    %7952 = vmatmul.mubr.f32.gmra.mrb[0].mxu0 %v7859
    %v7953 = vpop.f32.mrb[0].mxu0
    %v7954 = vadd.f32 0.0, %v7953
    %v7955 = vpop.f32.mrb[0].mxu0
    %7956 = vmatprep.mubr.f32.mxu0 %v7864
    %7957 = vmatmul.mubr.f32.gmra.mrb[0].mxu0 %v7863
    %v7958 = vpop.f32.mrb[0].mxu0
    %v7959 = vadd.f32 0.0, %v7958
    %v7960 = vpop.f32.mrb[0].mxu0
    %7961 = vmatprep.mubr.f32.mxu0 %v7868
    %7962 = vmatmul.mubr.f32.gmra.mrb[0].mxu0 %v7867
    %v7963 = vpop.f32.mrb[0].mxu0
    %v7964 = vadd.f32 0.0, %v7963
    %v7965 = vpop.f32.mrb[0].mxu0
    %7966 = vmatprep.mubr.f32.mxu0 %v7872
    %7967 = vmatmul.mubr.f32.gmra.mrb[0].mxu0 %v7871
    %v7968 = vpop.f32.mrb[0].mxu0
    %v7969 = vadd.f32 0.0, %v7968
    %v7970 = vpop.f32.mrb[0].mxu0
    %7971 = vmatprep.mubr.f32.mxu0 %v7876
    %7972 = vmatmul.mubr.f32.gmra.mrb[0].mxu0 %v7875
    %v7973 = vpop.f32.mrb[0].mxu0
    %v7974 = vadd.f32 0.0, %v7973
    %v7975 = vpop.f32.mrb[0].mxu0
    %7976 = vmatprep.mubr.f32.mxu0 %v7880
    %7977 = vmatmul.mubr.f32.gmra.mrb[0].mxu0 %v7879
    %v7978 = vpop.f32.mrb[0].mxu0
    %v7979 = vadd.f32 0.0, %v7978
    %v7980 = vpop.f32.mrb[0].mxu0
    %7981 = vmatprep.mubr.f32.mxu0 %v7884
    %7982 = vmatmul.mubr.f32.gmra.mrb[0].mxu0 %v7883
    %v7983 = vpop.f32.mrb[0].mxu0
    %v7984 = vadd.f32 0.0, %v7983
    %v7985 = vpop.f32.mrb[0].mxu0
    %7986 = vdwg.mxu0
    %7987 = vmatprep.subr.mxu0 0.0
    %7988 = vmatpush1.msra.mxu0 %v7827
    %7989 = vmatprep.subr.mxu0 0.0
    %7990 = vmatpush1.msra.mxu0 %v7828
    %7991 = vmatprep.subr.mxu0 0.0
    %7992 = vmatpush1.msra.mxu0 %v7829
    %7993 = vmatprep.subr.mxu0 0.0
    %7994 = vmatpush1.msra.mxu0 %v7830
    %7995 = vmatprep.subr.mxu0 0.0
    %7996 = vmatpush1.msra.mxu0 %v7831
    %7997 = vmatprep.subr.mxu0 0.0
    %7998 = vmatpush1.msra.mxu0 %v7832
    %7999 = vmatprep.subr.mxu0 0.0
    %8000 = vmatpush1.msra.mxu0 %v7833
    %8001 = vmatprep.subr.mxu0 0.0
    %8002 = vmatpush1.msra.mxu0 %v7834
    %8003 = vmatprep.subr.mxu0 0.0
    %8004 = vmatpush1.msra.mxu0 %v7835
    %8005 = vmatprep.subr.mxu0 0.0
    %8006 = vmatpush1.msra.mxu0 %v7836
    %8007 = vmatprep.subr.mxu0 0.0
    %8008 = vmatpush1.msra.mxu0 %v7837
    %8009 = vmatprep.subr.mxu0 0.0
    %8010 = vmatpush1.msra.mxu0 %v7838
    %8011 = vmatprep.subr.mxu0 0.0
    %8012 = vmatpush1.msra.mxu0 %v7839
    %8013 = vmatprep.subr.mxu0 0.0
    %8014 = vmatpush1.msra.mxu0 %v7840
    %8015 = vmatprep.subr.mxu0 0.0
    %8016 = vmatpush1.msra.mxu0 %v7841
    %8017 = vmatprep.subr.mxu0 0.0
    %8018 = vmatpush1.msra.mxu0 %v7842
    %8019 = vmatprep.subr.mxu0 0.0
    %8020 = vmatpush1.msra.mxu0 %v7843
    %8021 = vmatprep.subr.mxu0 0.0
    %8022 = vmatpush1.msra.mxu0 %v7844
    %8023 = vmatprep.subr.mxu0 0.0
    %8024 = vmatpush1.msra.mxu0 %v7845
    %8025 = vmatprep.subr.mxu0 0.0
    %8026 = vmatpush1.msra.mxu0 %v7846
    %8027 = vmatprep.subr.mxu0 0.0
    %8028 = vmatpush1.msra.mxu0 %v7847
    %8029 = vmatprep.subr.mxu0 0.0
    %8030 = vmatpush1.msra.mxu0 %v7848
    %8031 = vmatprep.subr.mxu0 0.0
    %8032 = vmatpush1.msra.mxu0 %v7849
    %8033 = vmatprep.subr.mxu0 0.0
    %8034 = vmatpush1.msra.mxu0 %v7850
    %8035 = vmatprep.subr.mxu0 0.0
    %8036 = vmatpush1.msra.mxu0 %v7851
    %8037 = vmatprep.subr.mxu0 0.0
    %8038 = vmatpush1.msra.mxu0 %v7852
    %8039 = vmatprep.subr.mxu0 0.0
    %8040 = vmatpush1.msra.mxu0 %v7853
    %8041 = vmatprep.subr.mxu0 0.0
    %8042 = vmatpush1.msra.mxu0 %v7854
    %8043 = vmatprep.subr.mxu0 0.0
    %8044 = vmatpush1.msra.mxu0 %v7855
    %8045 = vmatprep.subr.mxu0 0.0
    %8046 = vmatpush1.msra.mxu0 %v7856
    %8047 = vmatprep.subr.mxu0 0.0
    %8048 = vmatpush1.msra.mxu0 %v7857
    %8049 = vmatprep.subr.mxu0 0.0
    %8050 = vmatpush1.msra.mxu0 %v7858
    %8051 = vmatprep.mubr.f32.mxu0 %v7862
    %8052 = vmatmul.mubr.f32.gmra.mrb[0].mxu0 %v7861
    %v8053 = vpop.f32.mrb[0].mxu0
    %v8054 = vadd.f32 %v7954, %v8053
    %v8055 = vpop.f32.mrb[0].mxu0
    %8056 = vmatprep.mubr.f32.mxu0 %v7866
    %8057 = vmatmul.mubr.f32.gmra.mrb[0].mxu0 %v7865
    %v8058 = vpop.f32.mrb[0].mxu0
    %v8059 = vadd.f32 %v7959, %v8058
    %v8060 = vpop.f32.mrb[0].mxu0
    %8061 = vmatprep.mubr.f32.mxu0 %v7870
    %8062 = vmatmul.mubr.f32.gmra.mrb[0].mxu0 %v7869
    %v8063 = vpop.f32.mrb[0].mxu0
    %v8064 = vadd.f32 %v7964, %v8063
    %v8065 = vpop.f32.mrb[0].mxu0
    %8066 = vmatprep.mubr.f32.mxu0 %v7874
    %8067 = vmatmul.mubr.f32.gmra.mrb[0].mxu0 %v7873
    %v8068 = vpop.f32.mrb[0].mxu0
    %v8069 = vadd.f32 %v7969, %v8068
    %v8070 = vpop.f32.mrb[0].mxu0
    %8071 = vmatprep.mubr.f32.mxu0 %v7878
    %8072 = vmatmul.mubr.f32.gmra.mrb[0].mxu0 %v7877
    %v8073 = vpop.f32.mrb[0].mxu0
    %v8074 = vadd.f32 %v7974, %v8073
    %v8075 = vpop.f32.mrb[0].mxu0
    %8076 = vmatprep.mubr.f32.mxu0 %v7882
    %8077 = vmatmul.mubr.f32.gmra.mrb[0].mxu0 %v7881
    %v8078 = vpop.f32.mrb[0].mxu0
    %v8079 = vadd.f32 %v7979, %v8078
    %v8080 = vpop.f32.mrb[0].mxu0
    %8081 = vmatprep.mubr.f32.mxu0 %v7886
    %8082 = vmatmul.mubr.f32.gmra.mrb[0].mxu0 %v7885
    %v8083 = vpop.f32.mrb[0].mxu0
    %v8084 = vadd.f32 %v7984, %v8083
    %v8085 = vpop.f32.mrb[0].mxu0
    %8086 = vdwg.mxu0
    %v8087 = vld [vmem:[%s7] sm:$0xff]
    %v8088 = vld [vmem:[%s7 + $0x8] sm:$0xff]
    %v8089 = vld [vmem:[%s7 + $0x10] sm:$0xff]
    %v8090 = vld [vmem:[%s7 + $0x18] sm:$0xff]
    %v8091 = vld [vmem:[%s7 + $0x20] sm:$0xff]
    %v8092 = vld [vmem:[%s7 + $0x28] sm:$0xff]
    %v8093 = vld [vmem:[%s7 + $0x30] sm:$0xff]
    %v8094 = vld [vmem:[%s7 + $0x38] sm:$0xff]
    %vm8095 = vcmask 130048
    %v8097 = vsel %vm8095, %v8054, 0
    %v8100 = vsel %vm8095, %v8059, 0
    %v8103 = vsel %vm8095, %v8064, 0
    %v8106 = vsel %vm8095, %v8069, 0
    %v8109 = vsel %vm8095, %v8074, 0
    %v8112 = vsel %vm8095, %v8079, 0
    %v8115 = vsel %vm8095, %v8084, 0
    %8117 = vmatprep.subr.mxu0 %v8088
    %8118 = vmatpush1.msra.mxu0 %v8087
    %8119 = vmatprep.subr.mxu0 %v8092
    %8120 = vmatpush1.msra.mxu0 %v8091
    %8121 = vmatprep.subr.mxu0 0.0
    %8122 = vmatpush1.msra.mxu0 0.0
    %8123 = vmatprep.subr.mxu0 0.0
    %8124 = vmatpush1.msra.mxu0 0.0
    %8125 = vmatprep.subr.mxu0 0.0
    %8126 = vmatpush1.msra.mxu0 0.0
    %8127 = vmatprep.subr.mxu0 0.0
    %8128 = vmatpush1.msra.mxu0 0.0
    %8129 = vmatprep.subr.mxu0 0.0
    %8130 = vmatpush1.msra.mxu0 0.0
    %8131 = vmatprep.subr.mxu0 0.0
    %8132 = vmatpush1.msra.mxu0 0.0
    %8133 = vmatprep.subr.mxu0 0.0
    %8134 = vmatpush1.msra.mxu0 0.0
    %8135 = vmatprep.subr.mxu0 0.0
    %8136 = vmatpush1.msra.mxu0 0.0
    %8137 = vmatprep.subr.mxu0 0.0
    %8138 = vmatpush1.msra.mxu0 0.0
    %8139 = vmatprep.subr.mxu0 0.0
    %8140 = vmatpush1.msra.mxu0 0.0
    %8141 = vmatprep.subr.mxu0 0.0
    %8142 = vmatpush1.msra.mxu0 0.0
    %8143 = vmatprep.subr.mxu0 0.0
    %8144 = vmatpush1.msra.mxu0 0.0
    %8145 = vmatprep.subr.mxu0 0.0
    %8146 = vmatpush1.msra.mxu0 0.0
    %8147 = vmatprep.subr.mxu0 0.0
    %8148 = vmatpush1.msra.mxu0 0.0
    %8149 = vmatprep.subr.mxu0 0.0
    %8150 = vmatpush1.msra.mxu0 0.0
    %8151 = vmatprep.subr.mxu0 0.0
    %8152 = vmatpush1.msra.mxu0 0.0
    %8153 = vmatprep.subr.mxu0 0.0
    %8154 = vmatpush1.msra.mxu0 0.0
    %8155 = vmatprep.subr.mxu0 0.0
    %8156 = vmatpush1.msra.mxu0 0.0
    %8157 = vmatprep.subr.mxu0 0.0
    %8158 = vmatpush1.msra.mxu0 0.0
    %8159 = vmatprep.subr.mxu0 0.0
    %8160 = vmatpush1.msra.mxu0 0.0
    %8161 = vmatprep.subr.mxu0 0.0
    %8162 = vmatpush1.msra.mxu0 0.0
    %8163 = vmatprep.subr.mxu0 0.0
    %8164 = vmatpush1.msra.mxu0 0.0
    %8165 = vmatprep.subr.mxu0 0.0
    %8166 = vmatpush1.msra.mxu0 0.0
    %8167 = vmatprep.subr.mxu0 0.0
    %8168 = vmatpush1.msra.mxu0 0.0
    %8169 = vmatprep.subr.mxu0 0.0
    %8170 = vmatpush1.msra.mxu0 0.0
    %8171 = vmatprep.subr.mxu0 0.0
    %8172 = vmatpush1.msra.mxu0 0.0
    %8173 = vmatprep.subr.mxu0 0.0
    %8174 = vmatpush1.msra.mxu0 0.0
    %8175 = vmatprep.subr.mxu0 0.0
    %8176 = vmatpush1.msra.mxu0 0.0
    %8177 = vmatprep.subr.mxu0 0.0
    %8178 = vmatpush1.msra.mxu0 0.0
    %8179 = vmatprep.subr.mxu0 0.0
    %8180 = vmatpush1.msra.mxu0 0.0
    %8181 = vmatprep.mubr.f32.mxu0 0.0
    %8182 = vmatmul.mubr.f32.gmra.mrb[0].mxu0 %v8097
    %v8183 = vpop.f32.mrb[0].mxu0
    %v8184 = vadd.f32 0.0, %v8183
    %v8185 = vpop.f32.mrb[0].mxu0
    %v8186 = vadd.f32 0.0, %v8185
    %8187 = vmatprep.mubr.f32.mxu0 0.0
    %8188 = vmatmul.mubr.f32.gmra.mrb[0].mxu0 %v8100
    %v8189 = vpop.f32.mrb[0].mxu0
    %v8190 = vadd.f32 0.0, %v8189
    %v8191 = vpop.f32.mrb[0].mxu0
    %v8192 = vadd.f32 0.0, %v8191
    %8193 = vmatprep.mubr.f32.mxu0 0.0
    %8194 = vmatmul.mubr.f32.gmra.mrb[0].mxu0 %v8103
    %v8195 = vpop.f32.mrb[0].mxu0
    %v8196 = vadd.f32 0.0, %v8195
    %v8197 = vpop.f32.mrb[0].mxu0
    %v8198 = vadd.f32 0.0, %v8197
    %8199 = vmatprep.mubr.f32.mxu0 0.0
    %8200 = vmatmul.mubr.f32.gmra.mrb[0].mxu0 %v8106
    %v8201 = vpop.f32.mrb[0].mxu0
    %v8202 = vadd.f32 0.0, %v8201
    %v8203 = vpop.f32.mrb[0].mxu0
    %v8204 = vadd.f32 0.0, %v8203
    %8205 = vmatprep.mubr.f32.mxu0 0.0
    %8206 = vmatmul.mubr.f32.gmra.mrb[0].mxu0 %v8109
    %v8207 = vpop.f32.mrb[0].mxu0
    %v8208 = vadd.f32 0.0, %v8207
    %v8209 = vpop.f32.mrb[0].mxu0
    %v8210 = vadd.f32 0.0, %v8209
    %8211 = vmatprep.mubr.f32.mxu0 0.0
    %8212 = vmatmul.mubr.f32.gmra.mrb[0].mxu0 %v8112
    %v8213 = vpop.f32.mrb[0].mxu0
    %v8214 = vadd.f32 0.0, %v8213
    %v8215 = vpop.f32.mrb[0].mxu0
    %v8216 = vadd.f32 0.0, %v8215
    %8217 = vmatprep.mubr.f32.mxu0 0.0
    %8218 = vmatmul.mubr.f32.gmra.mrb[0].mxu0 %v8115
    %v8219 = vpop.f32.mrb[0].mxu0
    %v8220 = vadd.f32 0.0, %v8219
    %v8221 = vpop.f32.mrb[0].mxu0
    %v8222 = vadd.f32 0.0, %v8221
    %8223 = vdwg.mxu0
    %8224 = vmatprep.subr.mxu0 %v8090
    %8225 = vmatpush1.msra.mxu0 %v8089
    %8226 = vmatprep.subr.mxu0 %v8094
    %8227 = vmatpush1.msra.mxu0 %v8093
    %8228 = vmatprep.subr.mxu0 0.0
    %8229 = vmatpush1.msra.mxu0 0.0
    %8230 = vmatprep.subr.mxu0 0.0
    %8231 = vmatpush1.msra.mxu0 0.0
    %8232 = vmatprep.subr.mxu0 0.0
    %8233 = vmatpush1.msra.mxu0 0.0
    %8234 = vmatprep.subr.mxu0 0.0
    %8235 = vmatpush1.msra.mxu0 0.0
    %8236 = vmatprep.subr.mxu0 0.0
    %8237 = vmatpush1.msra.mxu0 0.0
    %8238 = vmatprep.subr.mxu0 0.0
    %8239 = vmatpush1.msra.mxu0 0.0
    %8240 = vmatprep.subr.mxu0 0.0
    %8241 = vmatpush1.msra.mxu0 0.0
    %8242 = vmatprep.subr.mxu0 0.0
    %8243 = vmatpush1.msra.mxu0 0.0
    %8244 = vmatprep.subr.mxu0 0.0
    %8245 = vmatpush1.msra.mxu0 0.0
    %8246 = vmatprep.subr.mxu0 0.0
    %8247 = vmatpush1.msra.mxu0 0.0
    %8248 = vmatprep.subr.mxu0 0.0
    %8249 = vmatpush1.msra.mxu0 0.0
    %8250 = vmatprep.subr.mxu0 0.0
    %8251 = vmatpush1.msra.mxu0 0.0
    %8252 = vmatprep.subr.mxu0 0.0
    %8253 = vmatpush1.msra.mxu0 0.0
    %8254 = vmatprep.subr.mxu0 0.0
    %8255 = vmatpush1.msra.mxu0 0.0
    %8256 = vmatprep.subr.mxu0 0.0
    %8257 = vmatpush1.msra.mxu0 0.0
    %8258 = vmatprep.subr.mxu0 0.0
    %8259 = vmatpush1.msra.mxu0 0.0
    %8260 = vmatprep.subr.mxu0 0.0
    %8261 = vmatpush1.msra.mxu0 0.0
    %8262 = vmatprep.subr.mxu0 0.0
    %8263 = vmatpush1.msra.mxu0 0.0
    %8264 = vmatprep.subr.mxu0 0.0
    %8265 = vmatpush1.msra.mxu0 0.0
    %8266 = vmatprep.subr.mxu0 0.0
    %8267 = vmatpush1.msra.mxu0 0.0
    %8268 = vmatprep.subr.mxu0 0.0
    %8269 = vmatpush1.msra.mxu0 0.0
    %8270 = vmatprep.subr.mxu0 0.0
    %8271 = vmatpush1.msra.mxu0 0.0
    %8272 = vmatprep.subr.mxu0 0.0
    %8273 = vmatpush1.msra.mxu0 0.0
    %8274 = vmatprep.subr.mxu0 0.0
    %8275 = vmatpush1.msra.mxu0 0.0
    %8276 = vmatprep.subr.mxu0 0.0
    %8277 = vmatpush1.msra.mxu0 0.0
    %8278 = vmatprep.subr.mxu0 0.0
    %8279 = vmatpush1.msra.mxu0 0.0
    %8280 = vmatprep.subr.mxu0 0.0
    %8281 = vmatpush1.msra.mxu0 0.0
    %8282 = vmatprep.subr.mxu0 0.0
    %8283 = vmatpush1.msra.mxu0 0.0
    %8284 = vmatprep.subr.mxu0 0.0
    %8285 = vmatpush1.msra.mxu0 0.0
    %8286 = vmatprep.subr.mxu0 0.0
    %8287 = vmatpush1.msra.mxu0 0.0
    %8288 = vmatprep.mubr.f32.mxu0 0.0
    %8289 = vmatmul.mubr.f32.gmra.mrb[0].mxu0 %v8097
    %v8290 = vpop.f32.mrb[0].mxu0
    %v8291 = vadd.f32 0.0, %v8290
    %v8292 = vpop.f32.mrb[0].mxu0
    %v8293 = vadd.f32 0.0, %v8292
    %8294 = vmatprep.mubr.f32.mxu0 0.0
    %8295 = vmatmul.mubr.f32.gmra.mrb[0].mxu0 %v8100
    %v8296 = vpop.f32.mrb[0].mxu0
    %v8297 = vadd.f32 0.0, %v8296
    %v8298 = vpop.f32.mrb[0].mxu0
    %v8299 = vadd.f32 0.0, %v8298
    %8300 = vmatprep.mubr.f32.mxu0 0.0
    %8301 = vmatmul.mubr.f32.gmra.mrb[0].mxu0 %v8103
    %v8302 = vpop.f32.mrb[0].mxu0
    %v8303 = vadd.f32 0.0, %v8302
    %v8304 = vpop.f32.mrb[0].mxu0
    %v8305 = vadd.f32 0.0, %v8304
    %8306 = vmatprep.mubr.f32.mxu0 0.0
    %8307 = vmatmul.mubr.f32.gmra.mrb[0].mxu0 %v8106
    %v8308 = vpop.f32.mrb[0].mxu0
    %v8309 = vadd.f32 0.0, %v8308
    %v8310 = vpop.f32.mrb[0].mxu0
    %v8311 = vadd.f32 0.0, %v8310
    %8312 = vmatprep.mubr.f32.mxu0 0.0
    %8313 = vmatmul.mubr.f32.gmra.mrb[0].mxu0 %v8109
    %v8314 = vpop.f32.mrb[0].mxu0
    %v8315 = vadd.f32 0.0, %v8314
    %v8316 = vpop.f32.mrb[0].mxu0
    %v8317 = vadd.f32 0.0, %v8316
    %8318 = vmatprep.mubr.f32.mxu0 0.0
    %8319 = vmatmul.mubr.f32.gmra.mrb[0].mxu0 %v8112
    %v8320 = vpop.f32.mrb[0].mxu0
    %v8321 = vadd.f32 0.0, %v8320
    %v8322 = vpop.f32.mrb[0].mxu0
    %v8323 = vadd.f32 0.0, %v8322
    %8324 = vmatprep.mubr.f32.mxu0 0.0
    %8325 = vmatmul.mubr.f32.gmra.mrb[0].mxu0 %v8115
    %v8326 = vpop.f32.mrb[0].mxu0
    %v8327 = vadd.f32 0.0, %v8326
    %v8328 = vpop.f32.mrb[0].mxu0
    %v8329 = vadd.f32 0.0, %v8328
    %8330 = vdwg.mxu0
    %v8331 = vld [vmem:[%s8] sm:$0x3]
    %v8332 = vld [vmem:[%s6] sm:$0xff]
    %v8333 = vld [vmem:[%s6 + $0x8] sm:$0xff]
    %v8334 = vld [vmem:[%s6 + $0x10] sm:$0xff]
    %v8335 = vld [vmem:[%s6 + $0x18] sm:$0xff]
    %v8336 = vld [vmem:[%s6 + $0x20] sm:$0xff]
    %v8337 = vld [vmem:[%s6 + $0x28] sm:$0xff]
    %v8338 = vld [vmem:[%s6 + $0x30] sm:$0xff]
    %v8339 = vld [vmem:[%s6 + $0x38] sm:$0xff]
    %v8340 = vld [vmem:[%s6 + $0x40] sm:$0xff]
    %v8341 = vld [vmem:[%s6 + $0x48] sm:$0xff]
    %v8342 = vld [vmem:[%s6 + $0x50] sm:$0xff]
    %v8343 = vld [vmem:[%s6 + $0x58] sm:$0xff]
    %v8344 = vld [vmem:[%s6 + $0x60] sm:$0xff]
    %v8345 = vld [vmem:[%s6 + $0x68] sm:$0xff]
    %v8346 = vld [vmem:[%s6 + $0x70] sm:$0xff]
    %v8347 = vld [vmem:[%s6 + $0x78] sm:$0xff]
    %v8348 = vld [vmem:[%s6 + $0x80] sm:$0xff]
    %v8349 = vld [vmem:[%s6 + $0x88] sm:$0xff]
    %v8350 = vld [vmem:[%s6 + $0x90] sm:$0xff]
    %v8351 = vld [vmem:[%s6 + $0x98] sm:$0xff]
    %v8352 = vld [vmem:[%s6 + $0xa0] sm:$0xff]
    %v8353 = vld [vmem:[%s6 + $0xa8] sm:$0xff]
    %v8354 = vld [vmem:[%s6 + $0xb0] sm:$0xff]
    %v8355 = vld [vmem:[%s6 + $0xb8] sm:$0xff]
    %v8356 = vld [vmem:[%s6 + $0xc0] sm:$0x3]
    %v8357 = vld [vmem:[%s6 + $0xc8] sm:$0x3]
    %v8358 = vld [vmem:[%s6 + $0xd0] sm:$0x3]
    %v8359 = vld [vmem:[%s6 + $0xd8] sm:$0x3]
    %v8360 = vmul.f32 %v8184, %v8332
    %v8361 = vmul.f32 %v8186, %v8333
    %v8362 = vmul.f32 %v8291, %v8334
    %v8363 = vmul.f32 %v8293, %v8335
    %v8364 = vmul.f32 %v8190, %v8336
    %v8365 = vmul.f32 %v8192, %v8337
    %v8366 = vmul.f32 %v8297, %v8338
    %v8367 = vmul.f32 %v8299, %v8339
    %v8368 = vmul.f32 %v8196, %v8340
    %v8369 = vmul.f32 %v8198, %v8341
    %v8370 = vmul.f32 %v8303, %v8342
    %v8371 = vmul.f32 %v8305, %v8343
    %v8372 = vmul.f32 %v8202, %v8344
    %v8373 = vmul.f32 %v8204, %v8345
    %v8374 = vmul.f32 %v8309, %v8346
    %v8375 = vmul.f32 %v8311, %v8347
    %v8376 = vmul.f32 %v8208, %v8348
    %v8377 = vmul.f32 %v8210, %v8349
    %v8378 = vmul.f32 %v8315, %v8350
    %v8379 = vmul.f32 %v8317, %v8351
    %v8380 = vmul.f32 %v8214, %v8352
    %v8381 = vmul.f32 %v8216, %v8353
    %v8382 = vmul.f32 %v8321, %v8354
    %v8383 = vmul.f32 %v8323, %v8355
    %v8384 = vmul.f32 %v8220, %v8356
    %v8385 = vmul.f32 %v8222, %v8357
    %v8386 = vmul.f32 %v8327, %v8358
    %v8387 = vmul.f32 %v8329, %v8359
    %vm8388 = vcmask 408576
    %v8390 = vsel %vm8388, %v8331, 0
    %vm8392 = vcmask 1041408
    %v8394 = vsel %vm8392, %v8384, 0
    %v8397 = vsel %vm8392, %v8385, 0
    %v8400 = vsel %vm8392, %v8386, 0
    %v8403 = vsel %vm8392, %v8387, 0
    %8405 = vmatprep.subr.mxu0 %v8361
    %8406 = vmatpush1.msra.mxu0 %v8360
    %8407 = vmatprep.subr.mxu0 %v8365
    %8408 = vmatpush1.msra.mxu0 %v8364
    %8409 = vmatprep.subr.mxu0 %v8369
    %8410 = vmatpush1.msra.mxu0 %v8368
    %8411 = vmatprep.subr.mxu0 %v8373
    %8412 = vmatpush1.msra.mxu0 %v8372
    %8413 = vmatprep.subr.mxu0 %v8377
    %8414 = vmatpush1.msra.mxu0 %v8376
    %8415 = vmatprep.subr.mxu0 %v8381
    %8416 = vmatpush1.msra.mxu0 %v8380
    %8417 = vmatprep.subr.mxu0 %v8397
    %8418 = vmatpush1.msra.mxu0 %v8394
    %8419 = vmatprep.subr.mxu0 0.0
    %8420 = vmatpush1.msra.mxu0 0.0
    %8421 = vmatprep.subr.mxu0 0.0
    %8422 = vmatpush1.msra.mxu0 0.0
    %8423 = vmatprep.subr.mxu0 0.0
    %8424 = vmatpush1.msra.mxu0 0.0
    %8425 = vmatprep.subr.mxu0 0.0
    %8426 = vmatpush1.msra.mxu0 0.0
    %8427 = vmatprep.subr.mxu0 0.0
    %8428 = vmatpush1.msra.mxu0 0.0
    %8429 = vmatprep.subr.mxu0 0.0
    %8430 = vmatpush1.msra.mxu0 0.0
    %8431 = vmatprep.subr.mxu0 0.0
    %8432 = vmatpush1.msra.mxu0 0.0
    %8433 = vmatprep.subr.mxu0 0.0
    %8434 = vmatpush1.msra.mxu0 0.0
    %8435 = vmatprep.subr.mxu0 0.0
    %8436 = vmatpush1.msra.mxu0 0.0
    %8437 = vmatprep.subr.mxu0 0.0
    %8438 = vmatpush1.msra.mxu0 0.0
    %8439 = vmatprep.subr.mxu0 0.0
    %8440 = vmatpush1.msra.mxu0 0.0
    %8441 = vmatprep.subr.mxu0 0.0
    %8442 = vmatpush1.msra.mxu0 0.0
    %8443 = vmatprep.subr.mxu0 0.0
    %8444 = vmatpush1.msra.mxu0 0.0
    %8445 = vmatprep.subr.mxu0 0.0
    %8446 = vmatpush1.msra.mxu0 0.0
    %8447 = vmatprep.subr.mxu0 0.0
    %8448 = vmatpush1.msra.mxu0 0.0
    %8449 = vmatprep.subr.mxu0 0.0
    %8450 = vmatpush1.msra.mxu0 0.0
    %8451 = vmatprep.subr.mxu0 0.0
    %8452 = vmatpush1.msra.mxu0 0.0
    %8453 = vmatprep.subr.mxu0 0.0
    %8454 = vmatpush1.msra.mxu0 0.0
    %8455 = vmatprep.subr.mxu0 0.0
    %8456 = vmatpush1.msra.mxu0 0.0
    %8457 = vmatprep.subr.mxu0 0.0
    %8458 = vmatpush1.msra.mxu0 0.0
    %8459 = vmatprep.subr.mxu0 0.0
    %8460 = vmatpush1.msra.mxu0 0.0
    %8461 = vmatprep.subr.mxu0 0.0
    %8462 = vmatpush1.msra.mxu0 0.0
    %8463 = vmatprep.subr.mxu0 0.0
    %8464 = vmatpush1.msra.mxu0 0.0
    %8465 = vmatprep.subr.mxu0 0.0
    %8466 = vmatpush1.msra.mxu0 0.0
    %8467 = vmatprep.subr.mxu0 0.0
    %8468 = vmatpush1.msra.mxu0 0.0
    %8469 = vmatprep.mubr.f32.mxu0 0.0
    %8470 = vmatmul.mubr.f32.gmra.mrb[0].mxu0 %v8390
    %v8471 = vpop.f32.mrb[0].mxu0
    %v8472 = vadd.f32 0.0, %v8471
    %v8473 = vpop.f32.mrb[0].mxu0
    %v8474 = vadd.f32 0.0, %v8473
    %8475 = vdwg.mxu0
    %8476 = vmatprep.subr.mxu0 %v8363
    %8477 = vmatpush1.msra.mxu0 %v8362
    %8478 = vmatprep.subr.mxu0 %v8367
    %8479 = vmatpush1.msra.mxu0 %v8366
    %8480 = vmatprep.subr.mxu0 %v8371
    %8481 = vmatpush1.msra.mxu0 %v8370
    %8482 = vmatprep.subr.mxu0 %v8375
    %8483 = vmatpush1.msra.mxu0 %v8374
    %8484 = vmatprep.subr.mxu0 %v8379
    %8485 = vmatpush1.msra.mxu0 %v8378
    %8486 = vmatprep.subr.mxu0 %v8383
    %8487 = vmatpush1.msra.mxu0 %v8382
    %8488 = vmatprep.subr.mxu0 %v8403
    %8489 = vmatpush1.msra.mxu0 %v8400
    %8490 = vmatprep.subr.mxu0 0.0
    %8491 = vmatpush1.msra.mxu0 0.0
    %8492 = vmatprep.subr.mxu0 0.0
    %8493 = vmatpush1.msra.mxu0 0.0
    %8494 = vmatprep.subr.mxu0 0.0
    %8495 = vmatpush1.msra.mxu0 0.0
    %8496 = vmatprep.subr.mxu0 0.0
    %8497 = vmatpush1.msra.mxu0 0.0
    %8498 = vmatprep.subr.mxu0 0.0
    %8499 = vmatpush1.msra.mxu0 0.0
    %8500 = vmatprep.subr.mxu0 0.0
    %8501 = vmatpush1.msra.mxu0 0.0
    %8502 = vmatprep.subr.mxu0 0.0
    %8503 = vmatpush1.msra.mxu0 0.0
    %8504 = vmatprep.subr.mxu0 0.0
    %8505 = vmatpush1.msra.mxu0 0.0
    %8506 = vmatprep.subr.mxu0 0.0
    %8507 = vmatpush1.msra.mxu0 0.0
    %8508 = vmatprep.subr.mxu0 0.0
    %8509 = vmatpush1.msra.mxu0 0.0
    %8510 = vmatprep.subr.mxu0 0.0
    %8511 = vmatpush1.msra.mxu0 0.0
    %8512 = vmatprep.subr.mxu0 0.0
    %8513 = vmatpush1.msra.mxu0 0.0
    %8514 = vmatprep.subr.mxu0 0.0
    %8515 = vmatpush1.msra.mxu0 0.0
    %8516 = vmatprep.subr.mxu0 0.0
    %8517 = vmatpush1.msra.mxu0 0.0
    %8518 = vmatprep.subr.mxu0 0.0
    %8519 = vmatpush1.msra.mxu0 0.0
    %8520 = vmatprep.subr.mxu0 0.0
    %8521 = vmatpush1.msra.mxu0 0.0
    %8522 = vmatprep.subr.mxu0 0.0
    %8523 = vmatpush1.msra.mxu0 0.0
    %8524 = vmatprep.subr.mxu0 0.0
    %8525 = vmatpush1.msra.mxu0 0.0
    %8526 = vmatprep.subr.mxu0 0.0
    %8527 = vmatpush1.msra.mxu0 0.0
    %8528 = vmatprep.subr.mxu0 0.0
    %8529 = vmatpush1.msra.mxu0 0.0
    %8530 = vmatprep.subr.mxu0 0.0
    %8531 = vmatpush1.msra.mxu0 0.0
    %8532 = vmatprep.subr.mxu0 0.0
    %8533 = vmatpush1.msra.mxu0 0.0
    %8534 = vmatprep.subr.mxu0 0.0
    %8535 = vmatpush1.msra.mxu0 0.0
    %8536 = vmatprep.subr.mxu0 0.0
    %8537 = vmatpush1.msra.mxu0 0.0
    %8538 = vmatprep.subr.mxu0 0.0
    %8539 = vmatpush1.msra.mxu0 0.0
    %8540 = vmatprep.mubr.f32.mxu0 0.0
    %8541 = vmatmul.mubr.f32.gmra.mrb[0].mxu0 %v8390
    %v8542 = vpop.f32.mrb[0].mxu0
    %v8543 = vadd.f32 0.0, %v8542
    %v8544 = vpop.f32.mrb[0].mxu0
    %v8545 = vadd.f32 0.0, %v8544
    %8546 = vdwg.mxu0
    %v8547 = vld [vmem:[%s9] sm:$0xff]
    %v8548 = vld [vmem:[%s9 + $0x8] sm:$0xff]
    %v8549 = vld [vmem:[%s9 + $0x10] sm:$0xff]
    %v8550 = vld [vmem:[%s9 + $0x18] sm:$0xff]
    %v8551 = vld [vmem:[%s9 + $0x20] sm:$0xff]
    %v8552 = vld [vmem:[%s9 + $0x28] sm:$0xff]
    %v8553 = vld [vmem:[%s9 + $0x30] sm:$0xff]
    %v8554 = vld [vmem:[%s9 + $0x38] sm:$0xff]
    %v8555 = vld [vmem:[%s9 + $0x40] sm:$0xff]
    %v8556 = vld [vmem:[%s9 + $0x48] sm:$0xff]
    %v8557 = vld [vmem:[%s9 + $0x50] sm:$0xff]
    %v8558 = vld [vmem:[%s9 + $0x58] sm:$0xff]
    %v8559 = vld [vmem:[%s9 + $0x60] sm:$0xff]
    %v8560 = vld [vmem:[%s9 + $0x68] sm:$0xff]
    %v8561 = vld [vmem:[%s9 + $0x70] sm:$0xff]
    %v8562 = vld [vmem:[%s9 + $0x78] sm:$0xff]
    %v8563 = vld [vmem:[%s9 + $0x80] sm:$0xff]
    %v8564 = vld [vmem:[%s9 + $0x88] sm:$0xff]
    %v8565 = vld [vmem:[%s9 + $0x90] sm:$0xff]
    %v8566 = vld [vmem:[%s9 + $0x98] sm:$0xff]
    %v8567 = vld [vmem:[%s9 + $0xa0] sm:$0xff]
    %v8568 = vld [vmem:[%s9 + $0xa8] sm:$0xff]
    %v8569 = vld [vmem:[%s9 + $0xb0] sm:$0xff]
    %v8570 = vld [vmem:[%s9 + $0xb8] sm:$0xff]
    %v8571 = vld [vmem:[%s9 + $0xc0] sm:$0xff]
    %v8572 = vld [vmem:[%s9 + $0xc8] sm:$0xff]
    %v8573 = vld [vmem:[%s9 + $0xd0] sm:$0xff]
    %v8574 = vld [vmem:[%s9 + $0xd8] sm:$0xff]
    %v8575 = vld [vmem:[%s9 + $0xe0] sm:$0xff]
    %v8576 = vld [vmem:[%s9 + $0xe8] sm:$0xff]
    %v8577 = vld [vmem:[%s9 + $0xf0] sm:$0xff]
    %v8578 = vld [vmem:[%s9 + $0xf8] sm:$0xff]
    %v8579 = vld [vmem:[%s9 + $0x100] sm:$0xff]
    %v8580 = vld [vmem:[%s9 + $0x108] sm:$0xff]
    %v8581 = vld [vmem:[%s9 + $0x110] sm:$0xff]
    %v8582 = vld [vmem:[%s9 + $0x118] sm:$0xff]
    %v8583 = vld [vmem:[%s9 + $0x120] sm:$0xff]
    %v8584 = vld [vmem:[%s9 + $0x128] sm:$0xff]
    %v8585 = vld [vmem:[%s9 + $0x130] sm:$0xff]
    %v8586 = vld [vmem:[%s9 + $0x138] sm:$0xff]
    %v8587 = vld [vmem:[%s9 + $0x140] sm:$0xff]
    %v8588 = vld [vmem:[%s9 + $0x148] sm:$0xff]
    %v8589 = vld [vmem:[%s9 + $0x150] sm:$0xff]
    %v8590 = vld [vmem:[%s9 + $0x158] sm:$0xff]
    %v8591 = vld [vmem:[%s9 + $0x160] sm:$0xff]
    %v8592 = vld [vmem:[%s9 + $0x168] sm:$0xff]
    %v8593 = vld [vmem:[%s9 + $0x170] sm:$0xff]
    %v8594 = vld [vmem:[%s9 + $0x178] sm:$0xff]
    %v8595 = vld [vmem:[%s9 + $0x180] sm:$0xff]
    %v8596 = vld [vmem:[%s9 + $0x188] sm:$0xff]
    %v8597 = vld [vmem:[%s9 + $0x190] sm:$0xff]
    %v8598 = vld [vmem:[%s9 + $0x198] sm:$0xff]
    %v8599 = vld [vmem:[%s9 + $0x1a0] sm:$0xff]
    %v8600 = vld [vmem:[%s9 + $0x1a8] sm:$0xff]
    %v8601 = vld [vmem:[%s9 + $0x1b0] sm:$0xff]
    %v8602 = vld [vmem:[%s9 + $0x1b8] sm:$0xff]
    %v8603 = vld [vmem:[%s9 + $0x1c0] sm:$0xff]
    %v8604 = vld [vmem:[%s9 + $0x1c8] sm:$0xff]
    %v8605 = vld [vmem:[%s9 + $0x1d0] sm:$0xff]
    %v8606 = vld [vmem:[%s9 + $0x1d8] sm:$0xff]
    %v8607 = vld [vmem:[%s9 + $0x1e0] sm:$0xff]
    %v8608 = vld [vmem:[%s9 + $0x1e8] sm:$0xff]
    %v8609 = vld [vmem:[%s9 + $0x1f0] sm:$0xff]
    %v8610 = vld [vmem:[%s9 + $0x1f8] sm:$0xff]
    %v8611 = vld [vmem:[%s10] sm:$0x1]
    %v8613 = vlaneseq
    %v8614 = vshrl.u32 %v8613, 7
    %v8615 = vsub.s32 0, %v8614
    %v8616 = vrot.slane %v8611, %v8615
    %8618 = vmatprep.subr.mxu0 0.0
    %8619 = vmatpush1.msra.mxu0 %v8547
    %8620 = vmatprep.subr.mxu0 0.0
    %8621 = vmatpush1.msra.mxu0 %v8548
    %8622 = vmatprep.subr.mxu0 0.0
    %8623 = vmatpush1.msra.mxu0 %v8549
    %8624 = vmatprep.subr.mxu0 0.0
    %8625 = vmatpush1.msra.mxu0 %v8550
    %8626 = vmatprep.subr.mxu0 0.0
    %8627 = vmatpush1.msra.mxu0 %v8551
    %8628 = vmatprep.subr.mxu0 0.0
    %8629 = vmatpush1.msra.mxu0 %v8552
    %8630 = vmatprep.subr.mxu0 0.0
    %8631 = vmatpush1.msra.mxu0 %v8553
    %8632 = vmatprep.subr.mxu0 0.0
    %8633 = vmatpush1.msra.mxu0 %v8554
    %8634 = vmatprep.subr.mxu0 0.0
    %8635 = vmatpush1.msra.mxu0 %v8555
    %8636 = vmatprep.subr.mxu0 0.0
    %8637 = vmatpush1.msra.mxu0 %v8556
    %8638 = vmatprep.subr.mxu0 0.0
    %8639 = vmatpush1.msra.mxu0 %v8557
    %8640 = vmatprep.subr.mxu0 0.0
    %8641 = vmatpush1.msra.mxu0 %v8558
    %8642 = vmatprep.subr.mxu0 0.0
    %8643 = vmatpush1.msra.mxu0 %v8559
    %8644 = vmatprep.subr.mxu0 0.0
    %8645 = vmatpush1.msra.mxu0 %v8560
    %8646 = vmatprep.subr.mxu0 0.0
    %8647 = vmatpush1.msra.mxu0 %v8561
    %8648 = vmatprep.subr.mxu0 0.0
    %8649 = vmatpush1.msra.mxu0 %v8562
    %8650 = vmatprep.subr.mxu0 0.0
    %8651 = vmatpush1.msra.mxu0 %v8563
    %8652 = vmatprep.subr.mxu0 0.0
    %8653 = vmatpush1.msra.mxu0 %v8564
    %8654 = vmatprep.subr.mxu0 0.0
    %8655 = vmatpush1.msra.mxu0 %v8565
    %8656 = vmatprep.subr.mxu0 0.0
    %8657 = vmatpush1.msra.mxu0 %v8566
    %8658 = vmatprep.subr.mxu0 0.0
    %8659 = vmatpush1.msra.mxu0 %v8567
    %8660 = vmatprep.subr.mxu0 0.0
    %8661 = vmatpush1.msra.mxu0 %v8568
    %8662 = vmatprep.subr.mxu0 0.0
    %8663 = vmatpush1.msra.mxu0 %v8569
    %8664 = vmatprep.subr.mxu0 0.0
    %8665 = vmatpush1.msra.mxu0 %v8570
    %8666 = vmatprep.subr.mxu0 0.0
    %8667 = vmatpush1.msra.mxu0 %v8571
    %8668 = vmatprep.subr.mxu0 0.0
    %8669 = vmatpush1.msra.mxu0 %v8572
    %8670 = vmatprep.subr.mxu0 0.0
    %8671 = vmatpush1.msra.mxu0 %v8573
    %8672 = vmatprep.subr.mxu0 0.0
    %8673 = vmatpush1.msra.mxu0 %v8574
    %8674 = vmatprep.subr.mxu0 0.0
    %8675 = vmatpush1.msra.mxu0 %v8575
    %8676 = vmatprep.subr.mxu0 0.0
    %8677 = vmatpush1.msra.mxu0 %v8576
    %8678 = vmatprep.subr.mxu0 0.0
    %8679 = vmatpush1.msra.mxu0 %v8577
    %8680 = vmatprep.subr.mxu0 0.0
    %8681 = vmatpush1.msra.mxu0 %v8578
    %8682 = vmatprep.mubr.f32.mxu0 %v8474
    %8683 = vmatmul.mubr.f32.gmra.mrb[0].mxu0 %v8472
    %v8684 = vpop.f32.mrb[0].mxu0
    %v8685 = vadd.f32 %v8616, %v8684
    %v8686 = vpop.f32.mrb[0].mxu0
    %8687 = vdwg.mxu0
    %8688 = vmatprep.subr.mxu0 0.0
    %8689 = vmatpush1.msra.mxu0 %v8579
    %8690 = vmatprep.subr.mxu0 0.0
    %8691 = vmatpush1.msra.mxu0 %v8580
    %8692 = vmatprep.subr.mxu0 0.0
    %8693 = vmatpush1.msra.mxu0 %v8581
    %8694 = vmatprep.subr.mxu0 0.0
    %8695 = vmatpush1.msra.mxu0 %v8582
    %8696 = vmatprep.subr.mxu0 0.0
    %8697 = vmatpush1.msra.mxu0 %v8583
    %8698 = vmatprep.subr.mxu0 0.0
    %8699 = vmatpush1.msra.mxu0 %v8584
    %8700 = vmatprep.subr.mxu0 0.0
    %8701 = vmatpush1.msra.mxu0 %v8585
    %8702 = vmatprep.subr.mxu0 0.0
    %8703 = vmatpush1.msra.mxu0 %v8586
    %8704 = vmatprep.subr.mxu0 0.0
    %8705 = vmatpush1.msra.mxu0 %v8587
    %8706 = vmatprep.subr.mxu0 0.0
    %8707 = vmatpush1.msra.mxu0 %v8588
    %8708 = vmatprep.subr.mxu0 0.0
    %8709 = vmatpush1.msra.mxu0 %v8589
    %8710 = vmatprep.subr.mxu0 0.0
    %8711 = vmatpush1.msra.mxu0 %v8590
    %8712 = vmatprep.subr.mxu0 0.0
    %8713 = vmatpush1.msra.mxu0 %v8591
    %8714 = vmatprep.subr.mxu0 0.0
    %8715 = vmatpush1.msra.mxu0 %v8592
    %8716 = vmatprep.subr.mxu0 0.0
    %8717 = vmatpush1.msra.mxu0 %v8593
    %8718 = vmatprep.subr.mxu0 0.0
    %8719 = vmatpush1.msra.mxu0 %v8594
    %8720 = vmatprep.subr.mxu0 0.0
    %8721 = vmatpush1.msra.mxu0 %v8595
    %8722 = vmatprep.subr.mxu0 0.0
    %8723 = vmatpush1.msra.mxu0 %v8596
    %8724 = vmatprep.subr.mxu0 0.0
    %8725 = vmatpush1.msra.mxu0 %v8597
    %8726 = vmatprep.subr.mxu0 0.0
    %8727 = vmatpush1.msra.mxu0 %v8598
    %8728 = vmatprep.subr.mxu0 0.0
    %8729 = vmatpush1.msra.mxu0 %v8599
    %8730 = vmatprep.subr.mxu0 0.0
    %8731 = vmatpush1.msra.mxu0 %v8600
    %8732 = vmatprep.subr.mxu0 0.0
    %8733 = vmatpush1.msra.mxu0 %v8601
    %8734 = vmatprep.subr.mxu0 0.0
    %8735 = vmatpush1.msra.mxu0 %v8602
    %8736 = vmatprep.subr.mxu0 0.0
    %8737 = vmatpush1.msra.mxu0 %v8603
    %8738 = vmatprep.subr.mxu0 0.0
    %8739 = vmatpush1.msra.mxu0 %v8604
    %8740 = vmatprep.subr.mxu0 0.0
    %8741 = vmatpush1.msra.mxu0 %v8605
    %8742 = vmatprep.subr.mxu0 0.0
    %8743 = vmatpush1.msra.mxu0 %v8606
    %8744 = vmatprep.subr.mxu0 0.0
    %8745 = vmatpush1.msra.mxu0 %v8607
    %8746 = vmatprep.subr.mxu0 0.0
    %8747 = vmatpush1.msra.mxu0 %v8608
    %8748 = vmatprep.subr.mxu0 0.0
    %8749 = vmatpush1.msra.mxu0 %v8609
    %8750 = vmatprep.subr.mxu0 0.0
    %8751 = vmatpush1.msra.mxu0 %v8610
    %8752 = vmatprep.mubr.f32.mxu0 %v8545
    %8753 = vmatmul.mubr.f32.gmra.mrb[0].mxu0 %v8543
    %v8754 = vpop.f32.mrb[0].mxu0
    %v8755 = vadd.f32 %v8685, %v8754
    %v8756 = vpop.f32.mrb[0].mxu0
    %8757 = vdwg.mxu0
    %v8758 = vmax.f32 %v8755, 0.0
    %v8759 = vld [vmem:[%s11] sm:$0xff]
    %v8760 = vld [vmem:[%s11 + $0x8] sm:$0xff]
    %v8761 = vld [vmem:[%s11 + $0x10] sm:$0xff]
    %v8762 = vld [vmem:[%s11 + $0x18] sm:$0xff]
    %v8763 = vld [vmem:[%s12] sm:$0x1]
    %v8765 = vlaneseq
    %v8766 = vshrl.u32 %v8765, 7
    %v8767 = vsub.s32 0, %v8766
    %v8768 = vrot.slane %v8763, %v8767
    %vm8770 = vcmask 261120
    %v8772 = vsel %vm8770, %v8758, 0
    %8774 = vmatprep.subr.mxu0 0.0
    %8775 = vmatpush1.msra.mxu0 %v8759
    %8776 = vmatprep.subr.mxu0 0.0
    %8777 = vmatpush1.msra.mxu0 %v8760
    %8778 = vmatprep.subr.mxu0 0.0
    %8779 = vmatpush1.msra.mxu0 %v8761
    %8780 = vmatprep.subr.mxu0 0.0
    %8781 = vmatpush1.msra.mxu0 %v8762
    %8782 = vmatprep.subr.mxu0 0.0
    %8783 = vmatpush1.msra.mxu0 0.0
    %8784 = vmatprep.subr.mxu0 0.0
    %8785 = vmatpush1.msra.mxu0 0.0
    %8786 = vmatprep.subr.mxu0 0.0
    %8787 = vmatpush1.msra.mxu0 0.0
    %8788 = vmatprep.subr.mxu0 0.0
    %8789 = vmatpush1.msra.mxu0 0.0
    %8790 = vmatprep.subr.mxu0 0.0
    %8791 = vmatpush1.msra.mxu0 0.0
    %8792 = vmatprep.subr.mxu0 0.0
    %8793 = vmatpush1.msra.mxu0 0.0
    %8794 = vmatprep.subr.mxu0 0.0
    %8795 = vmatpush1.msra.mxu0 0.0
    %8796 = vmatprep.subr.mxu0 0.0
    %8797 = vmatpush1.msra.mxu0 0.0
    %8798 = vmatprep.subr.mxu0 0.0
    %8799 = vmatpush1.msra.mxu0 0.0
    %8800 = vmatprep.subr.mxu0 0.0
    %8801 = vmatpush1.msra.mxu0 0.0
    %8802 = vmatprep.subr.mxu0 0.0
    %8803 = vmatpush1.msra.mxu0 0.0
    %8804 = vmatprep.subr.mxu0 0.0
    %8805 = vmatpush1.msra.mxu0 0.0
    %8806 = vmatprep.subr.mxu0 0.0
    %8807 = vmatpush1.msra.mxu0 0.0
    %8808 = vmatprep.subr.mxu0 0.0
    %8809 = vmatpush1.msra.mxu0 0.0
    %8810 = vmatprep.subr.mxu0 0.0
    %8811 = vmatpush1.msra.mxu0 0.0
    %8812 = vmatprep.subr.mxu0 0.0
    %8813 = vmatpush1.msra.mxu0 0.0
    %8814 = vmatprep.subr.mxu0 0.0
    %8815 = vmatpush1.msra.mxu0 0.0
    %8816 = vmatprep.subr.mxu0 0.0
    %8817 = vmatpush1.msra.mxu0 0.0
    %8818 = vmatprep.subr.mxu0 0.0
    %8819 = vmatpush1.msra.mxu0 0.0
    %8820 = vmatprep.subr.mxu0 0.0
    %8821 = vmatpush1.msra.mxu0 0.0
    %8822 = vmatprep.subr.mxu0 0.0
    %8823 = vmatpush1.msra.mxu0 0.0
    %8824 = vmatprep.subr.mxu0 0.0
    %8825 = vmatpush1.msra.mxu0 0.0
    %8826 = vmatprep.subr.mxu0 0.0
    %8827 = vmatpush1.msra.mxu0 0.0
    %8828 = vmatprep.subr.mxu0 0.0
    %8829 = vmatpush1.msra.mxu0 0.0
    %8830 = vmatprep.subr.mxu0 0.0
    %8831 = vmatpush1.msra.mxu0 0.0
    %8832 = vmatprep.subr.mxu0 0.0
    %8833 = vmatpush1.msra.mxu0 0.0
    %8834 = vmatprep.subr.mxu0 0.0
    %8835 = vmatpush1.msra.mxu0 0.0
    %8836 = vmatprep.subr.mxu0 0.0
    %8837 = vmatpush1.msra.mxu0 0.0
    %8838 = vmatprep.mubr.f32.mxu0 0.0
    %8839 = vmatmul.mubr.f32.gmra.mrb[0].mxu0 %v8772
    %v8840 = vpop.f32.mrb[0].mxu0
    %v8841 = vadd.f32 %v8768, %v8840
    %v8842 = vpop.f32.mrb[0].mxu0
    %8843 = vdwg.mxu0
    %vm8844 = vcmask 74752
    %8845 = vst.msk [vmem:[#allocation5] sm:$0x3] %vm8844, %v8841
    // Predicated region
    $region54: #{forward.1} parent=1 // pred_check
      _
    $region55: #{forward.1} parent=1 // pred_check_branch
      %8847 = sbr.rel (0) target = $region57
    $region56: #{forward.1} parent=1 // pred_region
      %s8849 = ssub.s32 32, 32
      %8850 = vsyncadd [#allocation6], %s8849
      %s8852 = sshll.u32 [#allocation5], 4
      %s8853 = int_to_ptr.vmem [resolvable:$true] %s8852
      %8855 = dma.vmem_to_hbm [thread:$0]  %s8853, 32, %s13, [#allocation6]
    $region57: #{forward.1} parent=1 // pred_fallthru
      _
    // Predicated region
    $region58: #{forward.1} parent=1 // pred_check
      _
    $region59: #{forward.1} parent=1 // pred_check_branch
      %8857 = sbr.rel (0) target = $region61
    $region60: #{forward.1} parent=1 // pred_region
      %8858 = dma.done [#allocation6], 32
    $region61: #{forward.1} parent=1 // pred_fallthru
      _
    %8859 = vsyncpa [#allocation6], 1

</llo_original>
